<compile_context>
chip_gen: v7x
topology: tpu7x:2x2x1
jax: 0.10.0
libtpu: 0.0.40
codegen_flags: <defaults>
</compile_context>

<pallas_src>
import math

import jax
import jax.numpy as jnp
from jax.experimental import pallas as pl
from jax.experimental.pallas import tpu as pltpu


def cnn_encoder_kernel(x_ref, w1_ref, b1_ref, w2_ref, b2_ref, w3_ref, b3_ref,
                       w4_ref, b4_ref, wf_ref, be_ref, out_ref, scr):
    """One block of B samples.

    x_ref : (Cin, B*L)    channels on sublanes, lane index = sample*L + position
    wN    : (K, Cout, Cin) per-tap conv weights;  bN: (Cout, 1)
    wf    : (32*Lf, E)     embed weight, row index = pooled_pos*32 + channel;  be: (1, E)
    out   : (B, E)
    scr   : (B*L, 32*Lf)  f32 VMEM scratch for the single end-of-network transpose.
    """
    B, E = out_ref.shape
    Cin, R = x_ref.shape
    L = R // B
    Lf = L // 16
    cdt = wf_ref.dtype                       # compute dtype for MXU operands (f32 or bf16)

    # position of each lane inside its sample (0..L-1); computed once, reused by every mask
    pos = jax.lax.broadcasted_iota(jnp.int32, (1, R), 1) % L

    def shift(a, d):
        # a[:, j] -> a[:, j + d]; static d; wrap-around values are masked or never read.
        # Static-shift jnp.roll lowers to the XLU lane-rotate path (same as pltpu.roll).
        return jnp.roll(a, -d, axis=1) if d else a

    def conv_relu(h, w_ref, b_ref, s):
        # 'same' Conv1d + bias + ReLU on a lane-sparse sequence of stride s: valid data lives
        # at lanes whose in-sample position is a multiple of s; other lanes carry finite
        # garbage that only feeds other garbage lanes.  K accumulating per-tap dots (review).
        K, Cout, _ = w_ref.shape
        pad = K // 2
        acc = jnp.zeros((Cout, R), jnp.float32)
        for k in range(K):                                        # static unroll over taps
            d = (k - pad) * s
            if d == 0:
                tap = h
            else:
                valid = (pos < L - d) if d > 0 else (pos >= -d)   # 'same' zero padding
                tap = jnp.where(valid, shift(h, d), 0).astype(h.dtype)
            acc = acc + jnp.dot(w_ref[k], tap, preferred_element_type=jnp.float32)
        # TODO(synk): nn.Dropout(p=0.5) is treated as inference-mode identity here.
        return jnp.maximum(acc + b_ref[...], 0.0)

    def pool(y, s):
        # MaxPool1d(2,2): max of each valid lane with its neighbour s lanes to the right.
        # No compaction -- only every (2s)-th lane is meaningful from here on.
        return jnp.maximum(y, shift(y, s))

    h = x_ref[...].astype(cdt)                                    # (3, R), lane-dense
    h = pool(conv_relu(h, w1_ref, b1_ref, 1), 1).astype(cdt)      # C=4,  valid stride 2
    h = pool(conv_relu(h, w2_ref, b2_ref, 2), 2).astype(cdt)      # C=8,  valid stride 4
    h = pool(conv_relu(h, w3_ref, b3_ref, 4), 4).astype(cdt)      # C=16, valid stride 8
    p4 = pool(conv_relu(h, w4_ref, b4_ref, 8), 8)                 # C=32, valid stride 16 (f32)

    # ---- flatten + Linear(embed), fused -------------------------------------------------
    # Stack the Lf pooled positions on sublanes so that column b*L of q is exactly sample b's
    # flattened (pos-major, channel-minor) feature vector:
    #   q[lp*32 + c, j] = p4[c, j + 16*lp]
    q = jnp.concatenate([shift(p4, 16 * lp) for lp in range(Lf)], axis=0)   # (32*Lf, R)
    scr[...] = jnp.transpose(q, (1, 0))                                     # (R, 32*Lf)
    flat = scr[pl.ds(0, B, L), :].astype(cdt)                               # (B, 32*Lf)
    out = jnp.dot(flat, wf_ref[...], preferred_element_type=jnp.float32)    # (B, E)
    out_ref[...] = out + be_ref[...]


def _pick_block_b(N, L):
    """Largest sample block with: grid >= 2 when possible (keeps both v7x TCs busy), 8-aligned
    output sublanes, 128-divisible input lane extent, and <= ~256 samples (~32 MiB/step)."""
    cands = [d for d in range(1, N + 1)
             if N % d == 0 and (d * L) % 128 == 0 and (d % 8 == 0 or d == N) and d <= 256]
    pref = [d for d in cands if N // d >= 2]
    if pref:
        return max(pref)
    return max(cands) if cands else N


def cnn_encoder_forward(x_cf, seq_len, conv_params, wf, be_row, *,
                        block_b=None, compute_dtype=jnp.float32):
    """Fused CNNEncoder forward.

    x_cf       : (Cin, N*L) channels-major input, lane index = sample*L + position.
    seq_len    : L (multiple of 16).
    conv_params: [(w (K, Cout, Cin), b (Cout, 1)) x 4] in f32 (cast to compute_dtype here).
    wf         : (32*(L//16), E) embed weight, row index = pooled_pos*32 + channel.
    be_row     : (1, E) embed bias.
    compute_dtype: jnp.float32 for strict parity, jnp.bfloat16 for the v6e/v7x fast path.
    """
    Cin, NL = x_cf.shape
    L = seq_len
    assert NL % L == 0 and L % 16 == 0
    N = NL // L
    E = wf.shape[1]
    Lf = L // 16
    B = block_b if block_b is not None else _pick_block_b(N, L)
    assert N % B == 0 and (B * L) % 128 == 0

    cdt = jnp.dtype(compute_dtype)
    args = [x_cf]
    in_specs = [pl.BlockSpec((Cin, B * L), lambda i: (0, i))]
    for w, b in conv_params:
        args += [w.astype(cdt), b.astype(jnp.float32)]
        in_specs += [pl.BlockSpec(w.shape, lambda i: (0, 0, 0)),     # VMEM-resident weights
                     pl.BlockSpec(b.shape, lambda i: (0, 0))]
    args += [wf.astype(cdt), be_row.astype(jnp.float32)]
    in_specs += [pl.BlockSpec(wf.shape, lambda i: (0, 0)),
                 pl.BlockSpec(be_row.shape, lambda i: (0, 0))]

    return pl.pallas_call(
        cnn_encoder_kernel,
        out_shape=jax.ShapeDtypeStruct((N, E), jnp.float32),
        grid=(N // B,),
        in_specs=in_specs,
        out_specs=pl.BlockSpec((B, E), lambda i: (i, 0)),
        scratch_shapes=[pltpu.VMEM((B * L, 32 * Lf), jnp.float32)],
        compiler_params=pltpu.CompilerParams(
            dimension_semantics=("parallel",),
            vmem_limit_bytes=32 * 1024 * 1024),
    )(*args)


# ---- pure-JAX reference (used only for the correctness check) ----
def reference_forward(x, conv_params_raw, we, be):
    h = x
    for w, b in conv_params_raw:                  # w: (Cout, Cin, K) torch layout
        pad = w.shape[2] // 2
        h = jax.lax.conv_general_dilated(
            h, w, window_strides=(1,), padding=[(pad, pad)],
            dimension_numbers=("NCH", "OIH", "NCH"),
            precision=jax.lax.Precision.HIGHEST) + b[None, :, None]
        h = jnp.maximum(h, 0.0)
        Nn, C, Ln = h.shape
        h = h.reshape(Nn, C, Ln // 2, 2).max(axis=-1)
    flat = h.reshape(h.shape[0], -1)
    return jnp.dot(flat, we.T, precision=jax.lax.Precision.HIGHEST) + be[None, :]


if __name__ == "__main__":
    kernel_size = 9                   # params['kernel_size'] -> conv kernels 9, 7, 5, 3
    embed_size = 32                   # params['embed_size']
    # TODO(synk): the original module hardcodes data_size=1000, but a length-1000 input pools
    # to 62 (not 1000//16+1=63), making its .view() inconsistent; we use L=64 so the pooled
    # length (L//16 = 4) matches the Linear's expected 32*(L//16) input features.
    N, Cin, L = 16, 3, 64
    Lf = L // 16
    flat_dim = 32 * Lf

    key = jax.random.PRNGKey(0)
    k_x, k1, k2, k3, k4, k_e = jax.random.split(key, 6)

    def init_conv(k, cout, cin, ksz):
        kw, kb = jax.random.split(k)
        scale = 1.0 / math.sqrt(cin * ksz)
        w = jax.random.normal(kw, (cout, cin, ksz), jnp.float32) * scale
        b = jax.random.normal(kb, (cout,), jnp.float32) * scale
        return w, b

    convs_raw = [
        init_conv(k1, 4, 3, kernel_size),
        init_conv(k2, 8, 4, kernel_size - 2),
        init_conv(k3, 16, 8, kernel_size - 4),
        init_conv(k4, 32, 16, kernel_size - 6),
    ]
    # kernel-friendly layouts: per-tap weight stacks (K, Cout, Cin); biases as (Cout, 1) cols
    convs_kern = [(jnp.transpose(w, (2, 0, 1)), b[:, None]) for w, b in convs_raw]

    kw_e, kb_e = jax.random.split(k_e)
    we = jax.random.normal(kw_e, (embed_size, flat_dim), jnp.float32) / math.sqrt(flat_dim)
    be = jax.random.normal(kb_e, (embed_size,), jnp.float32) * 0.01
    # embed weight re-indexed to the kernel's (pooled_pos, channel) feature order:
    # wf[lp*32 + c, e] = we[e, c*Lf + lp]
    wf = jnp.transpose(we.reshape(embed_size, 32, Lf), (2, 1, 0)).reshape(flat_dim, embed_size)
    be_row = be[None, :]

    x = jax.random.normal(k_x, (N, Cin, L), jnp.float32)          # PyTorch NCL layout
    # one-time relayout to the kernel's channels-major layout (a real producer would emit
    # this layout directly; it replaces the per-call transpose the previous version needed)
    x_cf = jnp.transpose(x, (1, 0, 2)).reshape(Cin, N * L)

    ref = reference_forward(x, convs_raw, we, be)

    # strict-parity run (f32 MXU operands)
    out_f32 = cnn_encoder_forward(x_cf, L, convs_kern, wf, be_row,
                                  compute_dtype=jnp.float32)
    out_f32 = jax.block_until_ready(out_f32)
    assert out_f32.shape == (N, embed_size)
    err32 = float(jnp.max(jnp.abs(out_f32 - ref)))
    assert jnp.allclose(out_f32, ref, atol=2e-3, rtol=2e-3), f"f32 mismatch: max abs err {err32}"

    # bf16-operand fast path (v6e/v7x recommendation; f32 accumulation) -- loose tolerance
    out_bf16 = cnn_encoder_forward(x_cf, L, convs_kern, wf, be_row,
                                   compute_dtype=jnp.bfloat16)
    out_bf16 = jax.block_until_ready(out_bf16)
    err16 = float(jnp.max(jnp.abs(out_bf16 - ref)))
    assert jnp.allclose(out_bf16, ref, atol=1e-1, rtol=1e-1), f"bf16 mismatch: max abs err {err16}"

    print("KERNEL_OK")
</pallas_src>

<mosaic_0001>
module attributes {stable_mosaic.version = 11 : i64} {
  func.func @cnn_encoder_kernel(%arg0: i32, %arg1: memref<3x512xf32, #tpu.memory_space<vmem>>, %arg2: memref<9x4x3xf32, #tpu.memory_space<vmem>>, %arg3: memref<4x1xf32, #tpu.memory_space<vmem>>, %arg4: memref<7x8x4xf32, #tpu.memory_space<vmem>>, %arg5: memref<8x1xf32, #tpu.memory_space<vmem>>, %arg6: memref<5x16x8xf32, #tpu.memory_space<vmem>>, %arg7: memref<16x1xf32, #tpu.memory_space<vmem>>, %arg8: memref<3x32x16xf32, #tpu.memory_space<vmem>>, %arg9: memref<32x1xf32, #tpu.memory_space<vmem>>, %arg10: memref<128x32xf32, #tpu.memory_space<vmem>>, %arg11: memref<1x32xf32, #tpu.memory_space<vmem>>, %arg12: memref<8x32xf32, #tpu.memory_space<vmem>>, %arg13: memref<512x128xf32, #tpu.memory_space<vmem>>) attributes {dimension_semantics = [#tpu.dimension_semantics<parallel>], iteration_bounds = array<i64: 2>, scalar_prefetch = 0 : i64, scratch_operands = 1 : i64, tpu.core_type = #tpu.core_type<tc>, window_params = [{transform_indices = @transform_0, window_bounds = array<i64: 3, 512>}, {pipeline_mode = #tpu.pipeline_mode<synchronous>, transform_indices = @transform_1, window_bounds = array<i64: 9, 4, 3>}, {pipeline_mode = #tpu.pipeline_mode<synchronous>, transform_indices = @transform_2, window_bounds = array<i64: 4, 1>}, {pipeline_mode = #tpu.pipeline_mode<synchronous>, transform_indices = @transform_3, window_bounds = array<i64: 7, 8, 4>}, {pipeline_mode = #tpu.pipeline_mode<synchronous>, transform_indices = @transform_4, window_bounds = array<i64: 8, 1>}, {pipeline_mode = #tpu.pipeline_mode<synchronous>, transform_indices = @transform_5, window_bounds = array<i64: 5, 16, 8>}, {pipeline_mode = #tpu.pipeline_mode<synchronous>, transform_indices = @transform_6, window_bounds = array<i64: 16, 1>}, {pipeline_mode = #tpu.pipeline_mode<synchronous>, transform_indices = @transform_7, window_bounds = array<i64: 3, 32, 16>}, {pipeline_mode = #tpu.pipeline_mode<synchronous>, transform_indices = @transform_8, window_bounds = array<i64: 32, 1>}, {pipeline_mode = #tpu.pipeline_mode<synchronous>, transform_indices = @transform_9, window_bounds = array<i64: 128, 32>}, {pipeline_mode = #tpu.pipeline_mode<synchronous>, transform_indices = @transform_10, window_bounds = array<i64: 1, 32>}, {transform_indices = @transform_11, window_bounds = array<i64: 8, 32>}]} {
    %0 = tpu.iota {dimensions = array<i32: 1>} : vector<1x512xi32>
    %c64_i32 = arith.constant 64 : i32
    %c0_i32 = arith.constant 0 : i32
    %1 = arith.cmpi eq, %c64_i32, %c0_i32 : i32
    %c1_i32 = arith.constant 1 : i32
    %2 = arith.select %1, %c1_i32, %c64_i32 : i32
    %3 = vector.broadcast %2 : i32 to vector<1x512xi32>
    %4 = arith.remsi %0, %3 : vector<1x512xi32>
    %c0_i32_0 = arith.constant 0 : i32
    %5 = vector.broadcast %c0_i32_0 : i32 to vector<1x512xi32>
    %6 = arith.cmpi ne, %4, %5 : vector<1x512xi32>
    %c0_i32_1 = arith.constant 0 : i32
    %7 = vector.broadcast %c0_i32_1 : i32 to vector<1x512xi32>
    %8 = arith.cmpi slt, %4, %7 : vector<1x512xi32>
    %c0_i32_2 = arith.constant 0 : i32
    %9 = arith.cmpi slt, %2, %c0_i32_2 : i32
    %10 = vector.broadcast %9 : i1 to vector<1x512xi1>
    %11 = vector.broadcast %10 : vector<1x512xi1> to vector<1x512xi1>
    %12 = arith.xori %8, %11 : vector<1x512xi1>
    %13 = arith.andi %12, %6 : vector<1x512xi1>
    %14 = vector.broadcast %2 : i32 to vector<1x512xi32>
    %15 = arith.addi %4, %14 : vector<1x512xi32>
    %16 = arith.select %13, %15, %4 : vector<1x512xi1>, vector<1x512xi32>
    %c0 = arith.constant 0 : index
    %c0_3 = arith.constant 0 : index
    %17 = vector.load %arg1[%c0, %c0_3] : memref<3x512xf32, #tpu.memory_space<vmem>>, vector<3x512xf32>
    %cst = arith.constant 0.000000e+00 : f32
    %18 = vector.broadcast %cst : f32 to vector<4x512xf32>
    %c4_i32 = arith.constant 4 : i32
    %19 = vector.broadcast %c4_i32 : i32 to vector<1x512xi32>
    %20 = arith.cmpi sge, %16, %19 : vector<1x512xi32>
    %21 = vector.extract_strided_slice %17 {offsets = [0, 508], sizes = [3, 4], strides = [1, 1]} : vector<3x512xf32> to vector<3x4xf32>
    %22 = vector.extract_strided_slice %17 {offsets = [0, 0], sizes = [3, 508], strides = [1, 1]} : vector<3x512xf32> to vector<3x508xf32>
    %23 = tpu.concatenate %21, %22 in 1 : vector<3x4xf32>, vector<3x508xf32> -> vector<3x512xf32>
    %c0_i32_4 = arith.constant 0 : i32
    %24 = arith.sitofp %c0_i32_4 : i32 to f32
    %25 = vector.shape_cast %20 : vector<1x512xi1> to vector<1x512xi1>
    %26 = vector.broadcast %25 : vector<1x512xi1> to vector<3x512xi1>
    %27 = vector.broadcast %24 : f32 to vector<3x512xf32>
    %28 = arith.select %26, %23, %27 : vector<3x512xi1>, vector<3x512xf32>
    %c0_5 = arith.constant 0 : index
    %c0_6 = arith.constant 0 : index
    %c0_7 = arith.constant 0 : index
    %29 = vector.load %arg2[%c0_5, %c0_6, %c0_7] : memref<9x4x3xf32, #tpu.memory_space<vmem>>, vector<1x4x3xf32>
    %30 = vector.shape_cast %29 : vector<1x4x3xf32> to vector<4x3xf32>
    %cst_8 = arith.constant dense<0.000000e+00> : vector<4x512xf32>
    %31 = tpu.matmul %30, %28, %cst_8 {dimension_numbers = #tpu.dot_dimension_numbers<[1], [0], [0], [1], [0, 0, 1, 1], [], []>} : vector<4x3xf32>, vector<3x512xf32>, vector<4x512xf32> -> vector<4x512xf32>
    %32 = arith.addf %18, %31 : vector<4x512xf32>
    %c3_i32 = arith.constant 3 : i32
    %33 = vector.broadcast %c3_i32 : i32 to vector<1x512xi32>
    %34 = arith.cmpi sge, %16, %33 : vector<1x512xi32>
    %35 = vector.extract_strided_slice %17 {offsets = [0, 509], sizes = [3, 3], strides = [1, 1]} : vector<3x512xf32> to vector<3x3xf32>
    %36 = vector.extract_strided_slice %17 {offsets = [0, 0], sizes = [3, 509], strides = [1, 1]} : vector<3x512xf32> to vector<3x509xf32>
    %37 = tpu.concatenate %35, %36 in 1 : vector<3x3xf32>, vector<3x509xf32> -> vector<3x512xf32>
    %c0_i32_9 = arith.constant 0 : i32
    %38 = arith.sitofp %c0_i32_9 : i32 to f32
    %39 = vector.shape_cast %34 : vector<1x512xi1> to vector<1x512xi1>
    %40 = vector.broadcast %39 : vector<1x512xi1> to vector<3x512xi1>
    %41 = vector.broadcast %38 : f32 to vector<3x512xf32>
    %42 = arith.select %40, %37, %41 : vector<3x512xi1>, vector<3x512xf32>
    %c1 = arith.constant 1 : index
    %c0_10 = arith.constant 0 : index
    %c0_11 = arith.constant 0 : index
    %43 = vector.load %arg2[%c1, %c0_10, %c0_11] : memref<9x4x3xf32, #tpu.memory_space<vmem>>, vector<1x4x3xf32>
    %44 = vector.shape_cast %43 : vector<1x4x3xf32> to vector<4x3xf32>
    %cst_12 = arith.constant dense<0.000000e+00> : vector<4x512xf32>
    %45 = tpu.matmul %44, %42, %cst_12 {dimension_numbers = #tpu.dot_dimension_numbers<[1], [0], [0], [1], [0, 0, 1, 1], [], []>} : vector<4x3xf32>, vector<3x512xf32>, vector<4x512xf32> -> vector<4x512xf32>
    %46 = arith.addf %32, %45 : vector<4x512xf32>
    %c2_i32 = arith.constant 2 : i32
    %47 = vector.broadcast %c2_i32 : i32 to vector<1x512xi32>
    %48 = arith.cmpi sge, %16, %47 : vector<1x512xi32>
    %49 = vector.extract_strided_slice %17 {offsets = [0, 510], sizes = [3, 2], strides = [1, 1]} : vector<3x512xf32> to vector<3x2xf32>
    %50 = vector.extract_strided_slice %17 {offsets = [0, 0], sizes = [3, 510], strides = [1, 1]} : vector<3x512xf32> to vector<3x510xf32>
    %51 = tpu.concatenate %49, %50 in 1 : vector<3x2xf32>, vector<3x510xf32> -> vector<3x512xf32>
    %c0_i32_13 = arith.constant 0 : i32
    %52 = arith.sitofp %c0_i32_13 : i32 to f32
    %53 = vector.shape_cast %48 : vector<1x512xi1> to vector<1x512xi1>
    %54 = vector.broadcast %53 : vector<1x512xi1> to vector<3x512xi1>
    %55 = vector.broadcast %52 : f32 to vector<3x512xf32>
    %56 = arith.select %54, %51, %55 : vector<3x512xi1>, vector<3x512xf32>
    %c2 = arith.constant 2 : index
    %c0_14 = arith.constant 0 : index
    %c0_15 = arith.constant 0 : index
    %57 = vector.load %arg2[%c2, %c0_14, %c0_15] : memref<9x4x3xf32, #tpu.memory_space<vmem>>, vector<1x4x3xf32>
    %58 = vector.shape_cast %57 : vector<1x4x3xf32> to vector<4x3xf32>
    %cst_16 = arith.constant dense<0.000000e+00> : vector<4x512xf32>
    %59 = tpu.matmul %58, %56, %cst_16 {dimension_numbers = #tpu.dot_dimension_numbers<[1], [0], [0], [1], [0, 0, 1, 1], [], []>} : vector<4x3xf32>, vector<3x512xf32>, vector<4x512xf32> -> vector<4x512xf32>
    %60 = arith.addf %46, %59 : vector<4x512xf32>
    %c1_i32_17 = arith.constant 1 : i32
    %61 = vector.broadcast %c1_i32_17 : i32 to vector<1x512xi32>
    %62 = arith.cmpi sge, %16, %61 : vector<1x512xi32>
    %63 = vector.extract_strided_slice %17 {offsets = [0, 511], sizes = [3, 1], strides = [1, 1]} : vector<3x512xf32> to vector<3x1xf32>
    %64 = vector.extract_strided_slice %17 {offsets = [0, 0], sizes = [3, 511], strides = [1, 1]} : vector<3x512xf32> to vector<3x511xf32>
    %65 = tpu.concatenate %63, %64 in 1 : vector<3x1xf32>, vector<3x511xf32> -> vector<3x512xf32>
    %c0_i32_18 = arith.constant 0 : i32
    %66 = arith.sitofp %c0_i32_18 : i32 to f32
    %67 = vector.shape_cast %62 : vector<1x512xi1> to vector<1x512xi1>
    %68 = vector.broadcast %67 : vector<1x512xi1> to vector<3x512xi1>
    %69 = vector.broadcast %66 : f32 to vector<3x512xf32>
    %70 = arith.select %68, %65, %69 : vector<3x512xi1>, vector<3x512xf32>
    %c3 = arith.constant 3 : index
    %c0_19 = arith.constant 0 : index
    %c0_20 = arith.constant 0 : index
    %71 = vector.load %arg2[%c3, %c0_19, %c0_20] : memref<9x4x3xf32, #tpu.memory_space<vmem>>, vector<1x4x3xf32>
    %72 = vector.shape_cast %71 : vector<1x4x3xf32> to vector<4x3xf32>
    %cst_21 = arith.constant dense<0.000000e+00> : vector<4x512xf32>
    %73 = tpu.matmul %72, %70, %cst_21 {dimension_numbers = #tpu.dot_dimension_numbers<[1], [0], [0], [1], [0, 0, 1, 1], [], []>} : vector<4x3xf32>, vector<3x512xf32>, vector<4x512xf32> -> vector<4x512xf32>
    %74 = arith.addf %60, %73 : vector<4x512xf32>
    %c4 = arith.constant 4 : index
    %c0_22 = arith.constant 0 : index
    %c0_23 = arith.constant 0 : index
    %75 = vector.load %arg2[%c4, %c0_22, %c0_23] : memref<9x4x3xf32, #tpu.memory_space<vmem>>, vector<1x4x3xf32>
    %76 = vector.shape_cast %75 : vector<1x4x3xf32> to vector<4x3xf32>
    %cst_24 = arith.constant dense<0.000000e+00> : vector<4x512xf32>
    %77 = tpu.matmul %76, %17, %cst_24 {dimension_numbers = #tpu.dot_dimension_numbers<[1], [0], [0], [1], [0, 0, 1, 1], [], []>} : vector<4x3xf32>, vector<3x512xf32>, vector<4x512xf32> -> vector<4x512xf32>
    %78 = arith.addf %74, %77 : vector<4x512xf32>
    %c63_i32 = arith.constant 63 : i32
    %79 = vector.broadcast %c63_i32 : i32 to vector<1x512xi32>
    %80 = arith.cmpi slt, %16, %79 : vector<1x512xi32>
    %81 = vector.extract_strided_slice %17 {offsets = [0, 1], sizes = [3, 511], strides = [1, 1]} : vector<3x512xf32> to vector<3x511xf32>
    %82 = vector.extract_strided_slice %17 {offsets = [0, 0], sizes = [3, 1], strides = [1, 1]} : vector<3x512xf32> to vector<3x1xf32>
    %83 = tpu.concatenate %81, %82 in 1 : vector<3x511xf32>, vector<3x1xf32> -> vector<3x512xf32>
    %c0_i32_25 = arith.constant 0 : i32
    %84 = arith.sitofp %c0_i32_25 : i32 to f32
    %85 = vector.shape_cast %80 : vector<1x512xi1> to vector<1x512xi1>
    %86 = vector.broadcast %85 : vector<1x512xi1> to vector<3x512xi1>
    %87 = vector.broadcast %84 : f32 to vector<3x512xf32>
    %88 = arith.select %86, %83, %87 : vector<3x512xi1>, vector<3x512xf32>
    %c5 = arith.constant 5 : index
    %c0_26 = arith.constant 0 : index
    %c0_27 = arith.constant 0 : index
    %89 = vector.load %arg2[%c5, %c0_26, %c0_27] : memref<9x4x3xf32, #tpu.memory_space<vmem>>, vector<1x4x3xf32>
    %90 = vector.shape_cast %89 : vector<1x4x3xf32> to vector<4x3xf32>
    %cst_28 = arith.constant dense<0.000000e+00> : vector<4x512xf32>
    %91 = tpu.matmul %90, %88, %cst_28 {dimension_numbers = #tpu.dot_dimension_numbers<[1], [0], [0], [1], [0, 0, 1, 1], [], []>} : vector<4x3xf32>, vector<3x512xf32>, vector<4x512xf32> -> vector<4x512xf32>
    %92 = arith.addf %78, %91 : vector<4x512xf32>
    %c62_i32 = arith.constant 62 : i32
    %93 = vector.broadcast %c62_i32 : i32 to vector<1x512xi32>
    %94 = arith.cmpi slt, %16, %93 : vector<1x512xi32>
    %95 = vector.extract_strided_slice %17 {offsets = [0, 2], sizes = [3, 510], strides = [1, 1]} : vector<3x512xf32> to vector<3x510xf32>
    %96 = vector.extract_strided_slice %17 {offsets = [0, 0], sizes = [3, 2], strides = [1, 1]} : vector<3x512xf32> to vector<3x2xf32>
    %97 = tpu.concatenate %95, %96 in 1 : vector<3x510xf32>, vector<3x2xf32> -> vector<3x512xf32>
    %c0_i32_29 = arith.constant 0 : i32
    %98 = arith.sitofp %c0_i32_29 : i32 to f32
    %99 = vector.shape_cast %94 : vector<1x512xi1> to vector<1x512xi1>
    %100 = vector.broadcast %99 : vector<1x512xi1> to vector<3x512xi1>
    %101 = vector.broadcast %98 : f32 to vector<3x512xf32>
    %102 = arith.select %100, %97, %101 : vector<3x512xi1>, vector<3x512xf32>
    %c6 = arith.constant 6 : index
    %c0_30 = arith.constant 0 : index
    %c0_31 = arith.constant 0 : index
    %103 = vector.load %arg2[%c6, %c0_30, %c0_31] : memref<9x4x3xf32, #tpu.memory_space<vmem>>, vector<1x4x3xf32>
    %104 = vector.shape_cast %103 : vector<1x4x3xf32> to vector<4x3xf32>
    %cst_32 = arith.constant dense<0.000000e+00> : vector<4x512xf32>
    %105 = tpu.matmul %104, %102, %cst_32 {dimension_numbers = #tpu.dot_dimension_numbers<[1], [0], [0], [1], [0, 0, 1, 1], [], []>} : vector<4x3xf32>, vector<3x512xf32>, vector<4x512xf32> -> vector<4x512xf32>
    %106 = arith.addf %92, %105 : vector<4x512xf32>
    %c61_i32 = arith.constant 61 : i32
    %107 = vector.broadcast %c61_i32 : i32 to vector<1x512xi32>
    %108 = arith.cmpi slt, %16, %107 : vector<1x512xi32>
    %109 = vector.extract_strided_slice %17 {offsets = [0, 3], sizes = [3, 509], strides = [1, 1]} : vector<3x512xf32> to vector<3x509xf32>
    %110 = vector.extract_strided_slice %17 {offsets = [0, 0], sizes = [3, 3], strides = [1, 1]} : vector<3x512xf32> to vector<3x3xf32>
    %111 = tpu.concatenate %109, %110 in 1 : vector<3x509xf32>, vector<3x3xf32> -> vector<3x512xf32>
    %c0_i32_33 = arith.constant 0 : i32
    %112 = arith.sitofp %c0_i32_33 : i32 to f32
    %113 = vector.shape_cast %108 : vector<1x512xi1> to vector<1x512xi1>
    %114 = vector.broadcast %113 : vector<1x512xi1> to vector<3x512xi1>
    %115 = vector.broadcast %112 : f32 to vector<3x512xf32>
    %116 = arith.select %114, %111, %115 : vector<3x512xi1>, vector<3x512xf32>
    %c7 = arith.constant 7 : index
    %c0_34 = arith.constant 0 : index
    %c0_35 = arith.constant 0 : index
    %117 = vector.load %arg2[%c7, %c0_34, %c0_35] : memref<9x4x3xf32, #tpu.memory_space<vmem>>, vector<1x4x3xf32>
    %118 = vector.shape_cast %117 : vector<1x4x3xf32> to vector<4x3xf32>
    %cst_36 = arith.constant dense<0.000000e+00> : vector<4x512xf32>
    %119 = tpu.matmul %118, %116, %cst_36 {dimension_numbers = #tpu.dot_dimension_numbers<[1], [0], [0], [1], [0, 0, 1, 1], [], []>} : vector<4x3xf32>, vector<3x512xf32>, vector<4x512xf32> -> vector<4x512xf32>
    %120 = arith.addf %106, %119 : vector<4x512xf32>
    %c60_i32 = arith.constant 60 : i32
    %121 = vector.broadcast %c60_i32 : i32 to vector<1x512xi32>
    %122 = arith.cmpi slt, %16, %121 : vector<1x512xi32>
    %123 = vector.extract_strided_slice %17 {offsets = [0, 4], sizes = [3, 508], strides = [1, 1]} : vector<3x512xf32> to vector<3x508xf32>
    %124 = vector.extract_strided_slice %17 {offsets = [0, 0], sizes = [3, 4], strides = [1, 1]} : vector<3x512xf32> to vector<3x4xf32>
    %125 = tpu.concatenate %123, %124 in 1 : vector<3x508xf32>, vector<3x4xf32> -> vector<3x512xf32>
    %c0_i32_37 = arith.constant 0 : i32
    %126 = arith.sitofp %c0_i32_37 : i32 to f32
    %127 = vector.shape_cast %122 : vector<1x512xi1> to vector<1x512xi1>
    %128 = vector.broadcast %127 : vector<1x512xi1> to vector<3x512xi1>
    %129 = vector.broadcast %126 : f32 to vector<3x512xf32>
    %130 = arith.select %128, %125, %129 : vector<3x512xi1>, vector<3x512xf32>
    %c8 = arith.constant 8 : index
    %c0_38 = arith.constant 0 : index
    %c0_39 = arith.constant 0 : index
    %131 = vector.load %arg2[%c8, %c0_38, %c0_39] : memref<9x4x3xf32, #tpu.memory_space<vmem>>, vector<1x4x3xf32>
    %132 = vector.shape_cast %131 : vector<1x4x3xf32> to vector<4x3xf32>
    %cst_40 = arith.constant dense<0.000000e+00> : vector<4x512xf32>
    %133 = tpu.matmul %132, %130, %cst_40 {dimension_numbers = #tpu.dot_dimension_numbers<[1], [0], [0], [1], [0, 0, 1, 1], [], []>} : vector<4x3xf32>, vector<3x512xf32>, vector<4x512xf32> -> vector<4x512xf32>
    %134 = arith.addf %120, %133 : vector<4x512xf32>
    %c0_41 = arith.constant 0 : index
    %c0_42 = arith.constant 0 : index
    %135 = vector.load %arg3[%c0_41, %c0_42] : memref<4x1xf32, #tpu.memory_space<vmem>>, vector<4x1xf32>
    %136 = vector.broadcast %135 : vector<4x1xf32> to vector<4x512xf32>
    %137 = arith.addf %134, %136 : vector<4x512xf32>
    %cst_43 = arith.constant 0.000000e+00 : f32
    %138 = vector.broadcast %cst_43 : f32 to vector<4x512xf32>
    %139 = arith.maximumf %137, %138 : vector<4x512xf32>
    %140 = vector.extract_strided_slice %139 {offsets = [0, 1], sizes = [4, 511], strides = [1, 1]} : vector<4x512xf32> to vector<4x511xf32>
    %141 = vector.extract_strided_slice %139 {offsets = [0, 0], sizes = [4, 1], strides = [1, 1]} : vector<4x512xf32> to vector<4x1xf32>
    %142 = tpu.concatenate %140, %141 in 1 : vector<4x511xf32>, vector<4x1xf32> -> vector<4x512xf32>
    %143 = arith.maximumf %139, %142 : vector<4x512xf32>
    %cst_44 = arith.constant 0.000000e+00 : f32
    %144 = vector.broadcast %cst_44 : f32 to vector<8x512xf32>
    %c6_i32 = arith.constant 6 : i32
    %145 = vector.broadcast %c6_i32 : i32 to vector<1x512xi32>
    %146 = arith.cmpi sge, %16, %145 : vector<1x512xi32>
    %147 = vector.extract_strided_slice %143 {offsets = [0, 506], sizes = [4, 6], strides = [1, 1]} : vector<4x512xf32> to vector<4x6xf32>
    %148 = vector.extract_strided_slice %143 {offsets = [0, 0], sizes = [4, 506], strides = [1, 1]} : vector<4x512xf32> to vector<4x506xf32>
    %149 = tpu.concatenate %147, %148 in 1 : vector<4x6xf32>, vector<4x506xf32> -> vector<4x512xf32>
    %c0_i32_45 = arith.constant 0 : i32
    %150 = arith.sitofp %c0_i32_45 : i32 to f32
    %151 = vector.shape_cast %146 : vector<1x512xi1> to vector<1x512xi1>
    %152 = vector.broadcast %151 : vector<1x512xi1> to vector<4x512xi1>
    %153 = vector.broadcast %150 : f32 to vector<4x512xf32>
    %154 = arith.select %152, %149, %153 : vector<4x512xi1>, vector<4x512xf32>
    %c0_46 = arith.constant 0 : index
    %c0_47 = arith.constant 0 : index
    %c0_48 = arith.constant 0 : index
    %155 = vector.load %arg4[%c0_46, %c0_47, %c0_48] : memref<7x8x4xf32, #tpu.memory_space<vmem>>, vector<1x8x4xf32>
    %156 = vector.shape_cast %155 : vector<1x8x4xf32> to vector<8x4xf32>
    %cst_49 = arith.constant dense<0.000000e+00> : vector<8x512xf32>
    %157 = tpu.matmul %156, %154, %cst_49 {dimension_numbers = #tpu.dot_dimension_numbers<[1], [0], [0], [1], [0, 0, 1, 1], [], []>} : vector<8x4xf32>, vector<4x512xf32>, vector<8x512xf32> -> vector<8x512xf32>
    %158 = arith.addf %144, %157 : vector<8x512xf32>
    %c4_i32_50 = arith.constant 4 : i32
    %159 = vector.broadcast %c4_i32_50 : i32 to vector<1x512xi32>
    %160 = arith.cmpi sge, %16, %159 : vector<1x512xi32>
    %161 = vector.extract_strided_slice %143 {offsets = [0, 508], sizes = [4, 4], strides = [1, 1]} : vector<4x512xf32> to vector<4x4xf32>
    %162 = vector.extract_strided_slice %143 {offsets = [0, 0], sizes = [4, 508], strides = [1, 1]} : vector<4x512xf32> to vector<4x508xf32>
    %163 = tpu.concatenate %161, %162 in 1 : vector<4x4xf32>, vector<4x508xf32> -> vector<4x512xf32>
    %c0_i32_51 = arith.constant 0 : i32
    %164 = arith.sitofp %c0_i32_51 : i32 to f32
    %165 = vector.shape_cast %160 : vector<1x512xi1> to vector<1x512xi1>
    %166 = vector.broadcast %165 : vector<1x512xi1> to vector<4x512xi1>
    %167 = vector.broadcast %164 : f32 to vector<4x512xf32>
    %168 = arith.select %166, %163, %167 : vector<4x512xi1>, vector<4x512xf32>
    %c1_52 = arith.constant 1 : index
    %c0_53 = arith.constant 0 : index
    %c0_54 = arith.constant 0 : index
    %169 = vector.load %arg4[%c1_52, %c0_53, %c0_54] : memref<7x8x4xf32, #tpu.memory_space<vmem>>, vector<1x8x4xf32>
    %170 = vector.shape_cast %169 : vector<1x8x4xf32> to vector<8x4xf32>
    %cst_55 = arith.constant dense<0.000000e+00> : vector<8x512xf32>
    %171 = tpu.matmul %170, %168, %cst_55 {dimension_numbers = #tpu.dot_dimension_numbers<[1], [0], [0], [1], [0, 0, 1, 1], [], []>} : vector<8x4xf32>, vector<4x512xf32>, vector<8x512xf32> -> vector<8x512xf32>
    %172 = arith.addf %158, %171 : vector<8x512xf32>
    %c2_i32_56 = arith.constant 2 : i32
    %173 = vector.broadcast %c2_i32_56 : i32 to vector<1x512xi32>
    %174 = arith.cmpi sge, %16, %173 : vector<1x512xi32>
    %175 = vector.extract_strided_slice %143 {offsets = [0, 510], sizes = [4, 2], strides = [1, 1]} : vector<4x512xf32> to vector<4x2xf32>
    %176 = vector.extract_strided_slice %143 {offsets = [0, 0], sizes = [4, 510], strides = [1, 1]} : vector<4x512xf32> to vector<4x510xf32>
    %177 = tpu.concatenate %175, %176 in 1 : vector<4x2xf32>, vector<4x510xf32> -> vector<4x512xf32>
    %c0_i32_57 = arith.constant 0 : i32
    %178 = arith.sitofp %c0_i32_57 : i32 to f32
    %179 = vector.shape_cast %174 : vector<1x512xi1> to vector<1x512xi1>
    %180 = vector.broadcast %179 : vector<1x512xi1> to vector<4x512xi1>
    %181 = vector.broadcast %178 : f32 to vector<4x512xf32>
    %182 = arith.select %180, %177, %181 : vector<4x512xi1>, vector<4x512xf32>
    %c2_58 = arith.constant 2 : index
    %c0_59 = arith.constant 0 : index
    %c0_60 = arith.constant 0 : index
    %183 = vector.load %arg4[%c2_58, %c0_59, %c0_60] : memref<7x8x4xf32, #tpu.memory_space<vmem>>, vector<1x8x4xf32>
    %184 = vector.shape_cast %183 : vector<1x8x4xf32> to vector<8x4xf32>
    %cst_61 = arith.constant dense<0.000000e+00> : vector<8x512xf32>
    %185 = tpu.matmul %184, %182, %cst_61 {dimension_numbers = #tpu.dot_dimension_numbers<[1], [0], [0], [1], [0, 0, 1, 1], [], []>} : vector<8x4xf32>, vector<4x512xf32>, vector<8x512xf32> -> vector<8x512xf32>
    %186 = arith.addf %172, %185 : vector<8x512xf32>
    %c3_62 = arith.constant 3 : index
    %c0_63 = arith.constant 0 : index
    %c0_64 = arith.constant 0 : index
    %187 = vector.load %arg4[%c3_62, %c0_63, %c0_64] : memref<7x8x4xf32, #tpu.memory_space<vmem>>, vector<1x8x4xf32>
    %188 = vector.shape_cast %187 : vector<1x8x4xf32> to vector<8x4xf32>
    %cst_65 = arith.constant dense<0.000000e+00> : vector<8x512xf32>
    %189 = tpu.matmul %188, %143, %cst_65 {dimension_numbers = #tpu.dot_dimension_numbers<[1], [0], [0], [1], [0, 0, 1, 1], [], []>} : vector<8x4xf32>, vector<4x512xf32>, vector<8x512xf32> -> vector<8x512xf32>
    %190 = arith.addf %186, %189 : vector<8x512xf32>
    %c62_i32_66 = arith.constant 62 : i32
    %191 = vector.broadcast %c62_i32_66 : i32 to vector<1x512xi32>
    %192 = arith.cmpi slt, %16, %191 : vector<1x512xi32>
    %193 = vector.extract_strided_slice %143 {offsets = [0, 2], sizes = [4, 510], strides = [1, 1]} : vector<4x512xf32> to vector<4x510xf32>
    %194 = vector.extract_strided_slice %143 {offsets = [0, 0], sizes = [4, 2], strides = [1, 1]} : vector<4x512xf32> to vector<4x2xf32>
    %195 = tpu.concatenate %193, %194 in 1 : vector<4x510xf32>, vector<4x2xf32> -> vector<4x512xf32>
    %c0_i32_67 = arith.constant 0 : i32
    %196 = arith.sitofp %c0_i32_67 : i32 to f32
    %197 = vector.shape_cast %192 : vector<1x512xi1> to vector<1x512xi1>
    %198 = vector.broadcast %197 : vector<1x512xi1> to vector<4x512xi1>
    %199 = vector.broadcast %196 : f32 to vector<4x512xf32>
    %200 = arith.select %198, %195, %199 : vector<4x512xi1>, vector<4x512xf32>
    %c4_68 = arith.constant 4 : index
    %c0_69 = arith.constant 0 : index
    %c0_70 = arith.constant 0 : index
    %201 = vector.load %arg4[%c4_68, %c0_69, %c0_70] : memref<7x8x4xf32, #tpu.memory_space<vmem>>, vector<1x8x4xf32>
    %202 = vector.shape_cast %201 : vector<1x8x4xf32> to vector<8x4xf32>
    %cst_71 = arith.constant dense<0.000000e+00> : vector<8x512xf32>
    %203 = tpu.matmul %202, %200, %cst_71 {dimension_numbers = #tpu.dot_dimension_numbers<[1], [0], [0], [1], [0, 0, 1, 1], [], []>} : vector<8x4xf32>, vector<4x512xf32>, vector<8x512xf32> -> vector<8x512xf32>
    %204 = arith.addf %190, %203 : vector<8x512xf32>
    %c60_i32_72 = arith.constant 60 : i32
    %205 = vector.broadcast %c60_i32_72 : i32 to vector<1x512xi32>
    %206 = arith.cmpi slt, %16, %205 : vector<1x512xi32>
    %207 = vector.extract_strided_slice %143 {offsets = [0, 4], sizes = [4, 508], strides = [1, 1]} : vector<4x512xf32> to vector<4x508xf32>
    %208 = vector.extract_strided_slice %143 {offsets = [0, 0], sizes = [4, 4], strides = [1, 1]} : vector<4x512xf32> to vector<4x4xf32>
    %209 = tpu.concatenate %207, %208 in 1 : vector<4x508xf32>, vector<4x4xf32> -> vector<4x512xf32>
    %c0_i32_73 = arith.constant 0 : i32
    %210 = arith.sitofp %c0_i32_73 : i32 to f32
    %211 = vector.shape_cast %206 : vector<1x512xi1> to vector<1x512xi1>
    %212 = vector.broadcast %211 : vector<1x512xi1> to vector<4x512xi1>
    %213 = vector.broadcast %210 : f32 to vector<4x512xf32>
    %214 = arith.select %212, %209, %213 : vector<4x512xi1>, vector<4x512xf32>
    %c5_74 = arith.constant 5 : index
    %c0_75 = arith.constant 0 : index
    %c0_76 = arith.constant 0 : index
    %215 = vector.load %arg4[%c5_74, %c0_75, %c0_76] : memref<7x8x4xf32, #tpu.memory_space<vmem>>, vector<1x8x4xf32>
    %216 = vector.shape_cast %215 : vector<1x8x4xf32> to vector<8x4xf32>
    %cst_77 = arith.constant dense<0.000000e+00> : vector<8x512xf32>
    %217 = tpu.matmul %216, %214, %cst_77 {dimension_numbers = #tpu.dot_dimension_numbers<[1], [0], [0], [1], [0, 0, 1, 1], [], []>} : vector<8x4xf32>, vector<4x512xf32>, vector<8x512xf32> -> vector<8x512xf32>
    %218 = arith.addf %204, %217 : vector<8x512xf32>
    %c58_i32 = arith.constant 58 : i32
    %219 = vector.broadcast %c58_i32 : i32 to vector<1x512xi32>
    %220 = arith.cmpi slt, %16, %219 : vector<1x512xi32>
    %221 = vector.extract_strided_slice %143 {offsets = [0, 6], sizes = [4, 506], strides = [1, 1]} : vector<4x512xf32> to vector<4x506xf32>
    %222 = vector.extract_strided_slice %143 {offsets = [0, 0], sizes = [4, 6], strides = [1, 1]} : vector<4x512xf32> to vector<4x6xf32>
    %223 = tpu.concatenate %221, %222 in 1 : vector<4x506xf32>, vector<4x6xf32> -> vector<4x512xf32>
    %c0_i32_78 = arith.constant 0 : i32
    %224 = arith.sitofp %c0_i32_78 : i32 to f32
    %225 = vector.shape_cast %220 : vector<1x512xi1> to vector<1x512xi1>
    %226 = vector.broadcast %225 : vector<1x512xi1> to vector<4x512xi1>
    %227 = vector.broadcast %224 : f32 to vector<4x512xf32>
    %228 = arith.select %226, %223, %227 : vector<4x512xi1>, vector<4x512xf32>
    %c6_79 = arith.constant 6 : index
    %c0_80 = arith.constant 0 : index
    %c0_81 = arith.constant 0 : index
    %229 = vector.load %arg4[%c6_79, %c0_80, %c0_81] : memref<7x8x4xf32, #tpu.memory_space<vmem>>, vector<1x8x4xf32>
    %230 = vector.shape_cast %229 : vector<1x8x4xf32> to vector<8x4xf32>
    %cst_82 = arith.constant dense<0.000000e+00> : vector<8x512xf32>
    %231 = tpu.matmul %230, %228, %cst_82 {dimension_numbers = #tpu.dot_dimension_numbers<[1], [0], [0], [1], [0, 0, 1, 1], [], []>} : vector<8x4xf32>, vector<4x512xf32>, vector<8x512xf32> -> vector<8x512xf32>
    %232 = arith.addf %218, %231 : vector<8x512xf32>
    %c0_83 = arith.constant 0 : index
    %c0_84 = arith.constant 0 : index
    %233 = vector.load %arg5[%c0_83, %c0_84] : memref<8x1xf32, #tpu.memory_space<vmem>>, vector<8x1xf32>
    %234 = vector.broadcast %233 : vector<8x1xf32> to vector<8x512xf32>
    %235 = arith.addf %232, %234 : vector<8x512xf32>
    %cst_85 = arith.constant 0.000000e+00 : f32
    %236 = vector.broadcast %cst_85 : f32 to vector<8x512xf32>
    %237 = arith.maximumf %235, %236 : vector<8x512xf32>
    %238 = vector.extract_strided_slice %237 {offsets = [0, 2], sizes = [8, 510], strides = [1, 1]} : vector<8x512xf32> to vector<8x510xf32>
    %239 = vector.extract_strided_slice %237 {offsets = [0, 0], sizes = [8, 2], strides = [1, 1]} : vector<8x512xf32> to vector<8x2xf32>
    %240 = tpu.concatenate %238, %239 in 1 : vector<8x510xf32>, vector<8x2xf32> -> vector<8x512xf32>
    %241 = arith.maximumf %237, %240 : vector<8x512xf32>
    %cst_86 = arith.constant 0.000000e+00 : f32
    %242 = vector.broadcast %cst_86 : f32 to vector<16x512xf32>
    %c8_i32 = arith.constant 8 : i32
    %243 = vector.broadcast %c8_i32 : i32 to vector<1x512xi32>
    %244 = arith.cmpi sge, %16, %243 : vector<1x512xi32>
    %245 = vector.extract_strided_slice %241 {offsets = [0, 504], sizes = [8, 8], strides = [1, 1]} : vector<8x512xf32> to vector<8x8xf32>
    %246 = vector.extract_strided_slice %241 {offsets = [0, 0], sizes = [8, 504], strides = [1, 1]} : vector<8x512xf32> to vector<8x504xf32>
    %247 = tpu.concatenate %245, %246 in 1 : vector<8x8xf32>, vector<8x504xf32> -> vector<8x512xf32>
    %c0_i32_87 = arith.constant 0 : i32
    %248 = arith.sitofp %c0_i32_87 : i32 to f32
    %249 = vector.shape_cast %244 : vector<1x512xi1> to vector<1x512xi1>
    %250 = vector.broadcast %249 : vector<1x512xi1> to vector<8x512xi1>
    %251 = vector.broadcast %248 : f32 to vector<8x512xf32>
    %252 = arith.select %250, %247, %251 : vector<8x512xi1>, vector<8x512xf32>
    %c0_88 = arith.constant 0 : index
    %c0_89 = arith.constant 0 : index
    %c0_90 = arith.constant 0 : index
    %253 = vector.load %arg6[%c0_88, %c0_89, %c0_90] : memref<5x16x8xf32, #tpu.memory_space<vmem>>, vector<1x16x8xf32>
    %254 = vector.shape_cast %253 : vector<1x16x8xf32> to vector<16x8xf32>
    %cst_91 = arith.constant dense<0.000000e+00> : vector<16x512xf32>
    %255 = tpu.matmul %254, %252, %cst_91 {dimension_numbers = #tpu.dot_dimension_numbers<[1], [0], [0], [1], [0, 0, 1, 1], [], []>} : vector<16x8xf32>, vector<8x512xf32>, vector<16x512xf32> -> vector<16x512xf32>
    %256 = arith.addf %242, %255 : vector<16x512xf32>
    %c4_i32_92 = arith.constant 4 : i32
    %257 = vector.broadcast %c4_i32_92 : i32 to vector<1x512xi32>
    %258 = arith.cmpi sge, %16, %257 : vector<1x512xi32>
    %259 = vector.extract_strided_slice %241 {offsets = [0, 508], sizes = [8, 4], strides = [1, 1]} : vector<8x512xf32> to vector<8x4xf32>
    %260 = vector.extract_strided_slice %241 {offsets = [0, 0], sizes = [8, 508], strides = [1, 1]} : vector<8x512xf32> to vector<8x508xf32>
    %261 = tpu.concatenate %259, %260 in 1 : vector<8x4xf32>, vector<8x508xf32> -> vector<8x512xf32>
    %c0_i32_93 = arith.constant 0 : i32
    %262 = arith.sitofp %c0_i32_93 : i32 to f32
    %263 = vector.shape_cast %258 : vector<1x512xi1> to vector<1x512xi1>
    %264 = vector.broadcast %263 : vector<1x512xi1> to vector<8x512xi1>
    %265 = vector.broadcast %262 : f32 to vector<8x512xf32>
    %266 = arith.select %264, %261, %265 : vector<8x512xi1>, vector<8x512xf32>
    %c1_94 = arith.constant 1 : index
    %c0_95 = arith.constant 0 : index
    %c0_96 = arith.constant 0 : index
    %267 = vector.load %arg6[%c1_94, %c0_95, %c0_96] : memref<5x16x8xf32, #tpu.memory_space<vmem>>, vector<1x16x8xf32>
    %268 = vector.shape_cast %267 : vector<1x16x8xf32> to vector<16x8xf32>
    %cst_97 = arith.constant dense<0.000000e+00> : vector<16x512xf32>
    %269 = tpu.matmul %268, %266, %cst_97 {dimension_numbers = #tpu.dot_dimension_numbers<[1], [0], [0], [1], [0, 0, 1, 1], [], []>} : vector<16x8xf32>, vector<8x512xf32>, vector<16x512xf32> -> vector<16x512xf32>
    %270 = arith.addf %256, %269 : vector<16x512xf32>
    %c2_98 = arith.constant 2 : index
    %c0_99 = arith.constant 0 : index
    %c0_100 = arith.constant 0 : index
    %271 = vector.load %arg6[%c2_98, %c0_99, %c0_100] : memref<5x16x8xf32, #tpu.memory_space<vmem>>, vector<1x16x8xf32>
    %272 = vector.shape_cast %271 : vector<1x16x8xf32> to vector<16x8xf32>
    %cst_101 = arith.constant dense<0.000000e+00> : vector<16x512xf32>
    %273 = tpu.matmul %272, %241, %cst_101 {dimension_numbers = #tpu.dot_dimension_numbers<[1], [0], [0], [1], [0, 0, 1, 1], [], []>} : vector<16x8xf32>, vector<8x512xf32>, vector<16x512xf32> -> vector<16x512xf32>
    %274 = arith.addf %270, %273 : vector<16x512xf32>
    %c60_i32_102 = arith.constant 60 : i32
    %275 = vector.broadcast %c60_i32_102 : i32 to vector<1x512xi32>
    %276 = arith.cmpi slt, %16, %275 : vector<1x512xi32>
    %277 = vector.extract_strided_slice %241 {offsets = [0, 4], sizes = [8, 508], strides = [1, 1]} : vector<8x512xf32> to vector<8x508xf32>
    %278 = vector.extract_strided_slice %241 {offsets = [0, 0], sizes = [8, 4], strides = [1, 1]} : vector<8x512xf32> to vector<8x4xf32>
    %279 = tpu.concatenate %277, %278 in 1 : vector<8x508xf32>, vector<8x4xf32> -> vector<8x512xf32>
    %c0_i32_103 = arith.constant 0 : i32
    %280 = arith.sitofp %c0_i32_103 : i32 to f32
    %281 = vector.shape_cast %276 : vector<1x512xi1> to vector<1x512xi1>
    %282 = vector.broadcast %281 : vector<1x512xi1> to vector<8x512xi1>
    %283 = vector.broadcast %280 : f32 to vector<8x512xf32>
    %284 = arith.select %282, %279, %283 : vector<8x512xi1>, vector<8x512xf32>
    %c3_104 = arith.constant 3 : index
    %c0_105 = arith.constant 0 : index
    %c0_106 = arith.constant 0 : index
    %285 = vector.load %arg6[%c3_104, %c0_105, %c0_106] : memref<5x16x8xf32, #tpu.memory_space<vmem>>, vector<1x16x8xf32>
    %286 = vector.shape_cast %285 : vector<1x16x8xf32> to vector<16x8xf32>
    %cst_107 = arith.constant dense<0.000000e+00> : vector<16x512xf32>
    %287 = tpu.matmul %286, %284, %cst_107 {dimension_numbers = #tpu.dot_dimension_numbers<[1], [0], [0], [1], [0, 0, 1, 1], [], []>} : vector<16x8xf32>, vector<8x512xf32>, vector<16x512xf32> -> vector<16x512xf32>
    %288 = arith.addf %274, %287 : vector<16x512xf32>
    %c56_i32 = arith.constant 56 : i32
    %289 = vector.broadcast %c56_i32 : i32 to vector<1x512xi32>
    %290 = arith.cmpi slt, %16, %289 : vector<1x512xi32>
    %291 = vector.extract_strided_slice %241 {offsets = [0, 8], sizes = [8, 504], strides = [1, 1]} : vector<8x512xf32> to vector<8x504xf32>
    %292 = vector.extract_strided_slice %241 {offsets = [0, 0], sizes = [8, 8], strides = [1, 1]} : vector<8x512xf32> to vector<8x8xf32>
    %293 = tpu.concatenate %291, %292 in 1 : vector<8x504xf32>, vector<8x8xf32> -> vector<8x512xf32>
    %c0_i32_108 = arith.constant 0 : i32
    %294 = arith.sitofp %c0_i32_108 : i32 to f32
    %295 = vector.shape_cast %290 : vector<1x512xi1> to vector<1x512xi1>
    %296 = vector.broadcast %295 : vector<1x512xi1> to vector<8x512xi1>
    %297 = vector.broadcast %294 : f32 to vector<8x512xf32>
    %298 = arith.select %296, %293, %297 : vector<8x512xi1>, vector<8x512xf32>
    %c4_109 = arith.constant 4 : index
    %c0_110 = arith.constant 0 : index
    %c0_111 = arith.constant 0 : index
    %299 = vector.load %arg6[%c4_109, %c0_110, %c0_111] : memref<5x16x8xf32, #tpu.memory_space<vmem>>, vector<1x16x8xf32>
    %300 = vector.shape_cast %299 : vector<1x16x8xf32> to vector<16x8xf32>
    %cst_112 = arith.constant dense<0.000000e+00> : vector<16x512xf32>
    %301 = tpu.matmul %300, %298, %cst_112 {dimension_numbers = #tpu.dot_dimension_numbers<[1], [0], [0], [1], [0, 0, 1, 1], [], []>} : vector<16x8xf32>, vector<8x512xf32>, vector<16x512xf32> -> vector<16x512xf32>
    %302 = arith.addf %288, %301 : vector<16x512xf32>
    %c0_113 = arith.constant 0 : index
    %c0_114 = arith.constant 0 : index
    %303 = vector.load %arg7[%c0_113, %c0_114] : memref<16x1xf32, #tpu.memory_space<vmem>>, vector<16x1xf32>
    %304 = vector.broadcast %303 : vector<16x1xf32> to vector<16x512xf32>
    %305 = arith.addf %302, %304 : vector<16x512xf32>
    %cst_115 = arith.constant 0.000000e+00 : f32
    %306 = vector.broadcast %cst_115 : f32 to vector<16x512xf32>
    %307 = arith.maximumf %305, %306 : vector<16x512xf32>
    %308 = vector.extract_strided_slice %307 {offsets = [0, 4], sizes = [16, 508], strides = [1, 1]} : vector<16x512xf32> to vector<16x508xf32>
    %309 = vector.extract_strided_slice %307 {offsets = [0, 0], sizes = [16, 4], strides = [1, 1]} : vector<16x512xf32> to vector<16x4xf32>
    %310 = tpu.concatenate %308, %309 in 1 : vector<16x508xf32>, vector<16x4xf32> -> vector<16x512xf32>
    %311 = arith.maximumf %307, %310 : vector<16x512xf32>
    %cst_116 = arith.constant 0.000000e+00 : f32
    %312 = vector.broadcast %cst_116 : f32 to vector<32x512xf32>
    %c8_i32_117 = arith.constant 8 : i32
    %313 = vector.broadcast %c8_i32_117 : i32 to vector<1x512xi32>
    %314 = arith.cmpi sge, %16, %313 : vector<1x512xi32>
    %315 = vector.extract_strided_slice %311 {offsets = [0, 504], sizes = [16, 8], strides = [1, 1]} : vector<16x512xf32> to vector<16x8xf32>
    %316 = vector.extract_strided_slice %311 {offsets = [0, 0], sizes = [16, 504], strides = [1, 1]} : vector<16x512xf32> to vector<16x504xf32>
    %317 = tpu.concatenate %315, %316 in 1 : vector<16x8xf32>, vector<16x504xf32> -> vector<16x512xf32>
    %c0_i32_118 = arith.constant 0 : i32
    %318 = arith.sitofp %c0_i32_118 : i32 to f32
    %319 = vector.shape_cast %314 : vector<1x512xi1> to vector<1x512xi1>
    %320 = vector.broadcast %319 : vector<1x512xi1> to vector<16x512xi1>
    %321 = vector.broadcast %318 : f32 to vector<16x512xf32>
    %322 = arith.select %320, %317, %321 : vector<16x512xi1>, vector<16x512xf32>
    %c0_119 = arith.constant 0 : index
    %c0_120 = arith.constant 0 : index
    %c0_121 = arith.constant 0 : index
    %323 = vector.load %arg8[%c0_119, %c0_120, %c0_121] : memref<3x32x16xf32, #tpu.memory_space<vmem>>, vector<1x32x16xf32>
    %324 = vector.shape_cast %323 : vector<1x32x16xf32> to vector<32x16xf32>
    %cst_122 = arith.constant dense<0.000000e+00> : vector<32x512xf32>
    %325 = tpu.matmul %324, %322, %cst_122 {dimension_numbers = #tpu.dot_dimension_numbers<[1], [0], [0], [1], [0, 0, 1, 1], [], []>} : vector<32x16xf32>, vector<16x512xf32>, vector<32x512xf32> -> vector<32x512xf32>
    %326 = arith.addf %312, %325 : vector<32x512xf32>
    %c1_123 = arith.constant 1 : index
    %c0_124 = arith.constant 0 : index
    %c0_125 = arith.constant 0 : index
    %327 = vector.load %arg8[%c1_123, %c0_124, %c0_125] : memref<3x32x16xf32, #tpu.memory_space<vmem>>, vector<1x32x16xf32>
    %328 = vector.shape_cast %327 : vector<1x32x16xf32> to vector<32x16xf32>
    %cst_126 = arith.constant dense<0.000000e+00> : vector<32x512xf32>
    %329 = tpu.matmul %328, %311, %cst_126 {dimension_numbers = #tpu.dot_dimension_numbers<[1], [0], [0], [1], [0, 0, 1, 1], [], []>} : vector<32x16xf32>, vector<16x512xf32>, vector<32x512xf32> -> vector<32x512xf32>
    %330 = arith.addf %326, %329 : vector<32x512xf32>
    %c56_i32_127 = arith.constant 56 : i32
    %331 = vector.broadcast %c56_i32_127 : i32 to vector<1x512xi32>
    %332 = arith.cmpi slt, %16, %331 : vector<1x512xi32>
    %333 = vector.extract_strided_slice %311 {offsets = [0, 8], sizes = [16, 504], strides = [1, 1]} : vector<16x512xf32> to vector<16x504xf32>
    %334 = vector.extract_strided_slice %311 {offsets = [0, 0], sizes = [16, 8], strides = [1, 1]} : vector<16x512xf32> to vector<16x8xf32>
    %335 = tpu.concatenate %333, %334 in 1 : vector<16x504xf32>, vector<16x8xf32> -> vector<16x512xf32>
    %c0_i32_128 = arith.constant 0 : i32
    %336 = arith.sitofp %c0_i32_128 : i32 to f32
    %337 = vector.shape_cast %332 : vector<1x512xi1> to vector<1x512xi1>
    %338 = vector.broadcast %337 : vector<1x512xi1> to vector<16x512xi1>
    %339 = vector.broadcast %336 : f32 to vector<16x512xf32>
    %340 = arith.select %338, %335, %339 : vector<16x512xi1>, vector<16x512xf32>
    %c2_129 = arith.constant 2 : index
    %c0_130 = arith.constant 0 : index
    %c0_131 = arith.constant 0 : index
    %341 = vector.load %arg8[%c2_129, %c0_130, %c0_131] : memref<3x32x16xf32, #tpu.memory_space<vmem>>, vector<1x32x16xf32>
    %342 = vector.shape_cast %341 : vector<1x32x16xf32> to vector<32x16xf32>
    %cst_132 = arith.constant dense<0.000000e+00> : vector<32x512xf32>
    %343 = tpu.matmul %342, %340, %cst_132 {dimension_numbers = #tpu.dot_dimension_numbers<[1], [0], [0], [1], [0, 0, 1, 1], [], []>} : vector<32x16xf32>, vector<16x512xf32>, vector<32x512xf32> -> vector<32x512xf32>
    %344 = arith.addf %330, %343 : vector<32x512xf32>
    %c0_133 = arith.constant 0 : index
    %c0_134 = arith.constant 0 : index
    %345 = vector.load %arg9[%c0_133, %c0_134] : memref<32x1xf32, #tpu.memory_space<vmem>>, vector<32x1xf32>
    %346 = vector.broadcast %345 : vector<32x1xf32> to vector<32x512xf32>
    %347 = arith.addf %344, %346 : vector<32x512xf32>
    %cst_135 = arith.constant 0.000000e+00 : f32
    %348 = vector.broadcast %cst_135 : f32 to vector<32x512xf32>
    %349 = arith.maximumf %347, %348 : vector<32x512xf32>
    %350 = vector.extract_strided_slice %349 {offsets = [0, 8], sizes = [32, 504], strides = [1, 1]} : vector<32x512xf32> to vector<32x504xf32>
    %351 = vector.extract_strided_slice %349 {offsets = [0, 0], sizes = [32, 8], strides = [1, 1]} : vector<32x512xf32> to vector<32x8xf32>
    %352 = tpu.concatenate %350, %351 in 1 : vector<32x504xf32>, vector<32x8xf32> -> vector<32x512xf32>
    %353 = arith.maximumf %349, %352 : vector<32x512xf32>
    %354 = vector.extract_strided_slice %353 {offsets = [0, 16], sizes = [32, 496], strides = [1, 1]} : vector<32x512xf32> to vector<32x496xf32>
    %355 = vector.extract_strided_slice %353 {offsets = [0, 0], sizes = [32, 16], strides = [1, 1]} : vector<32x512xf32> to vector<32x16xf32>
    %356 = tpu.concatenate %354, %355 in 1 : vector<32x496xf32>, vector<32x16xf32> -> vector<32x512xf32>
    %357 = vector.extract_strided_slice %353 {offsets = [0, 32], sizes = [32, 480], strides = [1, 1]} : vector<32x512xf32> to vector<32x480xf32>
    %358 = vector.extract_strided_slice %353 {offsets = [0, 0], sizes = [32, 32], strides = [1, 1]} : vector<32x512xf32> to vector<32x32xf32>
    %359 = tpu.concatenate %357, %358 in 1 : vector<32x480xf32>, vector<32x32xf32> -> vector<32x512xf32>
    %360 = vector.extract_strided_slice %353 {offsets = [0, 48], sizes = [32, 464], strides = [1, 1]} : vector<32x512xf32> to vector<32x464xf32>
    %361 = vector.extract_strided_slice %353 {offsets = [0, 0], sizes = [32, 48], strides = [1, 1]} : vector<32x512xf32> to vector<32x48xf32>
    %362 = tpu.concatenate %360, %361 in 1 : vector<32x464xf32>, vector<32x48xf32> -> vector<32x512xf32>
    %363 = tpu.concatenate %353, %356, %359, %362 in 0 : vector<32x512xf32>, vector<32x512xf32>, vector<32x512xf32>, vector<32x512xf32> -> vector<128x512xf32>
    %364 = tpu.transpose %363, [1, 0] : vector<128x512xf32> -> vector<512x128xf32>
    %c0_136 = arith.constant 0 : index
    %c0_137 = arith.constant 0 : index
    %365 = vector.load %arg13[%c0_136, %c0_137] : memref<512x128xf32, #tpu.memory_space<vmem>>, vector<512x128xf32>
    tpu.vector_store %arg13[%c0_136, %c0_137], %364 {strides = array<i32>} : memref<512x128xf32, #tpu.memory_space<vmem>>, vector<512x128xf32>,
    %c0_138 = arith.constant 0 : index
    %c0_139 = arith.constant 0 : index
    %366 = tpu.strided_load %arg13[%c0_138, %c0_139] {strides = array<i32: 64, 1>} : memref<512x128xf32, #tpu.memory_space<vmem>>, vector<8x128xf32>
    %c0_140 = arith.constant 0 : index
    %c0_141 = arith.constant 0 : index
    %367 = vector.load %arg10[%c0_140, %c0_141] : memref<128x32xf32, #tpu.memory_space<vmem>>, vector<128x32xf32>
    %cst_142 = arith.constant dense<0.000000e+00> : vector<8x32xf32>
    %368 = tpu.matmul %366, %367, %cst_142 {dimension_numbers = #tpu.dot_dimension_numbers<[1], [0], [0], [1], [0, 0, 1, 1], [], []>} : vector<8x128xf32>, vector<128x32xf32>, vector<8x32xf32> -> vector<8x32xf32>
    %c0_143 = arith.constant 0 : index
    %c0_144 = arith.constant 0 : index
    %369 = vector.load %arg11[%c0_143, %c0_144] : memref<1x32xf32, #tpu.memory_space<vmem>>, vector<1x32xf32>
    %370 = vector.broadcast %369 : vector<1x32xf32> to vector<8x32xf32>
    %371 = arith.addf %368, %370 : vector<8x32xf32>
    %c0_145 = arith.constant 0 : index
    %c0_146 = arith.constant 0 : index
    %372 = vector.load %arg12[%c0_145, %c0_146] : memref<8x32xf32, #tpu.memory_space<vmem>>, vector<8x32xf32>
    tpu.vector_store %arg12[%c0_145, %c0_146], %371 {strides = array<i32>} : memref<8x32xf32, #tpu.memory_space<vmem>>, vector<8x32xf32>,
    return
  }
  func.func @transform_0(%arg0: i32) -> (i32, i32) {
    %c0_i32 = arith.constant 0 : i32
    %c0_i32_0 = arith.constant 0 : i32
    return %c0_i32, %arg0 : i32, i32
  }
  func.func @transform_1(%arg0: i32) -> (i32, i32, i32) {
    %c0_i32 = arith.constant 0 : i32
    %c0_i32_0 = arith.constant 0 : i32
    %c0_i32_1 = arith.constant 0 : i32
    %c0_i32_2 = arith.constant 0 : i32
    return %c0_i32, %c0_i32_0, %c0_i32_1 : i32, i32, i32
  }
  func.func @transform_2(%arg0: i32) -> (i32, i32) {
    %c0_i32 = arith.constant 0 : i32
    %c0_i32_0 = arith.constant 0 : i32
    %c0_i32_1 = arith.constant 0 : i32
    return %c0_i32, %c0_i32_0 : i32, i32
  }
  func.func @transform_3(%arg0: i32) -> (i32, i32, i32) {
    %c0_i32 = arith.constant 0 : i32
    %c0_i32_0 = arith.constant 0 : i32
    %c0_i32_1 = arith.constant 0 : i32
    %c0_i32_2 = arith.constant 0 : i32
    return %c0_i32, %c0_i32_0, %c0_i32_1 : i32, i32, i32
  }
  func.func @transform_4(%arg0: i32) -> (i32, i32) {
    %c0_i32 = arith.constant 0 : i32
    %c0_i32_0 = arith.constant 0 : i32
    %c0_i32_1 = arith.constant 0 : i32
    return %c0_i32, %c0_i32_0 : i32, i32
  }
  func.func @transform_5(%arg0: i32) -> (i32, i32, i32) {
    %c0_i32 = arith.constant 0 : i32
    %c0_i32_0 = arith.constant 0 : i32
    %c0_i32_1 = arith.constant 0 : i32
    %c0_i32_2 = arith.constant 0 : i32
    return %c0_i32, %c0_i32_0, %c0_i32_1 : i32, i32, i32
  }
  func.func @transform_6(%arg0: i32) -> (i32, i32) {
    %c0_i32 = arith.constant 0 : i32
    %c0_i32_0 = arith.constant 0 : i32
    %c0_i32_1 = arith.constant 0 : i32
    return %c0_i32, %c0_i32_0 : i32, i32
  }
  func.func @transform_7(%arg0: i32) -> (i32, i32, i32) {
    %c0_i32 = arith.constant 0 : i32
    %c0_i32_0 = arith.constant 0 : i32
    %c0_i32_1 = arith.constant 0 : i32
    %c0_i32_2 = arith.constant 0 : i32
    return %c0_i32, %c0_i32_0, %c0_i32_1 : i32, i32, i32
  }
  func.func @transform_8(%arg0: i32) -> (i32, i32) {
    %c0_i32 = arith.constant 0 : i32
    %c0_i32_0 = arith.constant 0 : i32
    %c0_i32_1 = arith.constant 0 : i32
    return %c0_i32, %c0_i32_0 : i32, i32
  }
  func.func @transform_9(%arg0: i32) -> (i32, i32) {
    %c0_i32 = arith.constant 0 : i32
    %c0_i32_0 = arith.constant 0 : i32
    %c0_i32_1 = arith.constant 0 : i32
    return %c0_i32, %c0_i32_0 : i32, i32
  }
  func.func @transform_10(%arg0: i32) -> (i32, i32) {
    %c0_i32 = arith.constant 0 : i32
    %c0_i32_0 = arith.constant 0 : i32
    %c0_i32_1 = arith.constant 0 : i32
    return %c0_i32, %c0_i32_0 : i32, i32
  }
  func.func @transform_11(%arg0: i32) -> (i32, i32) {
    %c0_i32 = arith.constant 0 : i32
    %c0_i32_0 = arith.constant 0 : i32
    return %arg0, %c0_i32 : i32, i32
  }
}

</mosaic_0001>

<llo_original>
// kernel: tpu_custom_call.1
$region0: #{tpu_custom_call.1}
  #allocation0 [shape = 'u32[]', space=smem, size = 0x4, offset = 0x4, fixed_abs, tag = 'smem constant byte address 0x4 - core index']
  #allocation1 [shape = 'u32[144,128]{1,0:T(1,128)}', space=vmem, size = 0x12000, scoped, tag = 'internal scratch']
  #allocation2 [shape = 'f32[512,128]{1,0:T(8,128)}', space=vmem, size = 0x40000, scoped, tag = 'scratch operand']
  %s0 = inlined_call_operand.vmem [shape: f32[3,1024], index: 0, kind: input, shape index: {}]
  %s1 = inlined_call_operand.vmem [shape: f32[9,4,3], index: 1, kind: input, shape index: {}]
  %s2 = inlined_call_operand.vmem [shape: f32[4,1], index: 2, kind: input, shape index: {}]
  %s3 = inlined_call_operand.vmem [shape: f32[7,8,4], index: 3, kind: input, shape index: {}]
  %s4 = inlined_call_operand.vmem [shape: f32[8,1], index: 4, kind: input, shape index: {}]
  %s5 = inlined_call_operand.vmem [shape: f32[5,16,8], index: 5, kind: input, shape index: {}]
  %s6 = inlined_call_operand.vmem [shape: f32[16,1], index: 6, kind: input, shape index: {}]
  %s7 = inlined_call_operand.vmem [shape: f32[3,32,16], index: 7, kind: input, shape index: {}]
  %s8 = inlined_call_operand.vmem [shape: f32[32,1], index: 8, kind: input, shape index: {}]
  %s9 = inlined_call_operand.vmem [shape: f32[128,32], index: 9, kind: input, shape index: {}]
  %s10 = inlined_call_operand.vmem [shape: f32[1,32], index: 10, kind: input, shape index: {}]
  %s11 = inlined_call_operand.hbm [shape: f32[16,32], index: 11, kind: output, shape index: {}]
  %s12 = sld [smem:[#allocation0]]
  $region77: #{tpu_custom_call.1} parent=0
    _
  %s14 = ssub.s32 1, %s12
  %s15 = scalar_select 0, %s14, %s12
  $region1: #{tpu_custom_call.1} parent=0
    #allocation3 [shape = 'u8[8192]{0}', space=vmem, size = 0x2000, scoped, tag = 'output window, operand 0']
    #allocation4 [shape = 's32[2]{0}', space=sflag, size = 0x8, scoped, tag = 'scoped memory for tpu_custom_call.1']
    %16 = vsyncpa [#allocation4], 0
    %s17 = scalar_lea.sflag [#allocation4], 1
    %18 = vsyncpa %s17, 0
    loop: start=0, step=1, limit=4
    $region2: #{tpu_custom_call.1} parent=1 // loop_pre_header
      _
    $region3: #{tpu_custom_call.1} parent=1 // loop_header
      %s20 = sphi 0, %s24
      %p21 = scmp.ge.s32.totalorder %s20, 4
      %s30 = sphi 0, %s32
      %s33 = sphi 0, %s30
      %s34 = sphi 0, %s33
      %s50 = sphi 0, %s34
      %s54 = sphi 0, %s54
      %s56 = sphi 0, %s54
      %s57 = sphi 0, %s56
      %s71 = sphi 0, %s57
      %s75 = sphi 0, %s75
      %s77 = sphi 0, %s75
      %s78 = sphi 0, %s77
      %s92 = sphi 0, %s78
      %s96 = sphi 0, %s96
      %s98 = sphi 0, %s96
      %s99 = sphi 0, %s98
      %s113 = sphi 0, %s99
      %s117 = sphi 0, %s117
      %s119 = sphi 0, %s117
      %s120 = sphi 0, %s119
      %s134 = sphi 0, %s120
      %s138 = sphi 0, %s138
      %s140 = sphi 0, %s138
      %s141 = sphi 0, %s140
      %s155 = sphi 0, %s141
      %s159 = sphi 0, %s159
      %s161 = sphi 0, %s159
      %s162 = sphi 0, %s161
      %s176 = sphi 0, %s162
      %s180 = sphi 0, %s180
      %s182 = sphi 0, %s180
      %s183 = sphi 0, %s182
      %s197 = sphi 0, %s183
      %s201 = sphi 0, %s201
      %s203 = sphi 0, %s201
      %s204 = sphi 0, %s203
      %s218 = sphi 0, %s204
      %s222 = sphi 0, %s222
      %s224 = sphi 0, %s222
      %s225 = sphi 0, %s224
      %s239 = sphi 0, %s225
      %s243 = sphi 0, %s243
      %s245 = sphi 0, %s243
      %s246 = sphi 0, %s245
      %s260 = sphi 0, %s246
      %s266 = sphi 0, %s268
      %s269 = sphi 0, %s266
      %s270 = sphi 0, %s269
      %s286 = sphi 0, %s270
    $region4: #{tpu_custom_call.1} parent=1 // loop_header_branch
      %23 = sbr.rel (%p21) target = $region8
    $region5: #{tpu_custom_call.1} parent=1 // loop_body
      %s25 = ssub.s32 %s20, 1
      %s26 = ssub.s32 %s20, 2
      %s27 = sadd.s32 %s20, 1
      %s28 = ssub.s32 %s20, %s27
      %p29 = scmp.eq.s32.totalorder %s28, 0
      %s31 = sadd.s32 %s30, 1
      %s32 = scalar_select %p29, %s30, %s31
      %p35 = pneg %p29
      %p36 = scmp.eq.s32.totalorder %s20, 1
      %p37 = por %p35, %p36
      %p38 = scmp.ne.s32.totalorder %s30, %s33
      %p39 = scmp.eq.s32.totalorder %s20, 0
      %p40 = por %p38, %p39
      %p41 = scmp.ne.s32.totalorder %s30, %s33
      %p42 = scmp.eq.s32.totalorder %s25, 1
      %p43 = por %p41, %p42
      %p44 = scmp.ne.s32.totalorder %s33, %s34
      %p45 = scmp.eq.s32.totalorder %s25, 0
      %p46 = por %p44, %p45
      %p47 = scmp.ne.s32.totalorder %s33, %s34
      %p48 = scmp.eq.s32.totalorder %s26, 1
      %p49 = por %p47, %p48
      %p51 = scmp.ne.s32.totalorder %s34, %s50
      %p52 = scmp.eq.s32.totalorder %s26, 0
      %p53 = por %p51, %p52
      %s55 = sadd.s32 %s54, 1
      %p58 = scmp.eq.s32.totalorder %s20, 1
      %p59 = scmp.ne.s32.totalorder %s54, %s56
      %p60 = scmp.eq.s32.totalorder %s20, 0
      %p61 = por %p59, %p60
      %p62 = scmp.ne.s32.totalorder %s54, %s56
      %p63 = scmp.eq.s32.totalorder %s25, 1
      %p64 = por %p62, %p63
      %p65 = scmp.ne.s32.totalorder %s56, %s57
      %p66 = scmp.eq.s32.totalorder %s25, 0
      %p67 = por %p65, %p66
      %p68 = scmp.ne.s32.totalorder %s56, %s57
      %p69 = scmp.eq.s32.totalorder %s26, 1
      %p70 = por %p68, %p69
      %p72 = scmp.ne.s32.totalorder %s57, %s71
      %p73 = scmp.eq.s32.totalorder %s26, 0
      %p74 = por %p72, %p73
      %s76 = sadd.s32 %s75, 1
      %p79 = scmp.eq.s32.totalorder %s20, 1
      %p80 = scmp.ne.s32.totalorder %s75, %s77
      %p81 = scmp.eq.s32.totalorder %s20, 0
      %p82 = por %p80, %p81
      %p83 = scmp.ne.s32.totalorder %s75, %s77
      %p84 = scmp.eq.s32.totalorder %s25, 1
      %p85 = por %p83, %p84
      %p86 = scmp.ne.s32.totalorder %s77, %s78
      %p87 = scmp.eq.s32.totalorder %s25, 0
      %p88 = por %p86, %p87
      %p89 = scmp.ne.s32.totalorder %s77, %s78
      %p90 = scmp.eq.s32.totalorder %s26, 1
      %p91 = por %p89, %p90
      %p93 = scmp.ne.s32.totalorder %s78, %s92
      %p94 = scmp.eq.s32.totalorder %s26, 0
      %p95 = por %p93, %p94
      %s97 = sadd.s32 %s96, 1
      %p100 = scmp.eq.s32.totalorder %s20, 1
      %p101 = scmp.ne.s32.totalorder %s96, %s98
      %p102 = scmp.eq.s32.totalorder %s20, 0
      %p103 = por %p101, %p102
      %p104 = scmp.ne.s32.totalorder %s96, %s98
      %p105 = scmp.eq.s32.totalorder %s25, 1
      %p106 = por %p104, %p105
      %p107 = scmp.ne.s32.totalorder %s98, %s99
      %p108 = scmp.eq.s32.totalorder %s25, 0
      %p109 = por %p107, %p108
      %p110 = scmp.ne.s32.totalorder %s98, %s99
      %p111 = scmp.eq.s32.totalorder %s26, 1
      %p112 = por %p110, %p111
      %p114 = scmp.ne.s32.totalorder %s99, %s113
      %p115 = scmp.eq.s32.totalorder %s26, 0
      %p116 = por %p114, %p115
      %s118 = sadd.s32 %s117, 1
      %p121 = scmp.eq.s32.totalorder %s20, 1
      %p122 = scmp.ne.s32.totalorder %s117, %s119
      %p123 = scmp.eq.s32.totalorder %s20, 0
      %p124 = por %p122, %p123
      %p125 = scmp.ne.s32.totalorder %s117, %s119
      %p126 = scmp.eq.s32.totalorder %s25, 1
      %p127 = por %p125, %p126
      %p128 = scmp.ne.s32.totalorder %s119, %s120
      %p129 = scmp.eq.s32.totalorder %s25, 0
      %p130 = por %p128, %p129
      %p131 = scmp.ne.s32.totalorder %s119, %s120
      %p132 = scmp.eq.s32.totalorder %s26, 1
      %p133 = por %p131, %p132
      %p135 = scmp.ne.s32.totalorder %s120, %s134
      %p136 = scmp.eq.s32.totalorder %s26, 0
      %p137 = por %p135, %p136
      %s139 = sadd.s32 %s138, 1
      %p142 = scmp.eq.s32.totalorder %s20, 1
      %p143 = scmp.ne.s32.totalorder %s138, %s140
      %p144 = scmp.eq.s32.totalorder %s20, 0
      %p145 = por %p143, %p144
      %p146 = scmp.ne.s32.totalorder %s138, %s140
      %p147 = scmp.eq.s32.totalorder %s25, 1
      %p148 = por %p146, %p147
      %p149 = scmp.ne.s32.totalorder %s140, %s141
      %p150 = scmp.eq.s32.totalorder %s25, 0
      %p151 = por %p149, %p150
      %p152 = scmp.ne.s32.totalorder %s140, %s141
      %p153 = scmp.eq.s32.totalorder %s26, 1
      %p154 = por %p152, %p153
      %p156 = scmp.ne.s32.totalorder %s141, %s155
      %p157 = scmp.eq.s32.totalorder %s26, 0
      %p158 = por %p156, %p157
      %s160 = sadd.s32 %s159, 1
      %p163 = scmp.eq.s32.totalorder %s20, 1
      %p164 = scmp.ne.s32.totalorder %s159, %s161
      %p165 = scmp.eq.s32.totalorder %s20, 0
      %p166 = por %p164, %p165
      %p167 = scmp.ne.s32.totalorder %s159, %s161
      %p168 = scmp.eq.s32.totalorder %s25, 1
      %p169 = por %p167, %p168
      %p170 = scmp.ne.s32.totalorder %s161, %s162
      %p171 = scmp.eq.s32.totalorder %s25, 0
      %p172 = por %p170, %p171
      %p173 = scmp.ne.s32.totalorder %s161, %s162
      %p174 = scmp.eq.s32.totalorder %s26, 1
      %p175 = por %p173, %p174
      %p177 = scmp.ne.s32.totalorder %s162, %s176
      %p178 = scmp.eq.s32.totalorder %s26, 0
      %p179 = por %p177, %p178
      %s181 = sadd.s32 %s180, 1
      %p184 = scmp.eq.s32.totalorder %s20, 1
      %p185 = scmp.ne.s32.totalorder %s180, %s182
      %p186 = scmp.eq.s32.totalorder %s20, 0
      %p187 = por %p185, %p186
      %p188 = scmp.ne.s32.totalorder %s180, %s182
      %p189 = scmp.eq.s32.totalorder %s25, 1
      %p190 = por %p188, %p189
      %p191 = scmp.ne.s32.totalorder %s182, %s183
      %p192 = scmp.eq.s32.totalorder %s25, 0
      %p193 = por %p191, %p192
      %p194 = scmp.ne.s32.totalorder %s182, %s183
      %p195 = scmp.eq.s32.totalorder %s26, 1
      %p196 = por %p194, %p195
      %p198 = scmp.ne.s32.totalorder %s183, %s197
      %p199 = scmp.eq.s32.totalorder %s26, 0
      %p200 = por %p198, %p199
      %s202 = sadd.s32 %s201, 1
      %p205 = scmp.eq.s32.totalorder %s20, 1
      %p206 = scmp.ne.s32.totalorder %s201, %s203
      %p207 = scmp.eq.s32.totalorder %s20, 0
      %p208 = por %p206, %p207
      %p209 = scmp.ne.s32.totalorder %s201, %s203
      %p210 = scmp.eq.s32.totalorder %s25, 1
      %p211 = por %p209, %p210
      %p212 = scmp.ne.s32.totalorder %s203, %s204
      %p213 = scmp.eq.s32.totalorder %s25, 0
      %p214 = por %p212, %p213
      %p215 = scmp.ne.s32.totalorder %s203, %s204
      %p216 = scmp.eq.s32.totalorder %s26, 1
      %p217 = por %p215, %p216
      %p219 = scmp.ne.s32.totalorder %s204, %s218
      %p220 = scmp.eq.s32.totalorder %s26, 0
      %p221 = por %p219, %p220
      %s223 = sadd.s32 %s222, 1
      %p226 = scmp.eq.s32.totalorder %s20, 1
      %p227 = scmp.ne.s32.totalorder %s222, %s224
      %p228 = scmp.eq.s32.totalorder %s20, 0
      %p229 = por %p227, %p228
      %p230 = scmp.ne.s32.totalorder %s222, %s224
      %p231 = scmp.eq.s32.totalorder %s25, 1
      %p232 = por %p230, %p231
      %p233 = scmp.ne.s32.totalorder %s224, %s225
      %p234 = scmp.eq.s32.totalorder %s25, 0
      %p235 = por %p233, %p234
      %p236 = scmp.ne.s32.totalorder %s224, %s225
      %p237 = scmp.eq.s32.totalorder %s26, 1
      %p238 = por %p236, %p237
      %p240 = scmp.ne.s32.totalorder %s225, %s239
      %p241 = scmp.eq.s32.totalorder %s26, 0
      %p242 = por %p240, %p241
      %s244 = sadd.s32 %s243, 1
      %p247 = scmp.eq.s32.totalorder %s20, 1
      %p248 = scmp.ne.s32.totalorder %s243, %s245
      %p249 = scmp.eq.s32.totalorder %s20, 0
      %p250 = por %p248, %p249
      %p251 = scmp.ne.s32.totalorder %s243, %s245
      %p252 = scmp.eq.s32.totalorder %s25, 1
      %p253 = por %p251, %p252
      %p254 = scmp.ne.s32.totalorder %s245, %s246
      %p255 = scmp.eq.s32.totalorder %s25, 0
      %p256 = por %p254, %p255
      %p257 = scmp.ne.s32.totalorder %s245, %s246
      %p258 = scmp.eq.s32.totalorder %s26, 1
      %p259 = por %p257, %p258
      %p261 = scmp.ne.s32.totalorder %s246, %s260
      %p262 = scmp.eq.s32.totalorder %s26, 0
      %p263 = por %p261, %p262
      %s264 = ssub.s32 %s20, %s27
      %p265 = scmp.eq.s32.totalorder %s264, 0
      %s267 = sadd.s32 %s266, 1
      %s268 = scalar_select %p265, %s266, %s267
      %p271 = pneg %p265
      %p272 = scmp.eq.s32.totalorder %s20, 1
      %p273 = por %p271, %p272
      %p274 = scmp.ne.s32.totalorder %s266, %s269
      %p275 = scmp.eq.s32.totalorder %s20, 0
      %p276 = por %p274, %p275
      %p277 = scmp.ne.s32.totalorder %s266, %s269
      %p278 = scmp.eq.s32.totalorder %s25, 1
      %p279 = por %p277, %p278
      %p280 = scmp.ne.s32.totalorder %s269, %s270
      %p281 = scmp.eq.s32.totalorder %s25, 0
      %p282 = por %p280, %p281
      %p283 = scmp.ne.s32.totalorder %s269, %s270
      %p284 = scmp.eq.s32.totalorder %s26, 1
      %p285 = por %p283, %p284
      %p287 = scmp.ne.s32.totalorder %s270, %s286
      %p288 = scmp.eq.s32.totalorder %s26, 0
      %p289 = por %p287, %p288
      %p290 = scmp.le.s32.totalorder 1, %s20
      %p291 = scmp.lt.s32.totalorder %s20, 3
      %p292 = pnand %p290, %p291
      %p293 = pneg %p292
      // Predicated region
      $region9: #{tpu_custom_call.1} parent=5 // pred_check
        _
      $region10: #{tpu_custom_call.1} parent=5 // pred_check_branch
        %295 = sbr.rel (%p292) target = $region12
      $region11: #{tpu_custom_call.1} parent=5 // pred_region
        %s296 = ssub.s32 %s20, 1
        // Predicated region
        $region13: #{tpu_custom_call.1} parent=11 // pred_check
          %p297 = pneg %p67
        $region14: #{tpu_custom_call.1} parent=11 // pred_check_branch
          %299 = sbr.rel (%p297) target = $region16
        $region15: #{tpu_custom_call.1} parent=11 // pred_region
          _
        $region16: #{tpu_custom_call.1} parent=11 // pred_fallthru
          _
        // Predicated region
        $region17: #{tpu_custom_call.1} parent=11 // pred_check
          %p300 = pneg %p88
        $region18: #{tpu_custom_call.1} parent=11 // pred_check_branch
          %302 = sbr.rel (%p300) target = $region20
        $region19: #{tpu_custom_call.1} parent=11 // pred_region
          _
        $region20: #{tpu_custom_call.1} parent=11 // pred_fallthru
          _
        // Predicated region
        $region21: #{tpu_custom_call.1} parent=11 // pred_check
          %p303 = pneg %p109
        $region22: #{tpu_custom_call.1} parent=11 // pred_check_branch
          %305 = sbr.rel (%p303) target = $region24
        $region23: #{tpu_custom_call.1} parent=11 // pred_region
          _
        $region24: #{tpu_custom_call.1} parent=11 // pred_fallthru
          _
        // Predicated region
        $region25: #{tpu_custom_call.1} parent=11 // pred_check
          %p306 = pneg %p130
        $region26: #{tpu_custom_call.1} parent=11 // pred_check_branch
          %308 = sbr.rel (%p306) target = $region28
        $region27: #{tpu_custom_call.1} parent=11 // pred_region
          _
        $region28: #{tpu_custom_call.1} parent=11 // pred_fallthru
          _
        // Predicated region
        $region29: #{tpu_custom_call.1} parent=11 // pred_check
          %p309 = pneg %p151
        $region30: #{tpu_custom_call.1} parent=11 // pred_check_branch
          %311 = sbr.rel (%p309) target = $region32
        $region31: #{tpu_custom_call.1} parent=11 // pred_region
          _
        $region32: #{tpu_custom_call.1} parent=11 // pred_fallthru
          _
        // Predicated region
        $region33: #{tpu_custom_call.1} parent=11 // pred_check
          %p312 = pneg %p172
        $region34: #{tpu_custom_call.1} parent=11 // pred_check_branch
          %314 = sbr.rel (%p312) target = $region36
        $region35: #{tpu_custom_call.1} parent=11 // pred_region
          _
        $region36: #{tpu_custom_call.1} parent=11 // pred_fallthru
          _
        // Predicated region
        $region37: #{tpu_custom_call.1} parent=11 // pred_check
          %p315 = pneg %p193
        $region38: #{tpu_custom_call.1} parent=11 // pred_check_branch
          %317 = sbr.rel (%p315) target = $region40
        $region39: #{tpu_custom_call.1} parent=11 // pred_region
          _
        $region40: #{tpu_custom_call.1} parent=11 // pred_fallthru
          _
        // Predicated region
        $region41: #{tpu_custom_call.1} parent=11 // pred_check
          %p318 = pneg %p214
        $region42: #{tpu_custom_call.1} parent=11 // pred_check_branch
          %320 = sbr.rel (%p318) target = $region44
        $region43: #{tpu_custom_call.1} parent=11 // pred_region
          _
        $region44: #{tpu_custom_call.1} parent=11 // pred_fallthru
          _
        // Predicated region
        $region45: #{tpu_custom_call.1} parent=11 // pred_check
          %p321 = pneg %p235
        $region46: #{tpu_custom_call.1} parent=11 // pred_check_branch
          %323 = sbr.rel (%p321) target = $region48
        $region47: #{tpu_custom_call.1} parent=11 // pred_region
          _
        $region48: #{tpu_custom_call.1} parent=11 // pred_fallthru
          _
        // Predicated region
        $region49: #{tpu_custom_call.1} parent=11 // pred_check
          %p324 = pneg %p256
        $region50: #{tpu_custom_call.1} parent=11 // pred_check_branch
          %326 = sbr.rel (%p324) target = $region52
        $region51: #{tpu_custom_call.1} parent=11 // pred_region
          _
        $region52: #{tpu_custom_call.1} parent=11 // pred_fallthru
          _
      $region12: #{tpu_custom_call.1} parent=5 // pred_fallthru
        _
      %p327 = scmp.lt.s32.totalorder %s20, 2
      // Predicated region
      $region53: #{tpu_custom_call.1} parent=5 // pred_check
        %p328 = pneg %p327
      $region54: #{tpu_custom_call.1} parent=5 // pred_check_branch
        %330 = sbr.rel (%p328) target = $region56
      $region55: #{tpu_custom_call.1} parent=5 // pred_region
        // Predicated region
        $region57: #{tpu_custom_call.1} parent=55 // pred_check
          %p331 = pneg %p40
        $region58: #{tpu_custom_call.1} parent=55 // pred_check_branch
          %333 = sbr.rel (%p331) target = $region60
        $region59: #{tpu_custom_call.1} parent=55 // pred_region
          %s334 = smul.u32 4, %s20
          %p335 = scmp.lt.s32.totalorder %s334, 7
          %s336 = scalar_select %p335, %s334, 7
          %s337 = smul.addr %s336, 4
          %s338 = scalar_lea.vmem %s0, %s337
          %s339 = smul.u32 4, %s20
        $region60: #{tpu_custom_call.1} parent=55 // pred_fallthru
          _
      $region56: #{tpu_custom_call.1} parent=5 // pred_fallthru
        _
      %p340 = scmp.le.s32.totalorder 1, %s20
      %p341 = scmp.lt.s32.totalorder %s20, 3
      %p342 = pnand %p340, %p341
      %p343 = pneg %p342
      // Predicated region
      $region61: #{tpu_custom_call.1} parent=5 // pred_check
        _
      $region62: #{tpu_custom_call.1} parent=5 // pred_check_branch
        %345 = sbr.rel (%p342) target = $region64
      $region63: #{tpu_custom_call.1} parent=5 // pred_region
        %s346 = ssub.s32 %s20, 1
        %s347 = smul.u32 4, %s25
        %p348 = scmp.lt.s32.totalorder %s347, 7
        %s349 = scalar_select %p348, %s347, 7
        %s350 = smul.addr %s349, 4
        %s351 = scalar_lea.vmem %s0, %s350
        %p352 = pneg %p46
        %p353 = pneg %p43
        %p354 = pneg %p67
        %p355 = pneg %p64
        %p356 = pneg %p88
        %p357 = pneg %p85
        %p358 = pneg %p109
        %p359 = pneg %p106
        %p360 = pneg %p130
        %p361 = pneg %p127
        %p362 = pneg %p151
        %p363 = pneg %p148
        %p364 = pneg %p172
        %p365 = pneg %p169
        %p366 = pneg %p193
        %p367 = pneg %p190
        %p368 = pneg %p214
        %p369 = pneg %p211
        %p370 = pneg %p235
        %p371 = pneg %p232
        %p372 = pneg %p256
        %p373 = pneg %p253
        %p374 = pneg %p282
        %p375 = pneg %p279
        %s376 = sand.u32 %s269, 1
        %s377 = scalar_lea.sflag [#allocation4], %s376
        %s378 = sand.u32 %s269, 1
        %s379 = smul.addr %s378, 8
        %s380 = scalar_lea.vmem [#allocation3], %s379
        %s381 = smul.u32 4, %s25
        %p382 = scmp.lt.s32.totalorder %s381, 7
        %s383 = scalar_select %p382, %s381, 7
        %s384 = smul.addr %s383, 4
        %s385 = scalar_lea.vmem %s0, %s384
        %s386 = smul.u32 4, %s25
        %v387 = vlaneseq
        %v388 = vand.u32 %v387, 127
        %v389 = vadd.s32 %v388, 128
        %v390 = vadd.s32 %v388, 256
        %v391 = vadd.s32 %v388, 384
        %vm392 = vcmp.lt.s32.totalorder %v388, 0
        %v393 = vsub.s32 0, %v388
        %v394 = vsel %vm392, %v393, %v388
        %v395 = vshrl.u32 %v394, 6
        %v396 = vand.u32 %v394, 63
        %v397 = vsub.s32 0, %v396
        %v398 = vsel %vm392, %v397, %v396
        %vm399 = vcmp.lt.s32.totalorder %v389, 0
        %v400 = vsub.s32 0, %v389
        %v401 = vsel %vm399, %v400, %v389
        %v402 = vshrl.u32 %v401, 6
        %v403 = vand.u32 %v401, 63
        %v404 = vsub.s32 0, %v403
        %v405 = vsel %vm399, %v404, %v403
        %vm406 = vcmp.lt.s32.totalorder %v390, 0
        %v407 = vsub.s32 0, %v390
        %v408 = vsel %vm406, %v407, %v390
        %v409 = vshrl.u32 %v408, 6
        %v410 = vand.u32 %v408, 63
        %v411 = vsub.s32 0, %v410
        %v412 = vsel %vm406, %v411, %v410
        %vm413 = vcmp.lt.s32.totalorder %v391, 0
        %v414 = vsub.s32 0, %v391
        %v415 = vsel %vm413, %v414, %v391
        %v416 = vshrl.u32 %v415, 6
        %v417 = vand.u32 %v415, 63
        %v418 = vsub.s32 0, %v417
        %v419 = vsel %vm413, %v418, %v417
        %vm420 = vcmp.ne.s32.totalorder %v398, 0
        %vm421 = vcmp.ne.s32.totalorder %v405, 0
        %vm422 = vcmp.ne.s32.totalorder %v412, 0
        %vm423 = vcmp.ne.s32.totalorder %v419, 0
        %vm424 = vcmp.lt.s32.totalorder %v398, 0
        %vm425 = vcmp.lt.s32.totalorder %v405, 0
        %vm426 = vcmp.lt.s32.totalorder %v412, 0
        %vm427 = vcmp.lt.s32.totalorder %v419, 0
        %vm428 = vmand %vm424, %vm420
        %vm429 = vmand %vm425, %vm421
        %vm430 = vmand %vm426, %vm422
        %vm431 = vmand %vm427, %vm423
        %v432 = vadd.s32 %v398, 64
        %v433 = vadd.s32 %v405, 64
        %v434 = vadd.s32 %v412, 64
        %v435 = vadd.s32 %v419, 64
        %v436 = vsel %vm428, %v432, %v398
        %v437 = vsel %vm429, %v433, %v405
        %v438 = vsel %vm430, %v434, %v412
        %v439 = vsel %vm431, %v435, %v419
        %v440 = vld [vmem:[%s385] sm:$0x77]
        %v441 = vld [vmem:[%s385 + $0x8] sm:$0x77]
        %vm442 = vcmp.ge.s32.totalorder %v436, 4
        %vm443 = vcmp.ge.s32.totalorder %v437, 4
        %vm444 = vcmp.ge.s32.totalorder %v438, 4
        %vm445 = vcmp.ge.s32.totalorder %v439, 4
        %v447 = vcombine.high %v441, %v441
        %448 = vrot.lane.b32.xlu0 %v447, 4
        %v449 = vpop.permute.xlu0 %448
        %v452 = vcombine.high %v440, %v440
        %453 = vrot.lane.b32.xlu0 %v440, 4
        %v454 = vpop.permute.xlu0 %453
        %455 = vrot.lane.b32.xlu0 %v452, 4
        %v456 = vpop.permute.xlu0 %455
        %457 = vrot.lane.b32.xlu0 %v441, 4
        %v458 = vpop.permute.xlu0 %457
        %vm459 = vcmask 31744
        %v460 = vsel %vm459, %v454, %v456
        %v461 = vsel %vm459, %v456, %v458
        %v462 = vsel %vm459, %v458, %v449
        %v467 = vsel %vm459, %v449, %v454
        %v468 = vsel %vm442, 1, 0
        %v469 = vsel %vm443, 1, 0
        %v470 = vsel %vm444, 1, 0
        %v471 = vsel %vm445, 1, 0
        %vm472 = vcmp.eq.s32.totalorder %v468, 1
        %vm473 = vcmp.eq.s32.totalorder %v469, 1
        %vm474 = vcmp.eq.s32.totalorder %v470, 1
        %vm475 = vcmp.eq.s32.totalorder %v471, 1
        %v476 = vsel %vm472, %v467, 0.0
        %v477 = vsel %vm473, %v460, 0.0
        %v478 = vsel %vm474, %v461, 0.0
        %v479 = vsel %vm475, %v462, 0.0
        %v480 = vld [vmem:[%s1] sm:$0xf]
        %vm481 = vcmp.ge.s32.totalorder %v436, 3
        %vm482 = vcmp.ge.s32.totalorder %v437, 3
        %vm483 = vcmp.ge.s32.totalorder %v438, 3
        %vm484 = vcmp.ge.s32.totalorder %v439, 3
        %485 = vrot.lane.b32.xlu0 %v447, 3
        %v486 = vpop.permute.xlu0 %485
        %488 = vrot.lane.b32.xlu0 %v440, 3
        %v489 = vpop.permute.xlu0 %488
        %490 = vrot.lane.b32.xlu0 %v452, 3
        %v491 = vpop.permute.xlu0 %490
        %492 = vrot.lane.b32.xlu0 %v441, 3
        %v493 = vpop.permute.xlu0 %492
        %vm494 = vcmask 23552
        %v495 = vsel %vm494, %v489, %v491
        %v496 = vsel %vm494, %v491, %v493
        %v497 = vsel %vm494, %v493, %v486
        %v502 = vsel %vm494, %v486, %v489
        %v503 = vsel %vm481, 1, 0
        %v504 = vsel %vm482, 1, 0
        %v505 = vsel %vm483, 1, 0
        %v506 = vsel %vm484, 1, 0
        %vm507 = vcmp.eq.s32.totalorder %v503, 1
        %vm508 = vcmp.eq.s32.totalorder %v504, 1
        %vm509 = vcmp.eq.s32.totalorder %v505, 1
        %vm510 = vcmp.eq.s32.totalorder %v506, 1
        %v511 = vsel %vm507, %v502, 0.0
        %v512 = vsel %vm508, %v495, 0.0
        %v513 = vsel %vm509, %v496, 0.0
        %v514 = vsel %vm510, %v497, 0.0
        %s515 = scalar_lea.vmem %s1, 4
        %v516 = vld [vmem:[%s515] sm:$0xf]
        %v518 = vsel %vm494, %v516, 0
        %vm520 = vcmask 1042432
        %v522 = vsel %vm520, %v511, 0
        %v525 = vsel %vm520, %v512, 0
        %v528 = vsel %vm520, %v513, 0
        %v531 = vsel %vm520, %v514, 0
        %533 = vmatprep.subr.mxu0 %v525
        %534 = vmatpush1.msra.mxu0 %v522
        %535 = vmatprep.subr.mxu0 0.0
        %536 = vmatpush1.msra.mxu0 0.0
        %537 = vmatprep.subr.mxu0 0.0
        %538 = vmatpush1.msra.mxu0 0.0
        %539 = vmatprep.subr.mxu0 0.0
        %540 = vmatpush1.msra.mxu0 0.0
        %541 = vmatprep.subr.mxu0 0.0
        %542 = vmatpush1.msra.mxu0 0.0
        %543 = vmatprep.subr.mxu0 0.0
        %544 = vmatpush1.msra.mxu0 0.0
        %545 = vmatprep.subr.mxu0 0.0
        %546 = vmatpush1.msra.mxu0 0.0
        %547 = vmatprep.subr.mxu0 0.0
        %548 = vmatpush1.msra.mxu0 0.0
        %549 = vmatprep.subr.mxu0 0.0
        %550 = vmatpush1.msra.mxu0 0.0
        %551 = vmatprep.subr.mxu0 0.0
        %552 = vmatpush1.msra.mxu0 0.0
        %553 = vmatprep.subr.mxu0 0.0
        %554 = vmatpush1.msra.mxu0 0.0
        %555 = vmatprep.subr.mxu0 0.0
        %556 = vmatpush1.msra.mxu0 0.0
        %557 = vmatprep.subr.mxu0 0.0
        %558 = vmatpush1.msra.mxu0 0.0
        %559 = vmatprep.subr.mxu0 0.0
        %560 = vmatpush1.msra.mxu0 0.0
        %561 = vmatprep.subr.mxu0 0.0
        %562 = vmatpush1.msra.mxu0 0.0
        %563 = vmatprep.subr.mxu0 0.0
        %564 = vmatpush1.msra.mxu0 0.0
        %565 = vmatprep.subr.mxu0 0.0
        %566 = vmatpush1.msra.mxu0 0.0
        %567 = vmatprep.subr.mxu0 0.0
        %568 = vmatpush1.msra.mxu0 0.0
        %569 = vmatprep.subr.mxu0 0.0
        %570 = vmatpush1.msra.mxu0 0.0
        %571 = vmatprep.subr.mxu0 0.0
        %572 = vmatpush1.msra.mxu0 0.0
        %573 = vmatprep.subr.mxu0 0.0
        %574 = vmatpush1.msra.mxu0 0.0
        %575 = vmatprep.subr.mxu0 0.0
        %576 = vmatpush1.msra.mxu0 0.0
        %577 = vmatprep.subr.mxu0 0.0
        %578 = vmatpush1.msra.mxu0 0.0
        %579 = vmatprep.subr.mxu0 0.0
        %580 = vmatpush1.msra.mxu0 0.0
        %581 = vmatprep.subr.mxu0 0.0
        %582 = vmatpush1.msra.mxu0 0.0
        %583 = vmatprep.subr.mxu0 0.0
        %584 = vmatpush1.msra.mxu0 0.0
        %585 = vmatprep.subr.mxu0 0.0
        %586 = vmatpush1.msra.mxu0 0.0
        %587 = vmatprep.subr.mxu0 0.0
        %588 = vmatpush1.msra.mxu0 0.0
        %589 = vmatprep.subr.mxu0 0.0
        %590 = vmatpush1.msra.mxu0 0.0
        %591 = vmatprep.subr.mxu0 0.0
        %592 = vmatpush1.msra.mxu0 0.0
        %593 = vmatprep.subr.mxu0 0.0
        %594 = vmatpush1.msra.mxu0 0.0
        %595 = vmatprep.subr.mxu0 0.0
        %596 = vmatpush1.msra.mxu0 0.0
        %597 = vmatprep.mubr.f32.mxu0 0.0
        %598 = vmatmul.mubr.f32.gmra.mrb[0].mxu0 %v518
        %v599 = vpop.f32.mrb[0].mxu0
        %v600 = vadd.f32 0.0, %v599
        %v601 = vpop.f32.mrb[0].mxu0
        %v602 = vadd.f32 0.0, %v601
        %603 = vdwg.mxu0
        %604 = vmatprep.subr.mxu0 %v531
        %605 = vmatpush1.msra.mxu0 %v528
        %606 = vmatprep.subr.mxu0 0.0
        %607 = vmatpush1.msra.mxu0 0.0
        %608 = vmatprep.subr.mxu0 0.0
        %609 = vmatpush1.msra.mxu0 0.0
        %610 = vmatprep.subr.mxu0 0.0
        %611 = vmatpush1.msra.mxu0 0.0
        %612 = vmatprep.subr.mxu0 0.0
        %613 = vmatpush1.msra.mxu0 0.0
        %614 = vmatprep.subr.mxu0 0.0
        %615 = vmatpush1.msra.mxu0 0.0
        %616 = vmatprep.subr.mxu0 0.0
        %617 = vmatpush1.msra.mxu0 0.0
        %618 = vmatprep.subr.mxu0 0.0
        %619 = vmatpush1.msra.mxu0 0.0
        %620 = vmatprep.subr.mxu0 0.0
        %621 = vmatpush1.msra.mxu0 0.0
        %622 = vmatprep.subr.mxu0 0.0
        %623 = vmatpush1.msra.mxu0 0.0
        %624 = vmatprep.subr.mxu0 0.0
        %625 = vmatpush1.msra.mxu0 0.0
        %626 = vmatprep.subr.mxu0 0.0
        %627 = vmatpush1.msra.mxu0 0.0
        %628 = vmatprep.subr.mxu0 0.0
        %629 = vmatpush1.msra.mxu0 0.0
        %630 = vmatprep.subr.mxu0 0.0
        %631 = vmatpush1.msra.mxu0 0.0
        %632 = vmatprep.subr.mxu0 0.0
        %633 = vmatpush1.msra.mxu0 0.0
        %634 = vmatprep.subr.mxu0 0.0
        %635 = vmatpush1.msra.mxu0 0.0
        %636 = vmatprep.subr.mxu0 0.0
        %637 = vmatpush1.msra.mxu0 0.0
        %638 = vmatprep.subr.mxu0 0.0
        %639 = vmatpush1.msra.mxu0 0.0
        %640 = vmatprep.subr.mxu0 0.0
        %641 = vmatpush1.msra.mxu0 0.0
        %642 = vmatprep.subr.mxu0 0.0
        %643 = vmatpush1.msra.mxu0 0.0
        %644 = vmatprep.subr.mxu0 0.0
        %645 = vmatpush1.msra.mxu0 0.0
        %646 = vmatprep.subr.mxu0 0.0
        %647 = vmatpush1.msra.mxu0 0.0
        %648 = vmatprep.subr.mxu0 0.0
        %649 = vmatpush1.msra.mxu0 0.0
        %650 = vmatprep.subr.mxu0 0.0
        %651 = vmatpush1.msra.mxu0 0.0
        %652 = vmatprep.subr.mxu0 0.0
        %653 = vmatpush1.msra.mxu0 0.0
        %654 = vmatprep.subr.mxu0 0.0
        %655 = vmatpush1.msra.mxu0 0.0
        %656 = vmatprep.subr.mxu0 0.0
        %657 = vmatpush1.msra.mxu0 0.0
        %658 = vmatprep.subr.mxu0 0.0
        %659 = vmatpush1.msra.mxu0 0.0
        %660 = vmatprep.subr.mxu0 0.0
        %661 = vmatpush1.msra.mxu0 0.0
        %662 = vmatprep.subr.mxu0 0.0
        %663 = vmatpush1.msra.mxu0 0.0
        %664 = vmatprep.subr.mxu0 0.0
        %665 = vmatpush1.msra.mxu0 0.0
        %666 = vmatprep.subr.mxu0 0.0
        %667 = vmatpush1.msra.mxu0 0.0
        %668 = vmatprep.mubr.f32.mxu0 0.0
        %669 = vmatmul.mubr.f32.gmra.mrb[0].mxu0 %v518
        %v670 = vpop.f32.mrb[0].mxu0
        %v671 = vadd.f32 0.0, %v670
        %v672 = vpop.f32.mrb[0].mxu0
        %v673 = vadd.f32 0.0, %v672
        %674 = vdwg.mxu0
        %v676 = vsel %vm494, %v480, 0
        %v679 = vsel %vm520, %v476, 0
        %v682 = vsel %vm520, %v477, 0
        %v685 = vsel %vm520, %v478, 0
        %v688 = vsel %vm520, %v479, 0
        %690 = vmatprep.subr.mxu0 %v682
        %691 = vmatpush1.msra.mxu0 %v679
        %692 = vmatprep.subr.mxu0 0.0
        %693 = vmatpush1.msra.mxu0 0.0
        %694 = vmatprep.subr.mxu0 0.0
        %695 = vmatpush1.msra.mxu0 0.0
        %696 = vmatprep.subr.mxu0 0.0
        %697 = vmatpush1.msra.mxu0 0.0
        %698 = vmatprep.subr.mxu0 0.0
        %699 = vmatpush1.msra.mxu0 0.0
        %700 = vmatprep.subr.mxu0 0.0
        %701 = vmatpush1.msra.mxu0 0.0
        %702 = vmatprep.subr.mxu0 0.0
        %703 = vmatpush1.msra.mxu0 0.0
        %704 = vmatprep.subr.mxu0 0.0
        %705 = vmatpush1.msra.mxu0 0.0
        %706 = vmatprep.subr.mxu0 0.0
        %707 = vmatpush1.msra.mxu0 0.0
        %708 = vmatprep.subr.mxu0 0.0
        %709 = vmatpush1.msra.mxu0 0.0
        %710 = vmatprep.subr.mxu0 0.0
        %711 = vmatpush1.msra.mxu0 0.0
        %712 = vmatprep.subr.mxu0 0.0
        %713 = vmatpush1.msra.mxu0 0.0
        %714 = vmatprep.subr.mxu0 0.0
        %715 = vmatpush1.msra.mxu0 0.0
        %716 = vmatprep.subr.mxu0 0.0
        %717 = vmatpush1.msra.mxu0 0.0
        %718 = vmatprep.subr.mxu0 0.0
        %719 = vmatpush1.msra.mxu0 0.0
        %720 = vmatprep.subr.mxu0 0.0
        %721 = vmatpush1.msra.mxu0 0.0
        %722 = vmatprep.subr.mxu0 0.0
        %723 = vmatpush1.msra.mxu0 0.0
        %724 = vmatprep.subr.mxu0 0.0
        %725 = vmatpush1.msra.mxu0 0.0
        %726 = vmatprep.subr.mxu0 0.0
        %727 = vmatpush1.msra.mxu0 0.0
        %728 = vmatprep.subr.mxu0 0.0
        %729 = vmatpush1.msra.mxu0 0.0
        %730 = vmatprep.subr.mxu0 0.0
        %731 = vmatpush1.msra.mxu0 0.0
        %732 = vmatprep.subr.mxu0 0.0
        %733 = vmatpush1.msra.mxu0 0.0
        %734 = vmatprep.subr.mxu0 0.0
        %735 = vmatpush1.msra.mxu0 0.0
        %736 = vmatprep.subr.mxu0 0.0
        %737 = vmatpush1.msra.mxu0 0.0
        %738 = vmatprep.subr.mxu0 0.0
        %739 = vmatpush1.msra.mxu0 0.0
        %740 = vmatprep.subr.mxu0 0.0
        %741 = vmatpush1.msra.mxu0 0.0
        %742 = vmatprep.subr.mxu0 0.0
        %743 = vmatpush1.msra.mxu0 0.0
        %744 = vmatprep.subr.mxu0 0.0
        %745 = vmatpush1.msra.mxu0 0.0
        %746 = vmatprep.subr.mxu0 0.0
        %747 = vmatpush1.msra.mxu0 0.0
        %748 = vmatprep.subr.mxu0 0.0
        %749 = vmatpush1.msra.mxu0 0.0
        %750 = vmatprep.subr.mxu0 0.0
        %751 = vmatpush1.msra.mxu0 0.0
        %752 = vmatprep.subr.mxu0 0.0
        %753 = vmatpush1.msra.mxu0 0.0
        %754 = vmatprep.mubr.f32.mxu0 0.0
        %755 = vmatmul.mubr.f32.gmra.mrb[0].mxu0 %v676
        %v756 = vpop.f32.mrb[0].mxu0
        %v757 = vadd.f32 %v600, %v756
        %v758 = vpop.f32.mrb[0].mxu0
        %v759 = vadd.f32 %v602, %v758
        %760 = vdwg.mxu0
        %761 = vmatprep.subr.mxu0 %v688
        %762 = vmatpush1.msra.mxu0 %v685
        %763 = vmatprep.subr.mxu0 0.0
        %764 = vmatpush1.msra.mxu0 0.0
        %765 = vmatprep.subr.mxu0 0.0
        %766 = vmatpush1.msra.mxu0 0.0
        %767 = vmatprep.subr.mxu0 0.0
        %768 = vmatpush1.msra.mxu0 0.0
        %769 = vmatprep.subr.mxu0 0.0
        %770 = vmatpush1.msra.mxu0 0.0
        %771 = vmatprep.subr.mxu0 0.0
        %772 = vmatpush1.msra.mxu0 0.0
        %773 = vmatprep.subr.mxu0 0.0
        %774 = vmatpush1.msra.mxu0 0.0
        %775 = vmatprep.subr.mxu0 0.0
        %776 = vmatpush1.msra.mxu0 0.0
        %777 = vmatprep.subr.mxu0 0.0
        %778 = vmatpush1.msra.mxu0 0.0
        %779 = vmatprep.subr.mxu0 0.0
        %780 = vmatpush1.msra.mxu0 0.0
        %781 = vmatprep.subr.mxu0 0.0
        %782 = vmatpush1.msra.mxu0 0.0
        %783 = vmatprep.subr.mxu0 0.0
        %784 = vmatpush1.msra.mxu0 0.0
        %785 = vmatprep.subr.mxu0 0.0
        %786 = vmatpush1.msra.mxu0 0.0
        %787 = vmatprep.subr.mxu0 0.0
        %788 = vmatpush1.msra.mxu0 0.0
        %789 = vmatprep.subr.mxu0 0.0
        %790 = vmatpush1.msra.mxu0 0.0
        %791 = vmatprep.subr.mxu0 0.0
        %792 = vmatpush1.msra.mxu0 0.0
        %793 = vmatprep.subr.mxu0 0.0
        %794 = vmatpush1.msra.mxu0 0.0
        %795 = vmatprep.subr.mxu0 0.0
        %796 = vmatpush1.msra.mxu0 0.0
        %797 = vmatprep.subr.mxu0 0.0
        %798 = vmatpush1.msra.mxu0 0.0
        %799 = vmatprep.subr.mxu0 0.0
        %800 = vmatpush1.msra.mxu0 0.0
        %801 = vmatprep.subr.mxu0 0.0
        %802 = vmatpush1.msra.mxu0 0.0
        %803 = vmatprep.subr.mxu0 0.0
        %804 = vmatpush1.msra.mxu0 0.0
        %805 = vmatprep.subr.mxu0 0.0
        %806 = vmatpush1.msra.mxu0 0.0
        %807 = vmatprep.subr.mxu0 0.0
        %808 = vmatpush1.msra.mxu0 0.0
        %809 = vmatprep.subr.mxu0 0.0
        %810 = vmatpush1.msra.mxu0 0.0
        %811 = vmatprep.subr.mxu0 0.0
        %812 = vmatpush1.msra.mxu0 0.0
        %813 = vmatprep.subr.mxu0 0.0
        %814 = vmatpush1.msra.mxu0 0.0
        %815 = vmatprep.subr.mxu0 0.0
        %816 = vmatpush1.msra.mxu0 0.0
        %817 = vmatprep.subr.mxu0 0.0
        %818 = vmatpush1.msra.mxu0 0.0
        %819 = vmatprep.subr.mxu0 0.0
        %820 = vmatpush1.msra.mxu0 0.0
        %821 = vmatprep.subr.mxu0 0.0
        %822 = vmatpush1.msra.mxu0 0.0
        %823 = vmatprep.subr.mxu0 0.0
        %824 = vmatpush1.msra.mxu0 0.0
        %825 = vmatprep.mubr.f32.mxu0 0.0
        %826 = vmatmul.mubr.f32.gmra.mrb[0].mxu0 %v676
        %v827 = vpop.f32.mrb[0].mxu0
        %v828 = vadd.f32 %v671, %v827
        %v829 = vpop.f32.mrb[0].mxu0
        %v830 = vadd.f32 %v673, %v829
        %831 = vdwg.mxu0
        %vm832 = vcmp.ge.s32.totalorder %v436, 2
        %vm833 = vcmp.ge.s32.totalorder %v437, 2
        %vm834 = vcmp.ge.s32.totalorder %v438, 2
        %vm835 = vcmp.ge.s32.totalorder %v439, 2
        %836 = vrot.lane.b32.xlu0 %v447, 2
        %v837 = vpop.permute.xlu0 %836
        %839 = vrot.lane.b32.xlu0 %v440, 2
        %v840 = vpop.permute.xlu0 %839
        %841 = vrot.lane.b32.xlu0 %v452, 2
        %v842 = vpop.permute.xlu0 %841
        %843 = vrot.lane.b32.xlu0 %v441, 2
        %v844 = vpop.permute.xlu0 %843
        %vm845 = vcmask 15360
        %v846 = vsel %vm845, %v840, %v842
        %v847 = vsel %vm845, %v842, %v844
        %v848 = vsel %vm845, %v844, %v837
        %v853 = vsel %vm845, %v837, %v840
        %v854 = vsel %vm832, 1, 0
        %v855 = vsel %vm833, 1, 0
        %v856 = vsel %vm834, 1, 0
        %v857 = vsel %vm835, 1, 0
        %vm858 = vcmp.eq.s32.totalorder %v854, 1
        %vm859 = vcmp.eq.s32.totalorder %v855, 1
        %vm860 = vcmp.eq.s32.totalorder %v856, 1
        %vm861 = vcmp.eq.s32.totalorder %v857, 1
        %v862 = vsel %vm858, %v853, 0.0
        %v863 = vsel %vm859, %v846, 0.0
        %v864 = vsel %vm860, %v847, 0.0
        %v865 = vsel %vm861, %v848, 0.0
        %s866 = scalar_lea.vmem %s1, 8
        %v867 = vld [vmem:[%s866] sm:$0xf]
        %v869 = vsel %vm494, %v867, 0
        %v872 = vsel %vm520, %v862, 0
        %v875 = vsel %vm520, %v863, 0
        %v878 = vsel %vm520, %v864, 0
        %v881 = vsel %vm520, %v865, 0
        %883 = vmatprep.subr.mxu0 %v875
        %884 = vmatpush1.msra.mxu0 %v872
        %885 = vmatprep.subr.mxu0 0.0
        %886 = vmatpush1.msra.mxu0 0.0
        %887 = vmatprep.subr.mxu0 0.0
        %888 = vmatpush1.msra.mxu0 0.0
        %889 = vmatprep.subr.mxu0 0.0
        %890 = vmatpush1.msra.mxu0 0.0
        %891 = vmatprep.subr.mxu0 0.0
        %892 = vmatpush1.msra.mxu0 0.0
        %893 = vmatprep.subr.mxu0 0.0
        %894 = vmatpush1.msra.mxu0 0.0
        %895 = vmatprep.subr.mxu0 0.0
        %896 = vmatpush1.msra.mxu0 0.0
        %897 = vmatprep.subr.mxu0 0.0
        %898 = vmatpush1.msra.mxu0 0.0
        %899 = vmatprep.subr.mxu0 0.0
        %900 = vmatpush1.msra.mxu0 0.0
        %901 = vmatprep.subr.mxu0 0.0
        %902 = vmatpush1.msra.mxu0 0.0
        %903 = vmatprep.subr.mxu0 0.0
        %904 = vmatpush1.msra.mxu0 0.0
        %905 = vmatprep.subr.mxu0 0.0
        %906 = vmatpush1.msra.mxu0 0.0
        %907 = vmatprep.subr.mxu0 0.0
        %908 = vmatpush1.msra.mxu0 0.0
        %909 = vmatprep.subr.mxu0 0.0
        %910 = vmatpush1.msra.mxu0 0.0
        %911 = vmatprep.subr.mxu0 0.0
        %912 = vmatpush1.msra.mxu0 0.0
        %913 = vmatprep.subr.mxu0 0.0
        %914 = vmatpush1.msra.mxu0 0.0
        %915 = vmatprep.subr.mxu0 0.0
        %916 = vmatpush1.msra.mxu0 0.0
        %917 = vmatprep.subr.mxu0 0.0
        %918 = vmatpush1.msra.mxu0 0.0
        %919 = vmatprep.subr.mxu0 0.0
        %920 = vmatpush1.msra.mxu0 0.0
        %921 = vmatprep.subr.mxu0 0.0
        %922 = vmatpush1.msra.mxu0 0.0
        %923 = vmatprep.subr.mxu0 0.0
        %924 = vmatpush1.msra.mxu0 0.0
        %925 = vmatprep.subr.mxu0 0.0
        %926 = vmatpush1.msra.mxu0 0.0
        %927 = vmatprep.subr.mxu0 0.0
        %928 = vmatpush1.msra.mxu0 0.0
        %929 = vmatprep.subr.mxu0 0.0
        %930 = vmatpush1.msra.mxu0 0.0
        %931 = vmatprep.subr.mxu0 0.0
        %932 = vmatpush1.msra.mxu0 0.0
        %933 = vmatprep.subr.mxu0 0.0
        %934 = vmatpush1.msra.mxu0 0.0
        %935 = vmatprep.subr.mxu0 0.0
        %936 = vmatpush1.msra.mxu0 0.0
        %937 = vmatprep.subr.mxu0 0.0
        %938 = vmatpush1.msra.mxu0 0.0
        %939 = vmatprep.subr.mxu0 0.0
        %940 = vmatpush1.msra.mxu0 0.0
        %941 = vmatprep.subr.mxu0 0.0
        %942 = vmatpush1.msra.mxu0 0.0
        %943 = vmatprep.subr.mxu0 0.0
        %944 = vmatpush1.msra.mxu0 0.0
        %945 = vmatprep.subr.mxu0 0.0
        %946 = vmatpush1.msra.mxu0 0.0
        %947 = vmatprep.mubr.f32.mxu0 0.0
        %948 = vmatmul.mubr.f32.gmra.mrb[0].mxu0 %v869
        %v949 = vpop.f32.mrb[0].mxu0
        %v950 = vadd.f32 0.0, %v949
        %v951 = vpop.f32.mrb[0].mxu0
        %v952 = vadd.f32 0.0, %v951
        %953 = vdwg.mxu0
        %954 = vmatprep.subr.mxu0 %v881
        %955 = vmatpush1.msra.mxu0 %v878
        %956 = vmatprep.subr.mxu0 0.0
        %957 = vmatpush1.msra.mxu0 0.0
        %958 = vmatprep.subr.mxu0 0.0
        %959 = vmatpush1.msra.mxu0 0.0
        %960 = vmatprep.subr.mxu0 0.0
        %961 = vmatpush1.msra.mxu0 0.0
        %962 = vmatprep.subr.mxu0 0.0
        %963 = vmatpush1.msra.mxu0 0.0
        %964 = vmatprep.subr.mxu0 0.0
        %965 = vmatpush1.msra.mxu0 0.0
        %966 = vmatprep.subr.mxu0 0.0
        %967 = vmatpush1.msra.mxu0 0.0
        %968 = vmatprep.subr.mxu0 0.0
        %969 = vmatpush1.msra.mxu0 0.0
        %970 = vmatprep.subr.mxu0 0.0
        %971 = vmatpush1.msra.mxu0 0.0
        %972 = vmatprep.subr.mxu0 0.0
        %973 = vmatpush1.msra.mxu0 0.0
        %974 = vmatprep.subr.mxu0 0.0
        %975 = vmatpush1.msra.mxu0 0.0
        %976 = vmatprep.subr.mxu0 0.0
        %977 = vmatpush1.msra.mxu0 0.0
        %978 = vmatprep.subr.mxu0 0.0
        %979 = vmatpush1.msra.mxu0 0.0
        %980 = vmatprep.subr.mxu0 0.0
        %981 = vmatpush1.msra.mxu0 0.0
        %982 = vmatprep.subr.mxu0 0.0
        %983 = vmatpush1.msra.mxu0 0.0
        %984 = vmatprep.subr.mxu0 0.0
        %985 = vmatpush1.msra.mxu0 0.0
        %986 = vmatprep.subr.mxu0 0.0
        %987 = vmatpush1.msra.mxu0 0.0
        %988 = vmatprep.subr.mxu0 0.0
        %989 = vmatpush1.msra.mxu0 0.0
        %990 = vmatprep.subr.mxu0 0.0
        %991 = vmatpush1.msra.mxu0 0.0
        %992 = vmatprep.subr.mxu0 0.0
        %993 = vmatpush1.msra.mxu0 0.0
        %994 = vmatprep.subr.mxu0 0.0
        %995 = vmatpush1.msra.mxu0 0.0
        %996 = vmatprep.subr.mxu0 0.0
        %997 = vmatpush1.msra.mxu0 0.0
        %998 = vmatprep.subr.mxu0 0.0
        %999 = vmatpush1.msra.mxu0 0.0
        %1000 = vmatprep.subr.mxu0 0.0
        %1001 = vmatpush1.msra.mxu0 0.0
        %1002 = vmatprep.subr.mxu0 0.0
        %1003 = vmatpush1.msra.mxu0 0.0
        %1004 = vmatprep.subr.mxu0 0.0
        %1005 = vmatpush1.msra.mxu0 0.0
        %1006 = vmatprep.subr.mxu0 0.0
        %1007 = vmatpush1.msra.mxu0 0.0
        %1008 = vmatprep.subr.mxu0 0.0
        %1009 = vmatpush1.msra.mxu0 0.0
        %1010 = vmatprep.subr.mxu0 0.0
        %1011 = vmatpush1.msra.mxu0 0.0
        %1012 = vmatprep.subr.mxu0 0.0
        %1013 = vmatpush1.msra.mxu0 0.0
        %1014 = vmatprep.subr.mxu0 0.0
        %1015 = vmatpush1.msra.mxu0 0.0
        %1016 = vmatprep.subr.mxu0 0.0
        %1017 = vmatpush1.msra.mxu0 0.0
        %1018 = vmatprep.mubr.f32.mxu0 0.0
        %1019 = vmatmul.mubr.f32.gmra.mrb[0].mxu0 %v869
        %v1020 = vpop.f32.mrb[0].mxu0
        %v1021 = vadd.f32 0.0, %v1020
        %v1022 = vpop.f32.mrb[0].mxu0
        %v1023 = vadd.f32 0.0, %v1022
        %1024 = vdwg.mxu0
        %v1025 = vadd.f32 %v757, %v950
        %v1026 = vadd.f32 %v759, %v952
        %v1027 = vadd.f32 %v828, %v1021
        %v1028 = vadd.f32 %v830, %v1023
        %vm1029 = vcmp.ge.s32.totalorder %v436, 1
        %vm1030 = vcmp.ge.s32.totalorder %v437, 1
        %vm1031 = vcmp.ge.s32.totalorder %v438, 1
        %vm1032 = vcmp.ge.s32.totalorder %v439, 1
        %1033 = vrot.lane.b32.xlu0 %v447, 1
        %v1034 = vpop.permute.xlu0 %1033
        %1036 = vrot.lane.b32.xlu0 %v440, 1
        %v1037 = vpop.permute.xlu0 %1036
        %1038 = vrot.lane.b32.xlu0 %v452, 1
        %v1039 = vpop.permute.xlu0 %1038
        %1040 = vrot.lane.b32.xlu0 %v441, 1
        %v1041 = vpop.permute.xlu0 %1040
        %vm1042 = vcmask 7168
        %v1043 = vsel %vm1042, %v1037, %v1039
        %v1044 = vsel %vm1042, %v1039, %v1041
        %v1045 = vsel %vm1042, %v1041, %v1034
        %v1050 = vsel %vm1042, %v1034, %v1037
        %v1051 = vsel %vm1029, 1, 0
        %v1052 = vsel %vm1030, 1, 0
        %v1053 = vsel %vm1031, 1, 0
        %v1054 = vsel %vm1032, 1, 0
        %vm1055 = vcmp.eq.s32.totalorder %v1051, 1
        %vm1056 = vcmp.eq.s32.totalorder %v1052, 1
        %vm1057 = vcmp.eq.s32.totalorder %v1053, 1
        %vm1058 = vcmp.eq.s32.totalorder %v1054, 1
        %v1059 = vsel %vm1055, %v1050, 0.0
        %v1060 = vsel %vm1056, %v1043, 0.0
        %v1061 = vsel %vm1057, %v1044, 0.0
        %v1062 = vsel %vm1058, %v1045, 0.0
        %s1063 = scalar_lea.vmem %s1, 12
        %v1064 = vld [vmem:[%s1063] sm:$0xf]
        %v1066 = vsel %vm494, %v1064, 0
        %v1069 = vsel %vm520, %v1059, 0
        %v1072 = vsel %vm520, %v1060, 0
        %v1075 = vsel %vm520, %v1061, 0
        %v1078 = vsel %vm520, %v1062, 0
        %1080 = vmatprep.subr.mxu0 %v1072
        %1081 = vmatpush1.msra.mxu0 %v1069
        %1082 = vmatprep.subr.mxu0 0.0
        %1083 = vmatpush1.msra.mxu0 0.0
        %1084 = vmatprep.subr.mxu0 0.0
        %1085 = vmatpush1.msra.mxu0 0.0
        %1086 = vmatprep.subr.mxu0 0.0
        %1087 = vmatpush1.msra.mxu0 0.0
        %1088 = vmatprep.subr.mxu0 0.0
        %1089 = vmatpush1.msra.mxu0 0.0
        %1090 = vmatprep.subr.mxu0 0.0
        %1091 = vmatpush1.msra.mxu0 0.0
        %1092 = vmatprep.subr.mxu0 0.0
        %1093 = vmatpush1.msra.mxu0 0.0
        %1094 = vmatprep.subr.mxu0 0.0
        %1095 = vmatpush1.msra.mxu0 0.0
        %1096 = vmatprep.subr.mxu0 0.0
        %1097 = vmatpush1.msra.mxu0 0.0
        %1098 = vmatprep.subr.mxu0 0.0
        %1099 = vmatpush1.msra.mxu0 0.0
        %1100 = vmatprep.subr.mxu0 0.0
        %1101 = vmatpush1.msra.mxu0 0.0
        %1102 = vmatprep.subr.mxu0 0.0
        %1103 = vmatpush1.msra.mxu0 0.0
        %1104 = vmatprep.subr.mxu0 0.0
        %1105 = vmatpush1.msra.mxu0 0.0
        %1106 = vmatprep.subr.mxu0 0.0
        %1107 = vmatpush1.msra.mxu0 0.0
        %1108 = vmatprep.subr.mxu0 0.0
        %1109 = vmatpush1.msra.mxu0 0.0
        %1110 = vmatprep.subr.mxu0 0.0
        %1111 = vmatpush1.msra.mxu0 0.0
        %1112 = vmatprep.subr.mxu0 0.0
        %1113 = vmatpush1.msra.mxu0 0.0
        %1114 = vmatprep.subr.mxu0 0.0
        %1115 = vmatpush1.msra.mxu0 0.0
        %1116 = vmatprep.subr.mxu0 0.0
        %1117 = vmatpush1.msra.mxu0 0.0
        %1118 = vmatprep.subr.mxu0 0.0
        %1119 = vmatpush1.msra.mxu0 0.0
        %1120 = vmatprep.subr.mxu0 0.0
        %1121 = vmatpush1.msra.mxu0 0.0
        %1122 = vmatprep.subr.mxu0 0.0
        %1123 = vmatpush1.msra.mxu0 0.0
        %1124 = vmatprep.subr.mxu0 0.0
        %1125 = vmatpush1.msra.mxu0 0.0
        %1126 = vmatprep.subr.mxu0 0.0
        %1127 = vmatpush1.msra.mxu0 0.0
        %1128 = vmatprep.subr.mxu0 0.0
        %1129 = vmatpush1.msra.mxu0 0.0
        %1130 = vmatprep.subr.mxu0 0.0
        %1131 = vmatpush1.msra.mxu0 0.0
        %1132 = vmatprep.subr.mxu0 0.0
        %1133 = vmatpush1.msra.mxu0 0.0
        %1134 = vmatprep.subr.mxu0 0.0
        %1135 = vmatpush1.msra.mxu0 0.0
        %1136 = vmatprep.subr.mxu0 0.0
        %1137 = vmatpush1.msra.mxu0 0.0
        %1138 = vmatprep.subr.mxu0 0.0
        %1139 = vmatpush1.msra.mxu0 0.0
        %1140 = vmatprep.subr.mxu0 0.0
        %1141 = vmatpush1.msra.mxu0 0.0
        %1142 = vmatprep.subr.mxu0 0.0
        %1143 = vmatpush1.msra.mxu0 0.0
        %1144 = vmatprep.mubr.f32.mxu0 0.0
        %1145 = vmatmul.mubr.f32.gmra.mrb[0].mxu0 %v1066
        %v1146 = vpop.f32.mrb[0].mxu0
        %v1147 = vadd.f32 0.0, %v1146
        %v1148 = vpop.f32.mrb[0].mxu0
        %v1149 = vadd.f32 0.0, %v1148
        %1150 = vdwg.mxu0
        %1151 = vmatprep.subr.mxu0 %v1078
        %1152 = vmatpush1.msra.mxu0 %v1075
        %1153 = vmatprep.subr.mxu0 0.0
        %1154 = vmatpush1.msra.mxu0 0.0
        %1155 = vmatprep.subr.mxu0 0.0
        %1156 = vmatpush1.msra.mxu0 0.0
        %1157 = vmatprep.subr.mxu0 0.0
        %1158 = vmatpush1.msra.mxu0 0.0
        %1159 = vmatprep.subr.mxu0 0.0
        %1160 = vmatpush1.msra.mxu0 0.0
        %1161 = vmatprep.subr.mxu0 0.0
        %1162 = vmatpush1.msra.mxu0 0.0
        %1163 = vmatprep.subr.mxu0 0.0
        %1164 = vmatpush1.msra.mxu0 0.0
        %1165 = vmatprep.subr.mxu0 0.0
        %1166 = vmatpush1.msra.mxu0 0.0
        %1167 = vmatprep.subr.mxu0 0.0
        %1168 = vmatpush1.msra.mxu0 0.0
        %1169 = vmatprep.subr.mxu0 0.0
        %1170 = vmatpush1.msra.mxu0 0.0
        %1171 = vmatprep.subr.mxu0 0.0
        %1172 = vmatpush1.msra.mxu0 0.0
        %1173 = vmatprep.subr.mxu0 0.0
        %1174 = vmatpush1.msra.mxu0 0.0
        %1175 = vmatprep.subr.mxu0 0.0
        %1176 = vmatpush1.msra.mxu0 0.0
        %1177 = vmatprep.subr.mxu0 0.0
        %1178 = vmatpush1.msra.mxu0 0.0
        %1179 = vmatprep.subr.mxu0 0.0
        %1180 = vmatpush1.msra.mxu0 0.0
        %1181 = vmatprep.subr.mxu0 0.0
        %1182 = vmatpush1.msra.mxu0 0.0
        %1183 = vmatprep.subr.mxu0 0.0
        %1184 = vmatpush1.msra.mxu0 0.0
        %1185 = vmatprep.subr.mxu0 0.0
        %1186 = vmatpush1.msra.mxu0 0.0
        %1187 = vmatprep.subr.mxu0 0.0
        %1188 = vmatpush1.msra.mxu0 0.0
        %1189 = vmatprep.subr.mxu0 0.0
        %1190 = vmatpush1.msra.mxu0 0.0
        %1191 = vmatprep.subr.mxu0 0.0
        %1192 = vmatpush1.msra.mxu0 0.0
        %1193 = vmatprep.subr.mxu0 0.0
        %1194 = vmatpush1.msra.mxu0 0.0
        %1195 = vmatprep.subr.mxu0 0.0
        %1196 = vmatpush1.msra.mxu0 0.0
        %1197 = vmatprep.subr.mxu0 0.0
        %1198 = vmatpush1.msra.mxu0 0.0
        %1199 = vmatprep.subr.mxu0 0.0
        %1200 = vmatpush1.msra.mxu0 0.0
        %1201 = vmatprep.subr.mxu0 0.0
        %1202 = vmatpush1.msra.mxu0 0.0
        %1203 = vmatprep.subr.mxu0 0.0
        %1204 = vmatpush1.msra.mxu0 0.0
        %1205 = vmatprep.subr.mxu0 0.0
        %1206 = vmatpush1.msra.mxu0 0.0
        %1207 = vmatprep.subr.mxu0 0.0
        %1208 = vmatpush1.msra.mxu0 0.0
        %1209 = vmatprep.subr.mxu0 0.0
        %1210 = vmatpush1.msra.mxu0 0.0
        %1211 = vmatprep.subr.mxu0 0.0
        %1212 = vmatpush1.msra.mxu0 0.0
        %1213 = vmatprep.subr.mxu0 0.0
        %1214 = vmatpush1.msra.mxu0 0.0
        %1215 = vmatprep.mubr.f32.mxu0 0.0
        %1216 = vmatmul.mubr.f32.gmra.mrb[0].mxu0 %v1066
        %v1217 = vpop.f32.mrb[0].mxu0
        %v1218 = vadd.f32 0.0, %v1217
        %v1219 = vpop.f32.mrb[0].mxu0
        %v1220 = vadd.f32 0.0, %v1219
        %1221 = vdwg.mxu0
        %v1222 = vadd.f32 %v1025, %v1147
        %v1223 = vadd.f32 %v1026, %v1149
        %v1224 = vadd.f32 %v1027, %v1218
        %v1225 = vadd.f32 %v1028, %v1220
        %s1226 = scalar_lea.vmem %s1, 16
        %v1227 = vld [vmem:[%s1226] sm:$0xf]
        %v1229 = vsel %vm494, %v1227, 0
        %v1231 = vsel %vm520, %v440, 0
        %v1233 = vsel %vm520, %v452, 0
        %v1235 = vsel %vm520, %v441, 0
        %v1237 = vsel %vm520, %v447, 0
        %1239 = vmatprep.subr.mxu0 %v1233
        %1240 = vmatpush1.msra.mxu0 %v1231
        %1241 = vmatprep.subr.mxu0 0.0
        %1242 = vmatpush1.msra.mxu0 0.0
        %1243 = vmatprep.subr.mxu0 0.0
        %1244 = vmatpush1.msra.mxu0 0.0
        %1245 = vmatprep.subr.mxu0 0.0
        %1246 = vmatpush1.msra.mxu0 0.0
        %1247 = vmatprep.subr.mxu0 0.0
        %1248 = vmatpush1.msra.mxu0 0.0
        %1249 = vmatprep.subr.mxu0 0.0
        %1250 = vmatpush1.msra.mxu0 0.0
        %1251 = vmatprep.subr.mxu0 0.0
        %1252 = vmatpush1.msra.mxu0 0.0
        %1253 = vmatprep.subr.mxu0 0.0
        %1254 = vmatpush1.msra.mxu0 0.0
        %1255 = vmatprep.subr.mxu0 0.0
        %1256 = vmatpush1.msra.mxu0 0.0
        %1257 = vmatprep.subr.mxu0 0.0
        %1258 = vmatpush1.msra.mxu0 0.0
        %1259 = vmatprep.subr.mxu0 0.0
        %1260 = vmatpush1.msra.mxu0 0.0
        %1261 = vmatprep.subr.mxu0 0.0
        %1262 = vmatpush1.msra.mxu0 0.0
        %1263 = vmatprep.subr.mxu0 0.0
        %1264 = vmatpush1.msra.mxu0 0.0
        %1265 = vmatprep.subr.mxu0 0.0
        %1266 = vmatpush1.msra.mxu0 0.0
        %1267 = vmatprep.subr.mxu0 0.0
        %1268 = vmatpush1.msra.mxu0 0.0
        %1269 = vmatprep.subr.mxu0 0.0
        %1270 = vmatpush1.msra.mxu0 0.0
        %1271 = vmatprep.subr.mxu0 0.0
        %1272 = vmatpush1.msra.mxu0 0.0
        %1273 = vmatprep.subr.mxu0 0.0
        %1274 = vmatpush1.msra.mxu0 0.0
        %1275 = vmatprep.subr.mxu0 0.0
        %1276 = vmatpush1.msra.mxu0 0.0
        %1277 = vmatprep.subr.mxu0 0.0
        %1278 = vmatpush1.msra.mxu0 0.0
        %1279 = vmatprep.subr.mxu0 0.0
        %1280 = vmatpush1.msra.mxu0 0.0
        %1281 = vmatprep.subr.mxu0 0.0
        %1282 = vmatpush1.msra.mxu0 0.0
        %1283 = vmatprep.subr.mxu0 0.0
        %1284 = vmatpush1.msra.mxu0 0.0
        %1285 = vmatprep.subr.mxu0 0.0
        %1286 = vmatpush1.msra.mxu0 0.0
        %1287 = vmatprep.subr.mxu0 0.0
        %1288 = vmatpush1.msra.mxu0 0.0
        %1289 = vmatprep.subr.mxu0 0.0
        %1290 = vmatpush1.msra.mxu0 0.0
        %1291 = vmatprep.subr.mxu0 0.0
        %1292 = vmatpush1.msra.mxu0 0.0
        %1293 = vmatprep.subr.mxu0 0.0
        %1294 = vmatpush1.msra.mxu0 0.0
        %1295 = vmatprep.subr.mxu0 0.0
        %1296 = vmatpush1.msra.mxu0 0.0
        %1297 = vmatprep.subr.mxu0 0.0
        %1298 = vmatpush1.msra.mxu0 0.0
        %1299 = vmatprep.subr.mxu0 0.0
        %1300 = vmatpush1.msra.mxu0 0.0
        %1301 = vmatprep.subr.mxu0 0.0
        %1302 = vmatpush1.msra.mxu0 0.0
        %1303 = vmatprep.mubr.f32.mxu0 0.0
        %1304 = vmatmul.mubr.f32.gmra.mrb[0].mxu0 %v1229
        %v1305 = vpop.f32.mrb[0].mxu0
        %v1306 = vadd.f32 0.0, %v1305
        %v1307 = vpop.f32.mrb[0].mxu0
        %v1308 = vadd.f32 0.0, %v1307
        %1309 = vdwg.mxu0
        %1310 = vmatprep.subr.mxu0 %v1237
        %1311 = vmatpush1.msra.mxu0 %v1235
        %1312 = vmatprep.subr.mxu0 0.0
        %1313 = vmatpush1.msra.mxu0 0.0
        %1314 = vmatprep.subr.mxu0 0.0
        %1315 = vmatpush1.msra.mxu0 0.0
        %1316 = vmatprep.subr.mxu0 0.0
        %1317 = vmatpush1.msra.mxu0 0.0
        %1318 = vmatprep.subr.mxu0 0.0
        %1319 = vmatpush1.msra.mxu0 0.0
        %1320 = vmatprep.subr.mxu0 0.0
        %1321 = vmatpush1.msra.mxu0 0.0
        %1322 = vmatprep.subr.mxu0 0.0
        %1323 = vmatpush1.msra.mxu0 0.0
        %1324 = vmatprep.subr.mxu0 0.0
        %1325 = vmatpush1.msra.mxu0 0.0
        %1326 = vmatprep.subr.mxu0 0.0
        %1327 = vmatpush1.msra.mxu0 0.0
        %1328 = vmatprep.subr.mxu0 0.0
        %1329 = vmatpush1.msra.mxu0 0.0
        %1330 = vmatprep.subr.mxu0 0.0
        %1331 = vmatpush1.msra.mxu0 0.0
        %1332 = vmatprep.subr.mxu0 0.0
        %1333 = vmatpush1.msra.mxu0 0.0
        %1334 = vmatprep.subr.mxu0 0.0
        %1335 = vmatpush1.msra.mxu0 0.0
        %1336 = vmatprep.subr.mxu0 0.0
        %1337 = vmatpush1.msra.mxu0 0.0
        %1338 = vmatprep.subr.mxu0 0.0
        %1339 = vmatpush1.msra.mxu0 0.0
        %1340 = vmatprep.subr.mxu0 0.0
        %1341 = vmatpush1.msra.mxu0 0.0
        %1342 = vmatprep.subr.mxu0 0.0
        %1343 = vmatpush1.msra.mxu0 0.0
        %1344 = vmatprep.subr.mxu0 0.0
        %1345 = vmatpush1.msra.mxu0 0.0
        %1346 = vmatprep.subr.mxu0 0.0
        %1347 = vmatpush1.msra.mxu0 0.0
        %1348 = vmatprep.subr.mxu0 0.0
        %1349 = vmatpush1.msra.mxu0 0.0
        %1350 = vmatprep.subr.mxu0 0.0
        %1351 = vmatpush1.msra.mxu0 0.0
        %1352 = vmatprep.subr.mxu0 0.0
        %1353 = vmatpush1.msra.mxu0 0.0
        %1354 = vmatprep.subr.mxu0 0.0
        %1355 = vmatpush1.msra.mxu0 0.0
        %1356 = vmatprep.subr.mxu0 0.0
        %1357 = vmatpush1.msra.mxu0 0.0
        %1358 = vmatprep.subr.mxu0 0.0
        %1359 = vmatpush1.msra.mxu0 0.0
        %1360 = vmatprep.subr.mxu0 0.0
        %1361 = vmatpush1.msra.mxu0 0.0
        %1362 = vmatprep.subr.mxu0 0.0
        %1363 = vmatpush1.msra.mxu0 0.0
        %1364 = vmatprep.subr.mxu0 0.0
        %1365 = vmatpush1.msra.mxu0 0.0
        %1366 = vmatprep.subr.mxu0 0.0
        %1367 = vmatpush1.msra.mxu0 0.0
        %1368 = vmatprep.subr.mxu0 0.0
        %1369 = vmatpush1.msra.mxu0 0.0
        %1370 = vmatprep.subr.mxu0 0.0
        %1371 = vmatpush1.msra.mxu0 0.0
        %1372 = vmatprep.subr.mxu0 0.0
        %1373 = vmatpush1.msra.mxu0 0.0
        %1374 = vmatprep.mubr.f32.mxu0 0.0
        %1375 = vmatmul.mubr.f32.gmra.mrb[0].mxu0 %v1229
        %v1376 = vpop.f32.mrb[0].mxu0
        %v1377 = vadd.f32 0.0, %v1376
        %v1378 = vpop.f32.mrb[0].mxu0
        %v1379 = vadd.f32 0.0, %v1378
        %1380 = vdwg.mxu0
        %v1381 = vadd.f32 %v1222, %v1306
        %v1382 = vadd.f32 %v1223, %v1308
        %v1383 = vadd.f32 %v1224, %v1377
        %v1384 = vadd.f32 %v1225, %v1379
        %vm1385 = vcmp.lt.s32.totalorder %v436, 63
        %vm1386 = vcmp.lt.s32.totalorder %v437, 63
        %vm1387 = vcmp.lt.s32.totalorder %v438, 63
        %vm1388 = vcmp.lt.s32.totalorder %v439, 63
        %1389 = vrot.lane.b32.xlu0 %v440, 127
        %v1390 = vpop.permute.xlu0 %1389
        %1391 = vrot.lane.b32.xlu0 %v452, 127
        %v1392 = vpop.permute.xlu0 %1391
        %1393 = vrot.lane.b32.xlu0 %v441, 127
        %v1394 = vpop.permute.xlu0 %1393
        %1395 = vrot.lane.b32.xlu0 %v447, 127
        %v1396 = vpop.permute.xlu0 %1395
        %vm1397 = vcmask 1039360
        %v1398 = vsel %vm1397, %v1390, %v1392
        %v1399 = vsel %vm1397, %v1392, %v1394
        %v1400 = vsel %vm1397, %v1394, %v1396
        %v1406 = vsel %vm1397, %v1396, %v1390
        %v1407 = vsel %vm1385, 1, 0
        %v1408 = vsel %vm1386, 1, 0
        %v1409 = vsel %vm1387, 1, 0
        %v1410 = vsel %vm1388, 1, 0
        %vm1411 = vcmp.eq.s32.totalorder %v1407, 1
        %vm1412 = vcmp.eq.s32.totalorder %v1408, 1
        %vm1413 = vcmp.eq.s32.totalorder %v1409, 1
        %vm1414 = vcmp.eq.s32.totalorder %v1410, 1
        %v1415 = vsel %vm1411, %v1398, 0.0
        %v1416 = vsel %vm1412, %v1399, 0.0
        %v1417 = vsel %vm1413, %v1400, 0.0
        %v1418 = vsel %vm1414, %v1406, 0.0
        %s1419 = scalar_lea.vmem %s1, 20
        %v1420 = vld [vmem:[%s1419] sm:$0xf]
        %v1422 = vsel %vm494, %v1420, 0
        %v1425 = vsel %vm520, %v1415, 0
        %v1428 = vsel %vm520, %v1416, 0
        %v1431 = vsel %vm520, %v1417, 0
        %v1434 = vsel %vm520, %v1418, 0
        %1436 = vmatprep.subr.mxu0 %v1428
        %1437 = vmatpush1.msra.mxu0 %v1425
        %1438 = vmatprep.subr.mxu0 0.0
        %1439 = vmatpush1.msra.mxu0 0.0
        %1440 = vmatprep.subr.mxu0 0.0
        %1441 = vmatpush1.msra.mxu0 0.0
        %1442 = vmatprep.subr.mxu0 0.0
        %1443 = vmatpush1.msra.mxu0 0.0
        %1444 = vmatprep.subr.mxu0 0.0
        %1445 = vmatpush1.msra.mxu0 0.0
        %1446 = vmatprep.subr.mxu0 0.0
        %1447 = vmatpush1.msra.mxu0 0.0
        %1448 = vmatprep.subr.mxu0 0.0
        %1449 = vmatpush1.msra.mxu0 0.0
        %1450 = vmatprep.subr.mxu0 0.0
        %1451 = vmatpush1.msra.mxu0 0.0
        %1452 = vmatprep.subr.mxu0 0.0
        %1453 = vmatpush1.msra.mxu0 0.0
        %1454 = vmatprep.subr.mxu0 0.0
        %1455 = vmatpush1.msra.mxu0 0.0
        %1456 = vmatprep.subr.mxu0 0.0
        %1457 = vmatpush1.msra.mxu0 0.0
        %1458 = vmatprep.subr.mxu0 0.0
        %1459 = vmatpush1.msra.mxu0 0.0
        %1460 = vmatprep.subr.mxu0 0.0
        %1461 = vmatpush1.msra.mxu0 0.0
        %1462 = vmatprep.subr.mxu0 0.0
        %1463 = vmatpush1.msra.mxu0 0.0
        %1464 = vmatprep.subr.mxu0 0.0
        %1465 = vmatpush1.msra.mxu0 0.0
        %1466 = vmatprep.subr.mxu0 0.0
        %1467 = vmatpush1.msra.mxu0 0.0
        %1468 = vmatprep.subr.mxu0 0.0
        %1469 = vmatpush1.msra.mxu0 0.0
        %1470 = vmatprep.subr.mxu0 0.0
        %1471 = vmatpush1.msra.mxu0 0.0
        %1472 = vmatprep.subr.mxu0 0.0
        %1473 = vmatpush1.msra.mxu0 0.0
        %1474 = vmatprep.subr.mxu0 0.0
        %1475 = vmatpush1.msra.mxu0 0.0
        %1476 = vmatprep.subr.mxu0 0.0
        %1477 = vmatpush1.msra.mxu0 0.0
        %1478 = vmatprep.subr.mxu0 0.0
        %1479 = vmatpush1.msra.mxu0 0.0
        %1480 = vmatprep.subr.mxu0 0.0
        %1481 = vmatpush1.msra.mxu0 0.0
        %1482 = vmatprep.subr.mxu0 0.0
        %1483 = vmatpush1.msra.mxu0 0.0
        %1484 = vmatprep.subr.mxu0 0.0
        %1485 = vmatpush1.msra.mxu0 0.0
        %1486 = vmatprep.subr.mxu0 0.0
        %1487 = vmatpush1.msra.mxu0 0.0
        %1488 = vmatprep.subr.mxu0 0.0
        %1489 = vmatpush1.msra.mxu0 0.0
        %1490 = vmatprep.subr.mxu0 0.0
        %1491 = vmatpush1.msra.mxu0 0.0
        %1492 = vmatprep.subr.mxu0 0.0
        %1493 = vmatpush1.msra.mxu0 0.0
        %1494 = vmatprep.subr.mxu0 0.0
        %1495 = vmatpush1.msra.mxu0 0.0
        %1496 = vmatprep.subr.mxu0 0.0
        %1497 = vmatpush1.msra.mxu0 0.0
        %1498 = vmatprep.subr.mxu0 0.0
        %1499 = vmatpush1.msra.mxu0 0.0
        %1500 = vmatprep.mubr.f32.mxu0 0.0
        %1501 = vmatmul.mubr.f32.gmra.mrb[0].mxu0 %v1422
        %v1502 = vpop.f32.mrb[0].mxu0
        %v1503 = vadd.f32 0.0, %v1502
        %v1504 = vpop.f32.mrb[0].mxu0
        %v1505 = vadd.f32 0.0, %v1504
        %1506 = vdwg.mxu0
        %1507 = vmatprep.subr.mxu0 %v1434
        %1508 = vmatpush1.msra.mxu0 %v1431
        %1509 = vmatprep.subr.mxu0 0.0
        %1510 = vmatpush1.msra.mxu0 0.0
        %1511 = vmatprep.subr.mxu0 0.0
        %1512 = vmatpush1.msra.mxu0 0.0
        %1513 = vmatprep.subr.mxu0 0.0
        %1514 = vmatpush1.msra.mxu0 0.0
        %1515 = vmatprep.subr.mxu0 0.0
        %1516 = vmatpush1.msra.mxu0 0.0
        %1517 = vmatprep.subr.mxu0 0.0
        %1518 = vmatpush1.msra.mxu0 0.0
        %1519 = vmatprep.subr.mxu0 0.0
        %1520 = vmatpush1.msra.mxu0 0.0
        %1521 = vmatprep.subr.mxu0 0.0
        %1522 = vmatpush1.msra.mxu0 0.0
        %1523 = vmatprep.subr.mxu0 0.0
        %1524 = vmatpush1.msra.mxu0 0.0
        %1525 = vmatprep.subr.mxu0 0.0
        %1526 = vmatpush1.msra.mxu0 0.0
        %1527 = vmatprep.subr.mxu0 0.0
        %1528 = vmatpush1.msra.mxu0 0.0
        %1529 = vmatprep.subr.mxu0 0.0
        %1530 = vmatpush1.msra.mxu0 0.0
        %1531 = vmatprep.subr.mxu0 0.0
        %1532 = vmatpush1.msra.mxu0 0.0
        %1533 = vmatprep.subr.mxu0 0.0
        %1534 = vmatpush1.msra.mxu0 0.0
        %1535 = vmatprep.subr.mxu0 0.0
        %1536 = vmatpush1.msra.mxu0 0.0
        %1537 = vmatprep.subr.mxu0 0.0
        %1538 = vmatpush1.msra.mxu0 0.0
        %1539 = vmatprep.subr.mxu0 0.0
        %1540 = vmatpush1.msra.mxu0 0.0
        %1541 = vmatprep.subr.mxu0 0.0
        %1542 = vmatpush1.msra.mxu0 0.0
        %1543 = vmatprep.subr.mxu0 0.0
        %1544 = vmatpush1.msra.mxu0 0.0
        %1545 = vmatprep.subr.mxu0 0.0
        %1546 = vmatpush1.msra.mxu0 0.0
        %1547 = vmatprep.subr.mxu0 0.0
        %1548 = vmatpush1.msra.mxu0 0.0
        %1549 = vmatprep.subr.mxu0 0.0
        %1550 = vmatpush1.msra.mxu0 0.0
        %1551 = vmatprep.subr.mxu0 0.0
        %1552 = vmatpush1.msra.mxu0 0.0
        %1553 = vmatprep.subr.mxu0 0.0
        %1554 = vmatpush1.msra.mxu0 0.0
        %1555 = vmatprep.subr.mxu0 0.0
        %1556 = vmatpush1.msra.mxu0 0.0
        %1557 = vmatprep.subr.mxu0 0.0
        %1558 = vmatpush1.msra.mxu0 0.0
        %1559 = vmatprep.subr.mxu0 0.0
        %1560 = vmatpush1.msra.mxu0 0.0
        %1561 = vmatprep.subr.mxu0 0.0
        %1562 = vmatpush1.msra.mxu0 0.0
        %1563 = vmatprep.subr.mxu0 0.0
        %1564 = vmatpush1.msra.mxu0 0.0
        %1565 = vmatprep.subr.mxu0 0.0
        %1566 = vmatpush1.msra.mxu0 0.0
        %1567 = vmatprep.subr.mxu0 0.0
        %1568 = vmatpush1.msra.mxu0 0.0
        %1569 = vmatprep.subr.mxu0 0.0
        %1570 = vmatpush1.msra.mxu0 0.0
        %1571 = vmatprep.mubr.f32.mxu0 0.0
        %1572 = vmatmul.mubr.f32.gmra.mrb[0].mxu0 %v1422
        %v1573 = vpop.f32.mrb[0].mxu0
        %v1574 = vadd.f32 0.0, %v1573
        %v1575 = vpop.f32.mrb[0].mxu0
        %v1576 = vadd.f32 0.0, %v1575
        %1577 = vdwg.mxu0
        %v1578 = vadd.f32 %v1381, %v1503
        %v1579 = vadd.f32 %v1382, %v1505
        %v1580 = vadd.f32 %v1383, %v1574
        %v1581 = vadd.f32 %v1384, %v1576
        %vm1582 = vcmp.lt.s32.totalorder %v436, 62
        %vm1583 = vcmp.lt.s32.totalorder %v437, 62
        %vm1584 = vcmp.lt.s32.totalorder %v438, 62
        %vm1585 = vcmp.lt.s32.totalorder %v439, 62
        %1586 = vrot.lane.b32.xlu0 %v440, 126
        %v1587 = vpop.permute.xlu0 %1586
        %1588 = vrot.lane.b32.xlu0 %v452, 126
        %v1589 = vpop.permute.xlu0 %1588
        %1590 = vrot.lane.b32.xlu0 %v441, 126
        %v1591 = vpop.permute.xlu0 %1590
        %1592 = vrot.lane.b32.xlu0 %v447, 126
        %v1593 = vpop.permute.xlu0 %1592
        %vm1594 = vcmask 1031168
        %v1595 = vsel %vm1594, %v1587, %v1589
        %v1596 = vsel %vm1594, %v1589, %v1591
        %v1597 = vsel %vm1594, %v1591, %v1593
        %v1603 = vsel %vm1594, %v1593, %v1587
        %v1604 = vsel %vm1582, 1, 0
        %v1605 = vsel %vm1583, 1, 0
        %v1606 = vsel %vm1584, 1, 0
        %v1607 = vsel %vm1585, 1, 0
        %vm1608 = vcmp.eq.s32.totalorder %v1604, 1
        %vm1609 = vcmp.eq.s32.totalorder %v1605, 1
        %vm1610 = vcmp.eq.s32.totalorder %v1606, 1
        %vm1611 = vcmp.eq.s32.totalorder %v1607, 1
        %v1612 = vsel %vm1608, %v1595, 0.0
        %v1613 = vsel %vm1609, %v1596, 0.0
        %v1614 = vsel %vm1610, %v1597, 0.0
        %v1615 = vsel %vm1611, %v1603, 0.0
        %s1616 = scalar_lea.vmem %s1, 24
        %v1617 = vld [vmem:[%s1616] sm:$0xf]
        %v1619 = vsel %vm494, %v1617, 0
        %v1622 = vsel %vm520, %v1612, 0
        %v1625 = vsel %vm520, %v1613, 0
        %v1628 = vsel %vm520, %v1614, 0
        %v1631 = vsel %vm520, %v1615, 0
        %1633 = vmatprep.subr.mxu0 %v1625
        %1634 = vmatpush1.msra.mxu0 %v1622
        %1635 = vmatprep.subr.mxu0 0.0
        %1636 = vmatpush1.msra.mxu0 0.0
        %1637 = vmatprep.subr.mxu0 0.0
        %1638 = vmatpush1.msra.mxu0 0.0
        %1639 = vmatprep.subr.mxu0 0.0
        %1640 = vmatpush1.msra.mxu0 0.0
        %1641 = vmatprep.subr.mxu0 0.0
        %1642 = vmatpush1.msra.mxu0 0.0
        %1643 = vmatprep.subr.mxu0 0.0
        %1644 = vmatpush1.msra.mxu0 0.0
        %1645 = vmatprep.subr.mxu0 0.0
        %1646 = vmatpush1.msra.mxu0 0.0
        %1647 = vmatprep.subr.mxu0 0.0
        %1648 = vmatpush1.msra.mxu0 0.0
        %1649 = vmatprep.subr.mxu0 0.0
        %1650 = vmatpush1.msra.mxu0 0.0
        %1651 = vmatprep.subr.mxu0 0.0
        %1652 = vmatpush1.msra.mxu0 0.0
        %1653 = vmatprep.subr.mxu0 0.0
        %1654 = vmatpush1.msra.mxu0 0.0
        %1655 = vmatprep.subr.mxu0 0.0
        %1656 = vmatpush1.msra.mxu0 0.0
        %1657 = vmatprep.subr.mxu0 0.0
        %1658 = vmatpush1.msra.mxu0 0.0
        %1659 = vmatprep.subr.mxu0 0.0
        %1660 = vmatpush1.msra.mxu0 0.0
        %1661 = vmatprep.subr.mxu0 0.0
        %1662 = vmatpush1.msra.mxu0 0.0
        %1663 = vmatprep.subr.mxu0 0.0
        %1664 = vmatpush1.msra.mxu0 0.0
        %1665 = vmatprep.subr.mxu0 0.0
        %1666 = vmatpush1.msra.mxu0 0.0
        %1667 = vmatprep.subr.mxu0 0.0
        %1668 = vmatpush1.msra.mxu0 0.0
        %1669 = vmatprep.subr.mxu0 0.0
        %1670 = vmatpush1.msra.mxu0 0.0
        %1671 = vmatprep.subr.mxu0 0.0
        %1672 = vmatpush1.msra.mxu0 0.0
        %1673 = vmatprep.subr.mxu0 0.0
        %1674 = vmatpush1.msra.mxu0 0.0
        %1675 = vmatprep.subr.mxu0 0.0
        %1676 = vmatpush1.msra.mxu0 0.0
        %1677 = vmatprep.subr.mxu0 0.0
        %1678 = vmatpush1.msra.mxu0 0.0
        %1679 = vmatprep.subr.mxu0 0.0
        %1680 = vmatpush1.msra.mxu0 0.0
        %1681 = vmatprep.subr.mxu0 0.0
        %1682 = vmatpush1.msra.mxu0 0.0
        %1683 = vmatprep.subr.mxu0 0.0
        %1684 = vmatpush1.msra.mxu0 0.0
        %1685 = vmatprep.subr.mxu0 0.0
        %1686 = vmatpush1.msra.mxu0 0.0
        %1687 = vmatprep.subr.mxu0 0.0
        %1688 = vmatpush1.msra.mxu0 0.0
        %1689 = vmatprep.subr.mxu0 0.0
        %1690 = vmatpush1.msra.mxu0 0.0
        %1691 = vmatprep.subr.mxu0 0.0
        %1692 = vmatpush1.msra.mxu0 0.0
        %1693 = vmatprep.subr.mxu0 0.0
        %1694 = vmatpush1.msra.mxu0 0.0
        %1695 = vmatprep.subr.mxu0 0.0
        %1696 = vmatpush1.msra.mxu0 0.0
        %1697 = vmatprep.mubr.f32.mxu0 0.0
        %1698 = vmatmul.mubr.f32.gmra.mrb[0].mxu0 %v1619
        %v1699 = vpop.f32.mrb[0].mxu0
        %v1700 = vadd.f32 0.0, %v1699
        %v1701 = vpop.f32.mrb[0].mxu0
        %v1702 = vadd.f32 0.0, %v1701
        %1703 = vdwg.mxu0
        %1704 = vmatprep.subr.mxu0 %v1631
        %1705 = vmatpush1.msra.mxu0 %v1628
        %1706 = vmatprep.subr.mxu0 0.0
        %1707 = vmatpush1.msra.mxu0 0.0
        %1708 = vmatprep.subr.mxu0 0.0
        %1709 = vmatpush1.msra.mxu0 0.0
        %1710 = vmatprep.subr.mxu0 0.0
        %1711 = vmatpush1.msra.mxu0 0.0
        %1712 = vmatprep.subr.mxu0 0.0
        %1713 = vmatpush1.msra.mxu0 0.0
        %1714 = vmatprep.subr.mxu0 0.0
        %1715 = vmatpush1.msra.mxu0 0.0
        %1716 = vmatprep.subr.mxu0 0.0
        %1717 = vmatpush1.msra.mxu0 0.0
        %1718 = vmatprep.subr.mxu0 0.0
        %1719 = vmatpush1.msra.mxu0 0.0
        %1720 = vmatprep.subr.mxu0 0.0
        %1721 = vmatpush1.msra.mxu0 0.0
        %1722 = vmatprep.subr.mxu0 0.0
        %1723 = vmatpush1.msra.mxu0 0.0
        %1724 = vmatprep.subr.mxu0 0.0
        %1725 = vmatpush1.msra.mxu0 0.0
        %1726 = vmatprep.subr.mxu0 0.0
        %1727 = vmatpush1.msra.mxu0 0.0
        %1728 = vmatprep.subr.mxu0 0.0
        %1729 = vmatpush1.msra.mxu0 0.0
        %1730 = vmatprep.subr.mxu0 0.0
        %1731 = vmatpush1.msra.mxu0 0.0
        %1732 = vmatprep.subr.mxu0 0.0
        %1733 = vmatpush1.msra.mxu0 0.0
        %1734 = vmatprep.subr.mxu0 0.0
        %1735 = vmatpush1.msra.mxu0 0.0
        %1736 = vmatprep.subr.mxu0 0.0
        %1737 = vmatpush1.msra.mxu0 0.0
        %1738 = vmatprep.subr.mxu0 0.0
        %1739 = vmatpush1.msra.mxu0 0.0
        %1740 = vmatprep.subr.mxu0 0.0
        %1741 = vmatpush1.msra.mxu0 0.0
        %1742 = vmatprep.subr.mxu0 0.0
        %1743 = vmatpush1.msra.mxu0 0.0
        %1744 = vmatprep.subr.mxu0 0.0
        %1745 = vmatpush1.msra.mxu0 0.0
        %1746 = vmatprep.subr.mxu0 0.0
        %1747 = vmatpush1.msra.mxu0 0.0
        %1748 = vmatprep.subr.mxu0 0.0
        %1749 = vmatpush1.msra.mxu0 0.0
        %1750 = vmatprep.subr.mxu0 0.0
        %1751 = vmatpush1.msra.mxu0 0.0
        %1752 = vmatprep.subr.mxu0 0.0
        %1753 = vmatpush1.msra.mxu0 0.0
        %1754 = vmatprep.subr.mxu0 0.0
        %1755 = vmatpush1.msra.mxu0 0.0
        %1756 = vmatprep.subr.mxu0 0.0
        %1757 = vmatpush1.msra.mxu0 0.0
        %1758 = vmatprep.subr.mxu0 0.0
        %1759 = vmatpush1.msra.mxu0 0.0
        %1760 = vmatprep.subr.mxu0 0.0
        %1761 = vmatpush1.msra.mxu0 0.0
        %1762 = vmatprep.subr.mxu0 0.0
        %1763 = vmatpush1.msra.mxu0 0.0
        %1764 = vmatprep.subr.mxu0 0.0
        %1765 = vmatpush1.msra.mxu0 0.0
        %1766 = vmatprep.subr.mxu0 0.0
        %1767 = vmatpush1.msra.mxu0 0.0
        %1768 = vmatprep.mubr.f32.mxu0 0.0
        %1769 = vmatmul.mubr.f32.gmra.mrb[0].mxu0 %v1619
        %v1770 = vpop.f32.mrb[0].mxu0
        %v1771 = vadd.f32 0.0, %v1770
        %v1772 = vpop.f32.mrb[0].mxu0
        %v1773 = vadd.f32 0.0, %v1772
        %1774 = vdwg.mxu0
        %v1775 = vadd.f32 %v1578, %v1700
        %v1776 = vadd.f32 %v1579, %v1702
        %v1777 = vadd.f32 %v1580, %v1771
        %v1778 = vadd.f32 %v1581, %v1773
        %vm1779 = vcmp.lt.s32.totalorder %v436, 61
        %vm1780 = vcmp.lt.s32.totalorder %v437, 61
        %vm1781 = vcmp.lt.s32.totalorder %v438, 61
        %vm1782 = vcmp.lt.s32.totalorder %v439, 61
        %1783 = vrot.lane.b32.xlu0 %v440, 125
        %v1784 = vpop.permute.xlu0 %1783
        %1785 = vrot.lane.b32.xlu0 %v452, 125
        %v1786 = vpop.permute.xlu0 %1785
        %1787 = vrot.lane.b32.xlu0 %v441, 125
        %v1788 = vpop.permute.xlu0 %1787
        %1789 = vrot.lane.b32.xlu0 %v447, 125
        %v1790 = vpop.permute.xlu0 %1789
        %vm1791 = vcmask 1022976
        %v1792 = vsel %vm1791, %v1784, %v1786
        %v1793 = vsel %vm1791, %v1786, %v1788
        %v1794 = vsel %vm1791, %v1788, %v1790
        %v1800 = vsel %vm1791, %v1790, %v1784
        %v1801 = vsel %vm1779, 1, 0
        %v1802 = vsel %vm1780, 1, 0
        %v1803 = vsel %vm1781, 1, 0
        %v1804 = vsel %vm1782, 1, 0
        %vm1805 = vcmp.eq.s32.totalorder %v1801, 1
        %vm1806 = vcmp.eq.s32.totalorder %v1802, 1
        %vm1807 = vcmp.eq.s32.totalorder %v1803, 1
        %vm1808 = vcmp.eq.s32.totalorder %v1804, 1
        %v1809 = vsel %vm1805, %v1792, 0.0
        %v1810 = vsel %vm1806, %v1793, 0.0
        %v1811 = vsel %vm1807, %v1794, 0.0
        %v1812 = vsel %vm1808, %v1800, 0.0
        %s1813 = scalar_lea.vmem %s1, 28
        %v1814 = vld [vmem:[%s1813] sm:$0xf]
        %v1816 = vsel %vm494, %v1814, 0
        %v1819 = vsel %vm520, %v1809, 0
        %v1822 = vsel %vm520, %v1810, 0
        %v1825 = vsel %vm520, %v1811, 0
        %v1828 = vsel %vm520, %v1812, 0
        %1830 = vmatprep.subr.mxu0 %v1822
        %1831 = vmatpush1.msra.mxu0 %v1819
        %1832 = vmatprep.subr.mxu0 0.0
        %1833 = vmatpush1.msra.mxu0 0.0
        %1834 = vmatprep.subr.mxu0 0.0
        %1835 = vmatpush1.msra.mxu0 0.0
        %1836 = vmatprep.subr.mxu0 0.0
        %1837 = vmatpush1.msra.mxu0 0.0
        %1838 = vmatprep.subr.mxu0 0.0
        %1839 = vmatpush1.msra.mxu0 0.0
        %1840 = vmatprep.subr.mxu0 0.0
        %1841 = vmatpush1.msra.mxu0 0.0
        %1842 = vmatprep.subr.mxu0 0.0
        %1843 = vmatpush1.msra.mxu0 0.0
        %1844 = vmatprep.subr.mxu0 0.0
        %1845 = vmatpush1.msra.mxu0 0.0
        %1846 = vmatprep.subr.mxu0 0.0
        %1847 = vmatpush1.msra.mxu0 0.0
        %1848 = vmatprep.subr.mxu0 0.0
        %1849 = vmatpush1.msra.mxu0 0.0
        %1850 = vmatprep.subr.mxu0 0.0
        %1851 = vmatpush1.msra.mxu0 0.0
        %1852 = vmatprep.subr.mxu0 0.0
        %1853 = vmatpush1.msra.mxu0 0.0
        %1854 = vmatprep.subr.mxu0 0.0
        %1855 = vmatpush1.msra.mxu0 0.0
        %1856 = vmatprep.subr.mxu0 0.0
        %1857 = vmatpush1.msra.mxu0 0.0
        %1858 = vmatprep.subr.mxu0 0.0
        %1859 = vmatpush1.msra.mxu0 0.0
        %1860 = vmatprep.subr.mxu0 0.0
        %1861 = vmatpush1.msra.mxu0 0.0
        %1862 = vmatprep.subr.mxu0 0.0
        %1863 = vmatpush1.msra.mxu0 0.0
        %1864 = vmatprep.subr.mxu0 0.0
        %1865 = vmatpush1.msra.mxu0 0.0
        %1866 = vmatprep.subr.mxu0 0.0
        %1867 = vmatpush1.msra.mxu0 0.0
        %1868 = vmatprep.subr.mxu0 0.0
        %1869 = vmatpush1.msra.mxu0 0.0
        %1870 = vmatprep.subr.mxu0 0.0
        %1871 = vmatpush1.msra.mxu0 0.0
        %1872 = vmatprep.subr.mxu0 0.0
        %1873 = vmatpush1.msra.mxu0 0.0
        %1874 = vmatprep.subr.mxu0 0.0
        %1875 = vmatpush1.msra.mxu0 0.0
        %1876 = vmatprep.subr.mxu0 0.0
        %1877 = vmatpush1.msra.mxu0 0.0
        %1878 = vmatprep.subr.mxu0 0.0
        %1879 = vmatpush1.msra.mxu0 0.0
        %1880 = vmatprep.subr.mxu0 0.0
        %1881 = vmatpush1.msra.mxu0 0.0
        %1882 = vmatprep.subr.mxu0 0.0
        %1883 = vmatpush1.msra.mxu0 0.0
        %1884 = vmatprep.subr.mxu0 0.0
        %1885 = vmatpush1.msra.mxu0 0.0
        %1886 = vmatprep.subr.mxu0 0.0
        %1887 = vmatpush1.msra.mxu0 0.0
        %1888 = vmatprep.subr.mxu0 0.0
        %1889 = vmatpush1.msra.mxu0 0.0
        %1890 = vmatprep.subr.mxu0 0.0
        %1891 = vmatpush1.msra.mxu0 0.0
        %1892 = vmatprep.subr.mxu0 0.0
        %1893 = vmatpush1.msra.mxu0 0.0
        %1894 = vmatprep.mubr.f32.mxu0 0.0
        %1895 = vmatmul.mubr.f32.gmra.mrb[0].mxu0 %v1816
        %v1896 = vpop.f32.mrb[0].mxu0
        %v1897 = vadd.f32 0.0, %v1896
        %v1898 = vpop.f32.mrb[0].mxu0
        %v1899 = vadd.f32 0.0, %v1898
        %1900 = vdwg.mxu0
        %1901 = vmatprep.subr.mxu0 %v1828
        %1902 = vmatpush1.msra.mxu0 %v1825
        %1903 = vmatprep.subr.mxu0 0.0
        %1904 = vmatpush1.msra.mxu0 0.0
        %1905 = vmatprep.subr.mxu0 0.0
        %1906 = vmatpush1.msra.mxu0 0.0
        %1907 = vmatprep.subr.mxu0 0.0
        %1908 = vmatpush1.msra.mxu0 0.0
        %1909 = vmatprep.subr.mxu0 0.0
        %1910 = vmatpush1.msra.mxu0 0.0
        %1911 = vmatprep.subr.mxu0 0.0
        %1912 = vmatpush1.msra.mxu0 0.0
        %1913 = vmatprep.subr.mxu0 0.0
        %1914 = vmatpush1.msra.mxu0 0.0
        %1915 = vmatprep.subr.mxu0 0.0
        %1916 = vmatpush1.msra.mxu0 0.0
        %1917 = vmatprep.subr.mxu0 0.0
        %1918 = vmatpush1.msra.mxu0 0.0
        %1919 = vmatprep.subr.mxu0 0.0
        %1920 = vmatpush1.msra.mxu0 0.0
        %1921 = vmatprep.subr.mxu0 0.0
        %1922 = vmatpush1.msra.mxu0 0.0
        %1923 = vmatprep.subr.mxu0 0.0
        %1924 = vmatpush1.msra.mxu0 0.0
        %1925 = vmatprep.subr.mxu0 0.0
        %1926 = vmatpush1.msra.mxu0 0.0
        %1927 = vmatprep.subr.mxu0 0.0
        %1928 = vmatpush1.msra.mxu0 0.0
        %1929 = vmatprep.subr.mxu0 0.0
        %1930 = vmatpush1.msra.mxu0 0.0
        %1931 = vmatprep.subr.mxu0 0.0
        %1932 = vmatpush1.msra.mxu0 0.0
        %1933 = vmatprep.subr.mxu0 0.0
        %1934 = vmatpush1.msra.mxu0 0.0
        %1935 = vmatprep.subr.mxu0 0.0
        %1936 = vmatpush1.msra.mxu0 0.0
        %1937 = vmatprep.subr.mxu0 0.0
        %1938 = vmatpush1.msra.mxu0 0.0
        %1939 = vmatprep.subr.mxu0 0.0
        %1940 = vmatpush1.msra.mxu0 0.0
        %1941 = vmatprep.subr.mxu0 0.0
        %1942 = vmatpush1.msra.mxu0 0.0
        %1943 = vmatprep.subr.mxu0 0.0
        %1944 = vmatpush1.msra.mxu0 0.0
        %1945 = vmatprep.subr.mxu0 0.0
        %1946 = vmatpush1.msra.mxu0 0.0
        %1947 = vmatprep.subr.mxu0 0.0
        %1948 = vmatpush1.msra.mxu0 0.0
        %1949 = vmatprep.subr.mxu0 0.0
        %1950 = vmatpush1.msra.mxu0 0.0
        %1951 = vmatprep.subr.mxu0 0.0
        %1952 = vmatpush1.msra.mxu0 0.0
        %1953 = vmatprep.subr.mxu0 0.0
        %1954 = vmatpush1.msra.mxu0 0.0
        %1955 = vmatprep.subr.mxu0 0.0
        %1956 = vmatpush1.msra.mxu0 0.0
        %1957 = vmatprep.subr.mxu0 0.0
        %1958 = vmatpush1.msra.mxu0 0.0
        %1959 = vmatprep.subr.mxu0 0.0
        %1960 = vmatpush1.msra.mxu0 0.0
        %1961 = vmatprep.subr.mxu0 0.0
        %1962 = vmatpush1.msra.mxu0 0.0
        %1963 = vmatprep.subr.mxu0 0.0
        %1964 = vmatpush1.msra.mxu0 0.0
        %1965 = vmatprep.mubr.f32.mxu0 0.0
        %1966 = vmatmul.mubr.f32.gmra.mrb[0].mxu0 %v1816
        %v1967 = vpop.f32.mrb[0].mxu0
        %v1968 = vadd.f32 0.0, %v1967
        %v1969 = vpop.f32.mrb[0].mxu0
        %v1970 = vadd.f32 0.0, %v1969
        %1971 = vdwg.mxu0
        %v1972 = vadd.f32 %v1775, %v1897
        %v1973 = vadd.f32 %v1776, %v1899
        %v1974 = vadd.f32 %v1777, %v1968
        %v1975 = vadd.f32 %v1778, %v1970
        %vm1976 = vcmp.lt.s32.totalorder %v436, 60
        %vm1977 = vcmp.lt.s32.totalorder %v437, 60
        %vm1978 = vcmp.lt.s32.totalorder %v438, 60
        %vm1979 = vcmp.lt.s32.totalorder %v439, 60
        %1980 = vrot.lane.b32.xlu0 %v440, 124
        %v1981 = vpop.permute.xlu0 %1980
        %1982 = vrot.lane.b32.xlu0 %v452, 124
        %v1983 = vpop.permute.xlu0 %1982
        %1984 = vrot.lane.b32.xlu0 %v441, 124
        %v1985 = vpop.permute.xlu0 %1984
        %1986 = vrot.lane.b32.xlu0 %v447, 124
        %v1987 = vpop.permute.xlu0 %1986
        %vm1988 = vcmask 1014784
        %v1989 = vsel %vm1988, %v1981, %v1983
        %v1990 = vsel %vm1988, %v1983, %v1985
        %v1991 = vsel %vm1988, %v1985, %v1987
        %v1997 = vsel %vm1988, %v1987, %v1981
        %v1998 = vsel %vm1976, 1, 0
        %v1999 = vsel %vm1977, 1, 0
        %v2000 = vsel %vm1978, 1, 0
        %v2001 = vsel %vm1979, 1, 0
        %vm2002 = vcmp.eq.s32.totalorder %v1998, 1
        %vm2003 = vcmp.eq.s32.totalorder %v1999, 1
        %vm2004 = vcmp.eq.s32.totalorder %v2000, 1
        %vm2005 = vcmp.eq.s32.totalorder %v2001, 1
        %v2006 = vsel %vm2002, %v1989, 0.0
        %v2007 = vsel %vm2003, %v1990, 0.0
        %v2008 = vsel %vm2004, %v1991, 0.0
        %v2009 = vsel %vm2005, %v1997, 0.0
        %s2010 = scalar_lea.vmem %s1, 32
        %v2011 = vld [vmem:[%s2010] sm:$0xf]
        %v2013 = vsel %vm494, %v2011, 0
        %v2016 = vsel %vm520, %v2006, 0
        %v2019 = vsel %vm520, %v2007, 0
        %v2022 = vsel %vm520, %v2008, 0
        %v2025 = vsel %vm520, %v2009, 0
        %2027 = vmatprep.subr.mxu0 %v2019
        %2028 = vmatpush1.msra.mxu0 %v2016
        %2029 = vmatprep.subr.mxu0 0.0
        %2030 = vmatpush1.msra.mxu0 0.0
        %2031 = vmatprep.subr.mxu0 0.0
        %2032 = vmatpush1.msra.mxu0 0.0
        %2033 = vmatprep.subr.mxu0 0.0
        %2034 = vmatpush1.msra.mxu0 0.0
        %2035 = vmatprep.subr.mxu0 0.0
        %2036 = vmatpush1.msra.mxu0 0.0
        %2037 = vmatprep.subr.mxu0 0.0
        %2038 = vmatpush1.msra.mxu0 0.0
        %2039 = vmatprep.subr.mxu0 0.0
        %2040 = vmatpush1.msra.mxu0 0.0
        %2041 = vmatprep.subr.mxu0 0.0
        %2042 = vmatpush1.msra.mxu0 0.0
        %2043 = vmatprep.subr.mxu0 0.0
        %2044 = vmatpush1.msra.mxu0 0.0
        %2045 = vmatprep.subr.mxu0 0.0
        %2046 = vmatpush1.msra.mxu0 0.0
        %2047 = vmatprep.subr.mxu0 0.0
        %2048 = vmatpush1.msra.mxu0 0.0
        %2049 = vmatprep.subr.mxu0 0.0
        %2050 = vmatpush1.msra.mxu0 0.0
        %2051 = vmatprep.subr.mxu0 0.0
        %2052 = vmatpush1.msra.mxu0 0.0
        %2053 = vmatprep.subr.mxu0 0.0
        %2054 = vmatpush1.msra.mxu0 0.0
        %2055 = vmatprep.subr.mxu0 0.0
        %2056 = vmatpush1.msra.mxu0 0.0
        %2057 = vmatprep.subr.mxu0 0.0
        %2058 = vmatpush1.msra.mxu0 0.0
        %2059 = vmatprep.subr.mxu0 0.0
        %2060 = vmatpush1.msra.mxu0 0.0
        %2061 = vmatprep.subr.mxu0 0.0
        %2062 = vmatpush1.msra.mxu0 0.0
        %2063 = vmatprep.subr.mxu0 0.0
        %2064 = vmatpush1.msra.mxu0 0.0
        %2065 = vmatprep.subr.mxu0 0.0
        %2066 = vmatpush1.msra.mxu0 0.0
        %2067 = vmatprep.subr.mxu0 0.0
        %2068 = vmatpush1.msra.mxu0 0.0
        %2069 = vmatprep.subr.mxu0 0.0
        %2070 = vmatpush1.msra.mxu0 0.0
        %2071 = vmatprep.subr.mxu0 0.0
        %2072 = vmatpush1.msra.mxu0 0.0
        %2073 = vmatprep.subr.mxu0 0.0
        %2074 = vmatpush1.msra.mxu0 0.0
        %2075 = vmatprep.subr.mxu0 0.0
        %2076 = vmatpush1.msra.mxu0 0.0
        %2077 = vmatprep.subr.mxu0 0.0
        %2078 = vmatpush1.msra.mxu0 0.0
        %2079 = vmatprep.subr.mxu0 0.0
        %2080 = vmatpush1.msra.mxu0 0.0
        %2081 = vmatprep.subr.mxu0 0.0
        %2082 = vmatpush1.msra.mxu0 0.0
        %2083 = vmatprep.subr.mxu0 0.0
        %2084 = vmatpush1.msra.mxu0 0.0
        %2085 = vmatprep.subr.mxu0 0.0
        %2086 = vmatpush1.msra.mxu0 0.0
        %2087 = vmatprep.subr.mxu0 0.0
        %2088 = vmatpush1.msra.mxu0 0.0
        %2089 = vmatprep.subr.mxu0 0.0
        %2090 = vmatpush1.msra.mxu0 0.0
        %2091 = vmatprep.mubr.f32.mxu0 0.0
        %2092 = vmatmul.mubr.f32.gmra.mrb[0].mxu0 %v2013
        %v2093 = vpop.f32.mrb[0].mxu0
        %v2094 = vadd.f32 0.0, %v2093
        %v2095 = vpop.f32.mrb[0].mxu0
        %v2096 = vadd.f32 0.0, %v2095
        %2097 = vdwg.mxu0
        %2098 = vmatprep.subr.mxu0 %v2025
        %2099 = vmatpush1.msra.mxu0 %v2022
        %2100 = vmatprep.subr.mxu0 0.0
        %2101 = vmatpush1.msra.mxu0 0.0
        %2102 = vmatprep.subr.mxu0 0.0
        %2103 = vmatpush1.msra.mxu0 0.0
        %2104 = vmatprep.subr.mxu0 0.0
        %2105 = vmatpush1.msra.mxu0 0.0
        %2106 = vmatprep.subr.mxu0 0.0
        %2107 = vmatpush1.msra.mxu0 0.0
        %2108 = vmatprep.subr.mxu0 0.0
        %2109 = vmatpush1.msra.mxu0 0.0
        %2110 = vmatprep.subr.mxu0 0.0
        %2111 = vmatpush1.msra.mxu0 0.0
        %2112 = vmatprep.subr.mxu0 0.0
        %2113 = vmatpush1.msra.mxu0 0.0
        %2114 = vmatprep.subr.mxu0 0.0
        %2115 = vmatpush1.msra.mxu0 0.0
        %2116 = vmatprep.subr.mxu0 0.0
        %2117 = vmatpush1.msra.mxu0 0.0
        %2118 = vmatprep.subr.mxu0 0.0
        %2119 = vmatpush1.msra.mxu0 0.0
        %2120 = vmatprep.subr.mxu0 0.0
        %2121 = vmatpush1.msra.mxu0 0.0
        %2122 = vmatprep.subr.mxu0 0.0
        %2123 = vmatpush1.msra.mxu0 0.0
        %2124 = vmatprep.subr.mxu0 0.0
        %2125 = vmatpush1.msra.mxu0 0.0
        %2126 = vmatprep.subr.mxu0 0.0
        %2127 = vmatpush1.msra.mxu0 0.0
        %2128 = vmatprep.subr.mxu0 0.0
        %2129 = vmatpush1.msra.mxu0 0.0
        %2130 = vmatprep.subr.mxu0 0.0
        %2131 = vmatpush1.msra.mxu0 0.0
        %2132 = vmatprep.subr.mxu0 0.0
        %2133 = vmatpush1.msra.mxu0 0.0
        %2134 = vmatprep.subr.mxu0 0.0
        %2135 = vmatpush1.msra.mxu0 0.0
        %2136 = vmatprep.subr.mxu0 0.0
        %2137 = vmatpush1.msra.mxu0 0.0
        %2138 = vmatprep.subr.mxu0 0.0
        %2139 = vmatpush1.msra.mxu0 0.0
        %2140 = vmatprep.subr.mxu0 0.0
        %2141 = vmatpush1.msra.mxu0 0.0
        %2142 = vmatprep.subr.mxu0 0.0
        %2143 = vmatpush1.msra.mxu0 0.0
        %2144 = vmatprep.subr.mxu0 0.0
        %2145 = vmatpush1.msra.mxu0 0.0
        %2146 = vmatprep.subr.mxu0 0.0
        %2147 = vmatpush1.msra.mxu0 0.0
        %2148 = vmatprep.subr.mxu0 0.0
        %2149 = vmatpush1.msra.mxu0 0.0
        %2150 = vmatprep.subr.mxu0 0.0
        %2151 = vmatpush1.msra.mxu0 0.0
        %2152 = vmatprep.subr.mxu0 0.0
        %2153 = vmatpush1.msra.mxu0 0.0
        %2154 = vmatprep.subr.mxu0 0.0
        %2155 = vmatpush1.msra.mxu0 0.0
        %2156 = vmatprep.subr.mxu0 0.0
        %2157 = vmatpush1.msra.mxu0 0.0
        %2158 = vmatprep.subr.mxu0 0.0
        %2159 = vmatpush1.msra.mxu0 0.0
        %2160 = vmatprep.subr.mxu0 0.0
        %2161 = vmatpush1.msra.mxu0 0.0
        %2162 = vmatprep.mubr.f32.mxu0 0.0
        %2163 = vmatmul.mubr.f32.gmra.mrb[0].mxu0 %v2013
        %v2164 = vpop.f32.mrb[0].mxu0
        %v2165 = vadd.f32 0.0, %v2164
        %v2166 = vpop.f32.mrb[0].mxu0
        %v2167 = vadd.f32 0.0, %v2166
        %2168 = vdwg.mxu0
        %v2169 = vadd.f32 %v1972, %v2094
        %v2170 = vadd.f32 %v1973, %v2096
        %v2171 = vadd.f32 %v1974, %v2165
        %v2172 = vadd.f32 %v1975, %v2167
        %v2173 = vld [vmem:[%s2] sm:$0xf]
        %2175 = vset.pattern.permute.xlu0 0
        %2176 = vperm.xlu0 %2175, %v2173
        %v2177 = vpop.permute.xlu0 %2176
        %v2179 = vadd.f32 %v2169, %v2177
        %v2180 = vadd.f32 %v2170, %v2177
        %v2181 = vadd.f32 %v2171, %v2177
        %v2182 = vadd.f32 %v2172, %v2177
        %v2183 = vmax.f32 %v2179, 0.0
        %v2184 = vmax.f32 %v2180, 0.0
        %v2185 = vmax.f32 %v2181, 0.0
        %v2186 = vmax.f32 %v2182, 0.0
        %2191 = vrot.lane.b32.xlu0 %v2183, 127
        %v2192 = vpop.permute.xlu0 %2191
        %2193 = vrot.lane.b32.xlu0 %v2184, 127
        %v2194 = vpop.permute.xlu0 %2193
        %2195 = vrot.lane.b32.xlu0 %v2185, 127
        %v2196 = vpop.permute.xlu0 %2195
        %2197 = vrot.lane.b32.xlu0 %v2186, 127
        %v2198 = vpop.permute.xlu0 %2197
        %v2199 = vsel %vm1397, %v2192, %v2194
        %v2200 = vsel %vm1397, %v2194, %v2196
        %v2201 = vsel %vm1397, %v2196, %v2198
        %v2207 = vsel %vm1397, %v2198, %v2192
        %v2208 = vmax.f32 %v2183, %v2199
        %v2209 = vmax.f32 %v2184, %v2200
        %v2210 = vmax.f32 %v2185, %v2201
        %v2211 = vmax.f32 %v2186, %v2207
        %vm2212 = vcmp.ge.s32.totalorder %v436, 6
        %vm2213 = vcmp.ge.s32.totalorder %v437, 6
        %vm2214 = vcmp.ge.s32.totalorder %v438, 6
        %vm2215 = vcmp.ge.s32.totalorder %v439, 6
        %2217 = vrot.lane.b32.xlu0 %v2211, 6
        %v2218 = vpop.permute.xlu0 %2217
        %2223 = vrot.lane.b32.xlu0 %v2208, 6
        %v2224 = vpop.permute.xlu0 %2223
        %2225 = vrot.lane.b32.xlu0 %v2209, 6
        %v2226 = vpop.permute.xlu0 %2225
        %2227 = vrot.lane.b32.xlu0 %v2210, 6
        %v2228 = vpop.permute.xlu0 %2227
        %vm2229 = vcmask 48128
        %v2230 = vsel %vm2229, %v2224, %v2226
        %v2231 = vsel %vm2229, %v2226, %v2228
        %v2232 = vsel %vm2229, %v2228, %v2218
        %v2237 = vsel %vm2229, %v2218, %v2224
        %v2238 = vsel %vm2212, 1, 0
        %v2239 = vsel %vm2213, 1, 0
        %v2240 = vsel %vm2214, 1, 0
        %v2241 = vsel %vm2215, 1, 0
        %vm2242 = vcmp.eq.s32.totalorder %v2238, 1
        %vm2243 = vcmp.eq.s32.totalorder %v2239, 1
        %vm2244 = vcmp.eq.s32.totalorder %v2240, 1
        %vm2245 = vcmp.eq.s32.totalorder %v2241, 1
        %v2246 = vsel %vm2242, %v2237, 0.0
        %v2247 = vsel %vm2243, %v2230, 0.0
        %v2248 = vsel %vm2244, %v2231, 0.0
        %v2249 = vsel %vm2245, %v2232, 0.0
        %v2250 = vld [vmem:[%s3] sm:$0xff]
        %2251 = vrot.lane.b32.xlu0 %v2211, 4
        %v2252 = vpop.permute.xlu0 %2251
        %2254 = vrot.lane.b32.xlu0 %v2208, 4
        %v2255 = vpop.permute.xlu0 %2254
        %2256 = vrot.lane.b32.xlu0 %v2209, 4
        %v2257 = vpop.permute.xlu0 %2256
        %2258 = vrot.lane.b32.xlu0 %v2210, 4
        %v2259 = vpop.permute.xlu0 %2258
        %v2260 = vsel %vm459, %v2255, %v2257
        %v2261 = vsel %vm459, %v2257, %v2259
        %v2262 = vsel %vm459, %v2259, %v2252
        %v2267 = vsel %vm459, %v2252, %v2255
        %v2268 = vsel %vm472, %v2267, 0.0
        %v2269 = vsel %vm473, %v2260, 0.0
        %v2270 = vsel %vm474, %v2261, 0.0
        %v2271 = vsel %vm475, %v2262, 0.0
        %s2272 = scalar_lea.vmem %s3, 8
        %v2273 = vld [vmem:[%s2272] sm:$0xff]
        %v2275 = vsel %vm459, %v2273, 0
        %vm2277 = vcmask 1043456
        %v2279 = vsel %vm2277, %v2268, 0
        %v2282 = vsel %vm2277, %v2269, 0
        %v2285 = vsel %vm2277, %v2270, 0
        %v2288 = vsel %vm2277, %v2271, 0
        %2290 = vmatprep.subr.mxu0 %v2282
        %2291 = vmatpush1.msra.mxu0 %v2279
        %2292 = vmatprep.subr.mxu0 0.0
        %2293 = vmatpush1.msra.mxu0 0.0
        %2294 = vmatprep.subr.mxu0 0.0
        %2295 = vmatpush1.msra.mxu0 0.0
        %2296 = vmatprep.subr.mxu0 0.0
        %2297 = vmatpush1.msra.mxu0 0.0
        %2298 = vmatprep.subr.mxu0 0.0
        %2299 = vmatpush1.msra.mxu0 0.0
        %2300 = vmatprep.subr.mxu0 0.0
        %2301 = vmatpush1.msra.mxu0 0.0
        %2302 = vmatprep.subr.mxu0 0.0
        %2303 = vmatpush1.msra.mxu0 0.0
        %2304 = vmatprep.subr.mxu0 0.0
        %2305 = vmatpush1.msra.mxu0 0.0
        %2306 = vmatprep.subr.mxu0 0.0
        %2307 = vmatpush1.msra.mxu0 0.0
        %2308 = vmatprep.subr.mxu0 0.0
        %2309 = vmatpush1.msra.mxu0 0.0
        %2310 = vmatprep.subr.mxu0 0.0
        %2311 = vmatpush1.msra.mxu0 0.0
        %2312 = vmatprep.subr.mxu0 0.0
        %2313 = vmatpush1.msra.mxu0 0.0
        %2314 = vmatprep.subr.mxu0 0.0
        %2315 = vmatpush1.msra.mxu0 0.0
        %2316 = vmatprep.subr.mxu0 0.0
        %2317 = vmatpush1.msra.mxu0 0.0
        %2318 = vmatprep.subr.mxu0 0.0
        %2319 = vmatpush1.msra.mxu0 0.0
        %2320 = vmatprep.subr.mxu0 0.0
        %2321 = vmatpush1.msra.mxu0 0.0
        %2322 = vmatprep.subr.mxu0 0.0
        %2323 = vmatpush1.msra.mxu0 0.0
        %2324 = vmatprep.subr.mxu0 0.0
        %2325 = vmatpush1.msra.mxu0 0.0
        %2326 = vmatprep.subr.mxu0 0.0
        %2327 = vmatpush1.msra.mxu0 0.0
        %2328 = vmatprep.subr.mxu0 0.0
        %2329 = vmatpush1.msra.mxu0 0.0
        %2330 = vmatprep.subr.mxu0 0.0
        %2331 = vmatpush1.msra.mxu0 0.0
        %2332 = vmatprep.subr.mxu0 0.0
        %2333 = vmatpush1.msra.mxu0 0.0
        %2334 = vmatprep.subr.mxu0 0.0
        %2335 = vmatpush1.msra.mxu0 0.0
        %2336 = vmatprep.subr.mxu0 0.0
        %2337 = vmatpush1.msra.mxu0 0.0
        %2338 = vmatprep.subr.mxu0 0.0
        %2339 = vmatpush1.msra.mxu0 0.0
        %2340 = vmatprep.subr.mxu0 0.0
        %2341 = vmatpush1.msra.mxu0 0.0
        %2342 = vmatprep.subr.mxu0 0.0
        %2343 = vmatpush1.msra.mxu0 0.0
        %2344 = vmatprep.subr.mxu0 0.0
        %2345 = vmatpush1.msra.mxu0 0.0
        %2346 = vmatprep.subr.mxu0 0.0
        %2347 = vmatpush1.msra.mxu0 0.0
        %2348 = vmatprep.subr.mxu0 0.0
        %2349 = vmatpush1.msra.mxu0 0.0
        %2350 = vmatprep.subr.mxu0 0.0
        %2351 = vmatpush1.msra.mxu0 0.0
        %2352 = vmatprep.subr.mxu0 0.0
        %2353 = vmatpush1.msra.mxu0 0.0
        %2354 = vmatprep.mubr.f32.mxu0 0.0
        %2355 = vmatmul.mubr.f32.gmra.mrb[0].mxu0 %v2275
        %v2356 = vpop.f32.mrb[0].mxu0
        %v2357 = vadd.f32 0.0, %v2356
        %v2358 = vpop.f32.mrb[0].mxu0
        %v2359 = vadd.f32 0.0, %v2358
        %2360 = vdwg.mxu0
        %2361 = vmatprep.subr.mxu0 %v2288
        %2362 = vmatpush1.msra.mxu0 %v2285
        %2363 = vmatprep.subr.mxu0 0.0
        %2364 = vmatpush1.msra.mxu0 0.0
        %2365 = vmatprep.subr.mxu0 0.0
        %2366 = vmatpush1.msra.mxu0 0.0
        %2367 = vmatprep.subr.mxu0 0.0
        %2368 = vmatpush1.msra.mxu0 0.0
        %2369 = vmatprep.subr.mxu0 0.0
        %2370 = vmatpush1.msra.mxu0 0.0
        %2371 = vmatprep.subr.mxu0 0.0
        %2372 = vmatpush1.msra.mxu0 0.0
        %2373 = vmatprep.subr.mxu0 0.0
        %2374 = vmatpush1.msra.mxu0 0.0
        %2375 = vmatprep.subr.mxu0 0.0
        %2376 = vmatpush1.msra.mxu0 0.0
        %2377 = vmatprep.subr.mxu0 0.0
        %2378 = vmatpush1.msra.mxu0 0.0
        %2379 = vmatprep.subr.mxu0 0.0
        %2380 = vmatpush1.msra.mxu0 0.0
        %2381 = vmatprep.subr.mxu0 0.0
        %2382 = vmatpush1.msra.mxu0 0.0
        %2383 = vmatprep.subr.mxu0 0.0
        %2384 = vmatpush1.msra.mxu0 0.0
        %2385 = vmatprep.subr.mxu0 0.0
        %2386 = vmatpush1.msra.mxu0 0.0
        %2387 = vmatprep.subr.mxu0 0.0
        %2388 = vmatpush1.msra.mxu0 0.0
        %2389 = vmatprep.subr.mxu0 0.0
        %2390 = vmatpush1.msra.mxu0 0.0
        %2391 = vmatprep.subr.mxu0 0.0
        %2392 = vmatpush1.msra.mxu0 0.0
        %2393 = vmatprep.subr.mxu0 0.0
        %2394 = vmatpush1.msra.mxu0 0.0
        %2395 = vmatprep.subr.mxu0 0.0
        %2396 = vmatpush1.msra.mxu0 0.0
        %2397 = vmatprep.subr.mxu0 0.0
        %2398 = vmatpush1.msra.mxu0 0.0
        %2399 = vmatprep.subr.mxu0 0.0
        %2400 = vmatpush1.msra.mxu0 0.0
        %2401 = vmatprep.subr.mxu0 0.0
        %2402 = vmatpush1.msra.mxu0 0.0
        %2403 = vmatprep.subr.mxu0 0.0
        %2404 = vmatpush1.msra.mxu0 0.0
        %2405 = vmatprep.subr.mxu0 0.0
        %2406 = vmatpush1.msra.mxu0 0.0
        %2407 = vmatprep.subr.mxu0 0.0
        %2408 = vmatpush1.msra.mxu0 0.0
        %2409 = vmatprep.subr.mxu0 0.0
        %2410 = vmatpush1.msra.mxu0 0.0
        %2411 = vmatprep.subr.mxu0 0.0
        %2412 = vmatpush1.msra.mxu0 0.0
        %2413 = vmatprep.subr.mxu0 0.0
        %2414 = vmatpush1.msra.mxu0 0.0
        %2415 = vmatprep.subr.mxu0 0.0
        %2416 = vmatpush1.msra.mxu0 0.0
        %2417 = vmatprep.subr.mxu0 0.0
        %2418 = vmatpush1.msra.mxu0 0.0
        %2419 = vmatprep.subr.mxu0 0.0
        %2420 = vmatpush1.msra.mxu0 0.0
        %2421 = vmatprep.subr.mxu0 0.0
        %2422 = vmatpush1.msra.mxu0 0.0
        %2423 = vmatprep.subr.mxu0 0.0
        %2424 = vmatpush1.msra.mxu0 0.0
        %2425 = vmatprep.mubr.f32.mxu0 0.0
        %2426 = vmatmul.mubr.f32.gmra.mrb[0].mxu0 %v2275
        %v2427 = vpop.f32.mrb[0].mxu0
        %v2428 = vadd.f32 0.0, %v2427
        %v2429 = vpop.f32.mrb[0].mxu0
        %v2430 = vadd.f32 0.0, %v2429
        %2431 = vdwg.mxu0
        %v2433 = vsel %vm459, %v2250, 0
        %v2436 = vsel %vm2277, %v2246, 0
        %v2439 = vsel %vm2277, %v2247, 0
        %v2442 = vsel %vm2277, %v2248, 0
        %v2445 = vsel %vm2277, %v2249, 0
        %2447 = vmatprep.subr.mxu0 %v2439
        %2448 = vmatpush1.msra.mxu0 %v2436
        %2449 = vmatprep.subr.mxu0 0.0
        %2450 = vmatpush1.msra.mxu0 0.0
        %2451 = vmatprep.subr.mxu0 0.0
        %2452 = vmatpush1.msra.mxu0 0.0
        %2453 = vmatprep.subr.mxu0 0.0
        %2454 = vmatpush1.msra.mxu0 0.0
        %2455 = vmatprep.subr.mxu0 0.0
        %2456 = vmatpush1.msra.mxu0 0.0
        %2457 = vmatprep.subr.mxu0 0.0
        %2458 = vmatpush1.msra.mxu0 0.0
        %2459 = vmatprep.subr.mxu0 0.0
        %2460 = vmatpush1.msra.mxu0 0.0
        %2461 = vmatprep.subr.mxu0 0.0
        %2462 = vmatpush1.msra.mxu0 0.0
        %2463 = vmatprep.subr.mxu0 0.0
        %2464 = vmatpush1.msra.mxu0 0.0
        %2465 = vmatprep.subr.mxu0 0.0
        %2466 = vmatpush1.msra.mxu0 0.0
        %2467 = vmatprep.subr.mxu0 0.0
        %2468 = vmatpush1.msra.mxu0 0.0
        %2469 = vmatprep.subr.mxu0 0.0
        %2470 = vmatpush1.msra.mxu0 0.0
        %2471 = vmatprep.subr.mxu0 0.0
        %2472 = vmatpush1.msra.mxu0 0.0
        %2473 = vmatprep.subr.mxu0 0.0
        %2474 = vmatpush1.msra.mxu0 0.0
        %2475 = vmatprep.subr.mxu0 0.0
        %2476 = vmatpush1.msra.mxu0 0.0
        %2477 = vmatprep.subr.mxu0 0.0
        %2478 = vmatpush1.msra.mxu0 0.0
        %2479 = vmatprep.subr.mxu0 0.0
        %2480 = vmatpush1.msra.mxu0 0.0
        %2481 = vmatprep.subr.mxu0 0.0
        %2482 = vmatpush1.msra.mxu0 0.0
        %2483 = vmatprep.subr.mxu0 0.0
        %2484 = vmatpush1.msra.mxu0 0.0
        %2485 = vmatprep.subr.mxu0 0.0
        %2486 = vmatpush1.msra.mxu0 0.0
        %2487 = vmatprep.subr.mxu0 0.0
        %2488 = vmatpush1.msra.mxu0 0.0
        %2489 = vmatprep.subr.mxu0 0.0
        %2490 = vmatpush1.msra.mxu0 0.0
        %2491 = vmatprep.subr.mxu0 0.0
        %2492 = vmatpush1.msra.mxu0 0.0
        %2493 = vmatprep.subr.mxu0 0.0
        %2494 = vmatpush1.msra.mxu0 0.0
        %2495 = vmatprep.subr.mxu0 0.0
        %2496 = vmatpush1.msra.mxu0 0.0
        %2497 = vmatprep.subr.mxu0 0.0
        %2498 = vmatpush1.msra.mxu0 0.0
        %2499 = vmatprep.subr.mxu0 0.0
        %2500 = vmatpush1.msra.mxu0 0.0
        %2501 = vmatprep.subr.mxu0 0.0
        %2502 = vmatpush1.msra.mxu0 0.0
        %2503 = vmatprep.subr.mxu0 0.0
        %2504 = vmatpush1.msra.mxu0 0.0
        %2505 = vmatprep.subr.mxu0 0.0
        %2506 = vmatpush1.msra.mxu0 0.0
        %2507 = vmatprep.subr.mxu0 0.0
        %2508 = vmatpush1.msra.mxu0 0.0
        %2509 = vmatprep.subr.mxu0 0.0
        %2510 = vmatpush1.msra.mxu0 0.0
        %2511 = vmatprep.mubr.f32.mxu0 0.0
        %2512 = vmatmul.mubr.f32.gmra.mrb[0].mxu0 %v2433
        %v2513 = vpop.f32.mrb[0].mxu0
        %v2514 = vadd.f32 %v2357, %v2513
        %v2515 = vpop.f32.mrb[0].mxu0
        %v2516 = vadd.f32 %v2359, %v2515
        %2517 = vdwg.mxu0
        %2518 = vmatprep.subr.mxu0 %v2445
        %2519 = vmatpush1.msra.mxu0 %v2442
        %2520 = vmatprep.subr.mxu0 0.0
        %2521 = vmatpush1.msra.mxu0 0.0
        %2522 = vmatprep.subr.mxu0 0.0
        %2523 = vmatpush1.msra.mxu0 0.0
        %2524 = vmatprep.subr.mxu0 0.0
        %2525 = vmatpush1.msra.mxu0 0.0
        %2526 = vmatprep.subr.mxu0 0.0
        %2527 = vmatpush1.msra.mxu0 0.0
        %2528 = vmatprep.subr.mxu0 0.0
        %2529 = vmatpush1.msra.mxu0 0.0
        %2530 = vmatprep.subr.mxu0 0.0
        %2531 = vmatpush1.msra.mxu0 0.0
        %2532 = vmatprep.subr.mxu0 0.0
        %2533 = vmatpush1.msra.mxu0 0.0
        %2534 = vmatprep.subr.mxu0 0.0
        %2535 = vmatpush1.msra.mxu0 0.0
        %2536 = vmatprep.subr.mxu0 0.0
        %2537 = vmatpush1.msra.mxu0 0.0
        %2538 = vmatprep.subr.mxu0 0.0
        %2539 = vmatpush1.msra.mxu0 0.0
        %2540 = vmatprep.subr.mxu0 0.0
        %2541 = vmatpush1.msra.mxu0 0.0
        %2542 = vmatprep.subr.mxu0 0.0
        %2543 = vmatpush1.msra.mxu0 0.0
        %2544 = vmatprep.subr.mxu0 0.0
        %2545 = vmatpush1.msra.mxu0 0.0
        %2546 = vmatprep.subr.mxu0 0.0
        %2547 = vmatpush1.msra.mxu0 0.0
        %2548 = vmatprep.subr.mxu0 0.0
        %2549 = vmatpush1.msra.mxu0 0.0
        %2550 = vmatprep.subr.mxu0 0.0
        %2551 = vmatpush1.msra.mxu0 0.0
        %2552 = vmatprep.subr.mxu0 0.0
        %2553 = vmatpush1.msra.mxu0 0.0
        %2554 = vmatprep.subr.mxu0 0.0
        %2555 = vmatpush1.msra.mxu0 0.0
        %2556 = vmatprep.subr.mxu0 0.0
        %2557 = vmatpush1.msra.mxu0 0.0
        %2558 = vmatprep.subr.mxu0 0.0
        %2559 = vmatpush1.msra.mxu0 0.0
        %2560 = vmatprep.subr.mxu0 0.0
        %2561 = vmatpush1.msra.mxu0 0.0
        %2562 = vmatprep.subr.mxu0 0.0
        %2563 = vmatpush1.msra.mxu0 0.0
        %2564 = vmatprep.subr.mxu0 0.0
        %2565 = vmatpush1.msra.mxu0 0.0
        %2566 = vmatprep.subr.mxu0 0.0
        %2567 = vmatpush1.msra.mxu0 0.0
        %2568 = vmatprep.subr.mxu0 0.0
        %2569 = vmatpush1.msra.mxu0 0.0
        %2570 = vmatprep.subr.mxu0 0.0
        %2571 = vmatpush1.msra.mxu0 0.0
        %2572 = vmatprep.subr.mxu0 0.0
        %2573 = vmatpush1.msra.mxu0 0.0
        %2574 = vmatprep.subr.mxu0 0.0
        %2575 = vmatpush1.msra.mxu0 0.0
        %2576 = vmatprep.subr.mxu0 0.0
        %2577 = vmatpush1.msra.mxu0 0.0
        %2578 = vmatprep.subr.mxu0 0.0
        %2579 = vmatpush1.msra.mxu0 0.0
        %2580 = vmatprep.subr.mxu0 0.0
        %2581 = vmatpush1.msra.mxu0 0.0
        %2582 = vmatprep.mubr.f32.mxu0 0.0
        %2583 = vmatmul.mubr.f32.gmra.mrb[0].mxu0 %v2433
        %v2584 = vpop.f32.mrb[0].mxu0
        %v2585 = vadd.f32 %v2428, %v2584
        %v2586 = vpop.f32.mrb[0].mxu0
        %v2587 = vadd.f32 %v2430, %v2586
        %2588 = vdwg.mxu0
        %2589 = vrot.lane.b32.xlu0 %v2211, 2
        %v2590 = vpop.permute.xlu0 %2589
        %2592 = vrot.lane.b32.xlu0 %v2208, 2
        %v2593 = vpop.permute.xlu0 %2592
        %2594 = vrot.lane.b32.xlu0 %v2209, 2
        %v2595 = vpop.permute.xlu0 %2594
        %2596 = vrot.lane.b32.xlu0 %v2210, 2
        %v2597 = vpop.permute.xlu0 %2596
        %v2598 = vsel %vm845, %v2593, %v2595
        %v2599 = vsel %vm845, %v2595, %v2597
        %v2600 = vsel %vm845, %v2597, %v2590
        %v2605 = vsel %vm845, %v2590, %v2593
        %v2606 = vsel %vm858, %v2605, 0.0
        %v2607 = vsel %vm859, %v2598, 0.0
        %v2608 = vsel %vm860, %v2599, 0.0
        %v2609 = vsel %vm861, %v2600, 0.0
        %s2610 = scalar_lea.vmem %s3, 16
        %v2611 = vld [vmem:[%s2610] sm:$0xff]
        %v2613 = vsel %vm459, %v2611, 0
        %v2616 = vsel %vm2277, %v2606, 0
        %v2619 = vsel %vm2277, %v2607, 0
        %v2622 = vsel %vm2277, %v2608, 0
        %v2625 = vsel %vm2277, %v2609, 0
        %2627 = vmatprep.subr.mxu0 %v2619
        %2628 = vmatpush1.msra.mxu0 %v2616
        %2629 = vmatprep.subr.mxu0 0.0
        %2630 = vmatpush1.msra.mxu0 0.0
        %2631 = vmatprep.subr.mxu0 0.0
        %2632 = vmatpush1.msra.mxu0 0.0
        %2633 = vmatprep.subr.mxu0 0.0
        %2634 = vmatpush1.msra.mxu0 0.0
        %2635 = vmatprep.subr.mxu0 0.0
        %2636 = vmatpush1.msra.mxu0 0.0
        %2637 = vmatprep.subr.mxu0 0.0
        %2638 = vmatpush1.msra.mxu0 0.0
        %2639 = vmatprep.subr.mxu0 0.0
        %2640 = vmatpush1.msra.mxu0 0.0
        %2641 = vmatprep.subr.mxu0 0.0
        %2642 = vmatpush1.msra.mxu0 0.0
        %2643 = vmatprep.subr.mxu0 0.0
        %2644 = vmatpush1.msra.mxu0 0.0
        %2645 = vmatprep.subr.mxu0 0.0
        %2646 = vmatpush1.msra.mxu0 0.0
        %2647 = vmatprep.subr.mxu0 0.0
        %2648 = vmatpush1.msra.mxu0 0.0
        %2649 = vmatprep.subr.mxu0 0.0
        %2650 = vmatpush1.msra.mxu0 0.0
        %2651 = vmatprep.subr.mxu0 0.0
        %2652 = vmatpush1.msra.mxu0 0.0
        %2653 = vmatprep.subr.mxu0 0.0
        %2654 = vmatpush1.msra.mxu0 0.0
        %2655 = vmatprep.subr.mxu0 0.0
        %2656 = vmatpush1.msra.mxu0 0.0
        %2657 = vmatprep.subr.mxu0 0.0
        %2658 = vmatpush1.msra.mxu0 0.0
        %2659 = vmatprep.subr.mxu0 0.0
        %2660 = vmatpush1.msra.mxu0 0.0
        %2661 = vmatprep.subr.mxu0 0.0
        %2662 = vmatpush1.msra.mxu0 0.0
        %2663 = vmatprep.subr.mxu0 0.0
        %2664 = vmatpush1.msra.mxu0 0.0
        %2665 = vmatprep.subr.mxu0 0.0
        %2666 = vmatpush1.msra.mxu0 0.0
        %2667 = vmatprep.subr.mxu0 0.0
        %2668 = vmatpush1.msra.mxu0 0.0
        %2669 = vmatprep.subr.mxu0 0.0
        %2670 = vmatpush1.msra.mxu0 0.0
        %2671 = vmatprep.subr.mxu0 0.0
        %2672 = vmatpush1.msra.mxu0 0.0
        %2673 = vmatprep.subr.mxu0 0.0
        %2674 = vmatpush1.msra.mxu0 0.0
        %2675 = vmatprep.subr.mxu0 0.0
        %2676 = vmatpush1.msra.mxu0 0.0
        %2677 = vmatprep.subr.mxu0 0.0
        %2678 = vmatpush1.msra.mxu0 0.0
        %2679 = vmatprep.subr.mxu0 0.0
        %2680 = vmatpush1.msra.mxu0 0.0
        %2681 = vmatprep.subr.mxu0 0.0
        %2682 = vmatpush1.msra.mxu0 0.0
        %2683 = vmatprep.subr.mxu0 0.0
        %2684 = vmatpush1.msra.mxu0 0.0
        %2685 = vmatprep.subr.mxu0 0.0
        %2686 = vmatpush1.msra.mxu0 0.0
        %2687 = vmatprep.subr.mxu0 0.0
        %2688 = vmatpush1.msra.mxu0 0.0
        %2689 = vmatprep.subr.mxu0 0.0
        %2690 = vmatpush1.msra.mxu0 0.0
        %2691 = vmatprep.mubr.f32.mxu0 0.0
        %2692 = vmatmul.mubr.f32.gmra.mrb[0].mxu0 %v2613
        %v2693 = vpop.f32.mrb[0].mxu0
        %v2694 = vadd.f32 0.0, %v2693
        %v2695 = vpop.f32.mrb[0].mxu0
        %v2696 = vadd.f32 0.0, %v2695
        %2697 = vdwg.mxu0
        %2698 = vmatprep.subr.mxu0 %v2625
        %2699 = vmatpush1.msra.mxu0 %v2622
        %2700 = vmatprep.subr.mxu0 0.0
        %2701 = vmatpush1.msra.mxu0 0.0
        %2702 = vmatprep.subr.mxu0 0.0
        %2703 = vmatpush1.msra.mxu0 0.0
        %2704 = vmatprep.subr.mxu0 0.0
        %2705 = vmatpush1.msra.mxu0 0.0
        %2706 = vmatprep.subr.mxu0 0.0
        %2707 = vmatpush1.msra.mxu0 0.0
        %2708 = vmatprep.subr.mxu0 0.0
        %2709 = vmatpush1.msra.mxu0 0.0
        %2710 = vmatprep.subr.mxu0 0.0
        %2711 = vmatpush1.msra.mxu0 0.0
        %2712 = vmatprep.subr.mxu0 0.0
        %2713 = vmatpush1.msra.mxu0 0.0
        %2714 = vmatprep.subr.mxu0 0.0
        %2715 = vmatpush1.msra.mxu0 0.0
        %2716 = vmatprep.subr.mxu0 0.0
        %2717 = vmatpush1.msra.mxu0 0.0
        %2718 = vmatprep.subr.mxu0 0.0
        %2719 = vmatpush1.msra.mxu0 0.0
        %2720 = vmatprep.subr.mxu0 0.0
        %2721 = vmatpush1.msra.mxu0 0.0
        %2722 = vmatprep.subr.mxu0 0.0
        %2723 = vmatpush1.msra.mxu0 0.0
        %2724 = vmatprep.subr.mxu0 0.0
        %2725 = vmatpush1.msra.mxu0 0.0
        %2726 = vmatprep.subr.mxu0 0.0
        %2727 = vmatpush1.msra.mxu0 0.0
        %2728 = vmatprep.subr.mxu0 0.0
        %2729 = vmatpush1.msra.mxu0 0.0
        %2730 = vmatprep.subr.mxu0 0.0
        %2731 = vmatpush1.msra.mxu0 0.0
        %2732 = vmatprep.subr.mxu0 0.0
        %2733 = vmatpush1.msra.mxu0 0.0
        %2734 = vmatprep.subr.mxu0 0.0
        %2735 = vmatpush1.msra.mxu0 0.0
        %2736 = vmatprep.subr.mxu0 0.0
        %2737 = vmatpush1.msra.mxu0 0.0
        %2738 = vmatprep.subr.mxu0 0.0
        %2739 = vmatpush1.msra.mxu0 0.0
        %2740 = vmatprep.subr.mxu0 0.0
        %2741 = vmatpush1.msra.mxu0 0.0
        %2742 = vmatprep.subr.mxu0 0.0
        %2743 = vmatpush1.msra.mxu0 0.0
        %2744 = vmatprep.subr.mxu0 0.0
        %2745 = vmatpush1.msra.mxu0 0.0
        %2746 = vmatprep.subr.mxu0 0.0
        %2747 = vmatpush1.msra.mxu0 0.0
        %2748 = vmatprep.subr.mxu0 0.0
        %2749 = vmatpush1.msra.mxu0 0.0
        %2750 = vmatprep.subr.mxu0 0.0
        %2751 = vmatpush1.msra.mxu0 0.0
        %2752 = vmatprep.subr.mxu0 0.0
        %2753 = vmatpush1.msra.mxu0 0.0
        %2754 = vmatprep.subr.mxu0 0.0
        %2755 = vmatpush1.msra.mxu0 0.0
        %2756 = vmatprep.subr.mxu0 0.0
        %2757 = vmatpush1.msra.mxu0 0.0
        %2758 = vmatprep.subr.mxu0 0.0
        %2759 = vmatpush1.msra.mxu0 0.0
        %2760 = vmatprep.subr.mxu0 0.0
        %2761 = vmatpush1.msra.mxu0 0.0
        %2762 = vmatprep.mubr.f32.mxu0 0.0
        %2763 = vmatmul.mubr.f32.gmra.mrb[0].mxu0 %v2613
        %v2764 = vpop.f32.mrb[0].mxu0
        %v2765 = vadd.f32 0.0, %v2764
        %v2766 = vpop.f32.mrb[0].mxu0
        %v2767 = vadd.f32 0.0, %v2766
        %2768 = vdwg.mxu0
        %v2769 = vadd.f32 %v2514, %v2694
        %v2770 = vadd.f32 %v2516, %v2696
        %v2771 = vadd.f32 %v2585, %v2765
        %v2772 = vadd.f32 %v2587, %v2767
        %s2773 = scalar_lea.vmem %s3, 24
        %v2774 = vld [vmem:[%s2773] sm:$0xff]
        %v2776 = vsel %vm459, %v2774, 0
        %v2778 = vsel %vm2277, %v2208, 0
        %v2780 = vsel %vm2277, %v2209, 0
        %v2782 = vsel %vm2277, %v2210, 0
        %v2784 = vsel %vm2277, %v2211, 0
        %2786 = vmatprep.subr.mxu0 %v2780
        %2787 = vmatpush1.msra.mxu0 %v2778
        %2788 = vmatprep.subr.mxu0 0.0
        %2789 = vmatpush1.msra.mxu0 0.0
        %2790 = vmatprep.subr.mxu0 0.0
        %2791 = vmatpush1.msra.mxu0 0.0
        %2792 = vmatprep.subr.mxu0 0.0
        %2793 = vmatpush1.msra.mxu0 0.0
        %2794 = vmatprep.subr.mxu0 0.0
        %2795 = vmatpush1.msra.mxu0 0.0
        %2796 = vmatprep.subr.mxu0 0.0
        %2797 = vmatpush1.msra.mxu0 0.0
        %2798 = vmatprep.subr.mxu0 0.0
        %2799 = vmatpush1.msra.mxu0 0.0
        %2800 = vmatprep.subr.mxu0 0.0
        %2801 = vmatpush1.msra.mxu0 0.0
        %2802 = vmatprep.subr.mxu0 0.0
        %2803 = vmatpush1.msra.mxu0 0.0
        %2804 = vmatprep.subr.mxu0 0.0
        %2805 = vmatpush1.msra.mxu0 0.0
        %2806 = vmatprep.subr.mxu0 0.0
        %2807 = vmatpush1.msra.mxu0 0.0
        %2808 = vmatprep.subr.mxu0 0.0
        %2809 = vmatpush1.msra.mxu0 0.0
        %2810 = vmatprep.subr.mxu0 0.0
        %2811 = vmatpush1.msra.mxu0 0.0
        %2812 = vmatprep.subr.mxu0 0.0
        %2813 = vmatpush1.msra.mxu0 0.0
        %2814 = vmatprep.subr.mxu0 0.0
        %2815 = vmatpush1.msra.mxu0 0.0
        %2816 = vmatprep.subr.mxu0 0.0
        %2817 = vmatpush1.msra.mxu0 0.0
        %2818 = vmatprep.subr.mxu0 0.0
        %2819 = vmatpush1.msra.mxu0 0.0
        %2820 = vmatprep.subr.mxu0 0.0
        %2821 = vmatpush1.msra.mxu0 0.0
        %2822 = vmatprep.subr.mxu0 0.0
        %2823 = vmatpush1.msra.mxu0 0.0
        %2824 = vmatprep.subr.mxu0 0.0
        %2825 = vmatpush1.msra.mxu0 0.0
        %2826 = vmatprep.subr.mxu0 0.0
        %2827 = vmatpush1.msra.mxu0 0.0
        %2828 = vmatprep.subr.mxu0 0.0
        %2829 = vmatpush1.msra.mxu0 0.0
        %2830 = vmatprep.subr.mxu0 0.0
        %2831 = vmatpush1.msra.mxu0 0.0
        %2832 = vmatprep.subr.mxu0 0.0
        %2833 = vmatpush1.msra.mxu0 0.0
        %2834 = vmatprep.subr.mxu0 0.0
        %2835 = vmatpush1.msra.mxu0 0.0
        %2836 = vmatprep.subr.mxu0 0.0
        %2837 = vmatpush1.msra.mxu0 0.0
        %2838 = vmatprep.subr.mxu0 0.0
        %2839 = vmatpush1.msra.mxu0 0.0
        %2840 = vmatprep.subr.mxu0 0.0
        %2841 = vmatpush1.msra.mxu0 0.0
        %2842 = vmatprep.subr.mxu0 0.0
        %2843 = vmatpush1.msra.mxu0 0.0
        %2844 = vmatprep.subr.mxu0 0.0
        %2845 = vmatpush1.msra.mxu0 0.0
        %2846 = vmatprep.subr.mxu0 0.0
        %2847 = vmatpush1.msra.mxu0 0.0
        %2848 = vmatprep.subr.mxu0 0.0
        %2849 = vmatpush1.msra.mxu0 0.0
        %2850 = vmatprep.mubr.f32.mxu0 0.0
        %2851 = vmatmul.mubr.f32.gmra.mrb[0].mxu0 %v2776
        %v2852 = vpop.f32.mrb[0].mxu0
        %v2853 = vadd.f32 0.0, %v2852
        %v2854 = vpop.f32.mrb[0].mxu0
        %v2855 = vadd.f32 0.0, %v2854
        %2856 = vdwg.mxu0
        %2857 = vmatprep.subr.mxu0 %v2784
        %2858 = vmatpush1.msra.mxu0 %v2782
        %2859 = vmatprep.subr.mxu0 0.0
        %2860 = vmatpush1.msra.mxu0 0.0
        %2861 = vmatprep.subr.mxu0 0.0
        %2862 = vmatpush1.msra.mxu0 0.0
        %2863 = vmatprep.subr.mxu0 0.0
        %2864 = vmatpush1.msra.mxu0 0.0
        %2865 = vmatprep.subr.mxu0 0.0
        %2866 = vmatpush1.msra.mxu0 0.0
        %2867 = vmatprep.subr.mxu0 0.0
        %2868 = vmatpush1.msra.mxu0 0.0
        %2869 = vmatprep.subr.mxu0 0.0
        %2870 = vmatpush1.msra.mxu0 0.0
        %2871 = vmatprep.subr.mxu0 0.0
        %2872 = vmatpush1.msra.mxu0 0.0
        %2873 = vmatprep.subr.mxu0 0.0
        %2874 = vmatpush1.msra.mxu0 0.0
        %2875 = vmatprep.subr.mxu0 0.0
        %2876 = vmatpush1.msra.mxu0 0.0
        %2877 = vmatprep.subr.mxu0 0.0
        %2878 = vmatpush1.msra.mxu0 0.0
        %2879 = vmatprep.subr.mxu0 0.0
        %2880 = vmatpush1.msra.mxu0 0.0
        %2881 = vmatprep.subr.mxu0 0.0
        %2882 = vmatpush1.msra.mxu0 0.0
        %2883 = vmatprep.subr.mxu0 0.0
        %2884 = vmatpush1.msra.mxu0 0.0
        %2885 = vmatprep.subr.mxu0 0.0
        %2886 = vmatpush1.msra.mxu0 0.0
        %2887 = vmatprep.subr.mxu0 0.0
        %2888 = vmatpush1.msra.mxu0 0.0
        %2889 = vmatprep.subr.mxu0 0.0
        %2890 = vmatpush1.msra.mxu0 0.0
        %2891 = vmatprep.subr.mxu0 0.0
        %2892 = vmatpush1.msra.mxu0 0.0
        %2893 = vmatprep.subr.mxu0 0.0
        %2894 = vmatpush1.msra.mxu0 0.0
        %2895 = vmatprep.subr.mxu0 0.0
        %2896 = vmatpush1.msra.mxu0 0.0
        %2897 = vmatprep.subr.mxu0 0.0
        %2898 = vmatpush1.msra.mxu0 0.0
        %2899 = vmatprep.subr.mxu0 0.0
        %2900 = vmatpush1.msra.mxu0 0.0
        %2901 = vmatprep.subr.mxu0 0.0
        %2902 = vmatpush1.msra.mxu0 0.0
        %2903 = vmatprep.subr.mxu0 0.0
        %2904 = vmatpush1.msra.mxu0 0.0
        %2905 = vmatprep.subr.mxu0 0.0
        %2906 = vmatpush1.msra.mxu0 0.0
        %2907 = vmatprep.subr.mxu0 0.0
        %2908 = vmatpush1.msra.mxu0 0.0
        %2909 = vmatprep.subr.mxu0 0.0
        %2910 = vmatpush1.msra.mxu0 0.0
        %2911 = vmatprep.subr.mxu0 0.0
        %2912 = vmatpush1.msra.mxu0 0.0
        %2913 = vmatprep.subr.mxu0 0.0
        %2914 = vmatpush1.msra.mxu0 0.0
        %2915 = vmatprep.subr.mxu0 0.0
        %2916 = vmatpush1.msra.mxu0 0.0
        %2917 = vmatprep.subr.mxu0 0.0
        %2918 = vmatpush1.msra.mxu0 0.0
        %2919 = vmatprep.subr.mxu0 0.0
        %2920 = vmatpush1.msra.mxu0 0.0
        %2921 = vmatprep.mubr.f32.mxu0 0.0
        %2922 = vmatmul.mubr.f32.gmra.mrb[0].mxu0 %v2776
        %v2923 = vpop.f32.mrb[0].mxu0
        %v2924 = vadd.f32 0.0, %v2923
        %v2925 = vpop.f32.mrb[0].mxu0
        %v2926 = vadd.f32 0.0, %v2925
        %2927 = vdwg.mxu0
        %v2928 = vadd.f32 %v2769, %v2853
        %v2929 = vadd.f32 %v2770, %v2855
        %v2930 = vadd.f32 %v2771, %v2924
        %v2931 = vadd.f32 %v2772, %v2926
        %2932 = vrot.lane.b32.xlu0 %v2208, 126
        %v2933 = vpop.permute.xlu0 %2932
        %2934 = vrot.lane.b32.xlu0 %v2209, 126
        %v2935 = vpop.permute.xlu0 %2934
        %2936 = vrot.lane.b32.xlu0 %v2210, 126
        %v2937 = vpop.permute.xlu0 %2936
        %2938 = vrot.lane.b32.xlu0 %v2211, 126
        %v2939 = vpop.permute.xlu0 %2938
        %v2940 = vsel %vm1594, %v2933, %v2935
        %v2941 = vsel %vm1594, %v2935, %v2937
        %v2942 = vsel %vm1594, %v2937, %v2939
        %v2948 = vsel %vm1594, %v2939, %v2933
        %v2949 = vsel %vm1608, %v2940, 0.0
        %v2950 = vsel %vm1609, %v2941, 0.0
        %v2951 = vsel %vm1610, %v2942, 0.0
        %v2952 = vsel %vm1611, %v2948, 0.0
        %s2953 = scalar_lea.vmem %s3, 32
        %v2954 = vld [vmem:[%s2953] sm:$0xff]
        %v2956 = vsel %vm459, %v2954, 0
        %v2959 = vsel %vm2277, %v2949, 0
        %v2962 = vsel %vm2277, %v2950, 0
        %v2965 = vsel %vm2277, %v2951, 0
        %v2968 = vsel %vm2277, %v2952, 0
        %2970 = vmatprep.subr.mxu0 %v2962
        %2971 = vmatpush1.msra.mxu0 %v2959
        %2972 = vmatprep.subr.mxu0 0.0
        %2973 = vmatpush1.msra.mxu0 0.0
        %2974 = vmatprep.subr.mxu0 0.0
        %2975 = vmatpush1.msra.mxu0 0.0
        %2976 = vmatprep.subr.mxu0 0.0
        %2977 = vmatpush1.msra.mxu0 0.0
        %2978 = vmatprep.subr.mxu0 0.0
        %2979 = vmatpush1.msra.mxu0 0.0
        %2980 = vmatprep.subr.mxu0 0.0
        %2981 = vmatpush1.msra.mxu0 0.0
        %2982 = vmatprep.subr.mxu0 0.0
        %2983 = vmatpush1.msra.mxu0 0.0
        %2984 = vmatprep.subr.mxu0 0.0
        %2985 = vmatpush1.msra.mxu0 0.0
        %2986 = vmatprep.subr.mxu0 0.0
        %2987 = vmatpush1.msra.mxu0 0.0
        %2988 = vmatprep.subr.mxu0 0.0
        %2989 = vmatpush1.msra.mxu0 0.0
        %2990 = vmatprep.subr.mxu0 0.0
        %2991 = vmatpush1.msra.mxu0 0.0
        %2992 = vmatprep.subr.mxu0 0.0
        %2993 = vmatpush1.msra.mxu0 0.0
        %2994 = vmatprep.subr.mxu0 0.0
        %2995 = vmatpush1.msra.mxu0 0.0
        %2996 = vmatprep.subr.mxu0 0.0
        %2997 = vmatpush1.msra.mxu0 0.0
        %2998 = vmatprep.subr.mxu0 0.0
        %2999 = vmatpush1.msra.mxu0 0.0
        %3000 = vmatprep.subr.mxu0 0.0
        %3001 = vmatpush1.msra.mxu0 0.0
        %3002 = vmatprep.subr.mxu0 0.0
        %3003 = vmatpush1.msra.mxu0 0.0
        %3004 = vmatprep.subr.mxu0 0.0
        %3005 = vmatpush1.msra.mxu0 0.0
        %3006 = vmatprep.subr.mxu0 0.0
        %3007 = vmatpush1.msra.mxu0 0.0
        %3008 = vmatprep.subr.mxu0 0.0
        %3009 = vmatpush1.msra.mxu0 0.0
        %3010 = vmatprep.subr.mxu0 0.0
        %3011 = vmatpush1.msra.mxu0 0.0
        %3012 = vmatprep.subr.mxu0 0.0
        %3013 = vmatpush1.msra.mxu0 0.0
        %3014 = vmatprep.subr.mxu0 0.0
        %3015 = vmatpush1.msra.mxu0 0.0
        %3016 = vmatprep.subr.mxu0 0.0
        %3017 = vmatpush1.msra.mxu0 0.0
        %3018 = vmatprep.subr.mxu0 0.0
        %3019 = vmatpush1.msra.mxu0 0.0
        %3020 = vmatprep.subr.mxu0 0.0
        %3021 = vmatpush1.msra.mxu0 0.0
        %3022 = vmatprep.subr.mxu0 0.0
        %3023 = vmatpush1.msra.mxu0 0.0
        %3024 = vmatprep.subr.mxu0 0.0
        %3025 = vmatpush1.msra.mxu0 0.0
        %3026 = vmatprep.subr.mxu0 0.0
        %3027 = vmatpush1.msra.mxu0 0.0
        %3028 = vmatprep.subr.mxu0 0.0
        %3029 = vmatpush1.msra.mxu0 0.0
        %3030 = vmatprep.subr.mxu0 0.0
        %3031 = vmatpush1.msra.mxu0 0.0
        %3032 = vmatprep.subr.mxu0 0.0
        %3033 = vmatpush1.msra.mxu0 0.0
        %3034 = vmatprep.mubr.f32.mxu0 0.0
        %3035 = vmatmul.mubr.f32.gmra.mrb[0].mxu0 %v2956
        %v3036 = vpop.f32.mrb[0].mxu0
        %v3037 = vadd.f32 0.0, %v3036
        %v3038 = vpop.f32.mrb[0].mxu0
        %v3039 = vadd.f32 0.0, %v3038
        %3040 = vdwg.mxu0
        %3041 = vmatprep.subr.mxu0 %v2968
        %3042 = vmatpush1.msra.mxu0 %v2965
        %3043 = vmatprep.subr.mxu0 0.0
        %3044 = vmatpush1.msra.mxu0 0.0
        %3045 = vmatprep.subr.mxu0 0.0
        %3046 = vmatpush1.msra.mxu0 0.0
        %3047 = vmatprep.subr.mxu0 0.0
        %3048 = vmatpush1.msra.mxu0 0.0
        %3049 = vmatprep.subr.mxu0 0.0
        %3050 = vmatpush1.msra.mxu0 0.0
        %3051 = vmatprep.subr.mxu0 0.0
        %3052 = vmatpush1.msra.mxu0 0.0
        %3053 = vmatprep.subr.mxu0 0.0
        %3054 = vmatpush1.msra.mxu0 0.0
        %3055 = vmatprep.subr.mxu0 0.0
        %3056 = vmatpush1.msra.mxu0 0.0
        %3057 = vmatprep.subr.mxu0 0.0
        %3058 = vmatpush1.msra.mxu0 0.0
        %3059 = vmatprep.subr.mxu0 0.0
        %3060 = vmatpush1.msra.mxu0 0.0
        %3061 = vmatprep.subr.mxu0 0.0
        %3062 = vmatpush1.msra.mxu0 0.0
        %3063 = vmatprep.subr.mxu0 0.0
        %3064 = vmatpush1.msra.mxu0 0.0
        %3065 = vmatprep.subr.mxu0 0.0
        %3066 = vmatpush1.msra.mxu0 0.0
        %3067 = vmatprep.subr.mxu0 0.0
        %3068 = vmatpush1.msra.mxu0 0.0
        %3069 = vmatprep.subr.mxu0 0.0
        %3070 = vmatpush1.msra.mxu0 0.0
        %3071 = vmatprep.subr.mxu0 0.0
        %3072 = vmatpush1.msra.mxu0 0.0
        %3073 = vmatprep.subr.mxu0 0.0
        %3074 = vmatpush1.msra.mxu0 0.0
        %3075 = vmatprep.subr.mxu0 0.0
        %3076 = vmatpush1.msra.mxu0 0.0
        %3077 = vmatprep.subr.mxu0 0.0
        %3078 = vmatpush1.msra.mxu0 0.0
        %3079 = vmatprep.subr.mxu0 0.0
        %3080 = vmatpush1.msra.mxu0 0.0
        %3081 = vmatprep.subr.mxu0 0.0
        %3082 = vmatpush1.msra.mxu0 0.0
        %3083 = vmatprep.subr.mxu0 0.0
        %3084 = vmatpush1.msra.mxu0 0.0
        %3085 = vmatprep.subr.mxu0 0.0
        %3086 = vmatpush1.msra.mxu0 0.0
        %3087 = vmatprep.subr.mxu0 0.0
        %3088 = vmatpush1.msra.mxu0 0.0
        %3089 = vmatprep.subr.mxu0 0.0
        %3090 = vmatpush1.msra.mxu0 0.0
        %3091 = vmatprep.subr.mxu0 0.0
        %3092 = vmatpush1.msra.mxu0 0.0
        %3093 = vmatprep.subr.mxu0 0.0
        %3094 = vmatpush1.msra.mxu0 0.0
        %3095 = vmatprep.subr.mxu0 0.0
        %3096 = vmatpush1.msra.mxu0 0.0
        %3097 = vmatprep.subr.mxu0 0.0
        %3098 = vmatpush1.msra.mxu0 0.0
        %3099 = vmatprep.subr.mxu0 0.0
        %3100 = vmatpush1.msra.mxu0 0.0
        %3101 = vmatprep.subr.mxu0 0.0
        %3102 = vmatpush1.msra.mxu0 0.0
        %3103 = vmatprep.subr.mxu0 0.0
        %3104 = vmatpush1.msra.mxu0 0.0
        %3105 = vmatprep.mubr.f32.mxu0 0.0
        %3106 = vmatmul.mubr.f32.gmra.mrb[0].mxu0 %v2956
        %v3107 = vpop.f32.mrb[0].mxu0
        %v3108 = vadd.f32 0.0, %v3107
        %v3109 = vpop.f32.mrb[0].mxu0
        %v3110 = vadd.f32 0.0, %v3109
        %3111 = vdwg.mxu0
        %v3112 = vadd.f32 %v2928, %v3037
        %v3113 = vadd.f32 %v2929, %v3039
        %v3114 = vadd.f32 %v2930, %v3108
        %v3115 = vadd.f32 %v2931, %v3110
        %3116 = vrot.lane.b32.xlu0 %v2208, 124
        %v3117 = vpop.permute.xlu0 %3116
        %3118 = vrot.lane.b32.xlu0 %v2209, 124
        %v3119 = vpop.permute.xlu0 %3118
        %3120 = vrot.lane.b32.xlu0 %v2210, 124
        %v3121 = vpop.permute.xlu0 %3120
        %3122 = vrot.lane.b32.xlu0 %v2211, 124
        %v3123 = vpop.permute.xlu0 %3122
        %v3124 = vsel %vm1988, %v3117, %v3119
        %v3125 = vsel %vm1988, %v3119, %v3121
        %v3126 = vsel %vm1988, %v3121, %v3123
        %v3132 = vsel %vm1988, %v3123, %v3117
        %v3133 = vsel %vm2002, %v3124, 0.0
        %v3134 = vsel %vm2003, %v3125, 0.0
        %v3135 = vsel %vm2004, %v3126, 0.0
        %v3136 = vsel %vm2005, %v3132, 0.0
        %s3137 = scalar_lea.vmem %s3, 40
        %v3138 = vld [vmem:[%s3137] sm:$0xff]
        %v3140 = vsel %vm459, %v3138, 0
        %v3143 = vsel %vm2277, %v3133, 0
        %v3146 = vsel %vm2277, %v3134, 0
        %v3149 = vsel %vm2277, %v3135, 0
        %v3152 = vsel %vm2277, %v3136, 0
        %3154 = vmatprep.subr.mxu0 %v3146
        %3155 = vmatpush1.msra.mxu0 %v3143
        %3156 = vmatprep.subr.mxu0 0.0
        %3157 = vmatpush1.msra.mxu0 0.0
        %3158 = vmatprep.subr.mxu0 0.0
        %3159 = vmatpush1.msra.mxu0 0.0
        %3160 = vmatprep.subr.mxu0 0.0
        %3161 = vmatpush1.msra.mxu0 0.0
        %3162 = vmatprep.subr.mxu0 0.0
        %3163 = vmatpush1.msra.mxu0 0.0
        %3164 = vmatprep.subr.mxu0 0.0
        %3165 = vmatpush1.msra.mxu0 0.0
        %3166 = vmatprep.subr.mxu0 0.0
        %3167 = vmatpush1.msra.mxu0 0.0
        %3168 = vmatprep.subr.mxu0 0.0
        %3169 = vmatpush1.msra.mxu0 0.0
        %3170 = vmatprep.subr.mxu0 0.0
        %3171 = vmatpush1.msra.mxu0 0.0
        %3172 = vmatprep.subr.mxu0 0.0
        %3173 = vmatpush1.msra.mxu0 0.0
        %3174 = vmatprep.subr.mxu0 0.0
        %3175 = vmatpush1.msra.mxu0 0.0
        %3176 = vmatprep.subr.mxu0 0.0
        %3177 = vmatpush1.msra.mxu0 0.0
        %3178 = vmatprep.subr.mxu0 0.0
        %3179 = vmatpush1.msra.mxu0 0.0
        %3180 = vmatprep.subr.mxu0 0.0
        %3181 = vmatpush1.msra.mxu0 0.0
        %3182 = vmatprep.subr.mxu0 0.0
        %3183 = vmatpush1.msra.mxu0 0.0
        %3184 = vmatprep.subr.mxu0 0.0
        %3185 = vmatpush1.msra.mxu0 0.0
        %3186 = vmatprep.subr.mxu0 0.0
        %3187 = vmatpush1.msra.mxu0 0.0
        %3188 = vmatprep.subr.mxu0 0.0
        %3189 = vmatpush1.msra.mxu0 0.0
        %3190 = vmatprep.subr.mxu0 0.0
        %3191 = vmatpush1.msra.mxu0 0.0
        %3192 = vmatprep.subr.mxu0 0.0
        %3193 = vmatpush1.msra.mxu0 0.0
        %3194 = vmatprep.subr.mxu0 0.0
        %3195 = vmatpush1.msra.mxu0 0.0
        %3196 = vmatprep.subr.mxu0 0.0
        %3197 = vmatpush1.msra.mxu0 0.0
        %3198 = vmatprep.subr.mxu0 0.0
        %3199 = vmatpush1.msra.mxu0 0.0
        %3200 = vmatprep.subr.mxu0 0.0
        %3201 = vmatpush1.msra.mxu0 0.0
        %3202 = vmatprep.subr.mxu0 0.0
        %3203 = vmatpush1.msra.mxu0 0.0
        %3204 = vmatprep.subr.mxu0 0.0
        %3205 = vmatpush1.msra.mxu0 0.0
        %3206 = vmatprep.subr.mxu0 0.0
        %3207 = vmatpush1.msra.mxu0 0.0
        %3208 = vmatprep.subr.mxu0 0.0
        %3209 = vmatpush1.msra.mxu0 0.0
        %3210 = vmatprep.subr.mxu0 0.0
        %3211 = vmatpush1.msra.mxu0 0.0
        %3212 = vmatprep.subr.mxu0 0.0
        %3213 = vmatpush1.msra.mxu0 0.0
        %3214 = vmatprep.subr.mxu0 0.0
        %3215 = vmatpush1.msra.mxu0 0.0
        %3216 = vmatprep.subr.mxu0 0.0
        %3217 = vmatpush1.msra.mxu0 0.0
        %3218 = vmatprep.mubr.f32.mxu0 0.0
        %3219 = vmatmul.mubr.f32.gmra.mrb[0].mxu0 %v3140
        %v3220 = vpop.f32.mrb[0].mxu0
        %v3221 = vadd.f32 0.0, %v3220
        %v3222 = vpop.f32.mrb[0].mxu0
        %v3223 = vadd.f32 0.0, %v3222
        %3224 = vdwg.mxu0
        %3225 = vmatprep.subr.mxu0 %v3152
        %3226 = vmatpush1.msra.mxu0 %v3149
        %3227 = vmatprep.subr.mxu0 0.0
        %3228 = vmatpush1.msra.mxu0 0.0
        %3229 = vmatprep.subr.mxu0 0.0
        %3230 = vmatpush1.msra.mxu0 0.0
        %3231 = vmatprep.subr.mxu0 0.0
        %3232 = vmatpush1.msra.mxu0 0.0
        %3233 = vmatprep.subr.mxu0 0.0
        %3234 = vmatpush1.msra.mxu0 0.0
        %3235 = vmatprep.subr.mxu0 0.0
        %3236 = vmatpush1.msra.mxu0 0.0
        %3237 = vmatprep.subr.mxu0 0.0
        %3238 = vmatpush1.msra.mxu0 0.0
        %3239 = vmatprep.subr.mxu0 0.0
        %3240 = vmatpush1.msra.mxu0 0.0
        %3241 = vmatprep.subr.mxu0 0.0
        %3242 = vmatpush1.msra.mxu0 0.0
        %3243 = vmatprep.subr.mxu0 0.0
        %3244 = vmatpush1.msra.mxu0 0.0
        %3245 = vmatprep.subr.mxu0 0.0
        %3246 = vmatpush1.msra.mxu0 0.0
        %3247 = vmatprep.subr.mxu0 0.0
        %3248 = vmatpush1.msra.mxu0 0.0
        %3249 = vmatprep.subr.mxu0 0.0
        %3250 = vmatpush1.msra.mxu0 0.0
        %3251 = vmatprep.subr.mxu0 0.0
        %3252 = vmatpush1.msra.mxu0 0.0
        %3253 = vmatprep.subr.mxu0 0.0
        %3254 = vmatpush1.msra.mxu0 0.0
        %3255 = vmatprep.subr.mxu0 0.0
        %3256 = vmatpush1.msra.mxu0 0.0
        %3257 = vmatprep.subr.mxu0 0.0
        %3258 = vmatpush1.msra.mxu0 0.0
        %3259 = vmatprep.subr.mxu0 0.0
        %3260 = vmatpush1.msra.mxu0 0.0
        %3261 = vmatprep.subr.mxu0 0.0
        %3262 = vmatpush1.msra.mxu0 0.0
        %3263 = vmatprep.subr.mxu0 0.0
        %3264 = vmatpush1.msra.mxu0 0.0
        %3265 = vmatprep.subr.mxu0 0.0
        %3266 = vmatpush1.msra.mxu0 0.0
        %3267 = vmatprep.subr.mxu0 0.0
        %3268 = vmatpush1.msra.mxu0 0.0
        %3269 = vmatprep.subr.mxu0 0.0
        %3270 = vmatpush1.msra.mxu0 0.0
        %3271 = vmatprep.subr.mxu0 0.0
        %3272 = vmatpush1.msra.mxu0 0.0
        %3273 = vmatprep.subr.mxu0 0.0
        %3274 = vmatpush1.msra.mxu0 0.0
        %3275 = vmatprep.subr.mxu0 0.0
        %3276 = vmatpush1.msra.mxu0 0.0
        %3277 = vmatprep.subr.mxu0 0.0
        %3278 = vmatpush1.msra.mxu0 0.0
        %3279 = vmatprep.subr.mxu0 0.0
        %3280 = vmatpush1.msra.mxu0 0.0
        %3281 = vmatprep.subr.mxu0 0.0
        %3282 = vmatpush1.msra.mxu0 0.0
        %3283 = vmatprep.subr.mxu0 0.0
        %3284 = vmatpush1.msra.mxu0 0.0
        %3285 = vmatprep.subr.mxu0 0.0
        %3286 = vmatpush1.msra.mxu0 0.0
        %3287 = vmatprep.subr.mxu0 0.0
        %3288 = vmatpush1.msra.mxu0 0.0
        %3289 = vmatprep.mubr.f32.mxu0 0.0
        %3290 = vmatmul.mubr.f32.gmra.mrb[0].mxu0 %v3140
        %v3291 = vpop.f32.mrb[0].mxu0
        %v3292 = vadd.f32 0.0, %v3291
        %v3293 = vpop.f32.mrb[0].mxu0
        %v3294 = vadd.f32 0.0, %v3293
        %3295 = vdwg.mxu0
        %v3296 = vadd.f32 %v3112, %v3221
        %v3297 = vadd.f32 %v3113, %v3223
        %v3298 = vadd.f32 %v3114, %v3292
        %v3299 = vadd.f32 %v3115, %v3294
        %vm3300 = vcmp.lt.s32.totalorder %v436, 58
        %vm3301 = vcmp.lt.s32.totalorder %v437, 58
        %vm3302 = vcmp.lt.s32.totalorder %v438, 58
        %vm3303 = vcmp.lt.s32.totalorder %v439, 58
        %3304 = vrot.lane.b32.xlu0 %v2208, 122
        %v3305 = vpop.permute.xlu0 %3304
        %3306 = vrot.lane.b32.xlu0 %v2209, 122
        %v3307 = vpop.permute.xlu0 %3306
        %3308 = vrot.lane.b32.xlu0 %v2210, 122
        %v3309 = vpop.permute.xlu0 %3308
        %3310 = vrot.lane.b32.xlu0 %v2211, 122
        %v3311 = vpop.permute.xlu0 %3310
        %vm3312 = vcmask 998400
        %v3313 = vsel %vm3312, %v3305, %v3307
        %v3314 = vsel %vm3312, %v3307, %v3309
        %v3315 = vsel %vm3312, %v3309, %v3311
        %v3321 = vsel %vm3312, %v3311, %v3305
        %v3322 = vsel %vm3300, 1, 0
        %v3323 = vsel %vm3301, 1, 0
        %v3324 = vsel %vm3302, 1, 0
        %v3325 = vsel %vm3303, 1, 0
        %vm3326 = vcmp.eq.s32.totalorder %v3322, 1
        %vm3327 = vcmp.eq.s32.totalorder %v3323, 1
        %vm3328 = vcmp.eq.s32.totalorder %v3324, 1
        %vm3329 = vcmp.eq.s32.totalorder %v3325, 1
        %v3330 = vsel %vm3326, %v3313, 0.0
        %v3331 = vsel %vm3327, %v3314, 0.0
        %v3332 = vsel %vm3328, %v3315, 0.0
        %v3333 = vsel %vm3329, %v3321, 0.0
        %s3334 = scalar_lea.vmem %s3, 48
        %v3335 = vld [vmem:[%s3334] sm:$0xff]
        %v3337 = vsel %vm459, %v3335, 0
        %v3340 = vsel %vm2277, %v3330, 0
        %v3343 = vsel %vm2277, %v3331, 0
        %v3346 = vsel %vm2277, %v3332, 0
        %v3349 = vsel %vm2277, %v3333, 0
        %3351 = vmatprep.subr.mxu0 %v3343
        %3352 = vmatpush1.msra.mxu0 %v3340
        %3353 = vmatprep.subr.mxu0 0.0
        %3354 = vmatpush1.msra.mxu0 0.0
        %3355 = vmatprep.subr.mxu0 0.0
        %3356 = vmatpush1.msra.mxu0 0.0
        %3357 = vmatprep.subr.mxu0 0.0
        %3358 = vmatpush1.msra.mxu0 0.0
        %3359 = vmatprep.subr.mxu0 0.0
        %3360 = vmatpush1.msra.mxu0 0.0
        %3361 = vmatprep.subr.mxu0 0.0
        %3362 = vmatpush1.msra.mxu0 0.0
        %3363 = vmatprep.subr.mxu0 0.0
        %3364 = vmatpush1.msra.mxu0 0.0
        %3365 = vmatprep.subr.mxu0 0.0
        %3366 = vmatpush1.msra.mxu0 0.0
        %3367 = vmatprep.subr.mxu0 0.0
        %3368 = vmatpush1.msra.mxu0 0.0
        %3369 = vmatprep.subr.mxu0 0.0
        %3370 = vmatpush1.msra.mxu0 0.0
        %3371 = vmatprep.subr.mxu0 0.0
        %3372 = vmatpush1.msra.mxu0 0.0
        %3373 = vmatprep.subr.mxu0 0.0
        %3374 = vmatpush1.msra.mxu0 0.0
        %3375 = vmatprep.subr.mxu0 0.0
        %3376 = vmatpush1.msra.mxu0 0.0
        %3377 = vmatprep.subr.mxu0 0.0
        %3378 = vmatpush1.msra.mxu0 0.0
        %3379 = vmatprep.subr.mxu0 0.0
        %3380 = vmatpush1.msra.mxu0 0.0
        %3381 = vmatprep.subr.mxu0 0.0
        %3382 = vmatpush1.msra.mxu0 0.0
        %3383 = vmatprep.subr.mxu0 0.0
        %3384 = vmatpush1.msra.mxu0 0.0
        %3385 = vmatprep.subr.mxu0 0.0
        %3386 = vmatpush1.msra.mxu0 0.0
        %3387 = vmatprep.subr.mxu0 0.0
        %3388 = vmatpush1.msra.mxu0 0.0
        %3389 = vmatprep.subr.mxu0 0.0
        %3390 = vmatpush1.msra.mxu0 0.0
        %3391 = vmatprep.subr.mxu0 0.0
        %3392 = vmatpush1.msra.mxu0 0.0
        %3393 = vmatprep.subr.mxu0 0.0
        %3394 = vmatpush1.msra.mxu0 0.0
        %3395 = vmatprep.subr.mxu0 0.0
        %3396 = vmatpush1.msra.mxu0 0.0
        %3397 = vmatprep.subr.mxu0 0.0
        %3398 = vmatpush1.msra.mxu0 0.0
        %3399 = vmatprep.subr.mxu0 0.0
        %3400 = vmatpush1.msra.mxu0 0.0
        %3401 = vmatprep.subr.mxu0 0.0
        %3402 = vmatpush1.msra.mxu0 0.0
        %3403 = vmatprep.subr.mxu0 0.0
        %3404 = vmatpush1.msra.mxu0 0.0
        %3405 = vmatprep.subr.mxu0 0.0
        %3406 = vmatpush1.msra.mxu0 0.0
        %3407 = vmatprep.subr.mxu0 0.0
        %3408 = vmatpush1.msra.mxu0 0.0
        %3409 = vmatprep.subr.mxu0 0.0
        %3410 = vmatpush1.msra.mxu0 0.0
        %3411 = vmatprep.subr.mxu0 0.0
        %3412 = vmatpush1.msra.mxu0 0.0
        %3413 = vmatprep.subr.mxu0 0.0
        %3414 = vmatpush1.msra.mxu0 0.0
        %3415 = vmatprep.mubr.f32.mxu0 0.0
        %3416 = vmatmul.mubr.f32.gmra.mrb[0].mxu0 %v3337
        %v3417 = vpop.f32.mrb[0].mxu0
        %v3418 = vadd.f32 0.0, %v3417
        %v3419 = vpop.f32.mrb[0].mxu0
        %v3420 = vadd.f32 0.0, %v3419
        %3421 = vdwg.mxu0
        %3422 = vmatprep.subr.mxu0 %v3349
        %3423 = vmatpush1.msra.mxu0 %v3346
        %3424 = vmatprep.subr.mxu0 0.0
        %3425 = vmatpush1.msra.mxu0 0.0
        %3426 = vmatprep.subr.mxu0 0.0
        %3427 = vmatpush1.msra.mxu0 0.0
        %3428 = vmatprep.subr.mxu0 0.0
        %3429 = vmatpush1.msra.mxu0 0.0
        %3430 = vmatprep.subr.mxu0 0.0
        %3431 = vmatpush1.msra.mxu0 0.0
        %3432 = vmatprep.subr.mxu0 0.0
        %3433 = vmatpush1.msra.mxu0 0.0
        %3434 = vmatprep.subr.mxu0 0.0
        %3435 = vmatpush1.msra.mxu0 0.0
        %3436 = vmatprep.subr.mxu0 0.0
        %3437 = vmatpush1.msra.mxu0 0.0
        %3438 = vmatprep.subr.mxu0 0.0
        %3439 = vmatpush1.msra.mxu0 0.0
        %3440 = vmatprep.subr.mxu0 0.0
        %3441 = vmatpush1.msra.mxu0 0.0
        %3442 = vmatprep.subr.mxu0 0.0
        %3443 = vmatpush1.msra.mxu0 0.0
        %3444 = vmatprep.subr.mxu0 0.0
        %3445 = vmatpush1.msra.mxu0 0.0
        %3446 = vmatprep.subr.mxu0 0.0
        %3447 = vmatpush1.msra.mxu0 0.0
        %3448 = vmatprep.subr.mxu0 0.0
        %3449 = vmatpush1.msra.mxu0 0.0
        %3450 = vmatprep.subr.mxu0 0.0
        %3451 = vmatpush1.msra.mxu0 0.0
        %3452 = vmatprep.subr.mxu0 0.0
        %3453 = vmatpush1.msra.mxu0 0.0
        %3454 = vmatprep.subr.mxu0 0.0
        %3455 = vmatpush1.msra.mxu0 0.0
        %3456 = vmatprep.subr.mxu0 0.0
        %3457 = vmatpush1.msra.mxu0 0.0
        %3458 = vmatprep.subr.mxu0 0.0
        %3459 = vmatpush1.msra.mxu0 0.0
        %3460 = vmatprep.subr.mxu0 0.0
        %3461 = vmatpush1.msra.mxu0 0.0
        %3462 = vmatprep.subr.mxu0 0.0
        %3463 = vmatpush1.msra.mxu0 0.0
        %3464 = vmatprep.subr.mxu0 0.0
        %3465 = vmatpush1.msra.mxu0 0.0
        %3466 = vmatprep.subr.mxu0 0.0
        %3467 = vmatpush1.msra.mxu0 0.0
        %3468 = vmatprep.subr.mxu0 0.0
        %3469 = vmatpush1.msra.mxu0 0.0
        %3470 = vmatprep.subr.mxu0 0.0
        %3471 = vmatpush1.msra.mxu0 0.0
        %3472 = vmatprep.subr.mxu0 0.0
        %3473 = vmatpush1.msra.mxu0 0.0
        %3474 = vmatprep.subr.mxu0 0.0
        %3475 = vmatpush1.msra.mxu0 0.0
        %3476 = vmatprep.subr.mxu0 0.0
        %3477 = vmatpush1.msra.mxu0 0.0
        %3478 = vmatprep.subr.mxu0 0.0
        %3479 = vmatpush1.msra.mxu0 0.0
        %3480 = vmatprep.subr.mxu0 0.0
        %3481 = vmatpush1.msra.mxu0 0.0
        %3482 = vmatprep.subr.mxu0 0.0
        %3483 = vmatpush1.msra.mxu0 0.0
        %3484 = vmatprep.subr.mxu0 0.0
        %3485 = vmatpush1.msra.mxu0 0.0
        %3486 = vmatprep.mubr.f32.mxu0 0.0
        %3487 = vmatmul.mubr.f32.gmra.mrb[0].mxu0 %v3337
        %v3488 = vpop.f32.mrb[0].mxu0
        %v3489 = vadd.f32 0.0, %v3488
        %v3490 = vpop.f32.mrb[0].mxu0
        %v3491 = vadd.f32 0.0, %v3490
        %3492 = vdwg.mxu0
        %v3493 = vadd.f32 %v3296, %v3418
        %v3494 = vadd.f32 %v3297, %v3420
        %v3495 = vadd.f32 %v3298, %v3489
        %v3496 = vadd.f32 %v3299, %v3491
        %v3497 = vld [vmem:[%s4] sm:$0xff]
        %3499 = vset.pattern.permute.xlu0 0
        %3500 = vperm.xlu0 %3499, %v3497
        %v3501 = vpop.permute.xlu0 %3500
        %v3503 = vadd.f32 %v3493, %v3501
        %v3504 = vadd.f32 %v3494, %v3501
        %v3505 = vadd.f32 %v3495, %v3501
        %v3506 = vadd.f32 %v3496, %v3501
        %v3507 = vmax.f32 %v3503, 0.0
        %v3508 = vmax.f32 %v3504, 0.0
        %v3509 = vmax.f32 %v3505, 0.0
        %v3510 = vmax.f32 %v3506, 0.0
        %3515 = vrot.lane.b32.xlu0 %v3507, 126
        %v3516 = vpop.permute.xlu0 %3515
        %3517 = vrot.lane.b32.xlu0 %v3508, 126
        %v3518 = vpop.permute.xlu0 %3517
        %3519 = vrot.lane.b32.xlu0 %v3509, 126
        %v3520 = vpop.permute.xlu0 %3519
        %3521 = vrot.lane.b32.xlu0 %v3510, 126
        %v3522 = vpop.permute.xlu0 %3521
        %v3523 = vsel %vm1594, %v3516, %v3518
        %v3524 = vsel %vm1594, %v3518, %v3520
        %v3525 = vsel %vm1594, %v3520, %v3522
        %v3531 = vsel %vm1594, %v3522, %v3516
        %v3532 = vmax.f32 %v3507, %v3523
        %v3533 = vmax.f32 %v3508, %v3524
        %v3534 = vmax.f32 %v3509, %v3525
        %v3535 = vmax.f32 %v3510, %v3531
        %vm3536 = vcmp.ge.s32.totalorder %v436, 8
        %vm3537 = vcmp.ge.s32.totalorder %v437, 8
        %vm3538 = vcmp.ge.s32.totalorder %v438, 8
        %vm3539 = vcmp.ge.s32.totalorder %v439, 8
        %3541 = vrot.lane.b32.xlu0 %v3535, 8
        %v3542 = vpop.permute.xlu0 %3541
        %3547 = vrot.lane.b32.xlu0 %v3532, 8
        %v3548 = vpop.permute.xlu0 %3547
        %3549 = vrot.lane.b32.xlu0 %v3533, 8
        %v3550 = vpop.permute.xlu0 %3549
        %3551 = vrot.lane.b32.xlu0 %v3534, 8
        %v3552 = vpop.permute.xlu0 %3551
        %vm3553 = vcmask 64512
        %v3554 = vsel %vm3553, %v3548, %v3550
        %v3555 = vsel %vm3553, %v3550, %v3552
        %v3556 = vsel %vm3553, %v3552, %v3542
        %v3561 = vsel %vm3553, %v3542, %v3548
        %v3562 = vsel %vm3536, 1, 0
        %v3563 = vsel %vm3537, 1, 0
        %v3564 = vsel %vm3538, 1, 0
        %v3565 = vsel %vm3539, 1, 0
        %vm3566 = vcmp.eq.s32.totalorder %v3562, 1
        %vm3567 = vcmp.eq.s32.totalorder %v3563, 1
        %vm3568 = vcmp.eq.s32.totalorder %v3564, 1
        %vm3569 = vcmp.eq.s32.totalorder %v3565, 1
        %v3570 = vsel %vm3566, %v3561, 0.0
        %v3571 = vsel %vm3567, %v3554, 0.0
        %v3572 = vsel %vm3568, %v3555, 0.0
        %v3573 = vsel %vm3569, %v3556, 0.0
        %v3574 = vld [vmem:[%s5] sm:$0xff]
        %v3575 = vld [vmem:[%s5 + $0x8] sm:$0xff]
        %3576 = vrot.lane.b32.xlu0 %v3535, 4
        %v3577 = vpop.permute.xlu0 %3576
        %3579 = vrot.lane.b32.xlu0 %v3532, 4
        %v3580 = vpop.permute.xlu0 %3579
        %3581 = vrot.lane.b32.xlu0 %v3533, 4
        %v3582 = vpop.permute.xlu0 %3581
        %3583 = vrot.lane.b32.xlu0 %v3534, 4
        %v3584 = vpop.permute.xlu0 %3583
        %v3585 = vsel %vm459, %v3580, %v3582
        %v3586 = vsel %vm459, %v3582, %v3584
        %v3587 = vsel %vm459, %v3584, %v3577
        %v3592 = vsel %vm459, %v3577, %v3580
        %v3593 = vsel %vm472, %v3592, 0.0
        %v3594 = vsel %vm473, %v3585, 0.0
        %v3595 = vsel %vm474, %v3586, 0.0
        %v3596 = vsel %vm475, %v3587, 0.0
        %s3597 = scalar_lea.vmem %s5, 16
        %v3598 = vld [vmem:[%s3597] sm:$0xff]
        %v3599 = vld [vmem:[%s3597 + $0x8] sm:$0xff]
        %v3601 = vsel %vm3553, %v3598, 0
        %v3604 = vsel %vm3553, %v3599, 0
        %3606 = vmatprep.subr.mxu0 %v3594
        %3607 = vmatpush1.msra.mxu0 %v3593
        %3608 = vmatprep.subr.mxu0 0.0
        %3609 = vmatpush1.msra.mxu0 0.0
        %3610 = vmatprep.subr.mxu0 0.0
        %3611 = vmatpush1.msra.mxu0 0.0
        %3612 = vmatprep.subr.mxu0 0.0
        %3613 = vmatpush1.msra.mxu0 0.0
        %3614 = vmatprep.subr.mxu0 0.0
        %3615 = vmatpush1.msra.mxu0 0.0
        %3616 = vmatprep.subr.mxu0 0.0
        %3617 = vmatpush1.msra.mxu0 0.0
        %3618 = vmatprep.subr.mxu0 0.0
        %3619 = vmatpush1.msra.mxu0 0.0
        %3620 = vmatprep.subr.mxu0 0.0
        %3621 = vmatpush1.msra.mxu0 0.0
        %3622 = vmatprep.subr.mxu0 0.0
        %3623 = vmatpush1.msra.mxu0 0.0
        %3624 = vmatprep.subr.mxu0 0.0
        %3625 = vmatpush1.msra.mxu0 0.0
        %3626 = vmatprep.subr.mxu0 0.0
        %3627 = vmatpush1.msra.mxu0 0.0
        %3628 = vmatprep.subr.mxu0 0.0
        %3629 = vmatpush1.msra.mxu0 0.0
        %3630 = vmatprep.subr.mxu0 0.0
        %3631 = vmatpush1.msra.mxu0 0.0
        %3632 = vmatprep.subr.mxu0 0.0
        %3633 = vmatpush1.msra.mxu0 0.0
        %3634 = vmatprep.subr.mxu0 0.0
        %3635 = vmatpush1.msra.mxu0 0.0
        %3636 = vmatprep.subr.mxu0 0.0
        %3637 = vmatpush1.msra.mxu0 0.0
        %3638 = vmatprep.subr.mxu0 0.0
        %3639 = vmatpush1.msra.mxu0 0.0
        %3640 = vmatprep.subr.mxu0 0.0
        %3641 = vmatpush1.msra.mxu0 0.0
        %3642 = vmatprep.subr.mxu0 0.0
        %3643 = vmatpush1.msra.mxu0 0.0
        %3644 = vmatprep.subr.mxu0 0.0
        %3645 = vmatpush1.msra.mxu0 0.0
        %3646 = vmatprep.subr.mxu0 0.0
        %3647 = vmatpush1.msra.mxu0 0.0
        %3648 = vmatprep.subr.mxu0 0.0
        %3649 = vmatpush1.msra.mxu0 0.0
        %3650 = vmatprep.subr.mxu0 0.0
        %3651 = vmatpush1.msra.mxu0 0.0
        %3652 = vmatprep.subr.mxu0 0.0
        %3653 = vmatpush1.msra.mxu0 0.0
        %3654 = vmatprep.subr.mxu0 0.0
        %3655 = vmatpush1.msra.mxu0 0.0
        %3656 = vmatprep.subr.mxu0 0.0
        %3657 = vmatpush1.msra.mxu0 0.0
        %3658 = vmatprep.subr.mxu0 0.0
        %3659 = vmatpush1.msra.mxu0 0.0
        %3660 = vmatprep.subr.mxu0 0.0
        %3661 = vmatpush1.msra.mxu0 0.0
        %3662 = vmatprep.subr.mxu0 0.0
        %3663 = vmatpush1.msra.mxu0 0.0
        %3664 = vmatprep.subr.mxu0 0.0
        %3665 = vmatpush1.msra.mxu0 0.0
        %3666 = vmatprep.subr.mxu0 0.0
        %3667 = vmatpush1.msra.mxu0 0.0
        %3668 = vmatprep.subr.mxu0 0.0
        %3669 = vmatpush1.msra.mxu0 0.0
        %3670 = vmatprep.mubr.f32.mxu0 0.0
        %3671 = vmatmul.mubr.f32.gmra.mrb[0].mxu0 %v3601
        %v3672 = vpop.f32.mrb[0].mxu0
        %v3673 = vadd.f32 0.0, %v3672
        %v3674 = vpop.f32.mrb[0].mxu0
        %v3675 = vadd.f32 0.0, %v3674
        %3676 = vmatprep.mubr.f32.mxu0 0.0
        %3677 = vmatmul.mubr.f32.gmra.mrb[0].mxu0 %v3604
        %v3678 = vpop.f32.mrb[0].mxu0
        %v3679 = vadd.f32 0.0, %v3678
        %v3680 = vpop.f32.mrb[0].mxu0
        %v3681 = vadd.f32 0.0, %v3680
        %3682 = vdwg.mxu0
        %3683 = vmatprep.subr.mxu0 %v3596
        %3684 = vmatpush1.msra.mxu0 %v3595
        %3685 = vmatprep.subr.mxu0 0.0
        %3686 = vmatpush1.msra.mxu0 0.0
        %3687 = vmatprep.subr.mxu0 0.0
        %3688 = vmatpush1.msra.mxu0 0.0
        %3689 = vmatprep.subr.mxu0 0.0
        %3690 = vmatpush1.msra.mxu0 0.0
        %3691 = vmatprep.subr.mxu0 0.0
        %3692 = vmatpush1.msra.mxu0 0.0
        %3693 = vmatprep.subr.mxu0 0.0
        %3694 = vmatpush1.msra.mxu0 0.0
        %3695 = vmatprep.subr.mxu0 0.0
        %3696 = vmatpush1.msra.mxu0 0.0
        %3697 = vmatprep.subr.mxu0 0.0
        %3698 = vmatpush1.msra.mxu0 0.0
        %3699 = vmatprep.subr.mxu0 0.0
        %3700 = vmatpush1.msra.mxu0 0.0
        %3701 = vmatprep.subr.mxu0 0.0
        %3702 = vmatpush1.msra.mxu0 0.0
        %3703 = vmatprep.subr.mxu0 0.0
        %3704 = vmatpush1.msra.mxu0 0.0
        %3705 = vmatprep.subr.mxu0 0.0
        %3706 = vmatpush1.msra.mxu0 0.0
        %3707 = vmatprep.subr.mxu0 0.0
        %3708 = vmatpush1.msra.mxu0 0.0
        %3709 = vmatprep.subr.mxu0 0.0
        %3710 = vmatpush1.msra.mxu0 0.0
        %3711 = vmatprep.subr.mxu0 0.0
        %3712 = vmatpush1.msra.mxu0 0.0
        %3713 = vmatprep.subr.mxu0 0.0
        %3714 = vmatpush1.msra.mxu0 0.0
        %3715 = vmatprep.subr.mxu0 0.0
        %3716 = vmatpush1.msra.mxu0 0.0
        %3717 = vmatprep.subr.mxu0 0.0
        %3718 = vmatpush1.msra.mxu0 0.0
        %3719 = vmatprep.subr.mxu0 0.0
        %3720 = vmatpush1.msra.mxu0 0.0
        %3721 = vmatprep.subr.mxu0 0.0
        %3722 = vmatpush1.msra.mxu0 0.0
        %3723 = vmatprep.subr.mxu0 0.0
        %3724 = vmatpush1.msra.mxu0 0.0
        %3725 = vmatprep.subr.mxu0 0.0
        %3726 = vmatpush1.msra.mxu0 0.0
        %3727 = vmatprep.subr.mxu0 0.0
        %3728 = vmatpush1.msra.mxu0 0.0
        %3729 = vmatprep.subr.mxu0 0.0
        %3730 = vmatpush1.msra.mxu0 0.0
        %3731 = vmatprep.subr.mxu0 0.0
        %3732 = vmatpush1.msra.mxu0 0.0
        %3733 = vmatprep.subr.mxu0 0.0
        %3734 = vmatpush1.msra.mxu0 0.0
        %3735 = vmatprep.subr.mxu0 0.0
        %3736 = vmatpush1.msra.mxu0 0.0
        %3737 = vmatprep.subr.mxu0 0.0
        %3738 = vmatpush1.msra.mxu0 0.0
        %3739 = vmatprep.subr.mxu0 0.0
        %3740 = vmatpush1.msra.mxu0 0.0
        %3741 = vmatprep.subr.mxu0 0.0
        %3742 = vmatpush1.msra.mxu0 0.0
        %3743 = vmatprep.subr.mxu0 0.0
        %3744 = vmatpush1.msra.mxu0 0.0
        %3745 = vmatprep.subr.mxu0 0.0
        %3746 = vmatpush1.msra.mxu0 0.0
        %3747 = vmatprep.mubr.f32.mxu0 0.0
        %3748 = vmatmul.mubr.f32.gmra.mrb[0].mxu0 %v3601
        %v3749 = vpop.f32.mrb[0].mxu0
        %v3750 = vadd.f32 0.0, %v3749
        %v3751 = vpop.f32.mrb[0].mxu0
        %v3752 = vadd.f32 0.0, %v3751
        %3753 = vmatprep.mubr.f32.mxu0 0.0
        %3754 = vmatmul.mubr.f32.gmra.mrb[0].mxu0 %v3604
        %v3755 = vpop.f32.mrb[0].mxu0
        %v3756 = vadd.f32 0.0, %v3755
        %v3757 = vpop.f32.mrb[0].mxu0
        %v3758 = vadd.f32 0.0, %v3757
        %3759 = vdwg.mxu0
        %v3761 = vsel %vm3553, %v3574, 0
        %v3764 = vsel %vm3553, %v3575, 0
        %3766 = vmatprep.subr.mxu0 %v3571
        %3767 = vmatpush1.msra.mxu0 %v3570
        %3768 = vmatprep.subr.mxu0 0.0
        %3769 = vmatpush1.msra.mxu0 0.0
        %3770 = vmatprep.subr.mxu0 0.0
        %3771 = vmatpush1.msra.mxu0 0.0
        %3772 = vmatprep.subr.mxu0 0.0
        %3773 = vmatpush1.msra.mxu0 0.0
        %3774 = vmatprep.subr.mxu0 0.0
        %3775 = vmatpush1.msra.mxu0 0.0
        %3776 = vmatprep.subr.mxu0 0.0
        %3777 = vmatpush1.msra.mxu0 0.0
        %3778 = vmatprep.subr.mxu0 0.0
        %3779 = vmatpush1.msra.mxu0 0.0
        %3780 = vmatprep.subr.mxu0 0.0
        %3781 = vmatpush1.msra.mxu0 0.0
        %3782 = vmatprep.subr.mxu0 0.0
        %3783 = vmatpush1.msra.mxu0 0.0
        %3784 = vmatprep.subr.mxu0 0.0
        %3785 = vmatpush1.msra.mxu0 0.0
        %3786 = vmatprep.subr.mxu0 0.0
        %3787 = vmatpush1.msra.mxu0 0.0
        %3788 = vmatprep.subr.mxu0 0.0
        %3789 = vmatpush1.msra.mxu0 0.0
        %3790 = vmatprep.subr.mxu0 0.0
        %3791 = vmatpush1.msra.mxu0 0.0
        %3792 = vmatprep.subr.mxu0 0.0
        %3793 = vmatpush1.msra.mxu0 0.0
        %3794 = vmatprep.subr.mxu0 0.0
        %3795 = vmatpush1.msra.mxu0 0.0
        %3796 = vmatprep.subr.mxu0 0.0
        %3797 = vmatpush1.msra.mxu0 0.0
        %3798 = vmatprep.subr.mxu0 0.0
        %3799 = vmatpush1.msra.mxu0 0.0
        %3800 = vmatprep.subr.mxu0 0.0
        %3801 = vmatpush1.msra.mxu0 0.0
        %3802 = vmatprep.subr.mxu0 0.0
        %3803 = vmatpush1.msra.mxu0 0.0
        %3804 = vmatprep.subr.mxu0 0.0
        %3805 = vmatpush1.msra.mxu0 0.0
        %3806 = vmatprep.subr.mxu0 0.0
        %3807 = vmatpush1.msra.mxu0 0.0
        %3808 = vmatprep.subr.mxu0 0.0
        %3809 = vmatpush1.msra.mxu0 0.0
        %3810 = vmatprep.subr.mxu0 0.0
        %3811 = vmatpush1.msra.mxu0 0.0
        %3812 = vmatprep.subr.mxu0 0.0
        %3813 = vmatpush1.msra.mxu0 0.0
        %3814 = vmatprep.subr.mxu0 0.0
        %3815 = vmatpush1.msra.mxu0 0.0
        %3816 = vmatprep.subr.mxu0 0.0
        %3817 = vmatpush1.msra.mxu0 0.0
        %3818 = vmatprep.subr.mxu0 0.0
        %3819 = vmatpush1.msra.mxu0 0.0
        %3820 = vmatprep.subr.mxu0 0.0
        %3821 = vmatpush1.msra.mxu0 0.0
        %3822 = vmatprep.subr.mxu0 0.0
        %3823 = vmatpush1.msra.mxu0 0.0
        %3824 = vmatprep.subr.mxu0 0.0
        %3825 = vmatpush1.msra.mxu0 0.0
        %3826 = vmatprep.subr.mxu0 0.0
        %3827 = vmatpush1.msra.mxu0 0.0
        %3828 = vmatprep.subr.mxu0 0.0
        %3829 = vmatpush1.msra.mxu0 0.0
        %3830 = vmatprep.mubr.f32.mxu0 0.0
        %3831 = vmatmul.mubr.f32.gmra.mrb[0].mxu0 %v3761
        %v3832 = vpop.f32.mrb[0].mxu0
        %v3833 = vadd.f32 %v3673, %v3832
        %v3834 = vpop.f32.mrb[0].mxu0
        %v3835 = vadd.f32 %v3675, %v3834
        %3836 = vmatprep.mubr.f32.mxu0 0.0
        %3837 = vmatmul.mubr.f32.gmra.mrb[0].mxu0 %v3764
        %v3838 = vpop.f32.mrb[0].mxu0
        %v3839 = vadd.f32 %v3679, %v3838
        %v3840 = vpop.f32.mrb[0].mxu0
        %v3841 = vadd.f32 %v3681, %v3840
        %3842 = vdwg.mxu0
        %3843 = vmatprep.subr.mxu0 %v3573
        %3844 = vmatpush1.msra.mxu0 %v3572
        %3845 = vmatprep.subr.mxu0 0.0
        %3846 = vmatpush1.msra.mxu0 0.0
        %3847 = vmatprep.subr.mxu0 0.0
        %3848 = vmatpush1.msra.mxu0 0.0
        %3849 = vmatprep.subr.mxu0 0.0
        %3850 = vmatpush1.msra.mxu0 0.0
        %3851 = vmatprep.subr.mxu0 0.0
        %3852 = vmatpush1.msra.mxu0 0.0
        %3853 = vmatprep.subr.mxu0 0.0
        %3854 = vmatpush1.msra.mxu0 0.0
        %3855 = vmatprep.subr.mxu0 0.0
        %3856 = vmatpush1.msra.mxu0 0.0
        %3857 = vmatprep.subr.mxu0 0.0
        %3858 = vmatpush1.msra.mxu0 0.0
        %3859 = vmatprep.subr.mxu0 0.0
        %3860 = vmatpush1.msra.mxu0 0.0
        %3861 = vmatprep.subr.mxu0 0.0
        %3862 = vmatpush1.msra.mxu0 0.0
        %3863 = vmatprep.subr.mxu0 0.0
        %3864 = vmatpush1.msra.mxu0 0.0
        %3865 = vmatprep.subr.mxu0 0.0
        %3866 = vmatpush1.msra.mxu0 0.0
        %3867 = vmatprep.subr.mxu0 0.0
        %3868 = vmatpush1.msra.mxu0 0.0
        %3869 = vmatprep.subr.mxu0 0.0
        %3870 = vmatpush1.msra.mxu0 0.0
        %3871 = vmatprep.subr.mxu0 0.0
        %3872 = vmatpush1.msra.mxu0 0.0
        %3873 = vmatprep.subr.mxu0 0.0
        %3874 = vmatpush1.msra.mxu0 0.0
        %3875 = vmatprep.subr.mxu0 0.0
        %3876 = vmatpush1.msra.mxu0 0.0
        %3877 = vmatprep.subr.mxu0 0.0
        %3878 = vmatpush1.msra.mxu0 0.0
        %3879 = vmatprep.subr.mxu0 0.0
        %3880 = vmatpush1.msra.mxu0 0.0
        %3881 = vmatprep.subr.mxu0 0.0
        %3882 = vmatpush1.msra.mxu0 0.0
        %3883 = vmatprep.subr.mxu0 0.0
        %3884 = vmatpush1.msra.mxu0 0.0
        %3885 = vmatprep.subr.mxu0 0.0
        %3886 = vmatpush1.msra.mxu0 0.0
        %3887 = vmatprep.subr.mxu0 0.0
        %3888 = vmatpush1.msra.mxu0 0.0
        %3889 = vmatprep.subr.mxu0 0.0
        %3890 = vmatpush1.msra.mxu0 0.0
        %3891 = vmatprep.subr.mxu0 0.0
        %3892 = vmatpush1.msra.mxu0 0.0
        %3893 = vmatprep.subr.mxu0 0.0
        %3894 = vmatpush1.msra.mxu0 0.0
        %3895 = vmatprep.subr.mxu0 0.0
        %3896 = vmatpush1.msra.mxu0 0.0
        %3897 = vmatprep.subr.mxu0 0.0
        %3898 = vmatpush1.msra.mxu0 0.0
        %3899 = vmatprep.subr.mxu0 0.0
        %3900 = vmatpush1.msra.mxu0 0.0
        %3901 = vmatprep.subr.mxu0 0.0
        %3902 = vmatpush1.msra.mxu0 0.0
        %3903 = vmatprep.subr.mxu0 0.0
        %3904 = vmatpush1.msra.mxu0 0.0
        %3905 = vmatprep.subr.mxu0 0.0
        %3906 = vmatpush1.msra.mxu0 0.0
        %3907 = vmatprep.mubr.f32.mxu0 0.0
        %3908 = vmatmul.mubr.f32.gmra.mrb[0].mxu0 %v3761
        %v3909 = vpop.f32.mrb[0].mxu0
        %v3910 = vadd.f32 %v3750, %v3909
        %v3911 = vpop.f32.mrb[0].mxu0
        %v3912 = vadd.f32 %v3752, %v3911
        %3913 = vmatprep.mubr.f32.mxu0 0.0
        %3914 = vmatmul.mubr.f32.gmra.mrb[0].mxu0 %v3764
        %v3915 = vpop.f32.mrb[0].mxu0
        %v3916 = vadd.f32 %v3756, %v3915
        %v3917 = vpop.f32.mrb[0].mxu0
        %v3918 = vadd.f32 %v3758, %v3917
        %3919 = vdwg.mxu0
        %s3920 = scalar_lea.vmem %s5, 32
        %v3921 = vld [vmem:[%s3920] sm:$0xff]
        %v3922 = vld [vmem:[%s3920 + $0x8] sm:$0xff]
        %v3924 = vsel %vm3553, %v3921, 0
        %v3927 = vsel %vm3553, %v3922, 0
        %3929 = vmatprep.subr.mxu0 %v3533
        %3930 = vmatpush1.msra.mxu0 %v3532
        %3931 = vmatprep.subr.mxu0 0.0
        %3932 = vmatpush1.msra.mxu0 0.0
        %3933 = vmatprep.subr.mxu0 0.0
        %3934 = vmatpush1.msra.mxu0 0.0
        %3935 = vmatprep.subr.mxu0 0.0
        %3936 = vmatpush1.msra.mxu0 0.0
        %3937 = vmatprep.subr.mxu0 0.0
        %3938 = vmatpush1.msra.mxu0 0.0
        %3939 = vmatprep.subr.mxu0 0.0
        %3940 = vmatpush1.msra.mxu0 0.0
        %3941 = vmatprep.subr.mxu0 0.0
        %3942 = vmatpush1.msra.mxu0 0.0
        %3943 = vmatprep.subr.mxu0 0.0
        %3944 = vmatpush1.msra.mxu0 0.0
        %3945 = vmatprep.subr.mxu0 0.0
        %3946 = vmatpush1.msra.mxu0 0.0
        %3947 = vmatprep.subr.mxu0 0.0
        %3948 = vmatpush1.msra.mxu0 0.0
        %3949 = vmatprep.subr.mxu0 0.0
        %3950 = vmatpush1.msra.mxu0 0.0
        %3951 = vmatprep.subr.mxu0 0.0
        %3952 = vmatpush1.msra.mxu0 0.0
        %3953 = vmatprep.subr.mxu0 0.0
        %3954 = vmatpush1.msra.mxu0 0.0
        %3955 = vmatprep.subr.mxu0 0.0
        %3956 = vmatpush1.msra.mxu0 0.0
        %3957 = vmatprep.subr.mxu0 0.0
        %3958 = vmatpush1.msra.mxu0 0.0
        %3959 = vmatprep.subr.mxu0 0.0
        %3960 = vmatpush1.msra.mxu0 0.0
        %3961 = vmatprep.subr.mxu0 0.0
        %3962 = vmatpush1.msra.mxu0 0.0
        %3963 = vmatprep.subr.mxu0 0.0
        %3964 = vmatpush1.msra.mxu0 0.0
        %3965 = vmatprep.subr.mxu0 0.0
        %3966 = vmatpush1.msra.mxu0 0.0
        %3967 = vmatprep.subr.mxu0 0.0
        %3968 = vmatpush1.msra.mxu0 0.0
        %3969 = vmatprep.subr.mxu0 0.0
        %3970 = vmatpush1.msra.mxu0 0.0
        %3971 = vmatprep.subr.mxu0 0.0
        %3972 = vmatpush1.msra.mxu0 0.0
        %3973 = vmatprep.subr.mxu0 0.0
        %3974 = vmatpush1.msra.mxu0 0.0
        %3975 = vmatprep.subr.mxu0 0.0
        %3976 = vmatpush1.msra.mxu0 0.0
        %3977 = vmatprep.subr.mxu0 0.0
        %3978 = vmatpush1.msra.mxu0 0.0
        %3979 = vmatprep.subr.mxu0 0.0
        %3980 = vmatpush1.msra.mxu0 0.0
        %3981 = vmatprep.subr.mxu0 0.0
        %3982 = vmatpush1.msra.mxu0 0.0
        %3983 = vmatprep.subr.mxu0 0.0
        %3984 = vmatpush1.msra.mxu0 0.0
        %3985 = vmatprep.subr.mxu0 0.0
        %3986 = vmatpush1.msra.mxu0 0.0
        %3987 = vmatprep.subr.mxu0 0.0
        %3988 = vmatpush1.msra.mxu0 0.0
        %3989 = vmatprep.subr.mxu0 0.0
        %3990 = vmatpush1.msra.mxu0 0.0
        %3991 = vmatprep.subr.mxu0 0.0
        %3992 = vmatpush1.msra.mxu0 0.0
        %3993 = vmatprep.mubr.f32.mxu0 0.0
        %3994 = vmatmul.mubr.f32.gmra.mrb[0].mxu0 %v3924
        %v3995 = vpop.f32.mrb[0].mxu0
        %v3996 = vadd.f32 0.0, %v3995
        %v3997 = vpop.f32.mrb[0].mxu0
        %v3998 = vadd.f32 0.0, %v3997
        %3999 = vmatprep.mubr.f32.mxu0 0.0
        %4000 = vmatmul.mubr.f32.gmra.mrb[0].mxu0 %v3927
        %v4001 = vpop.f32.mrb[0].mxu0
        %v4002 = vadd.f32 0.0, %v4001
        %v4003 = vpop.f32.mrb[0].mxu0
        %v4004 = vadd.f32 0.0, %v4003
        %4005 = vdwg.mxu0
        %4006 = vmatprep.subr.mxu0 %v3535
        %4007 = vmatpush1.msra.mxu0 %v3534
        %4008 = vmatprep.subr.mxu0 0.0
        %4009 = vmatpush1.msra.mxu0 0.0
        %4010 = vmatprep.subr.mxu0 0.0
        %4011 = vmatpush1.msra.mxu0 0.0
        %4012 = vmatprep.subr.mxu0 0.0
        %4013 = vmatpush1.msra.mxu0 0.0
        %4014 = vmatprep.subr.mxu0 0.0
        %4015 = vmatpush1.msra.mxu0 0.0
        %4016 = vmatprep.subr.mxu0 0.0
        %4017 = vmatpush1.msra.mxu0 0.0
        %4018 = vmatprep.subr.mxu0 0.0
        %4019 = vmatpush1.msra.mxu0 0.0
        %4020 = vmatprep.subr.mxu0 0.0
        %4021 = vmatpush1.msra.mxu0 0.0
        %4022 = vmatprep.subr.mxu0 0.0
        %4023 = vmatpush1.msra.mxu0 0.0
        %4024 = vmatprep.subr.mxu0 0.0
        %4025 = vmatpush1.msra.mxu0 0.0
        %4026 = vmatprep.subr.mxu0 0.0
        %4027 = vmatpush1.msra.mxu0 0.0
        %4028 = vmatprep.subr.mxu0 0.0
        %4029 = vmatpush1.msra.mxu0 0.0
        %4030 = vmatprep.subr.mxu0 0.0
        %4031 = vmatpush1.msra.mxu0 0.0
        %4032 = vmatprep.subr.mxu0 0.0
        %4033 = vmatpush1.msra.mxu0 0.0
        %4034 = vmatprep.subr.mxu0 0.0
        %4035 = vmatpush1.msra.mxu0 0.0
        %4036 = vmatprep.subr.mxu0 0.0
        %4037 = vmatpush1.msra.mxu0 0.0
        %4038 = vmatprep.subr.mxu0 0.0
        %4039 = vmatpush1.msra.mxu0 0.0
        %4040 = vmatprep.subr.mxu0 0.0
        %4041 = vmatpush1.msra.mxu0 0.0
        %4042 = vmatprep.subr.mxu0 0.0
        %4043 = vmatpush1.msra.mxu0 0.0
        %4044 = vmatprep.subr.mxu0 0.0
        %4045 = vmatpush1.msra.mxu0 0.0
        %4046 = vmatprep.subr.mxu0 0.0
        %4047 = vmatpush1.msra.mxu0 0.0
        %4048 = vmatprep.subr.mxu0 0.0
        %4049 = vmatpush1.msra.mxu0 0.0
        %4050 = vmatprep.subr.mxu0 0.0
        %4051 = vmatpush1.msra.mxu0 0.0
        %4052 = vmatprep.subr.mxu0 0.0
        %4053 = vmatpush1.msra.mxu0 0.0
        %4054 = vmatprep.subr.mxu0 0.0
        %4055 = vmatpush1.msra.mxu0 0.0
        %4056 = vmatprep.subr.mxu0 0.0
        %4057 = vmatpush1.msra.mxu0 0.0
        %4058 = vmatprep.subr.mxu0 0.0
        %4059 = vmatpush1.msra.mxu0 0.0
        %4060 = vmatprep.subr.mxu0 0.0
        %4061 = vmatpush1.msra.mxu0 0.0
        %4062 = vmatprep.subr.mxu0 0.0
        %4063 = vmatpush1.msra.mxu0 0.0
        %4064 = vmatprep.subr.mxu0 0.0
        %4065 = vmatpush1.msra.mxu0 0.0
        %4066 = vmatprep.subr.mxu0 0.0
        %4067 = vmatpush1.msra.mxu0 0.0
        %4068 = vmatprep.subr.mxu0 0.0
        %4069 = vmatpush1.msra.mxu0 0.0
        %4070 = vmatprep.mubr.f32.mxu0 0.0
        %4071 = vmatmul.mubr.f32.gmra.mrb[0].mxu0 %v3924
        %v4072 = vpop.f32.mrb[0].mxu0
        %v4073 = vadd.f32 0.0, %v4072
        %v4074 = vpop.f32.mrb[0].mxu0
        %v4075 = vadd.f32 0.0, %v4074
        %4076 = vmatprep.mubr.f32.mxu0 0.0
        %4077 = vmatmul.mubr.f32.gmra.mrb[0].mxu0 %v3927
        %v4078 = vpop.f32.mrb[0].mxu0
        %v4079 = vadd.f32 0.0, %v4078
        %v4080 = vpop.f32.mrb[0].mxu0
        %v4081 = vadd.f32 0.0, %v4080
        %4082 = vdwg.mxu0
        %v4083 = vadd.f32 %v3833, %v3996
        %v4084 = vadd.f32 %v3835, %v3998
        %v4085 = vadd.f32 %v3910, %v4073
        %v4086 = vadd.f32 %v3912, %v4075
        %v4087 = vadd.f32 %v3839, %v4002
        %v4088 = vadd.f32 %v3841, %v4004
        %v4089 = vadd.f32 %v3916, %v4079
        %v4090 = vadd.f32 %v3918, %v4081
        %4091 = vrot.lane.b32.xlu0 %v3532, 124
        %v4092 = vpop.permute.xlu0 %4091
        %4093 = vrot.lane.b32.xlu0 %v3533, 124
        %v4094 = vpop.permute.xlu0 %4093
        %4095 = vrot.lane.b32.xlu0 %v3534, 124
        %v4096 = vpop.permute.xlu0 %4095
        %4097 = vrot.lane.b32.xlu0 %v3535, 124
        %v4098 = vpop.permute.xlu0 %4097
        %v4099 = vsel %vm1988, %v4092, %v4094
        %v4100 = vsel %vm1988, %v4094, %v4096
        %v4101 = vsel %vm1988, %v4096, %v4098
        %v4107 = vsel %vm1988, %v4098, %v4092
        %v4108 = vsel %vm2002, %v4099, 0.0
        %v4109 = vsel %vm2003, %v4100, 0.0
        %v4110 = vsel %vm2004, %v4101, 0.0
        %v4111 = vsel %vm2005, %v4107, 0.0
        %s4112 = scalar_lea.vmem %s5, 48
        %v4113 = vld [vmem:[%s4112] sm:$0xff]
        %v4114 = vld [vmem:[%s4112 + $0x8] sm:$0xff]
        %v4116 = vsel %vm3553, %v4113, 0
        %v4119 = vsel %vm3553, %v4114, 0
        %4121 = vmatprep.subr.mxu0 %v4109
        %4122 = vmatpush1.msra.mxu0 %v4108
        %4123 = vmatprep.subr.mxu0 0.0
        %4124 = vmatpush1.msra.mxu0 0.0
        %4125 = vmatprep.subr.mxu0 0.0
        %4126 = vmatpush1.msra.mxu0 0.0
        %4127 = vmatprep.subr.mxu0 0.0
        %4128 = vmatpush1.msra.mxu0 0.0
        %4129 = vmatprep.subr.mxu0 0.0
        %4130 = vmatpush1.msra.mxu0 0.0
        %4131 = vmatprep.subr.mxu0 0.0
        %4132 = vmatpush1.msra.mxu0 0.0
        %4133 = vmatprep.subr.mxu0 0.0
        %4134 = vmatpush1.msra.mxu0 0.0
        %4135 = vmatprep.subr.mxu0 0.0
        %4136 = vmatpush1.msra.mxu0 0.0
        %4137 = vmatprep.subr.mxu0 0.0
        %4138 = vmatpush1.msra.mxu0 0.0
        %4139 = vmatprep.subr.mxu0 0.0
        %4140 = vmatpush1.msra.mxu0 0.0
        %4141 = vmatprep.subr.mxu0 0.0
        %4142 = vmatpush1.msra.mxu0 0.0
        %4143 = vmatprep.subr.mxu0 0.0
        %4144 = vmatpush1.msra.mxu0 0.0
        %4145 = vmatprep.subr.mxu0 0.0
        %4146 = vmatpush1.msra.mxu0 0.0
        %4147 = vmatprep.subr.mxu0 0.0
        %4148 = vmatpush1.msra.mxu0 0.0
        %4149 = vmatprep.subr.mxu0 0.0
        %4150 = vmatpush1.msra.mxu0 0.0
        %4151 = vmatprep.subr.mxu0 0.0
        %4152 = vmatpush1.msra.mxu0 0.0
        %4153 = vmatprep.subr.mxu0 0.0
        %4154 = vmatpush1.msra.mxu0 0.0
        %4155 = vmatprep.subr.mxu0 0.0
        %4156 = vmatpush1.msra.mxu0 0.0
        %4157 = vmatprep.subr.mxu0 0.0
        %4158 = vmatpush1.msra.mxu0 0.0
        %4159 = vmatprep.subr.mxu0 0.0
        %4160 = vmatpush1.msra.mxu0 0.0
        %4161 = vmatprep.subr.mxu0 0.0
        %4162 = vmatpush1.msra.mxu0 0.0
        %4163 = vmatprep.subr.mxu0 0.0
        %4164 = vmatpush1.msra.mxu0 0.0
        %4165 = vmatprep.subr.mxu0 0.0
        %4166 = vmatpush1.msra.mxu0 0.0
        %4167 = vmatprep.subr.mxu0 0.0
        %4168 = vmatpush1.msra.mxu0 0.0
        %4169 = vmatprep.subr.mxu0 0.0
        %4170 = vmatpush1.msra.mxu0 0.0
        %4171 = vmatprep.subr.mxu0 0.0
        %4172 = vmatpush1.msra.mxu0 0.0
        %4173 = vmatprep.subr.mxu0 0.0
        %4174 = vmatpush1.msra.mxu0 0.0
        %4175 = vmatprep.subr.mxu0 0.0
        %4176 = vmatpush1.msra.mxu0 0.0
        %4177 = vmatprep.subr.mxu0 0.0
        %4178 = vmatpush1.msra.mxu0 0.0
        %4179 = vmatprep.subr.mxu0 0.0
        %4180 = vmatpush1.msra.mxu0 0.0
        %4181 = vmatprep.subr.mxu0 0.0
        %4182 = vmatpush1.msra.mxu0 0.0
        %4183 = vmatprep.subr.mxu0 0.0
        %4184 = vmatpush1.msra.mxu0 0.0
        %4185 = vmatprep.mubr.f32.mxu0 0.0
        %4186 = vmatmul.mubr.f32.gmra.mrb[0].mxu0 %v4116
        %v4187 = vpop.f32.mrb[0].mxu0
        %v4188 = vadd.f32 0.0, %v4187
        %v4189 = vpop.f32.mrb[0].mxu0
        %v4190 = vadd.f32 0.0, %v4189
        %4191 = vmatprep.mubr.f32.mxu0 0.0
        %4192 = vmatmul.mubr.f32.gmra.mrb[0].mxu0 %v4119
        %v4193 = vpop.f32.mrb[0].mxu0
        %v4194 = vadd.f32 0.0, %v4193
        %v4195 = vpop.f32.mrb[0].mxu0
        %v4196 = vadd.f32 0.0, %v4195
        %4197 = vdwg.mxu0
        %4198 = vmatprep.subr.mxu0 %v4111
        %4199 = vmatpush1.msra.mxu0 %v4110
        %4200 = vmatprep.subr.mxu0 0.0
        %4201 = vmatpush1.msra.mxu0 0.0
        %4202 = vmatprep.subr.mxu0 0.0
        %4203 = vmatpush1.msra.mxu0 0.0
        %4204 = vmatprep.subr.mxu0 0.0
        %4205 = vmatpush1.msra.mxu0 0.0
        %4206 = vmatprep.subr.mxu0 0.0
        %4207 = vmatpush1.msra.mxu0 0.0
        %4208 = vmatprep.subr.mxu0 0.0
        %4209 = vmatpush1.msra.mxu0 0.0
        %4210 = vmatprep.subr.mxu0 0.0
        %4211 = vmatpush1.msra.mxu0 0.0
        %4212 = vmatprep.subr.mxu0 0.0
        %4213 = vmatpush1.msra.mxu0 0.0
        %4214 = vmatprep.subr.mxu0 0.0
        %4215 = vmatpush1.msra.mxu0 0.0
        %4216 = vmatprep.subr.mxu0 0.0
        %4217 = vmatpush1.msra.mxu0 0.0
        %4218 = vmatprep.subr.mxu0 0.0
        %4219 = vmatpush1.msra.mxu0 0.0
        %4220 = vmatprep.subr.mxu0 0.0
        %4221 = vmatpush1.msra.mxu0 0.0
        %4222 = vmatprep.subr.mxu0 0.0
        %4223 = vmatpush1.msra.mxu0 0.0
        %4224 = vmatprep.subr.mxu0 0.0
        %4225 = vmatpush1.msra.mxu0 0.0
        %4226 = vmatprep.subr.mxu0 0.0
        %4227 = vmatpush1.msra.mxu0 0.0
        %4228 = vmatprep.subr.mxu0 0.0
        %4229 = vmatpush1.msra.mxu0 0.0
        %4230 = vmatprep.subr.mxu0 0.0
        %4231 = vmatpush1.msra.mxu0 0.0
        %4232 = vmatprep.subr.mxu0 0.0
        %4233 = vmatpush1.msra.mxu0 0.0
        %4234 = vmatprep.subr.mxu0 0.0
        %4235 = vmatpush1.msra.mxu0 0.0
        %4236 = vmatprep.subr.mxu0 0.0
        %4237 = vmatpush1.msra.mxu0 0.0
        %4238 = vmatprep.subr.mxu0 0.0
        %4239 = vmatpush1.msra.mxu0 0.0
        %4240 = vmatprep.subr.mxu0 0.0
        %4241 = vmatpush1.msra.mxu0 0.0
        %4242 = vmatprep.subr.mxu0 0.0
        %4243 = vmatpush1.msra.mxu0 0.0
        %4244 = vmatprep.subr.mxu0 0.0
        %4245 = vmatpush1.msra.mxu0 0.0
        %4246 = vmatprep.subr.mxu0 0.0
        %4247 = vmatpush1.msra.mxu0 0.0
        %4248 = vmatprep.subr.mxu0 0.0
        %4249 = vmatpush1.msra.mxu0 0.0
        %4250 = vmatprep.subr.mxu0 0.0
        %4251 = vmatpush1.msra.mxu0 0.0
        %4252 = vmatprep.subr.mxu0 0.0
        %4253 = vmatpush1.msra.mxu0 0.0
        %4254 = vmatprep.subr.mxu0 0.0
        %4255 = vmatpush1.msra.mxu0 0.0
        %4256 = vmatprep.subr.mxu0 0.0
        %4257 = vmatpush1.msra.mxu0 0.0
        %4258 = vmatprep.subr.mxu0 0.0
        %4259 = vmatpush1.msra.mxu0 0.0
        %4260 = vmatprep.subr.mxu0 0.0
        %4261 = vmatpush1.msra.mxu0 0.0
        %4262 = vmatprep.mubr.f32.mxu0 0.0
        %4263 = vmatmul.mubr.f32.gmra.mrb[0].mxu0 %v4116
        %v4264 = vpop.f32.mrb[0].mxu0
        %v4265 = vadd.f32 0.0, %v4264
        %v4266 = vpop.f32.mrb[0].mxu0
        %v4267 = vadd.f32 0.0, %v4266
        %4268 = vmatprep.mubr.f32.mxu0 0.0
        %4269 = vmatmul.mubr.f32.gmra.mrb[0].mxu0 %v4119
        %v4270 = vpop.f32.mrb[0].mxu0
        %v4271 = vadd.f32 0.0, %v4270
        %v4272 = vpop.f32.mrb[0].mxu0
        %v4273 = vadd.f32 0.0, %v4272
        %4274 = vdwg.mxu0
        %v4275 = vadd.f32 %v4083, %v4188
        %v4276 = vadd.f32 %v4084, %v4190
        %v4277 = vadd.f32 %v4085, %v4265
        %v4278 = vadd.f32 %v4086, %v4267
        %v4279 = vadd.f32 %v4087, %v4194
        %v4280 = vadd.f32 %v4088, %v4196
        %v4281 = vadd.f32 %v4089, %v4271
        %v4282 = vadd.f32 %v4090, %v4273
        %vm4283 = vcmp.lt.s32.totalorder %v436, 56
        %vm4284 = vcmp.lt.s32.totalorder %v437, 56
        %vm4285 = vcmp.lt.s32.totalorder %v438, 56
        %vm4286 = vcmp.lt.s32.totalorder %v439, 56
        %4287 = vrot.lane.b32.xlu0 %v3532, 120
        %v4288 = vpop.permute.xlu0 %4287
        %4289 = vrot.lane.b32.xlu0 %v3533, 120
        %v4290 = vpop.permute.xlu0 %4289
        %4291 = vrot.lane.b32.xlu0 %v3534, 120
        %v4292 = vpop.permute.xlu0 %4291
        %4293 = vrot.lane.b32.xlu0 %v3535, 120
        %v4294 = vpop.permute.xlu0 %4293
        %vm4295 = vcmask 982016
        %v4296 = vsel %vm4295, %v4288, %v4290
        %v4297 = vsel %vm4295, %v4290, %v4292
        %v4298 = vsel %vm4295, %v4292, %v4294
        %v4304 = vsel %vm4295, %v4294, %v4288
        %v4305 = vsel %vm4283, 1, 0
        %v4306 = vsel %vm4284, 1, 0
        %v4307 = vsel %vm4285, 1, 0
        %v4308 = vsel %vm4286, 1, 0
        %vm4309 = vcmp.eq.s32.totalorder %v4305, 1
        %vm4310 = vcmp.eq.s32.totalorder %v4306, 1
        %vm4311 = vcmp.eq.s32.totalorder %v4307, 1
        %vm4312 = vcmp.eq.s32.totalorder %v4308, 1
        %v4313 = vsel %vm4309, %v4296, 0.0
        %v4314 = vsel %vm4310, %v4297, 0.0
        %v4315 = vsel %vm4311, %v4298, 0.0
        %v4316 = vsel %vm4312, %v4304, 0.0
        %s4317 = scalar_lea.vmem %s5, 64
        %v4318 = vld [vmem:[%s4317] sm:$0xff]
        %v4319 = vld [vmem:[%s4317 + $0x8] sm:$0xff]
        %v4321 = vsel %vm3553, %v4318, 0
        %v4324 = vsel %vm3553, %v4319, 0
        %4326 = vmatprep.subr.mxu0 %v4314
        %4327 = vmatpush1.msra.mxu0 %v4313
        %4328 = vmatprep.subr.mxu0 0.0
        %4329 = vmatpush1.msra.mxu0 0.0
        %4330 = vmatprep.subr.mxu0 0.0
        %4331 = vmatpush1.msra.mxu0 0.0
        %4332 = vmatprep.subr.mxu0 0.0
        %4333 = vmatpush1.msra.mxu0 0.0
        %4334 = vmatprep.subr.mxu0 0.0
        %4335 = vmatpush1.msra.mxu0 0.0
        %4336 = vmatprep.subr.mxu0 0.0
        %4337 = vmatpush1.msra.mxu0 0.0
        %4338 = vmatprep.subr.mxu0 0.0
        %4339 = vmatpush1.msra.mxu0 0.0
        %4340 = vmatprep.subr.mxu0 0.0
        %4341 = vmatpush1.msra.mxu0 0.0
        %4342 = vmatprep.subr.mxu0 0.0
        %4343 = vmatpush1.msra.mxu0 0.0
        %4344 = vmatprep.subr.mxu0 0.0
        %4345 = vmatpush1.msra.mxu0 0.0
        %4346 = vmatprep.subr.mxu0 0.0
        %4347 = vmatpush1.msra.mxu0 0.0
        %4348 = vmatprep.subr.mxu0 0.0
        %4349 = vmatpush1.msra.mxu0 0.0
        %4350 = vmatprep.subr.mxu0 0.0
        %4351 = vmatpush1.msra.mxu0 0.0
        %4352 = vmatprep.subr.mxu0 0.0
        %4353 = vmatpush1.msra.mxu0 0.0
        %4354 = vmatprep.subr.mxu0 0.0
        %4355 = vmatpush1.msra.mxu0 0.0
        %4356 = vmatprep.subr.mxu0 0.0
        %4357 = vmatpush1.msra.mxu0 0.0
        %4358 = vmatprep.subr.mxu0 0.0
        %4359 = vmatpush1.msra.mxu0 0.0
        %4360 = vmatprep.subr.mxu0 0.0
        %4361 = vmatpush1.msra.mxu0 0.0
        %4362 = vmatprep.subr.mxu0 0.0
        %4363 = vmatpush1.msra.mxu0 0.0
        %4364 = vmatprep.subr.mxu0 0.0
        %4365 = vmatpush1.msra.mxu0 0.0
        %4366 = vmatprep.subr.mxu0 0.0
        %4367 = vmatpush1.msra.mxu0 0.0
        %4368 = vmatprep.subr.mxu0 0.0
        %4369 = vmatpush1.msra.mxu0 0.0
        %4370 = vmatprep.subr.mxu0 0.0
        %4371 = vmatpush1.msra.mxu0 0.0
        %4372 = vmatprep.subr.mxu0 0.0
        %4373 = vmatpush1.msra.mxu0 0.0
        %4374 = vmatprep.subr.mxu0 0.0
        %4375 = vmatpush1.msra.mxu0 0.0
        %4376 = vmatprep.subr.mxu0 0.0
        %4377 = vmatpush1.msra.mxu0 0.0
        %4378 = vmatprep.subr.mxu0 0.0
        %4379 = vmatpush1.msra.mxu0 0.0
        %4380 = vmatprep.subr.mxu0 0.0
        %4381 = vmatpush1.msra.mxu0 0.0
        %4382 = vmatprep.subr.mxu0 0.0
        %4383 = vmatpush1.msra.mxu0 0.0
        %4384 = vmatprep.subr.mxu0 0.0
        %4385 = vmatpush1.msra.mxu0 0.0
        %4386 = vmatprep.subr.mxu0 0.0
        %4387 = vmatpush1.msra.mxu0 0.0
        %4388 = vmatprep.subr.mxu0 0.0
        %4389 = vmatpush1.msra.mxu0 0.0
        %4390 = vmatprep.mubr.f32.mxu0 0.0
        %4391 = vmatmul.mubr.f32.gmra.mrb[0].mxu0 %v4321
        %v4392 = vpop.f32.mrb[0].mxu0
        %v4393 = vadd.f32 0.0, %v4392
        %v4394 = vpop.f32.mrb[0].mxu0
        %v4395 = vadd.f32 0.0, %v4394
        %4396 = vmatprep.mubr.f32.mxu0 0.0
        %4397 = vmatmul.mubr.f32.gmra.mrb[0].mxu0 %v4324
        %v4398 = vpop.f32.mrb[0].mxu0
        %v4399 = vadd.f32 0.0, %v4398
        %v4400 = vpop.f32.mrb[0].mxu0
        %v4401 = vadd.f32 0.0, %v4400
        %4402 = vdwg.mxu0
        %4403 = vmatprep.subr.mxu0 %v4316
        %4404 = vmatpush1.msra.mxu0 %v4315
        %4405 = vmatprep.subr.mxu0 0.0
        %4406 = vmatpush1.msra.mxu0 0.0
        %4407 = vmatprep.subr.mxu0 0.0
        %4408 = vmatpush1.msra.mxu0 0.0
        %4409 = vmatprep.subr.mxu0 0.0
        %4410 = vmatpush1.msra.mxu0 0.0
        %4411 = vmatprep.subr.mxu0 0.0
        %4412 = vmatpush1.msra.mxu0 0.0
        %4413 = vmatprep.subr.mxu0 0.0
        %4414 = vmatpush1.msra.mxu0 0.0
        %4415 = vmatprep.subr.mxu0 0.0
        %4416 = vmatpush1.msra.mxu0 0.0
        %4417 = vmatprep.subr.mxu0 0.0
        %4418 = vmatpush1.msra.mxu0 0.0
        %4419 = vmatprep.subr.mxu0 0.0
        %4420 = vmatpush1.msra.mxu0 0.0
        %4421 = vmatprep.subr.mxu0 0.0
        %4422 = vmatpush1.msra.mxu0 0.0
        %4423 = vmatprep.subr.mxu0 0.0
        %4424 = vmatpush1.msra.mxu0 0.0
        %4425 = vmatprep.subr.mxu0 0.0
        %4426 = vmatpush1.msra.mxu0 0.0
        %4427 = vmatprep.subr.mxu0 0.0
        %4428 = vmatpush1.msra.mxu0 0.0
        %4429 = vmatprep.subr.mxu0 0.0
        %4430 = vmatpush1.msra.mxu0 0.0
        %4431 = vmatprep.subr.mxu0 0.0
        %4432 = vmatpush1.msra.mxu0 0.0
        %4433 = vmatprep.subr.mxu0 0.0
        %4434 = vmatpush1.msra.mxu0 0.0
        %4435 = vmatprep.subr.mxu0 0.0
        %4436 = vmatpush1.msra.mxu0 0.0
        %4437 = vmatprep.subr.mxu0 0.0
        %4438 = vmatpush1.msra.mxu0 0.0
        %4439 = vmatprep.subr.mxu0 0.0
        %4440 = vmatpush1.msra.mxu0 0.0
        %4441 = vmatprep.subr.mxu0 0.0
        %4442 = vmatpush1.msra.mxu0 0.0
        %4443 = vmatprep.subr.mxu0 0.0
        %4444 = vmatpush1.msra.mxu0 0.0
        %4445 = vmatprep.subr.mxu0 0.0
        %4446 = vmatpush1.msra.mxu0 0.0
        %4447 = vmatprep.subr.mxu0 0.0
        %4448 = vmatpush1.msra.mxu0 0.0
        %4449 = vmatprep.subr.mxu0 0.0
        %4450 = vmatpush1.msra.mxu0 0.0
        %4451 = vmatprep.subr.mxu0 0.0
        %4452 = vmatpush1.msra.mxu0 0.0
        %4453 = vmatprep.subr.mxu0 0.0
        %4454 = vmatpush1.msra.mxu0 0.0
        %4455 = vmatprep.subr.mxu0 0.0
        %4456 = vmatpush1.msra.mxu0 0.0
        %4457 = vmatprep.subr.mxu0 0.0
        %4458 = vmatpush1.msra.mxu0 0.0
        %4459 = vmatprep.subr.mxu0 0.0
        %4460 = vmatpush1.msra.mxu0 0.0
        %4461 = vmatprep.subr.mxu0 0.0
        %4462 = vmatpush1.msra.mxu0 0.0
        %4463 = vmatprep.subr.mxu0 0.0
        %4464 = vmatpush1.msra.mxu0 0.0
        %4465 = vmatprep.subr.mxu0 0.0
        %4466 = vmatpush1.msra.mxu0 0.0
        %4467 = vmatprep.mubr.f32.mxu0 0.0
        %4468 = vmatmul.mubr.f32.gmra.mrb[0].mxu0 %v4321
        %v4469 = vpop.f32.mrb[0].mxu0
        %v4470 = vadd.f32 0.0, %v4469
        %v4471 = vpop.f32.mrb[0].mxu0
        %v4472 = vadd.f32 0.0, %v4471
        %4473 = vmatprep.mubr.f32.mxu0 0.0
        %4474 = vmatmul.mubr.f32.gmra.mrb[0].mxu0 %v4324
        %v4475 = vpop.f32.mrb[0].mxu0
        %v4476 = vadd.f32 0.0, %v4475
        %v4477 = vpop.f32.mrb[0].mxu0
        %v4478 = vadd.f32 0.0, %v4477
        %4479 = vdwg.mxu0
        %v4480 = vadd.f32 %v4275, %v4393
        %v4481 = vadd.f32 %v4276, %v4395
        %v4482 = vadd.f32 %v4277, %v4470
        %v4483 = vadd.f32 %v4278, %v4472
        %v4484 = vadd.f32 %v4279, %v4399
        %v4485 = vadd.f32 %v4280, %v4401
        %v4486 = vadd.f32 %v4281, %v4476
        %v4487 = vadd.f32 %v4282, %v4478
        %v4488 = vld [vmem:[%s6] sm:$0xff]
        %v4489 = vld [vmem:[%s6 + $0x8] sm:$0xff]
        %4491 = vset.pattern.permute.xlu0 0
        %4492 = vperm.xlu0 %4491, %v4488
        %v4493 = vpop.permute.xlu0 %4492
        %4496 = vset.pattern.permute.xlu0 0
        %4497 = vperm.xlu0 %4496, %v4489
        %v4498 = vpop.permute.xlu0 %4497
        %v4500 = vadd.f32 %v4480, %v4493
        %v4501 = vadd.f32 %v4481, %v4493
        %v4502 = vadd.f32 %v4482, %v4493
        %v4503 = vadd.f32 %v4483, %v4493
        %v4504 = vadd.f32 %v4484, %v4498
        %v4505 = vadd.f32 %v4485, %v4498
        %v4506 = vadd.f32 %v4486, %v4498
        %v4507 = vadd.f32 %v4487, %v4498
        %v4508 = vmax.f32 %v4500, 0.0
        %v4509 = vmax.f32 %v4501, 0.0
        %v4510 = vmax.f32 %v4502, 0.0
        %v4511 = vmax.f32 %v4503, 0.0
        %v4512 = vmax.f32 %v4504, 0.0
        %v4513 = vmax.f32 %v4505, 0.0
        %v4514 = vmax.f32 %v4506, 0.0
        %v4515 = vmax.f32 %v4507, 0.0
        %4524 = vrot.lane.b32.xlu0 %v4508, 124
        %v4525 = vpop.permute.xlu0 %4524
        %4526 = vrot.lane.b32.xlu0 %v4509, 124
        %v4527 = vpop.permute.xlu0 %4526
        %4528 = vrot.lane.b32.xlu0 %v4510, 124
        %v4529 = vpop.permute.xlu0 %4528
        %4530 = vrot.lane.b32.xlu0 %v4511, 124
        %v4531 = vpop.permute.xlu0 %4530
        %4532 = vrot.lane.b32.xlu0 %v4512, 124
        %v4533 = vpop.permute.xlu0 %4532
        %4534 = vrot.lane.b32.xlu0 %v4513, 124
        %v4535 = vpop.permute.xlu0 %4534
        %4536 = vrot.lane.b32.xlu0 %v4514, 124
        %v4537 = vpop.permute.xlu0 %4536
        %4538 = vrot.lane.b32.xlu0 %v4515, 124
        %v4539 = vpop.permute.xlu0 %4538
        %v4540 = vsel %vm1988, %v4525, %v4527
        %v4541 = vsel %vm1988, %v4527, %v4529
        %v4542 = vsel %vm1988, %v4529, %v4531
        %v4543 = vsel %vm1988, %v4533, %v4535
        %v4544 = vsel %vm1988, %v4535, %v4537
        %v4545 = vsel %vm1988, %v4537, %v4539
        %v4556 = vsel %vm1988, %v4531, %v4525
        %v4557 = vsel %vm1988, %v4539, %v4533
        %v4558 = vmax.f32 %v4508, %v4540
        %v4559 = vmax.f32 %v4509, %v4541
        %v4560 = vmax.f32 %v4510, %v4542
        %v4561 = vmax.f32 %v4511, %v4556
        %v4562 = vmax.f32 %v4512, %v4543
        %v4563 = vmax.f32 %v4513, %v4544
        %v4564 = vmax.f32 %v4514, %v4545
        %v4565 = vmax.f32 %v4515, %v4557
        %4568 = vrot.lane.b32.xlu0 %v4561, 8
        %v4569 = vpop.permute.xlu0 %4568
        %4570 = vrot.lane.b32.xlu0 %v4565, 8
        %v4571 = vpop.permute.xlu0 %4570
        %4580 = vrot.lane.b32.xlu0 %v4558, 8
        %v4581 = vpop.permute.xlu0 %4580
        %4582 = vrot.lane.b32.xlu0 %v4559, 8
        %v4583 = vpop.permute.xlu0 %4582
        %4584 = vrot.lane.b32.xlu0 %v4560, 8
        %v4585 = vpop.permute.xlu0 %4584
        %4586 = vrot.lane.b32.xlu0 %v4562, 8
        %v4587 = vpop.permute.xlu0 %4586
        %4588 = vrot.lane.b32.xlu0 %v4563, 8
        %v4589 = vpop.permute.xlu0 %4588
        %4590 = vrot.lane.b32.xlu0 %v4564, 8
        %v4591 = vpop.permute.xlu0 %4590
        %v4592 = vsel %vm3553, %v4581, %v4583
        %v4593 = vsel %vm3553, %v4583, %v4585
        %v4594 = vsel %vm3553, %v4585, %v4569
        %v4595 = vsel %vm3553, %v4587, %v4589
        %v4596 = vsel %vm3553, %v4589, %v4591
        %v4597 = vsel %vm3553, %v4591, %v4571
        %v4606 = vsel %vm3553, %v4569, %v4581
        %v4607 = vsel %vm3553, %v4571, %v4587
        %v4608 = vsel %vm3566, %v4606, 0.0
        %v4609 = vsel %vm3567, %v4592, 0.0
        %v4610 = vsel %vm3568, %v4593, 0.0
        %v4611 = vsel %vm3569, %v4594, 0.0
        %v4612 = vsel %vm3566, %v4607, 0.0
        %v4613 = vsel %vm3567, %v4595, 0.0
        %v4614 = vsel %vm3568, %v4596, 0.0
        %v4615 = vsel %vm3569, %v4597, 0.0
        %v4616 = vld [vmem:[%s7] sm:$0xff]
        %v4617 = vld [vmem:[%s7 + $0x8] sm:$0xff]
        %v4618 = vld [vmem:[%s7 + $0x10] sm:$0xff]
        %v4619 = vld [vmem:[%s7 + $0x18] sm:$0xff]
        %s4620 = scalar_lea.vmem %s7, 32
        %v4621 = vld [vmem:[%s4620] sm:$0xff]
        %v4622 = vld [vmem:[%s4620 + $0x8] sm:$0xff]
        %v4623 = vld [vmem:[%s4620 + $0x10] sm:$0xff]
        %v4624 = vld [vmem:[%s4620 + $0x18] sm:$0xff]
        %vm4625 = vcmask 130048
        %v4627 = vsel %vm4625, %v4621, 0
        %v4630 = vsel %vm4625, %v4622, 0
        %v4633 = vsel %vm4625, %v4623, 0
        %v4636 = vsel %vm4625, %v4624, 0
        %4638 = vmatprep.subr.mxu0 %v4559
        %4639 = vmatpush1.msra.mxu0 %v4558
        %4640 = vmatprep.subr.mxu0 %v4563
        %4641 = vmatpush1.msra.mxu0 %v4562
        %4642 = vmatprep.subr.mxu0 0.0
        %4643 = vmatpush1.msra.mxu0 0.0
        %4644 = vmatprep.subr.mxu0 0.0
        %4645 = vmatpush1.msra.mxu0 0.0
        %4646 = vmatprep.subr.mxu0 0.0
        %4647 = vmatpush1.msra.mxu0 0.0
        %4648 = vmatprep.subr.mxu0 0.0
        %4649 = vmatpush1.msra.mxu0 0.0
        %4650 = vmatprep.subr.mxu0 0.0
        %4651 = vmatpush1.msra.mxu0 0.0
        %4652 = vmatprep.subr.mxu0 0.0
        %4653 = vmatpush1.msra.mxu0 0.0
        %4654 = vmatprep.subr.mxu0 0.0
        %4655 = vmatpush1.msra.mxu0 0.0
        %4656 = vmatprep.subr.mxu0 0.0
        %4657 = vmatpush1.msra.mxu0 0.0
        %4658 = vmatprep.subr.mxu0 0.0
        %4659 = vmatpush1.msra.mxu0 0.0
        %4660 = vmatprep.subr.mxu0 0.0
        %4661 = vmatpush1.msra.mxu0 0.0
        %4662 = vmatprep.subr.mxu0 0.0
        %4663 = vmatpush1.msra.mxu0 0.0
        %4664 = vmatprep.subr.mxu0 0.0
        %4665 = vmatpush1.msra.mxu0 0.0
        %4666 = vmatprep.subr.mxu0 0.0
        %4667 = vmatpush1.msra.mxu0 0.0
        %4668 = vmatprep.subr.mxu0 0.0
        %4669 = vmatpush1.msra.mxu0 0.0
        %4670 = vmatprep.subr.mxu0 0.0
        %4671 = vmatpush1.msra.mxu0 0.0
        %4672 = vmatprep.subr.mxu0 0.0
        %4673 = vmatpush1.msra.mxu0 0.0
        %4674 = vmatprep.subr.mxu0 0.0
        %4675 = vmatpush1.msra.mxu0 0.0
        %4676 = vmatprep.subr.mxu0 0.0
        %4677 = vmatpush1.msra.mxu0 0.0
        %4678 = vmatprep.subr.mxu0 0.0
        %4679 = vmatpush1.msra.mxu0 0.0
        %4680 = vmatprep.subr.mxu0 0.0
        %4681 = vmatpush1.msra.mxu0 0.0
        %4682 = vmatprep.subr.mxu0 0.0
        %4683 = vmatpush1.msra.mxu0 0.0
        %4684 = vmatprep.subr.mxu0 0.0
        %4685 = vmatpush1.msra.mxu0 0.0
        %4686 = vmatprep.subr.mxu0 0.0
        %4687 = vmatpush1.msra.mxu0 0.0
        %4688 = vmatprep.subr.mxu0 0.0
        %4689 = vmatpush1.msra.mxu0 0.0
        %4690 = vmatprep.subr.mxu0 0.0
        %4691 = vmatpush1.msra.mxu0 0.0
        %4692 = vmatprep.subr.mxu0 0.0
        %4693 = vmatpush1.msra.mxu0 0.0
        %4694 = vmatprep.subr.mxu0 0.0
        %4695 = vmatpush1.msra.mxu0 0.0
        %4696 = vmatprep.subr.mxu0 0.0
        %4697 = vmatpush1.msra.mxu0 0.0
        %4698 = vmatprep.subr.mxu0 0.0
        %4699 = vmatpush1.msra.mxu0 0.0
        %4700 = vmatprep.subr.mxu0 0.0
        %4701 = vmatpush1.msra.mxu0 0.0
        %4702 = vmatprep.mubr.f32.mxu0 0.0
        %4703 = vmatmul.mubr.f32.gmra.mrb[0].mxu0 %v4627
        %v4704 = vpop.f32.mrb[0].mxu0
        %v4705 = vadd.f32 0.0, %v4704
        %v4706 = vpop.f32.mrb[0].mxu0
        %v4707 = vadd.f32 0.0, %v4706
        %4708 = vmatprep.mubr.f32.mxu0 0.0
        %4709 = vmatmul.mubr.f32.gmra.mrb[0].mxu0 %v4630
        %v4710 = vpop.f32.mrb[0].mxu0
        %v4711 = vadd.f32 0.0, %v4710
        %v4712 = vpop.f32.mrb[0].mxu0
        %v4713 = vadd.f32 0.0, %v4712
        %4714 = vmatprep.mubr.f32.mxu0 0.0
        %4715 = vmatmul.mubr.f32.gmra.mrb[0].mxu0 %v4633
        %v4716 = vpop.f32.mrb[0].mxu0
        %v4717 = vadd.f32 0.0, %v4716
        %v4718 = vpop.f32.mrb[0].mxu0
        %v4719 = vadd.f32 0.0, %v4718
        %4720 = vmatprep.mubr.f32.mxu0 0.0
        %4721 = vmatmul.mubr.f32.gmra.mrb[0].mxu0 %v4636
        %v4722 = vpop.f32.mrb[0].mxu0
        %v4723 = vadd.f32 0.0, %v4722
        %v4724 = vpop.f32.mrb[0].mxu0
        %v4725 = vadd.f32 0.0, %v4724
        %4726 = vdwg.mxu0
        %4727 = vmatprep.subr.mxu0 %v4561
        %4728 = vmatpush1.msra.mxu0 %v4560
        %4729 = vmatprep.subr.mxu0 %v4565
        %4730 = vmatpush1.msra.mxu0 %v4564
        %4731 = vmatprep.subr.mxu0 0.0
        %4732 = vmatpush1.msra.mxu0 0.0
        %4733 = vmatprep.subr.mxu0 0.0
        %4734 = vmatpush1.msra.mxu0 0.0
        %4735 = vmatprep.subr.mxu0 0.0
        %4736 = vmatpush1.msra.mxu0 0.0
        %4737 = vmatprep.subr.mxu0 0.0
        %4738 = vmatpush1.msra.mxu0 0.0
        %4739 = vmatprep.subr.mxu0 0.0
        %4740 = vmatpush1.msra.mxu0 0.0
        %4741 = vmatprep.subr.mxu0 0.0
        %4742 = vmatpush1.msra.mxu0 0.0
        %4743 = vmatprep.subr.mxu0 0.0
        %4744 = vmatpush1.msra.mxu0 0.0
        %4745 = vmatprep.subr.mxu0 0.0
        %4746 = vmatpush1.msra.mxu0 0.0
        %4747 = vmatprep.subr.mxu0 0.0
        %4748 = vmatpush1.msra.mxu0 0.0
        %4749 = vmatprep.subr.mxu0 0.0
        %4750 = vmatpush1.msra.mxu0 0.0
        %4751 = vmatprep.subr.mxu0 0.0
        %4752 = vmatpush1.msra.mxu0 0.0
        %4753 = vmatprep.subr.mxu0 0.0
        %4754 = vmatpush1.msra.mxu0 0.0
        %4755 = vmatprep.subr.mxu0 0.0
        %4756 = vmatpush1.msra.mxu0 0.0
        %4757 = vmatprep.subr.mxu0 0.0
        %4758 = vmatpush1.msra.mxu0 0.0
        %4759 = vmatprep.subr.mxu0 0.0
        %4760 = vmatpush1.msra.mxu0 0.0
        %4761 = vmatprep.subr.mxu0 0.0
        %4762 = vmatpush1.msra.mxu0 0.0
        %4763 = vmatprep.subr.mxu0 0.0
        %4764 = vmatpush1.msra.mxu0 0.0
        %4765 = vmatprep.subr.mxu0 0.0
        %4766 = vmatpush1.msra.mxu0 0.0
        %4767 = vmatprep.subr.mxu0 0.0
        %4768 = vmatpush1.msra.mxu0 0.0
        %4769 = vmatprep.subr.mxu0 0.0
        %4770 = vmatpush1.msra.mxu0 0.0
        %4771 = vmatprep.subr.mxu0 0.0
        %4772 = vmatpush1.msra.mxu0 0.0
        %4773 = vmatprep.subr.mxu0 0.0
        %4774 = vmatpush1.msra.mxu0 0.0
        %4775 = vmatprep.subr.mxu0 0.0
        %4776 = vmatpush1.msra.mxu0 0.0
        %4777 = vmatprep.subr.mxu0 0.0
        %4778 = vmatpush1.msra.mxu0 0.0
        %4779 = vmatprep.subr.mxu0 0.0
        %4780 = vmatpush1.msra.mxu0 0.0
        %4781 = vmatprep.subr.mxu0 0.0
        %4782 = vmatpush1.msra.mxu0 0.0
        %4783 = vmatprep.subr.mxu0 0.0
        %4784 = vmatpush1.msra.mxu0 0.0
        %4785 = vmatprep.subr.mxu0 0.0
        %4786 = vmatpush1.msra.mxu0 0.0
        %4787 = vmatprep.subr.mxu0 0.0
        %4788 = vmatpush1.msra.mxu0 0.0
        %4789 = vmatprep.subr.mxu0 0.0
        %4790 = vmatpush1.msra.mxu0 0.0
        %4791 = vmatprep.mubr.f32.mxu0 0.0
        %4792 = vmatmul.mubr.f32.gmra.mrb[0].mxu0 %v4627
        %v4793 = vpop.f32.mrb[0].mxu0
        %v4794 = vadd.f32 0.0, %v4793
        %v4795 = vpop.f32.mrb[0].mxu0
        %v4796 = vadd.f32 0.0, %v4795
        %4797 = vmatprep.mubr.f32.mxu0 0.0
        %4798 = vmatmul.mubr.f32.gmra.mrb[0].mxu0 %v4630
        %v4799 = vpop.f32.mrb[0].mxu0
        %v4800 = vadd.f32 0.0, %v4799
        %v4801 = vpop.f32.mrb[0].mxu0
        %v4802 = vadd.f32 0.0, %v4801
        %4803 = vmatprep.mubr.f32.mxu0 0.0
        %4804 = vmatmul.mubr.f32.gmra.mrb[0].mxu0 %v4633
        %v4805 = vpop.f32.mrb[0].mxu0
        %v4806 = vadd.f32 0.0, %v4805
        %v4807 = vpop.f32.mrb[0].mxu0
        %v4808 = vadd.f32 0.0, %v4807
        %4809 = vmatprep.mubr.f32.mxu0 0.0
        %4810 = vmatmul.mubr.f32.gmra.mrb[0].mxu0 %v4636
        %v4811 = vpop.f32.mrb[0].mxu0
        %v4812 = vadd.f32 0.0, %v4811
        %v4813 = vpop.f32.mrb[0].mxu0
        %v4814 = vadd.f32 0.0, %v4813
        %4815 = vdwg.mxu0
        %v4817 = vsel %vm4625, %v4616, 0
        %v4820 = vsel %vm4625, %v4617, 0
        %v4823 = vsel %vm4625, %v4618, 0
        %v4826 = vsel %vm4625, %v4619, 0
        %4828 = vmatprep.subr.mxu0 %v4609
        %4829 = vmatpush1.msra.mxu0 %v4608
        %4830 = vmatprep.subr.mxu0 %v4613
        %4831 = vmatpush1.msra.mxu0 %v4612
        %4832 = vmatprep.subr.mxu0 0.0
        %4833 = vmatpush1.msra.mxu0 0.0
        %4834 = vmatprep.subr.mxu0 0.0
        %4835 = vmatpush1.msra.mxu0 0.0
        %4836 = vmatprep.subr.mxu0 0.0
        %4837 = vmatpush1.msra.mxu0 0.0
        %4838 = vmatprep.subr.mxu0 0.0
        %4839 = vmatpush1.msra.mxu0 0.0
        %4840 = vmatprep.subr.mxu0 0.0
        %4841 = vmatpush1.msra.mxu0 0.0
        %4842 = vmatprep.subr.mxu0 0.0
        %4843 = vmatpush1.msra.mxu0 0.0
        %4844 = vmatprep.subr.mxu0 0.0
        %4845 = vmatpush1.msra.mxu0 0.0
        %4846 = vmatprep.subr.mxu0 0.0
        %4847 = vmatpush1.msra.mxu0 0.0
        %4848 = vmatprep.subr.mxu0 0.0
        %4849 = vmatpush1.msra.mxu0 0.0
        %4850 = vmatprep.subr.mxu0 0.0
        %4851 = vmatpush1.msra.mxu0 0.0
        %4852 = vmatprep.subr.mxu0 0.0
        %4853 = vmatpush1.msra.mxu0 0.0
        %4854 = vmatprep.subr.mxu0 0.0
        %4855 = vmatpush1.msra.mxu0 0.0
        %4856 = vmatprep.subr.mxu0 0.0
        %4857 = vmatpush1.msra.mxu0 0.0
        %4858 = vmatprep.subr.mxu0 0.0
        %4859 = vmatpush1.msra.mxu0 0.0
        %4860 = vmatprep.subr.mxu0 0.0
        %4861 = vmatpush1.msra.mxu0 0.0
        %4862 = vmatprep.subr.mxu0 0.0
        %4863 = vmatpush1.msra.mxu0 0.0
        %4864 = vmatprep.subr.mxu0 0.0
        %4865 = vmatpush1.msra.mxu0 0.0
        %4866 = vmatprep.subr.mxu0 0.0
        %4867 = vmatpush1.msra.mxu0 0.0
        %4868 = vmatprep.subr.mxu0 0.0
        %4869 = vmatpush1.msra.mxu0 0.0
        %4870 = vmatprep.subr.mxu0 0.0
        %4871 = vmatpush1.msra.mxu0 0.0
        %4872 = vmatprep.subr.mxu0 0.0
        %4873 = vmatpush1.msra.mxu0 0.0
        %4874 = vmatprep.subr.mxu0 0.0
        %4875 = vmatpush1.msra.mxu0 0.0
        %4876 = vmatprep.subr.mxu0 0.0
        %4877 = vmatpush1.msra.mxu0 0.0
        %4878 = vmatprep.subr.mxu0 0.0
        %4879 = vmatpush1.msra.mxu0 0.0
        %4880 = vmatprep.subr.mxu0 0.0
        %4881 = vmatpush1.msra.mxu0 0.0
        %4882 = vmatprep.subr.mxu0 0.0
        %4883 = vmatpush1.msra.mxu0 0.0
        %4884 = vmatprep.subr.mxu0 0.0
        %4885 = vmatpush1.msra.mxu0 0.0
        %4886 = vmatprep.subr.mxu0 0.0
        %4887 = vmatpush1.msra.mxu0 0.0
        %4888 = vmatprep.subr.mxu0 0.0
        %4889 = vmatpush1.msra.mxu0 0.0
        %4890 = vmatprep.subr.mxu0 0.0
        %4891 = vmatpush1.msra.mxu0 0.0
        %4892 = vmatprep.mubr.f32.mxu0 0.0
        %4893 = vmatmul.mubr.f32.gmra.mrb[0].mxu0 %v4817
        %v4894 = vpop.f32.mrb[0].mxu0
        %v4895 = vadd.f32 %v4705, %v4894
        %v4896 = vpop.f32.mrb[0].mxu0
        %v4897 = vadd.f32 %v4707, %v4896
        %4898 = vmatprep.mubr.f32.mxu0 0.0
        %4899 = vmatmul.mubr.f32.gmra.mrb[0].mxu0 %v4820
        %v4900 = vpop.f32.mrb[0].mxu0
        %v4901 = vadd.f32 %v4711, %v4900
        %v4902 = vpop.f32.mrb[0].mxu0
        %v4903 = vadd.f32 %v4713, %v4902
        %4904 = vmatprep.mubr.f32.mxu0 0.0
        %4905 = vmatmul.mubr.f32.gmra.mrb[0].mxu0 %v4823
        %v4906 = vpop.f32.mrb[0].mxu0
        %v4907 = vadd.f32 %v4717, %v4906
        %v4908 = vpop.f32.mrb[0].mxu0
        %v4909 = vadd.f32 %v4719, %v4908
        %4910 = vmatprep.mubr.f32.mxu0 0.0
        %4911 = vmatmul.mubr.f32.gmra.mrb[0].mxu0 %v4826
        %v4912 = vpop.f32.mrb[0].mxu0
        %v4913 = vadd.f32 %v4723, %v4912
        %v4914 = vpop.f32.mrb[0].mxu0
        %v4915 = vadd.f32 %v4725, %v4914
        %4916 = vdwg.mxu0
        %4917 = vmatprep.subr.mxu0 %v4611
        %4918 = vmatpush1.msra.mxu0 %v4610
        %4919 = vmatprep.subr.mxu0 %v4615
        %4920 = vmatpush1.msra.mxu0 %v4614
        %4921 = vmatprep.subr.mxu0 0.0
        %4922 = vmatpush1.msra.mxu0 0.0
        %4923 = vmatprep.subr.mxu0 0.0
        %4924 = vmatpush1.msra.mxu0 0.0
        %4925 = vmatprep.subr.mxu0 0.0
        %4926 = vmatpush1.msra.mxu0 0.0
        %4927 = vmatprep.subr.mxu0 0.0
        %4928 = vmatpush1.msra.mxu0 0.0
        %4929 = vmatprep.subr.mxu0 0.0
        %4930 = vmatpush1.msra.mxu0 0.0
        %4931 = vmatprep.subr.mxu0 0.0
        %4932 = vmatpush1.msra.mxu0 0.0
        %4933 = vmatprep.subr.mxu0 0.0
        %4934 = vmatpush1.msra.mxu0 0.0
        %4935 = vmatprep.subr.mxu0 0.0
        %4936 = vmatpush1.msra.mxu0 0.0
        %4937 = vmatprep.subr.mxu0 0.0
        %4938 = vmatpush1.msra.mxu0 0.0
        %4939 = vmatprep.subr.mxu0 0.0
        %4940 = vmatpush1.msra.mxu0 0.0
        %4941 = vmatprep.subr.mxu0 0.0
        %4942 = vmatpush1.msra.mxu0 0.0
        %4943 = vmatprep.subr.mxu0 0.0
        %4944 = vmatpush1.msra.mxu0 0.0
        %4945 = vmatprep.subr.mxu0 0.0
        %4946 = vmatpush1.msra.mxu0 0.0
        %4947 = vmatprep.subr.mxu0 0.0
        %4948 = vmatpush1.msra.mxu0 0.0
        %4949 = vmatprep.subr.mxu0 0.0
        %4950 = vmatpush1.msra.mxu0 0.0
        %4951 = vmatprep.subr.mxu0 0.0
        %4952 = vmatpush1.msra.mxu0 0.0
        %4953 = vmatprep.subr.mxu0 0.0
        %4954 = vmatpush1.msra.mxu0 0.0
        %4955 = vmatprep.subr.mxu0 0.0
        %4956 = vmatpush1.msra.mxu0 0.0
        %4957 = vmatprep.subr.mxu0 0.0
        %4958 = vmatpush1.msra.mxu0 0.0
        %4959 = vmatprep.subr.mxu0 0.0
        %4960 = vmatpush1.msra.mxu0 0.0
        %4961 = vmatprep.subr.mxu0 0.0
        %4962 = vmatpush1.msra.mxu0 0.0
        %4963 = vmatprep.subr.mxu0 0.0
        %4964 = vmatpush1.msra.mxu0 0.0
        %4965 = vmatprep.subr.mxu0 0.0
        %4966 = vmatpush1.msra.mxu0 0.0
        %4967 = vmatprep.subr.mxu0 0.0
        %4968 = vmatpush1.msra.mxu0 0.0
        %4969 = vmatprep.subr.mxu0 0.0
        %4970 = vmatpush1.msra.mxu0 0.0
        %4971 = vmatprep.subr.mxu0 0.0
        %4972 = vmatpush1.msra.mxu0 0.0
        %4973 = vmatprep.subr.mxu0 0.0
        %4974 = vmatpush1.msra.mxu0 0.0
        %4975 = vmatprep.subr.mxu0 0.0
        %4976 = vmatpush1.msra.mxu0 0.0
        %4977 = vmatprep.subr.mxu0 0.0
        %4978 = vmatpush1.msra.mxu0 0.0
        %4979 = vmatprep.subr.mxu0 0.0
        %4980 = vmatpush1.msra.mxu0 0.0
        %4981 = vmatprep.mubr.f32.mxu0 0.0
        %4982 = vmatmul.mubr.f32.gmra.mrb[0].mxu0 %v4817
        %v4983 = vpop.f32.mrb[0].mxu0
        %v4984 = vadd.f32 %v4794, %v4983
        %v4985 = vpop.f32.mrb[0].mxu0
        %v4986 = vadd.f32 %v4796, %v4985
        %4987 = vmatprep.mubr.f32.mxu0 0.0
        %4988 = vmatmul.mubr.f32.gmra.mrb[0].mxu0 %v4820
        %v4989 = vpop.f32.mrb[0].mxu0
        %v4990 = vadd.f32 %v4800, %v4989
        %v4991 = vpop.f32.mrb[0].mxu0
        %v4992 = vadd.f32 %v4802, %v4991
        %4993 = vmatprep.mubr.f32.mxu0 0.0
        %4994 = vmatmul.mubr.f32.gmra.mrb[0].mxu0 %v4823
        %v4995 = vpop.f32.mrb[0].mxu0
        %v4996 = vadd.f32 %v4806, %v4995
        %v4997 = vpop.f32.mrb[0].mxu0
        %v4998 = vadd.f32 %v4808, %v4997
        %4999 = vmatprep.mubr.f32.mxu0 0.0
        %5000 = vmatmul.mubr.f32.gmra.mrb[0].mxu0 %v4826
        %v5001 = vpop.f32.mrb[0].mxu0
        %v5002 = vadd.f32 %v4812, %v5001
        %v5003 = vpop.f32.mrb[0].mxu0
        %v5004 = vadd.f32 %v4814, %v5003
        %5005 = vdwg.mxu0
        %5006 = vrot.lane.b32.xlu0 %v4558, 120
        %v5007 = vpop.permute.xlu0 %5006
        %5008 = vrot.lane.b32.xlu0 %v4559, 120
        %v5009 = vpop.permute.xlu0 %5008
        %5010 = vrot.lane.b32.xlu0 %v4560, 120
        %v5011 = vpop.permute.xlu0 %5010
        %5012 = vrot.lane.b32.xlu0 %v4561, 120
        %v5013 = vpop.permute.xlu0 %5012
        %5014 = vrot.lane.b32.xlu0 %v4562, 120
        %v5015 = vpop.permute.xlu0 %5014
        %5016 = vrot.lane.b32.xlu0 %v4563, 120
        %v5017 = vpop.permute.xlu0 %5016
        %5018 = vrot.lane.b32.xlu0 %v4564, 120
        %v5019 = vpop.permute.xlu0 %5018
        %5020 = vrot.lane.b32.xlu0 %v4565, 120
        %v5021 = vpop.permute.xlu0 %5020
        %v5022 = vsel %vm4295, %v5007, %v5009
        %v5023 = vsel %vm4295, %v5009, %v5011
        %v5024 = vsel %vm4295, %v5011, %v5013
        %v5025 = vsel %vm4295, %v5015, %v5017
        %v5026 = vsel %vm4295, %v5017, %v5019
        %v5027 = vsel %vm4295, %v5019, %v5021
        %v5038 = vsel %vm4295, %v5013, %v5007
        %v5039 = vsel %vm4295, %v5021, %v5015
        %v5040 = vsel %vm4309, %v5022, 0.0
        %v5041 = vsel %vm4310, %v5023, 0.0
        %v5042 = vsel %vm4311, %v5024, 0.0
        %v5043 = vsel %vm4312, %v5038, 0.0
        %v5044 = vsel %vm4309, %v5025, 0.0
        %v5045 = vsel %vm4310, %v5026, 0.0
        %v5046 = vsel %vm4311, %v5027, 0.0
        %v5047 = vsel %vm4312, %v5039, 0.0
        %s5048 = scalar_lea.vmem %s7, 64
        %v5049 = vld [vmem:[%s5048] sm:$0xff]
        %v5050 = vld [vmem:[%s5048 + $0x8] sm:$0xff]
        %v5051 = vld [vmem:[%s5048 + $0x10] sm:$0xff]
        %v5052 = vld [vmem:[%s5048 + $0x18] sm:$0xff]
        %v5054 = vsel %vm4625, %v5049, 0
        %v5057 = vsel %vm4625, %v5050, 0
        %v5060 = vsel %vm4625, %v5051, 0
        %v5063 = vsel %vm4625, %v5052, 0
        %5065 = vmatprep.subr.mxu0 %v5041
        %5066 = vmatpush1.msra.mxu0 %v5040
        %5067 = vmatprep.subr.mxu0 %v5045
        %5068 = vmatpush1.msra.mxu0 %v5044
        %5069 = vmatprep.subr.mxu0 0.0
        %5070 = vmatpush1.msra.mxu0 0.0
        %5071 = vmatprep.subr.mxu0 0.0
        %5072 = vmatpush1.msra.mxu0 0.0
        %5073 = vmatprep.subr.mxu0 0.0
        %5074 = vmatpush1.msra.mxu0 0.0
        %5075 = vmatprep.subr.mxu0 0.0
        %5076 = vmatpush1.msra.mxu0 0.0
        %5077 = vmatprep.subr.mxu0 0.0
        %5078 = vmatpush1.msra.mxu0 0.0
        %5079 = vmatprep.subr.mxu0 0.0
        %5080 = vmatpush1.msra.mxu0 0.0
        %5081 = vmatprep.subr.mxu0 0.0
        %5082 = vmatpush1.msra.mxu0 0.0
        %5083 = vmatprep.subr.mxu0 0.0
        %5084 = vmatpush1.msra.mxu0 0.0
        %5085 = vmatprep.subr.mxu0 0.0
        %5086 = vmatpush1.msra.mxu0 0.0
        %5087 = vmatprep.subr.mxu0 0.0
        %5088 = vmatpush1.msra.mxu0 0.0
        %5089 = vmatprep.subr.mxu0 0.0
        %5090 = vmatpush1.msra.mxu0 0.0
        %5091 = vmatprep.subr.mxu0 0.0
        %5092 = vmatpush1.msra.mxu0 0.0
        %5093 = vmatprep.subr.mxu0 0.0
        %5094 = vmatpush1.msra.mxu0 0.0
        %5095 = vmatprep.subr.mxu0 0.0
        %5096 = vmatpush1.msra.mxu0 0.0
        %5097 = vmatprep.subr.mxu0 0.0
        %5098 = vmatpush1.msra.mxu0 0.0
        %5099 = vmatprep.subr.mxu0 0.0
        %5100 = vmatpush1.msra.mxu0 0.0
        %5101 = vmatprep.subr.mxu0 0.0
        %5102 = vmatpush1.msra.mxu0 0.0
        %5103 = vmatprep.subr.mxu0 0.0
        %5104 = vmatpush1.msra.mxu0 0.0
        %5105 = vmatprep.subr.mxu0 0.0
        %5106 = vmatpush1.msra.mxu0 0.0
        %5107 = vmatprep.subr.mxu0 0.0
        %5108 = vmatpush1.msra.mxu0 0.0
        %5109 = vmatprep.subr.mxu0 0.0
        %5110 = vmatpush1.msra.mxu0 0.0
        %5111 = vmatprep.subr.mxu0 0.0
        %5112 = vmatpush1.msra.mxu0 0.0
        %5113 = vmatprep.subr.mxu0 0.0
        %5114 = vmatpush1.msra.mxu0 0.0
        %5115 = vmatprep.subr.mxu0 0.0
        %5116 = vmatpush1.msra.mxu0 0.0
        %5117 = vmatprep.subr.mxu0 0.0
        %5118 = vmatpush1.msra.mxu0 0.0
        %5119 = vmatprep.subr.mxu0 0.0
        %5120 = vmatpush1.msra.mxu0 0.0
        %5121 = vmatprep.subr.mxu0 0.0
        %5122 = vmatpush1.msra.mxu0 0.0
        %5123 = vmatprep.subr.mxu0 0.0
        %5124 = vmatpush1.msra.mxu0 0.0
        %5125 = vmatprep.subr.mxu0 0.0
        %5126 = vmatpush1.msra.mxu0 0.0
        %5127 = vmatprep.subr.mxu0 0.0
        %5128 = vmatpush1.msra.mxu0 0.0
        %5129 = vmatprep.mubr.f32.mxu0 0.0
        %5130 = vmatmul.mubr.f32.gmra.mrb[0].mxu0 %v5054
        %v5131 = vpop.f32.mrb[0].mxu0
        %v5132 = vadd.f32 0.0, %v5131
        %v5133 = vpop.f32.mrb[0].mxu0
        %v5134 = vadd.f32 0.0, %v5133
        %5135 = vmatprep.mubr.f32.mxu0 0.0
        %5136 = vmatmul.mubr.f32.gmra.mrb[0].mxu0 %v5057
        %v5137 = vpop.f32.mrb[0].mxu0
        %v5138 = vadd.f32 0.0, %v5137
        %v5139 = vpop.f32.mrb[0].mxu0
        %v5140 = vadd.f32 0.0, %v5139
        %5141 = vmatprep.mubr.f32.mxu0 0.0
        %5142 = vmatmul.mubr.f32.gmra.mrb[0].mxu0 %v5060
        %v5143 = vpop.f32.mrb[0].mxu0
        %v5144 = vadd.f32 0.0, %v5143
        %v5145 = vpop.f32.mrb[0].mxu0
        %v5146 = vadd.f32 0.0, %v5145
        %5147 = vmatprep.mubr.f32.mxu0 0.0
        %5148 = vmatmul.mubr.f32.gmra.mrb[0].mxu0 %v5063
        %v5149 = vpop.f32.mrb[0].mxu0
        %v5150 = vadd.f32 0.0, %v5149
        %v5151 = vpop.f32.mrb[0].mxu0
        %v5152 = vadd.f32 0.0, %v5151
        %5153 = vdwg.mxu0
        %5154 = vmatprep.subr.mxu0 %v5043
        %5155 = vmatpush1.msra.mxu0 %v5042
        %5156 = vmatprep.subr.mxu0 %v5047
        %5157 = vmatpush1.msra.mxu0 %v5046
        %5158 = vmatprep.subr.mxu0 0.0
        %5159 = vmatpush1.msra.mxu0 0.0
        %5160 = vmatprep.subr.mxu0 0.0
        %5161 = vmatpush1.msra.mxu0 0.0
        %5162 = vmatprep.subr.mxu0 0.0
        %5163 = vmatpush1.msra.mxu0 0.0
        %5164 = vmatprep.subr.mxu0 0.0
        %5165 = vmatpush1.msra.mxu0 0.0
        %5166 = vmatprep.subr.mxu0 0.0
        %5167 = vmatpush1.msra.mxu0 0.0
        %5168 = vmatprep.subr.mxu0 0.0
        %5169 = vmatpush1.msra.mxu0 0.0
        %5170 = vmatprep.subr.mxu0 0.0
        %5171 = vmatpush1.msra.mxu0 0.0
        %5172 = vmatprep.subr.mxu0 0.0
        %5173 = vmatpush1.msra.mxu0 0.0
        %5174 = vmatprep.subr.mxu0 0.0
        %5175 = vmatpush1.msra.mxu0 0.0
        %5176 = vmatprep.subr.mxu0 0.0
        %5177 = vmatpush1.msra.mxu0 0.0
        %5178 = vmatprep.subr.mxu0 0.0
        %5179 = vmatpush1.msra.mxu0 0.0
        %5180 = vmatprep.subr.mxu0 0.0
        %5181 = vmatpush1.msra.mxu0 0.0
        %5182 = vmatprep.subr.mxu0 0.0
        %5183 = vmatpush1.msra.mxu0 0.0
        %5184 = vmatprep.subr.mxu0 0.0
        %5185 = vmatpush1.msra.mxu0 0.0
        %5186 = vmatprep.subr.mxu0 0.0
        %5187 = vmatpush1.msra.mxu0 0.0
        %5188 = vmatprep.subr.mxu0 0.0
        %5189 = vmatpush1.msra.mxu0 0.0
        %5190 = vmatprep.subr.mxu0 0.0
        %5191 = vmatpush1.msra.mxu0 0.0
        %5192 = vmatprep.subr.mxu0 0.0
        %5193 = vmatpush1.msra.mxu0 0.0
        %5194 = vmatprep.subr.mxu0 0.0
        %5195 = vmatpush1.msra.mxu0 0.0
        %5196 = vmatprep.subr.mxu0 0.0
        %5197 = vmatpush1.msra.mxu0 0.0
        %5198 = vmatprep.subr.mxu0 0.0
        %5199 = vmatpush1.msra.mxu0 0.0
        %5200 = vmatprep.subr.mxu0 0.0
        %5201 = vmatpush1.msra.mxu0 0.0
        %5202 = vmatprep.subr.mxu0 0.0
        %5203 = vmatpush1.msra.mxu0 0.0
        %5204 = vmatprep.subr.mxu0 0.0
        %5205 = vmatpush1.msra.mxu0 0.0
        %5206 = vmatprep.subr.mxu0 0.0
        %5207 = vmatpush1.msra.mxu0 0.0
        %5208 = vmatprep.subr.mxu0 0.0
        %5209 = vmatpush1.msra.mxu0 0.0
        %5210 = vmatprep.subr.mxu0 0.0
        %5211 = vmatpush1.msra.mxu0 0.0
        %5212 = vmatprep.subr.mxu0 0.0
        %5213 = vmatpush1.msra.mxu0 0.0
        %5214 = vmatprep.subr.mxu0 0.0
        %5215 = vmatpush1.msra.mxu0 0.0
        %5216 = vmatprep.subr.mxu0 0.0
        %5217 = vmatpush1.msra.mxu0 0.0
        %5218 = vmatprep.mubr.f32.mxu0 0.0
        %5219 = vmatmul.mubr.f32.gmra.mrb[0].mxu0 %v5054
        %v5220 = vpop.f32.mrb[0].mxu0
        %v5221 = vadd.f32 0.0, %v5220
        %v5222 = vpop.f32.mrb[0].mxu0
        %v5223 = vadd.f32 0.0, %v5222
        %5224 = vmatprep.mubr.f32.mxu0 0.0
        %5225 = vmatmul.mubr.f32.gmra.mrb[0].mxu0 %v5057
        %v5226 = vpop.f32.mrb[0].mxu0
        %v5227 = vadd.f32 0.0, %v5226
        %v5228 = vpop.f32.mrb[0].mxu0
        %v5229 = vadd.f32 0.0, %v5228
        %5230 = vmatprep.mubr.f32.mxu0 0.0
        %5231 = vmatmul.mubr.f32.gmra.mrb[0].mxu0 %v5060
        %v5232 = vpop.f32.mrb[0].mxu0
        %v5233 = vadd.f32 0.0, %v5232
        %v5234 = vpop.f32.mrb[0].mxu0
        %v5235 = vadd.f32 0.0, %v5234
        %5236 = vmatprep.mubr.f32.mxu0 0.0
        %5237 = vmatmul.mubr.f32.gmra.mrb[0].mxu0 %v5063
        %v5238 = vpop.f32.mrb[0].mxu0
        %v5239 = vadd.f32 0.0, %v5238
        %v5240 = vpop.f32.mrb[0].mxu0
        %v5241 = vadd.f32 0.0, %v5240
        %5242 = vdwg.mxu0
        %v5243 = vadd.f32 %v4895, %v5132
        %v5244 = vadd.f32 %v4897, %v5134
        %v5245 = vadd.f32 %v4984, %v5221
        %v5246 = vadd.f32 %v4986, %v5223
        %v5247 = vadd.f32 %v4901, %v5138
        %v5248 = vadd.f32 %v4903, %v5140
        %v5249 = vadd.f32 %v4990, %v5227
        %v5250 = vadd.f32 %v4992, %v5229
        %v5251 = vadd.f32 %v4907, %v5144
        %v5252 = vadd.f32 %v4909, %v5146
        %v5253 = vadd.f32 %v4996, %v5233
        %v5254 = vadd.f32 %v4998, %v5235
        %v5255 = vadd.f32 %v4913, %v5150
        %v5256 = vadd.f32 %v4915, %v5152
        %v5257 = vadd.f32 %v5002, %v5239
        %v5258 = vadd.f32 %v5004, %v5241
        %v5259 = vld [vmem:[%s8] sm:$0xff]
        %v5260 = vld [vmem:[%s8 + $0x8] sm:$0xff]
        %v5261 = vld [vmem:[%s8 + $0x10] sm:$0xff]
        %v5262 = vld [vmem:[%s8 + $0x18] sm:$0xff]
        %5264 = vset.pattern.permute.xlu0 0
        %5265 = vperm.xlu0 %5264, %v5259
        %v5266 = vpop.permute.xlu0 %5265
        %5269 = vset.pattern.permute.xlu0 0
        %5270 = vperm.xlu0 %5269, %v5260
        %v5271 = vpop.permute.xlu0 %5270
        %5274 = vset.pattern.permute.xlu0 0
        %5275 = vperm.xlu0 %5274, %v5261
        %v5276 = vpop.permute.xlu0 %5275
        %5279 = vset.pattern.permute.xlu0 0
        %5280 = vperm.xlu0 %5279, %v5262
        %v5281 = vpop.permute.xlu0 %5280
        %v5283 = vadd.f32 %v5243, %v5266
        %v5284 = vadd.f32 %v5244, %v5266
        %v5285 = vadd.f32 %v5245, %v5266
        %v5286 = vadd.f32 %v5246, %v5266
        %v5287 = vadd.f32 %v5247, %v5271
        %v5288 = vadd.f32 %v5248, %v5271
        %v5289 = vadd.f32 %v5249, %v5271
        %v5290 = vadd.f32 %v5250, %v5271
        %v5291 = vadd.f32 %v5251, %v5276
        %v5292 = vadd.f32 %v5252, %v5276
        %v5293 = vadd.f32 %v5253, %v5276
        %v5294 = vadd.f32 %v5254, %v5276
        %v5295 = vadd.f32 %v5255, %v5281
        %v5296 = vadd.f32 %v5256, %v5281
        %v5297 = vadd.f32 %v5257, %v5281
        %v5298 = vadd.f32 %v5258, %v5281
        %v5299 = vmax.f32 %v5283, 0.0
        %v5300 = vmax.f32 %v5284, 0.0
        %v5301 = vmax.f32 %v5285, 0.0
        %v5302 = vmax.f32 %v5286, 0.0
        %v5303 = vmax.f32 %v5287, 0.0
        %v5304 = vmax.f32 %v5288, 0.0
        %v5305 = vmax.f32 %v5289, 0.0
        %v5306 = vmax.f32 %v5290, 0.0
        %v5307 = vmax.f32 %v5291, 0.0
        %v5308 = vmax.f32 %v5292, 0.0
        %v5309 = vmax.f32 %v5293, 0.0
        %v5310 = vmax.f32 %v5294, 0.0
        %v5311 = vmax.f32 %v5295, 0.0
        %v5312 = vmax.f32 %v5296, 0.0
        %v5313 = vmax.f32 %v5297, 0.0
        %v5314 = vmax.f32 %v5298, 0.0
        %5331 = vrot.lane.b32.xlu0 %v5299, 120
        %v5332 = vpop.permute.xlu0 %5331
        %5333 = vrot.lane.b32.xlu0 %v5300, 120
        %v5334 = vpop.permute.xlu0 %5333
        %5335 = vrot.lane.b32.xlu0 %v5301, 120
        %v5336 = vpop.permute.xlu0 %5335
        %5337 = vrot.lane.b32.xlu0 %v5302, 120
        %v5338 = vpop.permute.xlu0 %5337
        %5339 = vrot.lane.b32.xlu0 %v5303, 120
        %v5340 = vpop.permute.xlu0 %5339
        %5341 = vrot.lane.b32.xlu0 %v5304, 120
        %v5342 = vpop.permute.xlu0 %5341
        %5343 = vrot.lane.b32.xlu0 %v5305, 120
        %v5344 = vpop.permute.xlu0 %5343
        %5345 = vrot.lane.b32.xlu0 %v5306, 120
        %v5346 = vpop.permute.xlu0 %5345
        %5347 = vrot.lane.b32.xlu0 %v5307, 120
        %v5348 = vpop.permute.xlu0 %5347
        %5349 = vrot.lane.b32.xlu0 %v5308, 120
        %v5350 = vpop.permute.xlu0 %5349
        %5351 = vrot.lane.b32.xlu0 %v5309, 120
        %v5352 = vpop.permute.xlu0 %5351
        %5353 = vrot.lane.b32.xlu0 %v5310, 120
        %v5354 = vpop.permute.xlu0 %5353
        %5355 = vrot.lane.b32.xlu0 %v5311, 120
        %v5356 = vpop.permute.xlu0 %5355
        %5357 = vrot.lane.b32.xlu0 %v5312, 120
        %v5358 = vpop.permute.xlu0 %5357
        %5359 = vrot.lane.b32.xlu0 %v5313, 120
        %v5360 = vpop.permute.xlu0 %5359
        %5361 = vrot.lane.b32.xlu0 %v5314, 120
        %v5362 = vpop.permute.xlu0 %5361
        %v5363 = vsel %vm4295, %v5332, %v5334
        %v5364 = vsel %vm4295, %v5334, %v5336
        %v5365 = vsel %vm4295, %v5336, %v5338
        %v5366 = vsel %vm4295, %v5340, %v5342
        %v5367 = vsel %vm4295, %v5342, %v5344
        %v5368 = vsel %vm4295, %v5344, %v5346
        %v5369 = vsel %vm4295, %v5348, %v5350
        %v5370 = vsel %vm4295, %v5350, %v5352
        %v5371 = vsel %vm4295, %v5352, %v5354
        %v5372 = vsel %vm4295, %v5356, %v5358
        %v5373 = vsel %vm4295, %v5358, %v5360
        %v5374 = vsel %vm4295, %v5360, %v5362
        %v5395 = vsel %vm4295, %v5338, %v5332
        %v5396 = vsel %vm4295, %v5346, %v5340
        %v5397 = vsel %vm4295, %v5354, %v5348
        %v5398 = vsel %vm4295, %v5362, %v5356
        %v5399 = vmax.f32 %v5299, %v5363
        %v5400 = vmax.f32 %v5300, %v5364
        %v5401 = vmax.f32 %v5301, %v5365
        %v5402 = vmax.f32 %v5302, %v5395
        %v5403 = vmax.f32 %v5303, %v5366
        %v5404 = vmax.f32 %v5304, %v5367
        %v5405 = vmax.f32 %v5305, %v5368
        %v5406 = vmax.f32 %v5306, %v5396
        %v5407 = vmax.f32 %v5307, %v5369
        %v5408 = vmax.f32 %v5308, %v5370
        %v5409 = vmax.f32 %v5309, %v5371
        %v5410 = vmax.f32 %v5310, %v5397
        %v5411 = vmax.f32 %v5311, %v5372
        %v5412 = vmax.f32 %v5312, %v5373
        %v5413 = vmax.f32 %v5313, %v5374
        %v5414 = vmax.f32 %v5314, %v5398
        %5431 = vrot.lane.b32.xlu0 %v5399, 112
        %v5432 = vpop.permute.xlu0 %5431
        %5433 = vrot.lane.b32.xlu0 %v5400, 112
        %v5434 = vpop.permute.xlu0 %5433
        %5435 = vrot.lane.b32.xlu0 %v5401, 112
        %v5436 = vpop.permute.xlu0 %5435
        %5437 = vrot.lane.b32.xlu0 %v5402, 112
        %v5438 = vpop.permute.xlu0 %5437
        %5439 = vrot.lane.b32.xlu0 %v5403, 112
        %v5440 = vpop.permute.xlu0 %5439
        %5441 = vrot.lane.b32.xlu0 %v5404, 112
        %v5442 = vpop.permute.xlu0 %5441
        %5443 = vrot.lane.b32.xlu0 %v5405, 112
        %v5444 = vpop.permute.xlu0 %5443
        %5445 = vrot.lane.b32.xlu0 %v5406, 112
        %v5446 = vpop.permute.xlu0 %5445
        %5447 = vrot.lane.b32.xlu0 %v5407, 112
        %v5448 = vpop.permute.xlu0 %5447
        %5449 = vrot.lane.b32.xlu0 %v5408, 112
        %v5450 = vpop.permute.xlu0 %5449
        %5451 = vrot.lane.b32.xlu0 %v5409, 112
        %v5452 = vpop.permute.xlu0 %5451
        %5453 = vrot.lane.b32.xlu0 %v5410, 112
        %v5454 = vpop.permute.xlu0 %5453
        %5455 = vrot.lane.b32.xlu0 %v5411, 112
        %v5456 = vpop.permute.xlu0 %5455
        %5457 = vrot.lane.b32.xlu0 %v5412, 112
        %v5458 = vpop.permute.xlu0 %5457
        %5459 = vrot.lane.b32.xlu0 %v5413, 112
        %v5460 = vpop.permute.xlu0 %5459
        %5461 = vrot.lane.b32.xlu0 %v5414, 112
        %v5462 = vpop.permute.xlu0 %5461
        %vm5463 = vcmask 916480
        %v5464 = vsel %vm5463, %v5432, %v5434
        %v5465 = vsel %vm5463, %v5434, %v5436
        %v5466 = vsel %vm5463, %v5436, %v5438
        %v5467 = vsel %vm5463, %v5440, %v5442
        %v5468 = vsel %vm5463, %v5442, %v5444
        %v5469 = vsel %vm5463, %v5444, %v5446
        %v5470 = vsel %vm5463, %v5448, %v5450
        %v5471 = vsel %vm5463, %v5450, %v5452
        %v5472 = vsel %vm5463, %v5452, %v5454
        %v5473 = vsel %vm5463, %v5456, %v5458
        %v5474 = vsel %vm5463, %v5458, %v5460
        %v5475 = vsel %vm5463, %v5460, %v5462
        %v5496 = vsel %vm5463, %v5438, %v5432
        %v5497 = vsel %vm5463, %v5446, %v5440
        %v5498 = vsel %vm5463, %v5454, %v5448
        %v5499 = vsel %vm5463, %v5462, %v5456
        %5500 = vrot.lane.b32.xlu0 %v5399, 96
        %v5501 = vpop.permute.xlu0 %5500
        %5502 = vrot.lane.b32.xlu0 %v5400, 96
        %v5503 = vpop.permute.xlu0 %5502
        %5504 = vrot.lane.b32.xlu0 %v5401, 96
        %v5505 = vpop.permute.xlu0 %5504
        %5506 = vrot.lane.b32.xlu0 %v5402, 96
        %v5507 = vpop.permute.xlu0 %5506
        %5508 = vrot.lane.b32.xlu0 %v5403, 96
        %v5509 = vpop.permute.xlu0 %5508
        %5510 = vrot.lane.b32.xlu0 %v5404, 96
        %v5511 = vpop.permute.xlu0 %5510
        %5512 = vrot.lane.b32.xlu0 %v5405, 96
        %v5513 = vpop.permute.xlu0 %5512
        %5514 = vrot.lane.b32.xlu0 %v5406, 96
        %v5515 = vpop.permute.xlu0 %5514
        %5516 = vrot.lane.b32.xlu0 %v5407, 96
        %v5517 = vpop.permute.xlu0 %5516
        %5518 = vrot.lane.b32.xlu0 %v5408, 96
        %v5519 = vpop.permute.xlu0 %5518
        %5520 = vrot.lane.b32.xlu0 %v5409, 96
        %v5521 = vpop.permute.xlu0 %5520
        %5522 = vrot.lane.b32.xlu0 %v5410, 96
        %v5523 = vpop.permute.xlu0 %5522
        %5524 = vrot.lane.b32.xlu0 %v5411, 96
        %v5525 = vpop.permute.xlu0 %5524
        %5526 = vrot.lane.b32.xlu0 %v5412, 96
        %v5527 = vpop.permute.xlu0 %5526
        %5528 = vrot.lane.b32.xlu0 %v5413, 96
        %v5529 = vpop.permute.xlu0 %5528
        %5530 = vrot.lane.b32.xlu0 %v5414, 96
        %v5531 = vpop.permute.xlu0 %5530
        %vm5532 = vcmask 785408
        %v5533 = vsel %vm5532, %v5501, %v5503
        %v5534 = vsel %vm5532, %v5503, %v5505
        %v5535 = vsel %vm5532, %v5505, %v5507
        %v5536 = vsel %vm5532, %v5509, %v5511
        %v5537 = vsel %vm5532, %v5511, %v5513
        %v5538 = vsel %vm5532, %v5513, %v5515
        %v5539 = vsel %vm5532, %v5517, %v5519
        %v5540 = vsel %vm5532, %v5519, %v5521
        %v5541 = vsel %vm5532, %v5521, %v5523
        %v5542 = vsel %vm5532, %v5525, %v5527
        %v5543 = vsel %vm5532, %v5527, %v5529
        %v5544 = vsel %vm5532, %v5529, %v5531
        %v5565 = vsel %vm5532, %v5507, %v5501
        %v5566 = vsel %vm5532, %v5515, %v5509
        %v5567 = vsel %vm5532, %v5523, %v5517
        %v5568 = vsel %vm5532, %v5531, %v5525
        %5569 = vrot.lane.b32.xlu0 %v5399, 80
        %v5570 = vpop.permute.xlu0 %5569
        %5571 = vrot.lane.b32.xlu0 %v5400, 80
        %v5572 = vpop.permute.xlu0 %5571
        %5573 = vrot.lane.b32.xlu0 %v5401, 80
        %v5574 = vpop.permute.xlu0 %5573
        %5575 = vrot.lane.b32.xlu0 %v5402, 80
        %v5576 = vpop.permute.xlu0 %5575
        %5577 = vrot.lane.b32.xlu0 %v5403, 80
        %v5578 = vpop.permute.xlu0 %5577
        %5579 = vrot.lane.b32.xlu0 %v5404, 80
        %v5580 = vpop.permute.xlu0 %5579
        %5581 = vrot.lane.b32.xlu0 %v5405, 80
        %v5582 = vpop.permute.xlu0 %5581
        %5583 = vrot.lane.b32.xlu0 %v5406, 80
        %v5584 = vpop.permute.xlu0 %5583
        %5585 = vrot.lane.b32.xlu0 %v5407, 80
        %v5586 = vpop.permute.xlu0 %5585
        %5587 = vrot.lane.b32.xlu0 %v5408, 80
        %v5588 = vpop.permute.xlu0 %5587
        %5589 = vrot.lane.b32.xlu0 %v5409, 80
        %v5590 = vpop.permute.xlu0 %5589
        %5591 = vrot.lane.b32.xlu0 %v5410, 80
        %v5592 = vpop.permute.xlu0 %5591
        %5593 = vrot.lane.b32.xlu0 %v5411, 80
        %v5594 = vpop.permute.xlu0 %5593
        %5595 = vrot.lane.b32.xlu0 %v5412, 80
        %v5596 = vpop.permute.xlu0 %5595
        %5597 = vrot.lane.b32.xlu0 %v5413, 80
        %v5598 = vpop.permute.xlu0 %5597
        %5599 = vrot.lane.b32.xlu0 %v5414, 80
        %v5600 = vpop.permute.xlu0 %5599
        %vm5601 = vcmask 654336
        %v5602 = vsel %vm5601, %v5570, %v5572
        %v5603 = vsel %vm5601, %v5572, %v5574
        %v5604 = vsel %vm5601, %v5574, %v5576
        %v5605 = vsel %vm5601, %v5578, %v5580
        %v5606 = vsel %vm5601, %v5580, %v5582
        %v5607 = vsel %vm5601, %v5582, %v5584
        %v5608 = vsel %vm5601, %v5586, %v5588
        %v5609 = vsel %vm5601, %v5588, %v5590
        %v5610 = vsel %vm5601, %v5590, %v5592
        %v5611 = vsel %vm5601, %v5594, %v5596
        %v5612 = vsel %vm5601, %v5596, %v5598
        %v5613 = vsel %vm5601, %v5598, %v5600
        %v5634 = vsel %vm5601, %v5576, %v5570
        %v5635 = vsel %vm5601, %v5584, %v5578
        %v5636 = vsel %vm5601, %v5592, %v5586
        %v5637 = vsel %vm5601, %v5600, %v5594
        %5638 = vxpose.xlu0.b32.start [1/16] %v5399, 128
        %5639 = vxpose.xlu0.b32.cont [2/16] %v5403, 128
        %5640 = vxpose.xlu0.b32.cont [3/16] %v5407, 128
        %5641 = vxpose.xlu0.b32.cont [4/16] %v5411, 128
        %5642 = vxpose.xlu0.b32.cont [5/16] %v5464, 128
        %5643 = vxpose.xlu0.b32.cont [6/16] %v5467, 128
        %5644 = vxpose.xlu0.b32.cont [7/16] %v5470, 128
        %5645 = vxpose.xlu0.b32.cont [8/16] %v5473, 128
        %5646 = vxpose.xlu0.b32.cont [9/16] %v5533, 128
        %5647 = vxpose.xlu0.b32.cont [10/16] %v5536, 128
        %5648 = vxpose.xlu0.b32.cont [11/16] %v5539, 128
        %5649 = vxpose.xlu0.b32.cont [12/16] %v5542, 128
        %5650 = vxpose.xlu0.b32.cont [13/16] %v5602, 128
        %5651 = vxpose.xlu0.b32.cont [14/16] %v5605, 128
        %5652 = vxpose.xlu0.b32.cont [15/16] %v5608, 128
        %5653 = vxpose.xlu0.b32.end [16/16] %v5611, 128
        %v5654 = vpop.trf.xlu0
        %v5655 = vpop.trf.xlu0
        %v5656 = vpop.trf.xlu0
        %v5657 = vpop.trf.xlu0
        %v5658 = vpop.trf.xlu0
        %v5659 = vpop.trf.xlu0
        %v5660 = vpop.trf.xlu0
        %v5661 = vpop.trf.xlu0
        %v5662 = vpop.trf.xlu0
        %v5663 = vpop.trf.xlu0
        %v5664 = vpop.trf.xlu0
        %v5665 = vpop.trf.xlu0
        %v5666 = vpop.trf.xlu0
        %v5667 = vpop.trf.xlu0
        %v5668 = vpop.trf.xlu0
        %v5669 = vpop.trf.xlu0
        %5670 = vxpose.xlu0.b32.start [1/16] %v5400, 128
        %5671 = vxpose.xlu0.b32.cont [2/16] %v5404, 128
        %5672 = vxpose.xlu0.b32.cont [3/16] %v5408, 128
        %5673 = vxpose.xlu0.b32.cont [4/16] %v5412, 128
        %5674 = vxpose.xlu0.b32.cont [5/16] %v5465, 128
        %5675 = vxpose.xlu0.b32.cont [6/16] %v5468, 128
        %5676 = vxpose.xlu0.b32.cont [7/16] %v5471, 128
        %5677 = vxpose.xlu0.b32.cont [8/16] %v5474, 128
        %5678 = vxpose.xlu0.b32.cont [9/16] %v5534, 128
        %5679 = vxpose.xlu0.b32.cont [10/16] %v5537, 128
        %5680 = vxpose.xlu0.b32.cont [11/16] %v5540, 128
        %5681 = vxpose.xlu0.b32.cont [12/16] %v5543, 128
        %5682 = vxpose.xlu0.b32.cont [13/16] %v5603, 128
        %5683 = vxpose.xlu0.b32.cont [14/16] %v5606, 128
        %5684 = vxpose.xlu0.b32.cont [15/16] %v5609, 128
        %5685 = vxpose.xlu0.b32.end [16/16] %v5612, 128
        %v5686 = vpop.trf.xlu0
        %v5687 = vpop.trf.xlu0
        %v5688 = vpop.trf.xlu0
        %v5689 = vpop.trf.xlu0
        %v5690 = vpop.trf.xlu0
        %v5691 = vpop.trf.xlu0
        %v5692 = vpop.trf.xlu0
        %v5693 = vpop.trf.xlu0
        %v5694 = vpop.trf.xlu0
        %v5695 = vpop.trf.xlu0
        %v5696 = vpop.trf.xlu0
        %v5697 = vpop.trf.xlu0
        %v5698 = vpop.trf.xlu0
        %v5699 = vpop.trf.xlu0
        %v5700 = vpop.trf.xlu0
        %v5701 = vpop.trf.xlu0
        %5702 = vxpose.xlu0.b32.start [1/16] %v5401, 128
        %5703 = vxpose.xlu0.b32.cont [2/16] %v5405, 128
        %5704 = vxpose.xlu0.b32.cont [3/16] %v5409, 128
        %5705 = vxpose.xlu0.b32.cont [4/16] %v5413, 128
        %5706 = vxpose.xlu0.b32.cont [5/16] %v5466, 128
        %5707 = vxpose.xlu0.b32.cont [6/16] %v5469, 128
        %5708 = vxpose.xlu0.b32.cont [7/16] %v5472, 128
        %5709 = vxpose.xlu0.b32.cont [8/16] %v5475, 128
        %5710 = vxpose.xlu0.b32.cont [9/16] %v5535, 128
        %5711 = vxpose.xlu0.b32.cont [10/16] %v5538, 128
        %5712 = vxpose.xlu0.b32.cont [11/16] %v5541, 128
        %5713 = vxpose.xlu0.b32.cont [12/16] %v5544, 128
        %5714 = vxpose.xlu0.b32.cont [13/16] %v5604, 128
        %5715 = vxpose.xlu0.b32.cont [14/16] %v5607, 128
        %5716 = vxpose.xlu0.b32.cont [15/16] %v5610, 128
        %5717 = vxpose.xlu0.b32.end [16/16] %v5613, 128
        %v5718 = vpop.trf.xlu0
        %v5719 = vpop.trf.xlu0
        %v5720 = vpop.trf.xlu0
        %v5721 = vpop.trf.xlu0
        %v5722 = vpop.trf.xlu0
        %v5723 = vpop.trf.xlu0
        %v5724 = vpop.trf.xlu0
        %v5725 = vpop.trf.xlu0
        %v5726 = vpop.trf.xlu0
        %v5727 = vpop.trf.xlu0
        %v5728 = vpop.trf.xlu0
        %v5729 = vpop.trf.xlu0
        %v5730 = vpop.trf.xlu0
        %v5731 = vpop.trf.xlu0
        %v5732 = vpop.trf.xlu0
        %v5733 = vpop.trf.xlu0
        %5734 = vxpose.xlu0.b32.start [1/16] %v5402, 128
        %5735 = vxpose.xlu0.b32.cont [2/16] %v5406, 128
        %5736 = vxpose.xlu0.b32.cont [3/16] %v5410, 128
        %5737 = vxpose.xlu0.b32.cont [4/16] %v5414, 128
        %5738 = vxpose.xlu0.b32.cont [5/16] %v5496, 128
        %5739 = vxpose.xlu0.b32.cont [6/16] %v5497, 128
        %5740 = vxpose.xlu0.b32.cont [7/16] %v5498, 128
        %5741 = vxpose.xlu0.b32.cont [8/16] %v5499, 128
        %5742 = vxpose.xlu0.b32.cont [9/16] %v5565, 128
        %5743 = vxpose.xlu0.b32.cont [10/16] %v5566, 128
        %5744 = vxpose.xlu0.b32.cont [11/16] %v5567, 128
        %5745 = vxpose.xlu0.b32.cont [12/16] %v5568, 128
        %5746 = vxpose.xlu0.b32.cont [13/16] %v5634, 128
        %5747 = vxpose.xlu0.b32.cont [14/16] %v5635, 128
        %5748 = vxpose.xlu0.b32.cont [15/16] %v5636, 128
        %5749 = vxpose.xlu0.b32.end [16/16] %v5637, 128
        %v5750 = vpop.trf.xlu0
        %v5751 = vpop.trf.xlu0
        %v5752 = vpop.trf.xlu0
        %v5753 = vpop.trf.xlu0
        %v5754 = vpop.trf.xlu0
        %v5755 = vpop.trf.xlu0
        %v5756 = vpop.trf.xlu0
        %v5757 = vpop.trf.xlu0
        %v5758 = vpop.trf.xlu0
        %v5759 = vpop.trf.xlu0
        %v5760 = vpop.trf.xlu0
        %v5761 = vpop.trf.xlu0
        %v5762 = vpop.trf.xlu0
        %v5763 = vpop.trf.xlu0
        %v5764 = vpop.trf.xlu0
        %v5765 = vpop.trf.xlu0
        %5766 = vst [vmem:[#allocation2] sm:$0xff] %v5654
        %5767 = vst [vmem:[#allocation2 + $0x8] sm:$0xff] %v5655
        %5768 = vst [vmem:[#allocation2 + $0x10] sm:$0xff] %v5656
        %5769 = vst [vmem:[#allocation2 + $0x18] sm:$0xff] %v5657
        %5770 = vst [vmem:[#allocation2 + $0x20] sm:$0xff] %v5658
        %5771 = vst [vmem:[#allocation2 + $0x28] sm:$0xff] %v5659
        %5772 = vst [vmem:[#allocation2 + $0x30] sm:$0xff] %v5660
        %5773 = vst [vmem:[#allocation2 + $0x38] sm:$0xff] %v5661
        %5774 = vst [vmem:[#allocation2 + $0x40] sm:$0xff] %v5662
        %5775 = vst [vmem:[#allocation2 + $0x48] sm:$0xff] %v5663
        %5776 = vst [vmem:[#allocation2 + $0x50] sm:$0xff] %v5664
        %5777 = vst [vmem:[#allocation2 + $0x58] sm:$0xff] %v5665
        %5778 = vst [vmem:[#allocation2 + $0x60] sm:$0xff] %v5666
        %5779 = vst [vmem:[#allocation2 + $0x68] sm:$0xff] %v5667
        %5780 = vst [vmem:[#allocation2 + $0x70] sm:$0xff] %v5668
        %5781 = vst [vmem:[#allocation2 + $0x78] sm:$0xff] %v5669
        %5782 = vst [vmem:[#allocation2 + $0x80] sm:$0xff] %v5686
        %5783 = vst [vmem:[#allocation2 + $0x88] sm:$0xff] %v5687
        %5784 = vst [vmem:[#allocation2 + $0x90] sm:$0xff] %v5688
        %5785 = vst [vmem:[#allocation2 + $0x98] sm:$0xff] %v5689
        %5786 = vst [vmem:[#allocation2 + $0xa0] sm:$0xff] %v5690
        %5787 = vst [vmem:[#allocation2 + $0xa8] sm:$0xff] %v5691
        %5788 = vst [vmem:[#allocation2 + $0xb0] sm:$0xff] %v5692
        %5789 = vst [vmem:[#allocation2 + $0xb8] sm:$0xff] %v5693
        %5790 = vst [vmem:[#allocation2 + $0xc0] sm:$0xff] %v5694
        %5791 = vst [vmem:[#allocation2 + $0xc8] sm:$0xff] %v5695
        %5792 = vst [vmem:[#allocation2 + $0xd0] sm:$0xff] %v5696
        %5793 = vst [vmem:[#allocation2 + $0xd8] sm:$0xff] %v5697
        %5794 = vst [vmem:[#allocation2 + $0xe0] sm:$0xff] %v5698
        %5795 = vst [vmem:[#allocation2 + $0xe8] sm:$0xff] %v5699
        %5796 = vst [vmem:[#allocation2 + $0xf0] sm:$0xff] %v5700
        %5797 = vst [vmem:[#allocation2 + $0xf8] sm:$0xff] %v5701
        %5798 = vst [vmem:[#allocation2 + $0x100] sm:$0xff] %v5718
        %5799 = vst [vmem:[#allocation2 + $0x108] sm:$0xff] %v5719
        %5800 = vst [vmem:[#allocation2 + $0x110] sm:$0xff] %v5720
        %5801 = vst [vmem:[#allocation2 + $0x118] sm:$0xff] %v5721
        %5802 = vst [vmem:[#allocation2 + $0x120] sm:$0xff] %v5722
        %5803 = vst [vmem:[#allocation2 + $0x128] sm:$0xff] %v5723
        %5804 = vst [vmem:[#allocation2 + $0x130] sm:$0xff] %v5724
        %5805 = vst [vmem:[#allocation2 + $0x138] sm:$0xff] %v5725
        %5806 = vst [vmem:[#allocation2 + $0x140] sm:$0xff] %v5726
        %5807 = vst [vmem:[#allocation2 + $0x148] sm:$0xff] %v5727
        %5808 = vst [vmem:[#allocation2 + $0x150] sm:$0xff] %v5728
        %5809 = vst [vmem:[#allocation2 + $0x158] sm:$0xff] %v5729
        %5810 = vst [vmem:[#allocation2 + $0x160] sm:$0xff] %v5730
        %5811 = vst [vmem:[#allocation2 + $0x168] sm:$0xff] %v5731
        %5812 = vst [vmem:[#allocation2 + $0x170] sm:$0xff] %v5732
        %5813 = vst [vmem:[#allocation2 + $0x178] sm:$0xff] %v5733
        %5814 = vst [vmem:[#allocation2 + $0x180] sm:$0xff] %v5750
        %5815 = vst [vmem:[#allocation2 + $0x188] sm:$0xff] %v5751
        %5816 = vst [vmem:[#allocation2 + $0x190] sm:$0xff] %v5752
        %5817 = vst [vmem:[#allocation2 + $0x198] sm:$0xff] %v5753
        %5818 = vst [vmem:[#allocation2 + $0x1a0] sm:$0xff] %v5754
        %5819 = vst [vmem:[#allocation2 + $0x1a8] sm:$0xff] %v5755
        %5820 = vst [vmem:[#allocation2 + $0x1b0] sm:$0xff] %v5756
        %5821 = vst [vmem:[#allocation2 + $0x1b8] sm:$0xff] %v5757
        %5822 = vst [vmem:[#allocation2 + $0x1c0] sm:$0xff] %v5758
        %5823 = vst [vmem:[#allocation2 + $0x1c8] sm:$0xff] %v5759
        %5824 = vst [vmem:[#allocation2 + $0x1d0] sm:$0xff] %v5760
        %5825 = vst [vmem:[#allocation2 + $0x1d8] sm:$0xff] %v5761
        %5826 = vst [vmem:[#allocation2 + $0x1e0] sm:$0xff] %v5762
        %5827 = vst [vmem:[#allocation2 + $0x1e8] sm:$0xff] %v5763
        %5828 = vst [vmem:[#allocation2 + $0x1f0] sm:$0xff] %v5764
        %5829 = vst [vmem:[#allocation2 + $0x1f8] sm:$0xff] %v5765
        %v5830 = vld [vmem:[#allocation2] ss:$64 sm:$0x1]
        %v5831 = vld [vmem:[#allocation2] ss:$64 sm:$0x2]
        %v5832 = vor.u32 %v5830, %v5831
        %v5833 = vld [vmem:[#allocation2] ss:$64 sm:$0x4]
        %v5834 = vor.u32 %v5832, %v5833
        %v5835 = vld [vmem:[#allocation2] ss:$64 sm:$0x8]
        %v5836 = vor.u32 %v5834, %v5835
        %v5837 = vld [vmem:[#allocation2] ss:$64 sm:$0x10]
        %v5838 = vor.u32 %v5836, %v5837
        %v5839 = vld [vmem:[#allocation2] ss:$64 sm:$0x20]
        %v5840 = vor.u32 %v5838, %v5839
        %v5841 = vld [vmem:[#allocation2] ss:$64 sm:$0x40]
        %v5842 = vor.u32 %v5840, %v5841
        %v5843 = vld [vmem:[#allocation2] ss:$64 sm:$0x80]
        %v5844 = vor.u32 %v5842, %v5843
        %v5845 = vld [vmem:[%s9] sm:$0xff]
        %v5846 = vld [vmem:[%s9 + $0x8] sm:$0xff]
        %v5847 = vld [vmem:[%s9 + $0x10] sm:$0xff]
        %v5848 = vld [vmem:[%s9 + $0x18] sm:$0xff]
        %v5849 = vld [vmem:[%s9 + $0x20] sm:$0xff]
        %v5850 = vld [vmem:[%s9 + $0x28] sm:$0xff]
        %v5851 = vld [vmem:[%s9 + $0x30] sm:$0xff]
        %v5852 = vld [vmem:[%s9 + $0x38] sm:$0xff]
        %v5853 = vld [vmem:[%s9 + $0x40] sm:$0xff]
        %v5854 = vld [vmem:[%s9 + $0x48] sm:$0xff]
        %v5855 = vld [vmem:[%s9 + $0x50] sm:$0xff]
        %v5856 = vld [vmem:[%s9 + $0x58] sm:$0xff]
        %v5857 = vld [vmem:[%s9 + $0x60] sm:$0xff]
        %v5858 = vld [vmem:[%s9 + $0x68] sm:$0xff]
        %v5859 = vld [vmem:[%s9 + $0x70] sm:$0xff]
        %v5860 = vld [vmem:[%s9 + $0x78] sm:$0xff]
        %v5861 = vld [vmem:[%s10] sm:$0x1]
        %v5863 = vlaneseq
        %v5864 = vshrl.u32 %v5863, 7
        %v5865 = vsub.s32 0, %v5864
        %v5866 = vrot.slane %v5861, %v5865
        %5868 = vmatprep.subr.mxu0 0.0
        %5869 = vmatpush1.msra.mxu0 %v5845
        %5870 = vmatprep.subr.mxu0 0.0
        %5871 = vmatpush1.msra.mxu0 %v5846
        %5872 = vmatprep.subr.mxu0 0.0
        %5873 = vmatpush1.msra.mxu0 %v5847
        %5874 = vmatprep.subr.mxu0 0.0
        %5875 = vmatpush1.msra.mxu0 %v5848
        %5876 = vmatprep.subr.mxu0 0.0
        %5877 = vmatpush1.msra.mxu0 %v5849
        %5878 = vmatprep.subr.mxu0 0.0
        %5879 = vmatpush1.msra.mxu0 %v5850
        %5880 = vmatprep.subr.mxu0 0.0
        %5881 = vmatpush1.msra.mxu0 %v5851
        %5882 = vmatprep.subr.mxu0 0.0
        %5883 = vmatpush1.msra.mxu0 %v5852
        %5884 = vmatprep.subr.mxu0 0.0
        %5885 = vmatpush1.msra.mxu0 %v5853
        %5886 = vmatprep.subr.mxu0 0.0
        %5887 = vmatpush1.msra.mxu0 %v5854
        %5888 = vmatprep.subr.mxu0 0.0
        %5889 = vmatpush1.msra.mxu0 %v5855
        %5890 = vmatprep.subr.mxu0 0.0
        %5891 = vmatpush1.msra.mxu0 %v5856
        %5892 = vmatprep.subr.mxu0 0.0
        %5893 = vmatpush1.msra.mxu0 %v5857
        %5894 = vmatprep.subr.mxu0 0.0
        %5895 = vmatpush1.msra.mxu0 %v5858
        %5896 = vmatprep.subr.mxu0 0.0
        %5897 = vmatpush1.msra.mxu0 %v5859
        %5898 = vmatprep.subr.mxu0 0.0
        %5899 = vmatpush1.msra.mxu0 %v5860
        %5900 = vmatprep.subr.mxu0 0.0
        %5901 = vmatpush1.msra.mxu0 0.0
        %5902 = vmatprep.subr.mxu0 0.0
        %5903 = vmatpush1.msra.mxu0 0.0
        %5904 = vmatprep.subr.mxu0 0.0
        %5905 = vmatpush1.msra.mxu0 0.0
        %5906 = vmatprep.subr.mxu0 0.0
        %5907 = vmatpush1.msra.mxu0 0.0
        %5908 = vmatprep.subr.mxu0 0.0
        %5909 = vmatpush1.msra.mxu0 0.0
        %5910 = vmatprep.subr.mxu0 0.0
        %5911 = vmatpush1.msra.mxu0 0.0
        %5912 = vmatprep.subr.mxu0 0.0
        %5913 = vmatpush1.msra.mxu0 0.0
        %5914 = vmatprep.subr.mxu0 0.0
        %5915 = vmatpush1.msra.mxu0 0.0
        %5916 = vmatprep.subr.mxu0 0.0
        %5917 = vmatpush1.msra.mxu0 0.0
        %5918 = vmatprep.subr.mxu0 0.0
        %5919 = vmatpush1.msra.mxu0 0.0
        %5920 = vmatprep.subr.mxu0 0.0
        %5921 = vmatpush1.msra.mxu0 0.0
        %5922 = vmatprep.subr.mxu0 0.0
        %5923 = vmatpush1.msra.mxu0 0.0
        %5924 = vmatprep.subr.mxu0 0.0
        %5925 = vmatpush1.msra.mxu0 0.0
        %5926 = vmatprep.subr.mxu0 0.0
        %5927 = vmatpush1.msra.mxu0 0.0
        %5928 = vmatprep.subr.mxu0 0.0
        %5929 = vmatpush1.msra.mxu0 0.0
        %5930 = vmatprep.subr.mxu0 0.0
        %5931 = vmatpush1.msra.mxu0 0.0
        %5932 = vmatprep.mubr.f32.mxu0 0.0
        %5933 = vmatmul.mubr.f32.gmra.mrb[0].mxu0 %v5844
        %v5934 = vpop.f32.mrb[0].mxu0
        %v5935 = vadd.f32 %v5866, %v5934
        %v5936 = vpop.f32.mrb[0].mxu0
        %5937 = vdwg.mxu0
        %vm5938 = vcmask 261120
        %5939 = vst.msk [vmem:[%s380] sm:$0xff] %vm5938, %v5935
        %s5940 = sand.u32 %s269, 1
        %s5941 = scalar_lea.sflag [#allocation4], %s5940
        %s5942 = sand.u32 %s269, 1
        %s5943 = smul.addr %s5942, 8
        %s5944 = scalar_lea.vmem [#allocation3], %s5943
        // Predicated region
        $region65: #{tpu_custom_call.1} parent=63 // pred_check
          %p5945 = pneg %p279
        $region66: #{tpu_custom_call.1} parent=63 // pred_check_branch
          %5947 = sbr.rel (%p5945) target = $region68
        $region67: #{tpu_custom_call.1} parent=63 // pred_region
          %s5949 = ssub.s32 128, 128
          %5950 = vsyncadd %s5941, %s5949
          %s5951 = smul.addr %s25, 128
          %s5952 = scalar_lea.hbm %s11, %s5951
          %s5954 = sshll.u32 %s5944, 4
          %s5955 = int_to_ptr.vmem [resolvable:$true] %s5954
          %5957 = dma.vmem_to_hbm [thread:$0]  %s5955, 128, %s5952, %s5941
        $region68: #{tpu_custom_call.1} parent=63 // pred_fallthru
          _
      $region64: #{tpu_custom_call.1} parent=5 // pred_fallthru
        _
      %p5958 = scmp.le.s32.totalorder 2, %s20
      // Predicated region
      $region69: #{tpu_custom_call.1} parent=5 // pred_check
        %p5959 = pneg %p5958
      $region70: #{tpu_custom_call.1} parent=5 // pred_check_branch
        %5961 = sbr.rel (%p5959) target = $region72
      $region71: #{tpu_custom_call.1} parent=5 // pred_region
        %s5962 = ssub.s32 %s20, 2
        // Predicated region
        $region73: #{tpu_custom_call.1} parent=71 // pred_check
          %p5963 = pneg %p285
        $region74: #{tpu_custom_call.1} parent=71 // pred_check_branch
          %5965 = sbr.rel (%p5963) target = $region76
        $region75: #{tpu_custom_call.1} parent=71 // pred_region
          %s5966 = sand.u32 %s270, 1
          %s5967 = scalar_lea.sflag [#allocation4], %s5966
          %s5968 = sand.u32 %s270, 1
          %s5969 = smul.addr %s5968, 8
          %s5970 = scalar_lea.vmem [#allocation3], %s5969
          %5971 = dma.done %s5967, 128
        $region76: #{tpu_custom_call.1} parent=71 // pred_fallthru
          _
      $region72: #{tpu_custom_call.1} parent=5 // pred_fallthru
        _
    $region6: #{tpu_custom_call.1} parent=1 // loop_footer
      %s24 = sadd.s32 1, %s20
    $region7: #{tpu_custom_call.1} parent=1 // loop_footer_branch
      %19 = sbr.rel target = $region3
    $region8: #{tpu_custom_call.1} parent=1 // loop_exit
      _
    %5972 = vsyncpa [#allocation4], 1
    %s5973 = scalar_lea.sflag [#allocation4], 1
    %5974 = vsyncpa %s5973, 1

</llo_original>
